<compile_context>
chip_gen: v7x
topology: tpu7x:2x2x1
jax: 0.10.0
libtpu: 0.0.40
codegen_flags: <defaults>
</compile_context>

<pallas_src>
import functools

import numpy as np
import jax
import jax.numpy as jnp
from jax import lax
from jax.experimental import pallas as pl
from jax.experimental.pallas import tpu as pltpu

_BN_EPS = 1e-5
_TAPS = tuple((ky, kx) for ky in range(3) for kx in range(3))


# ---------------------------------------------------------------------------
# VMEM budgeting / row-tile selection (trace-time, static)
# ---------------------------------------------------------------------------

def _vmem_capacity_bytes():
    try:
        info = pltpu.get_tpu_info()
        cap = getattr(info, "vmem_capacity_bytes", None)
        if cap:
            return int(min(int(cap), 128 * 1024 * 1024))
    except Exception:
        pass
    return 128 * 1024 * 1024


def _tile_vmem_bytes(th, wu, cin, ch, cout, act_bytes, out_bytes):
    """Rough per-step VMEM estimate for row tile `th` (double-buffered blocks)."""
    wp = wu + 2
    hw = th * wu
    blocks = 2 * ((th + 4) * wp * cin * act_bytes        # halo'd input tile
                  + hw * cin * act_bytes                  # shortcut tile
                  + hw * cout * out_bytes)                # output tile
    weights = 2 * ((9 * cin * ch + 9 * ch * cout + cin * cout) * act_bytes
                   + (3 * ch + 2 * cout) * 4)
    scratch = (th + 2) * wp * ch * act_bytes              # padded h1 tile (bf16)
    live = ((th + 2) * wu * (ch + max(cin, ch)) + hw * cout) * 4  # f32 accum/taps
    return blocks + weights + scratch + live


def _choose_row_tile(hu, wu, cin, ch, cout, act_bytes, out_bytes, budget, row_tile):
    divisors = [d for d in range(hu, 0, -1) if hu % d == 0]
    # (8,128) rule: a partial second-minor block dim (TH*Wu) must be 8-aligned.
    aligned = [d for d in divisors if d == hu or (d * wu) % 8 == 0] or [hu]
    if row_tile is not None:
        capped = [d for d in aligned if d <= row_tile]
        if capped:
            aligned = capped
    for d in aligned:
        if _tile_vmem_bytes(d, wu, cin, ch, cout, act_bytes, out_bytes) <= budget:
            return d
    return aligned[-1]


# ---------------------------------------------------------------------------
# Fused Pallas kernel: conv1 -> BN2 -> ReLU -> conv2 -> (+ 1x1 shortcut) -> add
# ---------------------------------------------------------------------------

def _gblock_kernel(x_ref, sc_ref, w1_ref, b1_ref, s2_ref, t2_ref,
                   w2_ref, b2_ref, wsc_ref, bsc_ref,
                   o_ref, pad2_ref, *, learnable_sc):
    th2, wp, ch = pad2_ref.shape          # (TH+2, Wu+2, Ch)
    th = th2 - 2
    wu = wp - 2
    cin = x_ref.shape[-1]
    cout = w2_ref.shape[1]
    cdt = pad2_ref.dtype
    r = pl.program_id(1)

    b1v, s2v, t2v = b1_ref[...], s2_ref[...], t2_ref[...]
    b2v = b2_ref[...]

    # ---- conv1 (3x3, pad 1) over TH+2 rows (1-row halo each side for conv2):
    # 9 per-tap bf16 MXU matmuls accumulated in f32 registers.
    h1 = jnp.zeros((th2 * wu, ch), jnp.float32)
    for t, (ky, kx) in enumerate(_TAPS):
        tap = x_ref[0, 0, ky:ky + th2, kx:kx + wu, :].reshape(th2 * wu, cin)
        h1 = h1 + jnp.dot(tap, w1_ref[t * cin:(t + 1) * cin, :],
                          preferred_element_type=jnp.float32)
    # conv1 bias, then BN2 (inference affine) + ReLU fused on the VPU.
    h1 = jnp.maximum((h1 + b1v) * s2v + t2v, 0.0)

    # ---- stage relu(bn2(h1)) into the bf16 VMEM halo tile (never hits HBM).
    # Only the two halo column strips are re-zeroed per step (image left/right
    # edge padding); the interior is overwritten every step.
    pad2_ref[:, 0:1, :] = jnp.zeros((th2, 1, ch), cdt)
    pad2_ref[:, wu + 1:wu + 2, :] = jnp.zeros((th2, 1, ch), cdt)
    pad2_ref[:, 1:wu + 1, :] = h1.reshape(th2, wu, ch).astype(cdt)

    # At the image top/bottom the h1 halo row is conv2's zero padding,
    # not conv1 output computed from out-of-image rows.
    @pl.when(r == 0)
    def _():
        pad2_ref[0:1, :, :] = jnp.zeros((1, wp, ch), cdt)

    @pl.when(r == pl.num_programs(1) - 1)
    def _():
        pad2_ref[th2 - 1:th2, :, :] = jnp.zeros((1, wp, ch), cdt)

    # ---- conv2 (3x3, pad 1) over TH output rows, same per-tap accumulation.
    h2 = jnp.zeros((th * wu, cout), jnp.float32)
    for t, (ky, kx) in enumerate(_TAPS):
        tap = pad2_ref[ky:ky + th, kx:kx + wu, :].reshape(th * wu, ch)
        h2 = h2 + jnp.dot(tap, w2_ref[t * ch:(t + 1) * ch, :],
                          preferred_element_type=jnp.float32)
    h2 = h2 + b2v

    # ---- shortcut (1x1 conv if learnable, identity otherwise) + residual add.
    s = sc_ref[0]
    if learnable_sc:
        s = jnp.dot(s, wsc_ref[...],
                    preferred_element_type=jnp.float32) + bsc_ref[...]
    else:
        s = s.astype(jnp.float32)
    o_ref[0] = (h2 + s).astype(o_ref.dtype)


def _gblock_pallas_call(x_tiles, s_flat, w1, b1, s2, t2, w2, b2, wsc, bsc,
                        *, th, learnable_sc, compute_dtype, out_dtype,
                        vmem_limit_bytes):
    B, nR, _, wp, cin = x_tiles.shape
    wu = wp - 2
    ch = w1.shape[1]
    cout = w2.shape[1]
    hw_tile = th * wu
    hu = nR * th

    kernel = functools.partial(_gblock_kernel, learnable_sc=learnable_sc)

    flops = 2 * B * ((hu + 2 * nR) * wu * 9 * cin * ch
                     + hu * wu * 9 * ch * cout
                     + (hu * wu * cin * cout if learnable_sc else 0))
    bytes_accessed = int(
        x_tiles.size * np.dtype(x_tiles.dtype).itemsize
        + s_flat.size * np.dtype(s_flat.dtype).itemsize
        + (w1.size + w2.size + wsc.size) * np.dtype(w1.dtype).itemsize
        + B * hu * wu * cout * np.dtype(out_dtype).itemsize)

    grid_spec = pltpu.PrefetchScalarGridSpec(
        num_scalar_prefetch=0,
        grid=(B, nR),
        in_specs=[
            pl.BlockSpec((1, 1, th + 4, wp, cin), lambda b, r: (b, r, 0, 0, 0)),
            pl.BlockSpec((1, hw_tile, cin), lambda b, r: (b, r, 0)),
            pl.BlockSpec((9 * cin, ch), lambda b, r: (0, 0)),
            pl.BlockSpec((1, ch), lambda b, r: (0, 0)),
            pl.BlockSpec((1, ch), lambda b, r: (0, 0)),
            pl.BlockSpec((1, ch), lambda b, r: (0, 0)),
            pl.BlockSpec((9 * ch, cout), lambda b, r: (0, 0)),
            pl.BlockSpec((1, cout), lambda b, r: (0, 0)),
            pl.BlockSpec((cin, cout), lambda b, r: (0, 0)),
            pl.BlockSpec((1, cout), lambda b, r: (0, 0)),
        ],
        out_specs=pl.BlockSpec((1, hw_tile, cout), lambda b, r: (b, r, 0)),
        scratch_shapes=[pltpu.VMEM((th + 2, wp, ch), compute_dtype)],
    )
    return pl.pallas_call(
        kernel,
        out_shape=jax.ShapeDtypeStruct((B, hu * wu, cout), out_dtype),
        grid_spec=grid_spec,
        compiler_params=pltpu.CompilerParams(
            dimension_semantics=("parallel", "parallel"),
            vmem_limit_bytes=int(vmem_limit_bytes)),
        cost_estimate=pl.CostEstimate(flops=int(flops), transcendentals=0,
                                      bytes_accessed=bytes_accessed),
    )(x_tiles, s_flat, w1, b1, s2, t2, w2, b2, wsc, bsc)


# ---------------------------------------------------------------------------
# Plain-JAX glue (layout, BN1+ReLU, exact PyTorch bilinear x2 upsample)
# ---------------------------------------------------------------------------

def _bilinear_up2_matrix(n):
    """(2n, n) matrix matching F.interpolate(scale=2, bilinear, align_corners=False)."""
    m = np.zeros((2 * n, n), np.float32)
    for o in range(2 * n):
        src = (o + 0.5) * 0.5 - 0.5
        src = max(src, 0.0)
        i0 = int(np.floor(src))
        frac = src - i0
        i0 = min(i0, n - 1)
        i1 = min(i0 + 1, n - 1)
        m[o, i0] += 1.0 - frac
        m[o, i1] += frac
    return jnp.asarray(m)


def _bilinear_up2_nhwc(x):
    B, H, W, C = x.shape
    mh, mw = _bilinear_up2_matrix(H), _bilinear_up2_matrix(W)
    y = jnp.einsum('ph,bhwc->bpwc', mh, x, precision=lax.Precision.HIGHEST)
    return jnp.einsum('qw,bpwc->bpqc', mw, y, precision=lax.Precision.HIGHEST)


def _bilinear_up2_nchw(x):
    B, C, H, W = x.shape
    mh, mw = _bilinear_up2_matrix(H), _bilinear_up2_matrix(W)
    y = jnp.einsum('ph,bchw->bcpw', mh, x, precision=lax.Precision.HIGHEST)
    return jnp.einsum('qw,bcpw->bcpq', mw, y, precision=lax.Precision.HIGHEST)


def _spectral_normalize(w, key, n_iter=1, eps=1e-12):
    """PyTorch-style spectral norm (weight viewed as (out, -1)); deterministic u."""
    wm = w.reshape(w.shape[0], -1)
    u = jax.random.normal(key, (wm.shape[0],), dtype=w.dtype)
    u = u / (jnp.linalg.norm(u) + eps)
    v = wm.T @ u
    v = v / (jnp.linalg.norm(v) + eps)
    for _ in range(n_iter):
        u = wm @ v
        u = u / (jnp.linalg.norm(u) + eps)
        v = wm.T @ u
        v = v / (jnp.linalg.norm(v) + eps)
    sigma = u @ (wm @ v)
    return w / sigma


def init_gblock_params(key, in_channels, out_channels, hidden_channels=None,
                       upsample=False, spectral_norm=True):
    hidden = out_channels if hidden_channels is None else hidden_channels
    learnable_sc = (in_channels != out_channels) or upsample
    ks = jax.random.split(key, 17)

    def conv_init(kw, kb, cout, cin, k):
        fan_in = cin * k * k
        bound = 1.0 / np.sqrt(fan_in)
        w = jax.random.uniform(kw, (cout, cin, k, k), jnp.float32, -bound, bound)
        b = jax.random.uniform(kb, (cout,), jnp.float32, -bound, bound)
        return w, b

    def bn_init(kg, kb, km, kv, c):
        return (jax.random.uniform(kg, (c,), jnp.float32, 0.5, 1.5),
                0.1 * jax.random.normal(kb, (c,), jnp.float32),
                0.1 * jax.random.normal(km, (c,), jnp.float32),
                jax.random.uniform(kv, (c,), jnp.float32, 0.5, 1.5))

    w1, b1 = conv_init(ks[0], ks[1], hidden, in_channels, 3)
    w2, b2 = conv_init(ks[2], ks[3], out_channels, hidden, 3)
    if spectral_norm:
        w1 = _spectral_normalize(w1, ks[4])
        w2 = _spectral_normalize(w2, ks[5])
    g1, be1, m1, v1 = bn_init(ks[6], ks[7], ks[8], ks[9], in_channels)
    g2, be2, m2, v2 = bn_init(ks[10], ks[11], ks[12], ks[13], hidden)
    p = dict(w1=w1, b1=b1, w2=w2, b2=b2,
             bn1_gamma=g1, bn1_beta=be1, bn1_mean=m1, bn1_var=v1,
             bn2_gamma=g2, bn2_beta=be2, bn2_mean=m2, bn2_var=v2)
    if learnable_sc:
        wsc, bsc = conv_init(ks[14], ks[15], out_channels, in_channels, 1)
        if spectral_norm:
            wsc = _spectral_normalize(wsc, ks[16])
        p['wsc'], p['bsc'] = wsc, bsc
    return p


def gblock_forward_pallas(x_nchw, params, *, upsample=False,
                          compute_dtype=jnp.bfloat16, out_dtype=jnp.float32,
                          row_tile=None):
    B, Cin, H, W = x_nchw.shape
    Ch = params['w1'].shape[0]
    Cout = params['w2'].shape[0]
    learnable_sc = (Cin != Cout) or upsample

    x = jnp.transpose(x_nchw, (0, 2, 3, 1)).astype(jnp.float32)      # NHWC

    # BN1 (inference affine) + ReLU applied BEFORE zero padding so the conv's
    # zero padding stays exact zeros.
    s1 = params['bn1_gamma'] / jnp.sqrt(params['bn1_var'] + _BN_EPS)
    t1 = params['bn1_beta'] - params['bn1_mean'] * s1
    a = jnp.maximum(x * s1 + t1, 0.0)

    if upsample:
        a = _bilinear_up2_nhwc(a)        # residual path upsample
        s_in = _bilinear_up2_nhwc(x)     # shortcut path upsamples raw x
        Hu, Wu = 2 * H, 2 * W
    else:
        s_in = x
        Hu, Wu = H, W

    # Trace-time row-tile selection from a per-generation VMEM budget.
    act_bytes = np.dtype(compute_dtype).itemsize
    out_bytes = np.dtype(out_dtype).itemsize
    budget = int(_vmem_capacity_bytes() * 0.70)
    th = _choose_row_tile(Hu, Wu, Cin, Ch, Cout, act_bytes, out_bytes,
                          budget, row_tile)
    nR = Hu // th

    # Residual-path input: 2-row / 1-col zero pad, then overlapping halo'd row
    # tiles staged in HBM (2+2 duplicated halo rows per tile).
    h0pad = jnp.pad(a, ((0, 0), (2, 2), (1, 1), (0, 0))).astype(compute_dtype)
    row_idx = np.arange(nR)[:, None] * th + np.arange(th + 4)[None, :]
    x_tiles = h0pad[:, row_idx]                  # (B, nR, th+4, Wu+2, Cin)

    s_flat = s_in.reshape(B, Hu * Wu, Cin).astype(compute_dtype)

    # BN2 folded to per-channel scale/shift, applied in-kernel.
    s2 = params['bn2_gamma'] / jnp.sqrt(params['bn2_var'] + _BN_EPS)
    t2 = params['bn2_beta'] - params['bn2_mean'] * s2
    s2 = s2.reshape(1, Ch).astype(jnp.float32)
    t2 = t2.reshape(1, Ch).astype(jnp.float32)

    # torch OIHW -> (ky, kx, Cin, Cout) -> (9*Cin, Cout): taps stacked along K.
    w1 = jnp.transpose(params['w1'], (2, 3, 1, 0)).reshape(9 * Cin, Ch)
    w2 = jnp.transpose(params['w2'], (2, 3, 1, 0)).reshape(9 * Ch, Cout)
    w1 = w1.astype(compute_dtype)
    w2 = w2.astype(compute_dtype)
    b1 = params['b1'].reshape(1, Ch).astype(jnp.float32)
    b2 = params['b2'].reshape(1, Cout).astype(jnp.float32)
    if learnable_sc:
        wsc = params['wsc'][:, :, 0, 0].T.astype(compute_dtype)
        bsc = params['bsc'].reshape(1, Cout).astype(jnp.float32)
    else:
        wsc = jnp.eye(Cin, Cout, dtype=compute_dtype)   # unused in-kernel
        bsc = jnp.zeros((1, Cout), jnp.float32)

    out_flat = _gblock_pallas_call(
        x_tiles, s_flat, w1, b1, s2, t2, w2, b2, wsc, bsc,
        th=th, learnable_sc=learnable_sc, compute_dtype=compute_dtype,
        out_dtype=out_dtype, vmem_limit_bytes=budget)
    return jnp.transpose(out_flat.reshape(B, Hu, Wu, Cout), (0, 3, 1, 2))


# ---------------------------------------------------------------------------
# Pure-JAX reference (matches the PyTorch forward, eval-mode BN)
# ---------------------------------------------------------------------------

def gblock_forward_reference(x, p, *, upsample=False):
    B, Cin, H, W = x.shape
    Cout = p['w2'].shape[0]
    learnable_sc = (Cin != Cout) or upsample

    def bn(h, g, b, m, v):
        s = g / jnp.sqrt(v + _BN_EPS)
        return h * s[None, :, None, None] + (b - m * s)[None, :, None, None]

    def conv(h, w, b, pad):
        y = lax.conv_general_dilated(
            h, w, window_strides=(1, 1), padding=[(pad, pad), (pad, pad)],
            dimension_numbers=('NCHW', 'OIHW', 'NCHW'),
            precision=lax.Precision.HIGHEST)
        return y + b[None, :, None, None]

    h = bn(x, p['bn1_gamma'], p['bn1_beta'], p['bn1_mean'], p['bn1_var'])
    h = jnp.maximum(h, 0.0)
    if upsample:
        h = _bilinear_up2_nchw(h)
    h = conv(h, p['w1'], p['b1'], 1)
    h = bn(h, p['bn2_gamma'], p['bn2_beta'], p['bn2_mean'], p['bn2_var'])
    h = jnp.maximum(h, 0.0)
    h = conv(h, p['w2'], p['b2'], 1)

    s = _bilinear_up2_nchw(x) if upsample else x
    if learnable_sc:
        s = conv(s, p['wsc'], p['bsc'], 0)
    return h + s


if __name__ == "__main__":
    key = jax.random.PRNGKey(0)
    kx, kp, kx2, kp2 = jax.random.split(key, 4)

    # GBlock(in=4, out=8, hidden=8, upsample=True, spectral_norm=True):
    # learnable shortcut, Hu=Wu=32 after upsample; force row_tile=8 so the
    # 4-way row tiling / halo-stitch path is exercised and validated.
    B, Cin, Cout, H, W = 2, 4, 8, 16, 16
    x = jax.random.normal(kx, (B, Cin, H, W), jnp.float32)
    params = init_gblock_params(kp, Cin, Cout, upsample=True, spectral_norm=True)
    out = jax.block_until_ready(
        gblock_forward_pallas(x, params, upsample=True, row_tile=8))
    ref = jax.block_until_ready(gblock_forward_reference(x, params, upsample=True))
    assert out.shape == (B, Cout, 2 * H, 2 * W), out.shape
    if not np.allclose(np.asarray(out), np.asarray(ref), atol=5e-2, rtol=5e-2):
        raise AssertionError("Pallas GBlock (upsample, row-tiled) mismatch vs reference")

    # GBlock(in=8, out=8, upsample=False): identity shortcut, single row tile.
    C2, H2, W2 = 8, 8, 8
    x2 = jax.random.normal(kx2, (B, C2, H2, W2), jnp.float32)
    params2 = init_gblock_params(kp2, C2, C2, upsample=False, spectral_norm=True)
    out2 = jax.block_until_ready(gblock_forward_pallas(x2, params2, upsample=False))
    ref2 = jax.block_until_ready(gblock_forward_reference(x2, params2, upsample=False))
    assert out2.shape == (B, C2, H2, W2), out2.shape
    if not np.allclose(np.asarray(out2), np.asarray(ref2), atol=5e-2, rtol=5e-2):
        raise AssertionError("Pallas GBlock (no upsample) mismatch vs reference")

    print("KERNEL_OK")
</pallas_src>

<mosaic_0001>
module attributes {stable_mosaic.version = 11 : i64} {
  func.func @_gblock_kernel(%arg0: i32, %arg1: i32, %arg2: memref<1x1x12x34x4xbf16, #tpu.memory_space<vmem>>, %arg3: memref<1x256x4xbf16, #tpu.memory_space<vmem>>, %arg4: memref<36x8xbf16, #tpu.memory_space<vmem>>, %arg5: memref<1x8xf32, #tpu.memory_space<vmem>>, %arg6: memref<1x8xf32, #tpu.memory_space<vmem>>, %arg7: memref<1x8xf32, #tpu.memory_space<vmem>>, %arg8: memref<72x8xbf16, #tpu.memory_space<vmem>>, %arg9: memref<1x8xf32, #tpu.memory_space<vmem>>, %arg10: memref<4x8xbf16, #tpu.memory_space<vmem>>, %arg11: memref<1x8xf32, #tpu.memory_space<vmem>>, %arg12: memref<1x256x8xf32, #tpu.memory_space<vmem>>, %arg13: memref<10x34x8xbf16, #tpu.memory_space<vmem>>) attributes {dimension_semantics = [#tpu.dimension_semantics<parallel>, #tpu.dimension_semantics<parallel>], iteration_bounds = array<i64: 2, 4>, scalar_prefetch = 0 : i64, scratch_operands = 1 : i64, tpu.core_type = #tpu.core_type<tc>, window_params = [{transform_indices = @transform_0, window_bounds = array<i64: 1, 1, 12, 34, 4>}, {transform_indices = @transform_1, window_bounds = array<i64: 1, 256, 4>}, {pipeline_mode = #tpu.pipeline_mode<synchronous>, transform_indices = @transform_2, window_bounds = array<i64: 36, 8>}, {pipeline_mode = #tpu.pipeline_mode<synchronous>, transform_indices = @transform_3, window_bounds = array<i64: 1, 8>}, {pipeline_mode = #tpu.pipeline_mode<synchronous>, transform_indices = @transform_4, window_bounds = array<i64: 1, 8>}, {pipeline_mode = #tpu.pipeline_mode<synchronous>, transform_indices = @transform_5, window_bounds = array<i64: 1, 8>}, {pipeline_mode = #tpu.pipeline_mode<synchronous>, transform_indices = @transform_6, window_bounds = array<i64: 72, 8>}, {pipeline_mode = #tpu.pipeline_mode<synchronous>, transform_indices = @transform_7, window_bounds = array<i64: 1, 8>}, {pipeline_mode = #tpu.pipeline_mode<synchronous>, transform_indices = @transform_8, window_bounds = array<i64: 4, 8>}, {pipeline_mode = #tpu.pipeline_mode<synchronous>, transform_indices = @transform_9, window_bounds = array<i64: 1, 8>}, {transform_indices = @transform_10, window_bounds = array<i64: 1, 256, 8>}]} {
    %c0 = arith.constant 0 : index
    %c0_0 = arith.constant 0 : index
    %0 = vector.load %arg5[%c0, %c0_0] : memref<1x8xf32, #tpu.memory_space<vmem>>, vector<1x8xf32>
    %c0_1 = arith.constant 0 : index
    %c0_2 = arith.constant 0 : index
    %1 = vector.load %arg6[%c0_1, %c0_2] : memref<1x8xf32, #tpu.memory_space<vmem>>, vector<1x8xf32>
    %c0_3 = arith.constant 0 : index
    %c0_4 = arith.constant 0 : index
    %2 = vector.load %arg7[%c0_3, %c0_4] : memref<1x8xf32, #tpu.memory_space<vmem>>, vector<1x8xf32>
    %c0_5 = arith.constant 0 : index
    %c0_6 = arith.constant 0 : index
    %3 = vector.load %arg9[%c0_5, %c0_6] : memref<1x8xf32, #tpu.memory_space<vmem>>, vector<1x8xf32>
    %cst = arith.constant 0.000000e+00 : f32
    %4 = vector.broadcast %cst : f32 to vector<320x8xf32>
    %c0_7 = arith.constant 0 : index
    %c0_8 = arith.constant 0 : index
    %c0_9 = arith.constant 0 : index
    %c0_10 = arith.constant 0 : index
    %c0_11 = arith.constant 0 : index
    %5 = vector.load %arg2[%c0_7, %c0_8, %c0_9, %c0_10, %c0_11] : memref<1x1x12x34x4xbf16, #tpu.memory_space<vmem>>, vector<1x1x10x32x4xbf16>
    %6 = vector.shape_cast %5 : vector<1x1x10x32x4xbf16> to vector<10x32x4xbf16>
    %7 = vector.shape_cast %6 : vector<10x32x4xbf16> to vector<320x4xbf16>
    %c0_12 = arith.constant 0 : index
    %c0_13 = arith.constant 0 : index
    %8 = vector.load %arg4[%c0_12, %c0_13] : memref<36x8xbf16, #tpu.memory_space<vmem>>, vector<4x8xbf16>
    %cst_14 = arith.constant dense<0.000000e+00> : vector<320x8xf32>
    %9 = tpu.matmul %7, %8, %cst_14 {dimension_numbers = #tpu.dot_dimension_numbers<[1], [0], [0], [1], [0, 0, 1, 1], [], []>} : vector<320x4xbf16>, vector<4x8xbf16>, vector<320x8xf32> -> vector<320x8xf32>
    %10 = arith.addf %4, %9 : vector<320x8xf32>
    %c0_15 = arith.constant 0 : index
    %c0_16 = arith.constant 0 : index
    %c0_17 = arith.constant 0 : index
    %c1 = arith.constant 1 : index
    %c0_18 = arith.constant 0 : index
    %11 = vector.load %arg2[%c0_15, %c0_16, %c0_17, %c1, %c0_18] : memref<1x1x12x34x4xbf16, #tpu.memory_space<vmem>>, vector<1x1x10x32x4xbf16>
    %12 = vector.shape_cast %11 : vector<1x1x10x32x4xbf16> to vector<10x32x4xbf16>
    %13 = vector.shape_cast %12 : vector<10x32x4xbf16> to vector<320x4xbf16>
    %c4 = arith.constant 4 : index
    %c0_19 = arith.constant 0 : index
    %14 = vector.load %arg4[%c4, %c0_19] : memref<36x8xbf16, #tpu.memory_space<vmem>>, vector<4x8xbf16>
    %cst_20 = arith.constant dense<0.000000e+00> : vector<320x8xf32>
    %15 = tpu.matmul %13, %14, %cst_20 {dimension_numbers = #tpu.dot_dimension_numbers<[1], [0], [0], [1], [0, 0, 1, 1], [], []>} : vector<320x4xbf16>, vector<4x8xbf16>, vector<320x8xf32> -> vector<320x8xf32>
    %16 = arith.addf %10, %15 : vector<320x8xf32>
    %c0_21 = arith.constant 0 : index
    %c0_22 = arith.constant 0 : index
    %c0_23 = arith.constant 0 : index
    %c2 = arith.constant 2 : index
    %c0_24 = arith.constant 0 : index
    %17 = vector.load %arg2[%c0_21, %c0_22, %c0_23, %c2, %c0_24] : memref<1x1x12x34x4xbf16, #tpu.memory_space<vmem>>, vector<1x1x10x32x4xbf16>
    %18 = vector.shape_cast %17 : vector<1x1x10x32x4xbf16> to vector<10x32x4xbf16>
    %19 = vector.shape_cast %18 : vector<10x32x4xbf16> to vector<320x4xbf16>
    %c8 = arith.constant 8 : index
    %c0_25 = arith.constant 0 : index
    %20 = vector.load %arg4[%c8, %c0_25] : memref<36x8xbf16, #tpu.memory_space<vmem>>, vector<4x8xbf16>
    %cst_26 = arith.constant dense<0.000000e+00> : vector<320x8xf32>
    %21 = tpu.matmul %19, %20, %cst_26 {dimension_numbers = #tpu.dot_dimension_numbers<[1], [0], [0], [1], [0, 0, 1, 1], [], []>} : vector<320x4xbf16>, vector<4x8xbf16>, vector<320x8xf32> -> vector<320x8xf32>
    %22 = arith.addf %16, %21 : vector<320x8xf32>
    %c0_27 = arith.constant 0 : index
    %c0_28 = arith.constant 0 : index
    %c1_29 = arith.constant 1 : index
    %c0_30 = arith.constant 0 : index
    %c0_31 = arith.constant 0 : index
    %23 = vector.load %arg2[%c0_27, %c0_28, %c1_29, %c0_30, %c0_31] : memref<1x1x12x34x4xbf16, #tpu.memory_space<vmem>>, vector<1x1x10x32x4xbf16>
    %24 = vector.shape_cast %23 : vector<1x1x10x32x4xbf16> to vector<10x32x4xbf16>
    %25 = vector.shape_cast %24 : vector<10x32x4xbf16> to vector<320x4xbf16>
    %c12 = arith.constant 12 : index
    %c0_32 = arith.constant 0 : index
    %26 = vector.load %arg4[%c12, %c0_32] : memref<36x8xbf16, #tpu.memory_space<vmem>>, vector<4x8xbf16>
    %cst_33 = arith.constant dense<0.000000e+00> : vector<320x8xf32>
    %27 = tpu.matmul %25, %26, %cst_33 {dimension_numbers = #tpu.dot_dimension_numbers<[1], [0], [0], [1], [0, 0, 1, 1], [], []>} : vector<320x4xbf16>, vector<4x8xbf16>, vector<320x8xf32> -> vector<320x8xf32>
    %28 = arith.addf %22, %27 : vector<320x8xf32>
    %c0_34 = arith.constant 0 : index
    %c0_35 = arith.constant 0 : index
    %c1_36 = arith.constant 1 : index
    %c1_37 = arith.constant 1 : index
    %c0_38 = arith.constant 0 : index
    %29 = vector.load %arg2[%c0_34, %c0_35, %c1_36, %c1_37, %c0_38] : memref<1x1x12x34x4xbf16, #tpu.memory_space<vmem>>, vector<1x1x10x32x4xbf16>
    %30 = vector.shape_cast %29 : vector<1x1x10x32x4xbf16> to vector<10x32x4xbf16>
    %31 = vector.shape_cast %30 : vector<10x32x4xbf16> to vector<320x4xbf16>
    %c16 = arith.constant 16 : index
    %c0_39 = arith.constant 0 : index
    %32 = vector.load %arg4[%c16, %c0_39] : memref<36x8xbf16, #tpu.memory_space<vmem>>, vector<4x8xbf16>
    %cst_40 = arith.constant dense<0.000000e+00> : vector<320x8xf32>
    %33 = tpu.matmul %31, %32, %cst_40 {dimension_numbers = #tpu.dot_dimension_numbers<[1], [0], [0], [1], [0, 0, 1, 1], [], []>} : vector<320x4xbf16>, vector<4x8xbf16>, vector<320x8xf32> -> vector<320x8xf32>
    %34 = arith.addf %28, %33 : vector<320x8xf32>
    %c0_41 = arith.constant 0 : index
    %c0_42 = arith.constant 0 : index
    %c1_43 = arith.constant 1 : index
    %c2_44 = arith.constant 2 : index
    %c0_45 = arith.constant 0 : index
    %35 = vector.load %arg2[%c0_41, %c0_42, %c1_43, %c2_44, %c0_45] : memref<1x1x12x34x4xbf16, #tpu.memory_space<vmem>>, vector<1x1x10x32x4xbf16>
    %36 = vector.shape_cast %35 : vector<1x1x10x32x4xbf16> to vector<10x32x4xbf16>
    %37 = vector.shape_cast %36 : vector<10x32x4xbf16> to vector<320x4xbf16>
    %c20 = arith.constant 20 : index
    %c0_46 = arith.constant 0 : index
    %38 = vector.load %arg4[%c20, %c0_46] : memref<36x8xbf16, #tpu.memory_space<vmem>>, vector<4x8xbf16>
    %cst_47 = arith.constant dense<0.000000e+00> : vector<320x8xf32>
    %39 = tpu.matmul %37, %38, %cst_47 {dimension_numbers = #tpu.dot_dimension_numbers<[1], [0], [0], [1], [0, 0, 1, 1], [], []>} : vector<320x4xbf16>, vector<4x8xbf16>, vector<320x8xf32> -> vector<320x8xf32>
    %40 = arith.addf %34, %39 : vector<320x8xf32>
    %c0_48 = arith.constant 0 : index
    %c0_49 = arith.constant 0 : index
    %c2_50 = arith.constant 2 : index
    %c0_51 = arith.constant 0 : index
    %c0_52 = arith.constant 0 : index
    %41 = vector.load %arg2[%c0_48, %c0_49, %c2_50, %c0_51, %c0_52] : memref<1x1x12x34x4xbf16, #tpu.memory_space<vmem>>, vector<1x1x10x32x4xbf16>
    %42 = vector.shape_cast %41 : vector<1x1x10x32x4xbf16> to vector<10x32x4xbf16>
    %43 = vector.shape_cast %42 : vector<10x32x4xbf16> to vector<320x4xbf16>
    %c24 = arith.constant 24 : index
    %c0_53 = arith.constant 0 : index
    %44 = vector.load %arg4[%c24, %c0_53] : memref<36x8xbf16, #tpu.memory_space<vmem>>, vector<4x8xbf16>
    %cst_54 = arith.constant dense<0.000000e+00> : vector<320x8xf32>
    %45 = tpu.matmul %43, %44, %cst_54 {dimension_numbers = #tpu.dot_dimension_numbers<[1], [0], [0], [1], [0, 0, 1, 1], [], []>} : vector<320x4xbf16>, vector<4x8xbf16>, vector<320x8xf32> -> vector<320x8xf32>
    %46 = arith.addf %40, %45 : vector<320x8xf32>
    %c0_55 = arith.constant 0 : index
    %c0_56 = arith.constant 0 : index
    %c2_57 = arith.constant 2 : index
    %c1_58 = arith.constant 1 : index
    %c0_59 = arith.constant 0 : index
    %47 = vector.load %arg2[%c0_55, %c0_56, %c2_57, %c1_58, %c0_59] : memref<1x1x12x34x4xbf16, #tpu.memory_space<vmem>>, vector<1x1x10x32x4xbf16>
    %48 = vector.shape_cast %47 : vector<1x1x10x32x4xbf16> to vector<10x32x4xbf16>
    %49 = vector.shape_cast %48 : vector<10x32x4xbf16> to vector<320x4xbf16>
    %c28 = arith.constant 28 : index
    %c0_60 = arith.constant 0 : index
    %50 = vector.load %arg4[%c28, %c0_60] : memref<36x8xbf16, #tpu.memory_space<vmem>>, vector<4x8xbf16>
    %cst_61 = arith.constant dense<0.000000e+00> : vector<320x8xf32>
    %51 = tpu.matmul %49, %50, %cst_61 {dimension_numbers = #tpu.dot_dimension_numbers<[1], [0], [0], [1], [0, 0, 1, 1], [], []>} : vector<320x4xbf16>, vector<4x8xbf16>, vector<320x8xf32> -> vector<320x8xf32>
    %52 = arith.addf %46, %51 : vector<320x8xf32>
    %c0_62 = arith.constant 0 : index
    %c0_63 = arith.constant 0 : index
    %c2_64 = arith.constant 2 : index
    %c2_65 = arith.constant 2 : index
    %c0_66 = arith.constant 0 : index
    %53 = vector.load %arg2[%c0_62, %c0_63, %c2_64, %c2_65, %c0_66] : memref<1x1x12x34x4xbf16, #tpu.memory_space<vmem>>, vector<1x1x10x32x4xbf16>
    %54 = vector.shape_cast %53 : vector<1x1x10x32x4xbf16> to vector<10x32x4xbf16>
    %55 = vector.shape_cast %54 : vector<10x32x4xbf16> to vector<320x4xbf16>
    %c32 = arith.constant 32 : index
    %c0_67 = arith.constant 0 : index
    %56 = vector.load %arg4[%c32, %c0_67] : memref<36x8xbf16, #tpu.memory_space<vmem>>, vector<4x8xbf16>
    %cst_68 = arith.constant dense<0.000000e+00> : vector<320x8xf32>
    %57 = tpu.matmul %55, %56, %cst_68 {dimension_numbers = #tpu.dot_dimension_numbers<[1], [0], [0], [1], [0, 0, 1, 1], [], []>} : vector<320x4xbf16>, vector<4x8xbf16>, vector<320x8xf32> -> vector<320x8xf32>
    %58 = arith.addf %52, %57 : vector<320x8xf32>
    %59 = vector.broadcast %0 : vector<1x8xf32> to vector<320x8xf32>
    %60 = arith.addf %58, %59 : vector<320x8xf32>
    %61 = vector.broadcast %1 : vector<1x8xf32> to vector<320x8xf32>
    %62 = arith.mulf %60, %61 : vector<320x8xf32>
    %63 = vector.broadcast %2 : vector<1x8xf32> to vector<320x8xf32>
    %64 = arith.addf %62, %63 : vector<320x8xf32>
    %cst_69 = arith.constant 0.000000e+00 : f32
    %65 = vector.broadcast %cst_69 : f32 to vector<320x8xf32>
    %66 = arith.maximumf %64, %65 : vector<320x8xf32>
    %cst_70 = arith.constant 0.000000e+00 : bf16
    %67 = vector.broadcast %cst_70 : bf16 to vector<10x1x8xbf16>
    %c0_71 = arith.constant 0 : index
    %c0_72 = arith.constant 0 : index
    %c0_73 = arith.constant 0 : index
    %68 = vector.load %arg13[%c0_71, %c0_72, %c0_73] : memref<10x34x8xbf16, #tpu.memory_space<vmem>>, vector<10x1x8xbf16>
    tpu.vector_store %arg13[%c0_71, %c0_72, %c0_73], %67 {strides = array<i32>} : memref<10x34x8xbf16, #tpu.memory_space<vmem>>, vector<10x1x8xbf16>,
    %cst_74 = arith.constant 0.000000e+00 : bf16
    %69 = vector.broadcast %cst_74 : bf16 to vector<10x1x8xbf16>
    %c0_75 = arith.constant 0 : index
    %c33 = arith.constant 33 : index
    %c0_76 = arith.constant 0 : index
    %70 = vector.load %arg13[%c0_75, %c33, %c0_76] : memref<10x34x8xbf16, #tpu.memory_space<vmem>>, vector<10x1x8xbf16>
    tpu.vector_store %arg13[%c0_75, %c33, %c0_76], %69 {strides = array<i32>} : memref<10x34x8xbf16, #tpu.memory_space<vmem>>, vector<10x1x8xbf16>,
    %71 = vector.shape_cast %66 : vector<320x8xf32> to vector<10x32x8xf32>
    %72 = arith.truncf %71 : vector<10x32x8xf32> to vector<10x32x8xbf16>
    %c0_77 = arith.constant 0 : index
    %c1_78 = arith.constant 1 : index
    %c0_79 = arith.constant 0 : index
    %73 = vector.load %arg13[%c0_77, %c1_78, %c0_79] : memref<10x34x8xbf16, #tpu.memory_space<vmem>>, vector<10x32x8xbf16>
    tpu.vector_store %arg13[%c0_77, %c1_78, %c0_79], %72 {strides = array<i32>} : memref<10x34x8xbf16, #tpu.memory_space<vmem>>, vector<10x32x8xbf16>,
    %c0_i32 = arith.constant 0 : i32
    %74 = arith.cmpi eq, %arg1, %c0_i32 : i32
    %75 = arith.extui %74 : i1 to i32
    %c0_i32_80 = arith.constant 0 : i32
    %76 = arith.cmpi ne, %75, %c0_i32_80 : i32
    scf.if %76 {
      %cst_144 = arith.constant 0.000000e+00 : bf16
      %139 = vector.broadcast %cst_144 : bf16 to vector<1x34x8xbf16>
      %c0_145 = arith.constant 0 : index
      %c0_146 = arith.constant 0 : index
      %c0_147 = arith.constant 0 : index
      %140 = vector.load %arg13[%c0_145, %c0_146, %c0_147] : memref<10x34x8xbf16, #tpu.memory_space<vmem>>, vector<1x34x8xbf16>
      tpu.vector_store %arg13[%c0_145, %c0_146, %c0_147], %139 {strides = array<i32>} : memref<10x34x8xbf16, #tpu.memory_space<vmem>>, vector<1x34x8xbf16>,
    } else {
    }
    %c3_i32 = arith.constant 3 : i32
    %77 = arith.cmpi eq, %arg1, %c3_i32 : i32
    %78 = arith.extui %77 : i1 to i32
    %c0_i32_81 = arith.constant 0 : i32
    %79 = arith.cmpi ne, %78, %c0_i32_81 : i32
    scf.if %79 {
      %cst_144 = arith.constant 0.000000e+00 : bf16
      %139 = vector.broadcast %cst_144 : bf16 to vector<1x34x8xbf16>
      %c9 = arith.constant 9 : index
      %c0_145 = arith.constant 0 : index
      %c0_146 = arith.constant 0 : index
      %140 = vector.load %arg13[%c9, %c0_145, %c0_146] : memref<10x34x8xbf16, #tpu.memory_space<vmem>>, vector<1x34x8xbf16>
      tpu.vector_store %arg13[%c9, %c0_145, %c0_146], %139 {strides = array<i32>} : memref<10x34x8xbf16, #tpu.memory_space<vmem>>, vector<1x34x8xbf16>,
    } else {
    }
    %cst_82 = arith.constant 0.000000e+00 : f32
    %80 = vector.broadcast %cst_82 : f32 to vector<256x8xf32>
    %c0_83 = arith.constant 0 : index
    %c0_84 = arith.constant 0 : index
    %c0_85 = arith.constant 0 : index
    %81 = vector.load %arg13[%c0_83, %c0_84, %c0_85] : memref<10x34x8xbf16, #tpu.memory_space<vmem>>, vector<8x32x8xbf16>
    %82 = vector.shape_cast %81 : vector<8x32x8xbf16> to vector<256x8xbf16>
    %c0_86 = arith.constant 0 : index
    %c0_87 = arith.constant 0 : index
    %83 = vector.load %arg8[%c0_86, %c0_87] : memref<72x8xbf16, #tpu.memory_space<vmem>>, vector<8x8xbf16>
    %cst_88 = arith.constant dense<0.000000e+00> : vector<256x8xf32>
    %84 = tpu.matmul %82, %83, %cst_88 {dimension_numbers = #tpu.dot_dimension_numbers<[1], [0], [0], [1], [0, 0, 1, 1], [], []>} : vector<256x8xbf16>, vector<8x8xbf16>, vector<256x8xf32> -> vector<256x8xf32>
    %85 = arith.addf %80, %84 : vector<256x8xf32>
    %c0_89 = arith.constant 0 : index
    %c1_90 = arith.constant 1 : index
    %c0_91 = arith.constant 0 : index
    %86 = vector.load %arg13[%c0_89, %c1_90, %c0_91] : memref<10x34x8xbf16, #tpu.memory_space<vmem>>, vector<8x32x8xbf16>
    %87 = vector.shape_cast %86 : vector<8x32x8xbf16> to vector<256x8xbf16>
    %c8_92 = arith.constant 8 : index
    %c0_93 = arith.constant 0 : index
    %88 = vector.load %arg8[%c8_92, %c0_93] : memref<72x8xbf16, #tpu.memory_space<vmem>>, vector<8x8xbf16>
    %cst_94 = arith.constant dense<0.000000e+00> : vector<256x8xf32>
    %89 = tpu.matmul %87, %88, %cst_94 {dimension_numbers = #tpu.dot_dimension_numbers<[1], [0], [0], [1], [0, 0, 1, 1], [], []>} : vector<256x8xbf16>, vector<8x8xbf16>, vector<256x8xf32> -> vector<256x8xf32>
    %90 = arith.addf %85, %89 : vector<256x8xf32>
    %c0_95 = arith.constant 0 : index
    %c2_96 = arith.constant 2 : index
    %c0_97 = arith.constant 0 : index
    %91 = vector.load %arg13[%c0_95, %c2_96, %c0_97] : memref<10x34x8xbf16, #tpu.memory_space<vmem>>, vector<8x32x8xbf16>
    %92 = vector.shape_cast %91 : vector<8x32x8xbf16> to vector<256x8xbf16>
    %c16_98 = arith.constant 16 : index
    %c0_99 = arith.constant 0 : index
    %93 = vector.load %arg8[%c16_98, %c0_99] : memref<72x8xbf16, #tpu.memory_space<vmem>>, vector<8x8xbf16>
    %cst_100 = arith.constant dense<0.000000e+00> : vector<256x8xf32>
    %94 = tpu.matmul %92, %93, %cst_100 {dimension_numbers = #tpu.dot_dimension_numbers<[1], [0], [0], [1], [0, 0, 1, 1], [], []>} : vector<256x8xbf16>, vector<8x8xbf16>, vector<256x8xf32> -> vector<256x8xf32>
    %95 = arith.addf %90, %94 : vector<256x8xf32>
    %c1_101 = arith.constant 1 : index
    %c0_102 = arith.constant 0 : index
    %c0_103 = arith.constant 0 : index
    %96 = vector.load %arg13[%c1_101, %c0_102, %c0_103] : memref<10x34x8xbf16, #tpu.memory_space<vmem>>, vector<8x32x8xbf16>
    %97 = vector.shape_cast %96 : vector<8x32x8xbf16> to vector<256x8xbf16>
    %c24_104 = arith.constant 24 : index
    %c0_105 = arith.constant 0 : index
    %98 = vector.load %arg8[%c24_104, %c0_105] : memref<72x8xbf16, #tpu.memory_space<vmem>>, vector<8x8xbf16>
    %cst_106 = arith.constant dense<0.000000e+00> : vector<256x8xf32>
    %99 = tpu.matmul %97, %98, %cst_106 {dimension_numbers = #tpu.dot_dimension_numbers<[1], [0], [0], [1], [0, 0, 1, 1], [], []>} : vector<256x8xbf16>, vector<8x8xbf16>, vector<256x8xf32> -> vector<256x8xf32>
    %100 = arith.addf %95, %99 : vector<256x8xf32>
    %c1_107 = arith.constant 1 : index
    %c1_108 = arith.constant 1 : index
    %c0_109 = arith.constant 0 : index
    %101 = vector.load %arg13[%c1_107, %c1_108, %c0_109] : memref<10x34x8xbf16, #tpu.memory_space<vmem>>, vector<8x32x8xbf16>
    %102 = vector.shape_cast %101 : vector<8x32x8xbf16> to vector<256x8xbf16>
    %c32_110 = arith.constant 32 : index
    %c0_111 = arith.constant 0 : index
    %103 = vector.load %arg8[%c32_110, %c0_111] : memref<72x8xbf16, #tpu.memory_space<vmem>>, vector<8x8xbf16>
    %cst_112 = arith.constant dense<0.000000e+00> : vector<256x8xf32>
    %104 = tpu.matmul %102, %103, %cst_112 {dimension_numbers = #tpu.dot_dimension_numbers<[1], [0], [0], [1], [0, 0, 1, 1], [], []>} : vector<256x8xbf16>, vector<8x8xbf16>, vector<256x8xf32> -> vector<256x8xf32>
    %105 = arith.addf %100, %104 : vector<256x8xf32>
    %c1_113 = arith.constant 1 : index
    %c2_114 = arith.constant 2 : index
    %c0_115 = arith.constant 0 : index
    %106 = vector.load %arg13[%c1_113, %c2_114, %c0_115] : memref<10x34x8xbf16, #tpu.memory_space<vmem>>, vector<8x32x8xbf16>
    %107 = vector.shape_cast %106 : vector<8x32x8xbf16> to vector<256x8xbf16>
    %c40 = arith.constant 40 : index
    %c0_116 = arith.constant 0 : index
    %108 = vector.load %arg8[%c40, %c0_116] : memref<72x8xbf16, #tpu.memory_space<vmem>>, vector<8x8xbf16>
    %cst_117 = arith.constant dense<0.000000e+00> : vector<256x8xf32>
    %109 = tpu.matmul %107, %108, %cst_117 {dimension_numbers = #tpu.dot_dimension_numbers<[1], [0], [0], [1], [0, 0, 1, 1], [], []>} : vector<256x8xbf16>, vector<8x8xbf16>, vector<256x8xf32> -> vector<256x8xf32>
    %110 = arith.addf %105, %109 : vector<256x8xf32>
    %c2_118 = arith.constant 2 : index
    %c0_119 = arith.constant 0 : index
    %c0_120 = arith.constant 0 : index
    %111 = vector.load %arg13[%c2_118, %c0_119, %c0_120] : memref<10x34x8xbf16, #tpu.memory_space<vmem>>, vector<8x32x8xbf16>
    %112 = vector.shape_cast %111 : vector<8x32x8xbf16> to vector<256x8xbf16>
    %c48 = arith.constant 48 : index
    %c0_121 = arith.constant 0 : index
    %113 = vector.load %arg8[%c48, %c0_121] : memref<72x8xbf16, #tpu.memory_space<vmem>>, vector<8x8xbf16>
    %cst_122 = arith.constant dense<0.000000e+00> : vector<256x8xf32>
    %114 = tpu.matmul %112, %113, %cst_122 {dimension_numbers = #tpu.dot_dimension_numbers<[1], [0], [0], [1], [0, 0, 1, 1], [], []>} : vector<256x8xbf16>, vector<8x8xbf16>, vector<256x8xf32> -> vector<256x8xf32>
    %115 = arith.addf %110, %114 : vector<256x8xf32>
    %c2_123 = arith.constant 2 : index
    %c1_124 = arith.constant 1 : index
    %c0_125 = arith.constant 0 : index
    %116 = vector.load %arg13[%c2_123, %c1_124, %c0_125] : memref<10x34x8xbf16, #tpu.memory_space<vmem>>, vector<8x32x8xbf16>
    %117 = vector.shape_cast %116 : vector<8x32x8xbf16> to vector<256x8xbf16>
    %c56 = arith.constant 56 : index
    %c0_126 = arith.constant 0 : index
    %118 = vector.load %arg8[%c56, %c0_126] : memref<72x8xbf16, #tpu.memory_space<vmem>>, vector<8x8xbf16>
    %cst_127 = arith.constant dense<0.000000e+00> : vector<256x8xf32>
    %119 = tpu.matmul %117, %118, %cst_127 {dimension_numbers = #tpu.dot_dimension_numbers<[1], [0], [0], [1], [0, 0, 1, 1], [], []>} : vector<256x8xbf16>, vector<8x8xbf16>, vector<256x8xf32> -> vector<256x8xf32>
    %120 = arith.addf %115, %119 : vector<256x8xf32>
    %c2_128 = arith.constant 2 : index
    %c2_129 = arith.constant 2 : index
    %c0_130 = arith.constant 0 : index
    %121 = vector.load %arg13[%c2_128, %c2_129, %c0_130] : memref<10x34x8xbf16, #tpu.memory_space<vmem>>, vector<8x32x8xbf16>
    %122 = vector.shape_cast %121 : vector<8x32x8xbf16> to vector<256x8xbf16>
    %c64 = arith.constant 64 : index
    %c0_131 = arith.constant 0 : index
    %123 = vector.load %arg8[%c64, %c0_131] : memref<72x8xbf16, #tpu.memory_space<vmem>>, vector<8x8xbf16>
    %cst_132 = arith.constant dense<0.000000e+00> : vector<256x8xf32>
    %124 = tpu.matmul %122, %123, %cst_132 {dimension_numbers = #tpu.dot_dimension_numbers<[1], [0], [0], [1], [0, 0, 1, 1], [], []>} : vector<256x8xbf16>, vector<8x8xbf16>, vector<256x8xf32> -> vector<256x8xf32>
    %125 = arith.addf %120, %124 : vector<256x8xf32>
    %126 = vector.broadcast %3 : vector<1x8xf32> to vector<256x8xf32>
    %127 = arith.addf %125, %126 : vector<256x8xf32>
    %c0_133 = arith.constant 0 : index
    %c0_134 = arith.constant 0 : index
    %c0_135 = arith.constant 0 : index
    %128 = vector.load %arg3[%c0_133, %c0_134, %c0_135] : memref<1x256x4xbf16, #tpu.memory_space<vmem>>, vector<1x256x4xbf16>
    %129 = vector.shape_cast %128 : vector<1x256x4xbf16> to vector<256x4xbf16>
    %c0_136 = arith.constant 0 : index
    %c0_137 = arith.constant 0 : index
    %130 = vector.load %arg10[%c0_136, %c0_137] : memref<4x8xbf16, #tpu.memory_space<vmem>>, vector<4x8xbf16>
    %cst_138 = arith.constant dense<0.000000e+00> : vector<256x8xf32>
    %131 = tpu.matmul %129, %130, %cst_138 {dimension_numbers = #tpu.dot_dimension_numbers<[1], [0], [0], [1], [0, 0, 1, 1], [], []>} : vector<256x4xbf16>, vector<4x8xbf16>, vector<256x8xf32> -> vector<256x8xf32>
    %c0_139 = arith.constant 0 : index
    %c0_140 = arith.constant 0 : index
    %132 = vector.load %arg11[%c0_139, %c0_140] : memref<1x8xf32, #tpu.memory_space<vmem>>, vector<1x8xf32>
    %133 = vector.broadcast %132 : vector<1x8xf32> to vector<256x8xf32>
    %134 = arith.addf %131, %133 : vector<256x8xf32>
    %135 = arith.addf %127, %134 : vector<256x8xf32>
    %c0_141 = arith.constant 0 : index
    %c0_142 = arith.constant 0 : index
    %c0_143 = arith.constant 0 : index
    %136 = vector.load %arg12[%c0_141, %c0_142, %c0_143] : memref<1x256x8xf32, #tpu.memory_space<vmem>>, vector<1x256x8xf32>
    %137 = vector.shape_cast %136 : vector<1x256x8xf32> to vector<256x8xf32>
    %138 = vector.shape_cast %135 : vector<256x8xf32> to vector<1x256x8xf32>
    tpu.vector_store %arg12[%c0_141, %c0_142, %c0_143], %138 {strides = array<i32>} : memref<1x256x8xf32, #tpu.memory_space<vmem>>, vector<1x256x8xf32>,
    return
  }
  func.func @transform_0(%arg0: i32, %arg1: i32) -> (i32, i32, i32, i32, i32) {
    %c0_i32 = arith.constant 0 : i32
    %c0_i32_0 = arith.constant 0 : i32
    %c0_i32_1 = arith.constant 0 : i32
    %c0_i32_2 = arith.constant 0 : i32
    return %arg0, %arg1, %c0_i32, %c0_i32_0, %c0_i32_1 : i32, i32, i32, i32, i32
  }
  func.func @transform_1(%arg0: i32, %arg1: i32) -> (i32, i32, i32) {
    %c0_i32 = arith.constant 0 : i32
    %c0_i32_0 = arith.constant 0 : i32
    return %arg0, %arg1, %c0_i32 : i32, i32, i32
  }
  func.func @transform_2(%arg0: i32, %arg1: i32) -> (i32, i32) {
    %c0_i32 = arith.constant 0 : i32
    %c0_i32_0 = arith.constant 0 : i32
    %c0_i32_1 = arith.constant 0 : i32
    return %c0_i32, %c0_i32_0 : i32, i32
  }
  func.func @transform_3(%arg0: i32, %arg1: i32) -> (i32, i32) {
    %c0_i32 = arith.constant 0 : i32
    %c0_i32_0 = arith.constant 0 : i32
    %c0_i32_1 = arith.constant 0 : i32
    return %c0_i32, %c0_i32_0 : i32, i32
  }
  func.func @transform_4(%arg0: i32, %arg1: i32) -> (i32, i32) {
    %c0_i32 = arith.constant 0 : i32
    %c0_i32_0 = arith.constant 0 : i32
    %c0_i32_1 = arith.constant 0 : i32
    return %c0_i32, %c0_i32_0 : i32, i32
  }
  func.func @transform_5(%arg0: i32, %arg1: i32) -> (i32, i32) {
    %c0_i32 = arith.constant 0 : i32
    %c0_i32_0 = arith.constant 0 : i32
    %c0_i32_1 = arith.constant 0 : i32
    return %c0_i32, %c0_i32_0 : i32, i32
  }
  func.func @transform_6(%arg0: i32, %arg1: i32) -> (i32, i32) {
    %c0_i32 = arith.constant 0 : i32
    %c0_i32_0 = arith.constant 0 : i32
    %c0_i32_1 = arith.constant 0 : i32
    return %c0_i32, %c0_i32_0 : i32, i32
  }
  func.func @transform_7(%arg0: i32, %arg1: i32) -> (i32, i32) {
    %c0_i32 = arith.constant 0 : i32
    %c0_i32_0 = arith.constant 0 : i32
    %c0_i32_1 = arith.constant 0 : i32
    return %c0_i32, %c0_i32_0 : i32, i32
  }
  func.func @transform_8(%arg0: i32, %arg1: i32) -> (i32, i32) {
    %c0_i32 = arith.constant 0 : i32
    %c0_i32_0 = arith.constant 0 : i32
    %c0_i32_1 = arith.constant 0 : i32
    return %c0_i32, %c0_i32_0 : i32, i32
  }
  func.func @transform_9(%arg0: i32, %arg1: i32) -> (i32, i32) {
    %c0_i32 = arith.constant 0 : i32
    %c0_i32_0 = arith.constant 0 : i32
    %c0_i32_1 = arith.constant 0 : i32
    return %c0_i32, %c0_i32_0 : i32, i32
  }
  func.func @transform_10(%arg0: i32, %arg1: i32) -> (i32, i32, i32) {
    %c0_i32 = arith.constant 0 : i32
    %c0_i32_0 = arith.constant 0 : i32
    return %arg0, %arg1, %c0_i32 : i32, i32, i32
  }
}

</mosaic_0001>

<llo_original>
// kernel: tpu_custom_call.1
$region0: #{tpu_custom_call.1}
  #allocation0 [shape = 'u32[]', space=smem, size = 0x4, offset = 0x4, fixed_abs, tag = 'smem constant byte address 0x4 - core index']
  #allocation1 [shape = 'u32[144,128]{1,0:T(1,128)}', space=vmem, size = 0x12000, scoped, tag = 'internal scratch']
  #allocation2 [shape = 'bf16[10,34,8]{2,1,0:T(8,128)(2,1)}', space=vmem, size = 0x19000, scoped, tag = 'scratch operand']
  %s0 = inlined_call_operand.hbm [shape: bf16[2,4,12,34,4], index: 0, kind: input, shape index: {}]
  %s1 = inlined_call_operand.hbm [shape: bf16[2,1024,4], index: 1, kind: input, shape index: {}]
  %s2 = inlined_call_operand.hbm [shape: bf16[36,8], index: 2, kind: input, shape index: {}]
  %s3 = inlined_call_operand.hbm [shape: f32[1,8], index: 3, kind: input, shape index: {}]
  %s4 = inlined_call_operand.hbm [shape: f32[1,8], index: 4, kind: input, shape index: {}]
  %s5 = inlined_call_operand.hbm [shape: f32[1,8], index: 5, kind: input, shape index: {}]
  %s6 = inlined_call_operand.hbm [shape: bf16[72,8], index: 6, kind: input, shape index: {}]
  %s7 = inlined_call_operand.hbm [shape: f32[1,8], index: 7, kind: input, shape index: {}]
  %s8 = inlined_call_operand.hbm [shape: bf16[4,8], index: 8, kind: input, shape index: {}]
  %s9 = inlined_call_operand.hbm [shape: f32[1,8], index: 9, kind: input, shape index: {}]
  %s10 = inlined_call_operand.hbm [shape: f32[2,1024,8], index: 10, kind: output, shape index: {}]
  %s11 = sld [smem:[#allocation0]]
  $region121: #{tpu_custom_call.1} parent=0
    _
  %s13 = ssub.s32 1, %s11
  %s14 = scalar_select 0, %s13, %s11
  $region1: #{tpu_custom_call.1} parent=0
    #allocation3 [shape = 'u8[245760]{0}', space=vmem, size = 0x3c000, scoped, tag = 'input window, operand 0']
    #allocation4 [shape = 's32[2]{0}', space=sflag, size = 0x8, scoped, tag = 'scoped memory for tpu_custom_call.1']
    #allocation5 [shape = 's32[2]{0}', space=sflag, size = 0x8, scoped, tag = 'scoped memory for tpu_custom_call.1']
    #allocation6 [shape = 'u8[131072]{0}', space=vmem, size = 0x20000, scoped, tag = 'input window, operand 1']
    #allocation7 [shape = 's32[2]{0}', space=sflag, size = 0x8, scoped, tag = 'scoped memory for tpu_custom_call.1']
    #allocation8 [shape = 'u8[10240]{0}', space=vmem, size = 0x2800, scoped, tag = 'input window, operand 2, single buffered']
    #allocation9 [shape = 'u8[512]{0}', space=vmem, size = 0x400, scoped, tag = 'input window, operand 3, single buffered']
    #allocation10 [shape = 's32[1]{0}', space=sflag, size = 0x4, scoped, tag = 'scoped memory for tpu_custom_call.1']
    #allocation11 [shape = 'u8[512]{0}', space=vmem, size = 0x400, scoped, tag = 'input window, operand 4, single buffered']
    #allocation12 [shape = 'u8[512]{0}', space=vmem, size = 0x400, scoped, tag = 'input window, operand 5, single buffered']
    #allocation13 [shape = 's32[1]{0}', space=sflag, size = 0x4, scoped, tag = 'scoped memory for tpu_custom_call.1']
    #allocation14 [shape = 'u8[18432]{0}', space=vmem, size = 0x4800, scoped, tag = 'input window, operand 6, single buffered']
    #allocation15 [shape = 'u8[512]{0}', space=vmem, size = 0x400, scoped, tag = 'input window, operand 7, single buffered']
    #allocation16 [shape = 's32[1]{0}', space=sflag, size = 0x4, scoped, tag = 'scoped memory for tpu_custom_call.1']
    #allocation17 [shape = 'u8[1024]{0}', space=vmem, size = 0x400, scoped, tag = 'input window, operand 8, single buffered']
    #allocation18 [shape = 'u8[512]{0}', space=vmem, size = 0x400, scoped, tag = 'input window, operand 9, single buffered']
    #allocation19 [shape = 's32[1]{0}', space=sflag, size = 0x4, scoped, tag = 'scoped memory for tpu_custom_call.1']
    #allocation20 [shape = 'u8[262144]{0}', space=vmem, size = 0x40000, scoped, tag = 'output window, operand 0']
    %15 = vsyncpa [#allocation4], 0
    %s16 = scalar_lea.sflag [#allocation4], 1
    %17 = vsyncpa %s16, 0
    %18 = vsyncpa [#allocation7], 0
    %s19 = scalar_lea.sflag [#allocation7], 1
    %20 = vsyncpa %s19, 0
    %21 = vsyncpa [#allocation10], 0
    %22 = vsyncpa [#allocation13], 0
    %23 = vsyncpa [#allocation16], 0
    %24 = vsyncpa [#allocation19], 0
    %25 = vsyncpa [#allocation5], 0
    %s26 = scalar_lea.sflag [#allocation5], 1
    %27 = vsyncpa %s26, 0
    loop: start=0, step=1, limit=10
    $region2: #{tpu_custom_call.1} parent=1 // loop_pre_header
      _
    $region3: #{tpu_custom_call.1} parent=1 // loop_header
      %s29 = sphi 0, %s33
      %p30 = scmp.ge.s32.totalorder %s29, 10
      %s36 = sphi 0, %s48
      %s37 = sphi 0, %s44
      %s38 = sphi 0, %s36
      %s39 = sphi 0, %s37
      %s40 = sphi 0, %s38
      %s41 = sphi 0, %s39
      %s53 = sphi 0, %s55
      %s56 = sphi 0, %s53
      %s57 = sphi 0, %s56
      %s73 = sphi 0, %s57
      %s81 = sphi 0, %s83
      %s84 = sphi 0, %s81
      %s85 = sphi 0, %s84
      %s101 = sphi 0, %s85
      %s105 = sphi 0, %s105
      %s107 = sphi 0, %s105
      %s108 = sphi 0, %s107
      %s122 = sphi 0, %s108
      %s126 = sphi 0, %s126
      %s128 = sphi 0, %s126
      %s129 = sphi 0, %s128
      %s143 = sphi 0, %s129
      %s147 = sphi 0, %s147
      %s149 = sphi 0, %s147
      %s150 = sphi 0, %s149
      %s164 = sphi 0, %s150
      %s168 = sphi 0, %s168
      %s170 = sphi 0, %s168
      %s171 = sphi 0, %s170
      %s185 = sphi 0, %s171
      %s189 = sphi 0, %s189
      %s191 = sphi 0, %s189
      %s192 = sphi 0, %s191
      %s206 = sphi 0, %s192
      %s210 = sphi 0, %s210
      %s212 = sphi 0, %s210
      %s213 = sphi 0, %s212
      %s227 = sphi 0, %s213
      %s231 = sphi 0, %s231
      %s233 = sphi 0, %s231
      %s234 = sphi 0, %s233
      %s248 = sphi 0, %s234
      %s252 = sphi 0, %s252
      %s254 = sphi 0, %s252
      %s255 = sphi 0, %s254
      %s269 = sphi 0, %s255
      %s277 = sphi 0, %s279
      %s280 = sphi 0, %s277
      %s281 = sphi 0, %s280
      %s297 = sphi 0, %s281
    $region4: #{tpu_custom_call.1} parent=1 // loop_header_branch
      %32 = sbr.rel (%p30) target = $region8
    $region5: #{tpu_custom_call.1} parent=1 // loop_body
      %s34 = ssub.s32 %s29, 1
      %s35 = ssub.s32 %s29, 2
      %s42 = sadd.s32 1, %s37
      %p43 = scmp.ge.s32.totalorder %s42, 4
      %s44 = scalar_select %p43, 0, %s42
      %s45 = sadd.s32 1, %s36
      %s46 = scalar_select %p43, %s45, %s36
      %p47 = scmp.ge.s32.totalorder %s46, 2
      %s48 = scalar_select %p47, 0, %s46
      %s49 = ssub.s32 %s36, %s48
      %s50 = ssub.s32 %s37, %s44
      %s51 = sor.u32 %s49, %s50
      %p52 = scmp.eq.s32.totalorder %s51, 0
      %s54 = sadd.s32 %s53, 1
      %s55 = scalar_select %p52, %s53, %s54
      %p58 = pneg %p52
      %p59 = scmp.eq.s32.totalorder %s29, 7
      %p60 = por %p58, %p59
      %p61 = scmp.ne.s32.totalorder %s53, %s56
      %p62 = scmp.eq.s32.totalorder %s29, 0
      %p63 = por %p61, %p62
      %p64 = scmp.ne.s32.totalorder %s53, %s56
      %p65 = scmp.eq.s32.totalorder %s34, 7
      %p66 = por %p64, %p65
      %p67 = scmp.ne.s32.totalorder %s56, %s57
      %p68 = scmp.eq.s32.totalorder %s34, 0
      %p69 = por %p67, %p68
      %p70 = scmp.ne.s32.totalorder %s56, %s57
      %p71 = scmp.eq.s32.totalorder %s35, 7
      %p72 = por %p70, %p71
      %p74 = scmp.ne.s32.totalorder %s57, %s73
      %p75 = scmp.eq.s32.totalorder %s35, 0
      %p76 = por %p74, %p75
      %s77 = ssub.s32 %s36, %s48
      %s78 = ssub.s32 %s37, %s44
      %s79 = sor.u32 %s77, %s78
      %p80 = scmp.eq.s32.totalorder %s79, 0
      %s82 = sadd.s32 %s81, 1
      %s83 = scalar_select %p80, %s81, %s82
      %p86 = pneg %p80
      %p87 = scmp.eq.s32.totalorder %s29, 7
      %p88 = por %p86, %p87
      %p89 = scmp.ne.s32.totalorder %s81, %s84
      %p90 = scmp.eq.s32.totalorder %s29, 0
      %p91 = por %p89, %p90
      %p92 = scmp.ne.s32.totalorder %s81, %s84
      %p93 = scmp.eq.s32.totalorder %s34, 7
      %p94 = por %p92, %p93
      %p95 = scmp.ne.s32.totalorder %s84, %s85
      %p96 = scmp.eq.s32.totalorder %s34, 0
      %p97 = por %p95, %p96
      %p98 = scmp.ne.s32.totalorder %s84, %s85
      %p99 = scmp.eq.s32.totalorder %s35, 7
      %p100 = por %p98, %p99
      %p102 = scmp.ne.s32.totalorder %s85, %s101
      %p103 = scmp.eq.s32.totalorder %s35, 0
      %p104 = por %p102, %p103
      %s106 = sadd.s32 %s105, 1
      %p109 = scmp.eq.s32.totalorder %s29, 7
      %p110 = scmp.ne.s32.totalorder %s105, %s107
      %p111 = scmp.eq.s32.totalorder %s29, 0
      %p112 = por %p110, %p111
      %p113 = scmp.ne.s32.totalorder %s105, %s107
      %p114 = scmp.eq.s32.totalorder %s34, 7
      %p115 = por %p113, %p114
      %p116 = scmp.ne.s32.totalorder %s107, %s108
      %p117 = scmp.eq.s32.totalorder %s34, 0
      %p118 = por %p116, %p117
      %p119 = scmp.ne.s32.totalorder %s107, %s108
      %p120 = scmp.eq.s32.totalorder %s35, 7
      %p121 = por %p119, %p120
      %p123 = scmp.ne.s32.totalorder %s108, %s122
      %p124 = scmp.eq.s32.totalorder %s35, 0
      %p125 = por %p123, %p124
      %s127 = sadd.s32 %s126, 1
      %p130 = scmp.eq.s32.totalorder %s29, 7
      %p131 = scmp.ne.s32.totalorder %s126, %s128
      %p132 = scmp.eq.s32.totalorder %s29, 0
      %p133 = por %p131, %p132
      %p134 = scmp.ne.s32.totalorder %s126, %s128
      %p135 = scmp.eq.s32.totalorder %s34, 7
      %p136 = por %p134, %p135
      %p137 = scmp.ne.s32.totalorder %s128, %s129
      %p138 = scmp.eq.s32.totalorder %s34, 0
      %p139 = por %p137, %p138
      %p140 = scmp.ne.s32.totalorder %s128, %s129
      %p141 = scmp.eq.s32.totalorder %s35, 7
      %p142 = por %p140, %p141
      %p144 = scmp.ne.s32.totalorder %s129, %s143
      %p145 = scmp.eq.s32.totalorder %s35, 0
      %p146 = por %p144, %p145
      %s148 = sadd.s32 %s147, 1
      %p151 = scmp.eq.s32.totalorder %s29, 7
      %p152 = scmp.ne.s32.totalorder %s147, %s149
      %p153 = scmp.eq.s32.totalorder %s29, 0
      %p154 = por %p152, %p153
      %p155 = scmp.ne.s32.totalorder %s147, %s149
      %p156 = scmp.eq.s32.totalorder %s34, 7
      %p157 = por %p155, %p156
      %p158 = scmp.ne.s32.totalorder %s149, %s150
      %p159 = scmp.eq.s32.totalorder %s34, 0
      %p160 = por %p158, %p159
      %p161 = scmp.ne.s32.totalorder %s149, %s150
      %p162 = scmp.eq.s32.totalorder %s35, 7
      %p163 = por %p161, %p162
      %p165 = scmp.ne.s32.totalorder %s150, %s164
      %p166 = scmp.eq.s32.totalorder %s35, 0
      %p167 = por %p165, %p166
      %s169 = sadd.s32 %s168, 1
      %p172 = scmp.eq.s32.totalorder %s29, 7
      %p173 = scmp.ne.s32.totalorder %s168, %s170
      %p174 = scmp.eq.s32.totalorder %s29, 0
      %p175 = por %p173, %p174
      %p176 = scmp.ne.s32.totalorder %s168, %s170
      %p177 = scmp.eq.s32.totalorder %s34, 7
      %p178 = por %p176, %p177
      %p179 = scmp.ne.s32.totalorder %s170, %s171
      %p180 = scmp.eq.s32.totalorder %s34, 0
      %p181 = por %p179, %p180
      %p182 = scmp.ne.s32.totalorder %s170, %s171
      %p183 = scmp.eq.s32.totalorder %s35, 7
      %p184 = por %p182, %p183
      %p186 = scmp.ne.s32.totalorder %s171, %s185
      %p187 = scmp.eq.s32.totalorder %s35, 0
      %p188 = por %p186, %p187
      %s190 = sadd.s32 %s189, 1
      %p193 = scmp.eq.s32.totalorder %s29, 7
      %p194 = scmp.ne.s32.totalorder %s189, %s191
      %p195 = scmp.eq.s32.totalorder %s29, 0
      %p196 = por %p194, %p195
      %p197 = scmp.ne.s32.totalorder %s189, %s191
      %p198 = scmp.eq.s32.totalorder %s34, 7
      %p199 = por %p197, %p198
      %p200 = scmp.ne.s32.totalorder %s191, %s192
      %p201 = scmp.eq.s32.totalorder %s34, 0
      %p202 = por %p200, %p201
      %p203 = scmp.ne.s32.totalorder %s191, %s192
      %p204 = scmp.eq.s32.totalorder %s35, 7
      %p205 = por %p203, %p204
      %p207 = scmp.ne.s32.totalorder %s192, %s206
      %p208 = scmp.eq.s32.totalorder %s35, 0
      %p209 = por %p207, %p208
      %s211 = sadd.s32 %s210, 1
      %p214 = scmp.eq.s32.totalorder %s29, 7
      %p215 = scmp.ne.s32.totalorder %s210, %s212
      %p216 = scmp.eq.s32.totalorder %s29, 0
      %p217 = por %p215, %p216
      %p218 = scmp.ne.s32.totalorder %s210, %s212
      %p219 = scmp.eq.s32.totalorder %s34, 7
      %p220 = por %p218, %p219
      %p221 = scmp.ne.s32.totalorder %s212, %s213
      %p222 = scmp.eq.s32.totalorder %s34, 0
      %p223 = por %p221, %p222
      %p224 = scmp.ne.s32.totalorder %s212, %s213
      %p225 = scmp.eq.s32.totalorder %s35, 7
      %p226 = por %p224, %p225
      %p228 = scmp.ne.s32.totalorder %s213, %s227
      %p229 = scmp.eq.s32.totalorder %s35, 0
      %p230 = por %p228, %p229
      %s232 = sadd.s32 %s231, 1
      %p235 = scmp.eq.s32.totalorder %s29, 7
      %p236 = scmp.ne.s32.totalorder %s231, %s233
      %p237 = scmp.eq.s32.totalorder %s29, 0
      %p238 = por %p236, %p237
      %p239 = scmp.ne.s32.totalorder %s231, %s233
      %p240 = scmp.eq.s32.totalorder %s34, 7
      %p241 = por %p239, %p240
      %p242 = scmp.ne.s32.totalorder %s233, %s234
      %p243 = scmp.eq.s32.totalorder %s34, 0
      %p244 = por %p242, %p243
      %p245 = scmp.ne.s32.totalorder %s233, %s234
      %p246 = scmp.eq.s32.totalorder %s35, 7
      %p247 = por %p245, %p246
      %p249 = scmp.ne.s32.totalorder %s234, %s248
      %p250 = scmp.eq.s32.totalorder %s35, 0
      %p251 = por %p249, %p250
      %s253 = sadd.s32 %s252, 1
      %p256 = scmp.eq.s32.totalorder %s29, 7
      %p257 = scmp.ne.s32.totalorder %s252, %s254
      %p258 = scmp.eq.s32.totalorder %s29, 0
      %p259 = por %p257, %p258
      %p260 = scmp.ne.s32.totalorder %s252, %s254
      %p261 = scmp.eq.s32.totalorder %s34, 7
      %p262 = por %p260, %p261
      %p263 = scmp.ne.s32.totalorder %s254, %s255
      %p264 = scmp.eq.s32.totalorder %s34, 0
      %p265 = por %p263, %p264
      %p266 = scmp.ne.s32.totalorder %s254, %s255
      %p267 = scmp.eq.s32.totalorder %s35, 7
      %p268 = por %p266, %p267
      %p270 = scmp.ne.s32.totalorder %s255, %s269
      %p271 = scmp.eq.s32.totalorder %s35, 0
      %p272 = por %p270, %p271
      %s273 = ssub.s32 %s36, %s48
      %s274 = ssub.s32 %s37, %s44
      %s275 = sor.u32 %s273, %s274
      %p276 = scmp.eq.s32.totalorder %s275, 0
      %s278 = sadd.s32 %s277, 1
      %s279 = scalar_select %p276, %s277, %s278
      %p282 = pneg %p276
      %p283 = scmp.eq.s32.totalorder %s29, 7
      %p284 = por %p282, %p283
      %p285 = scmp.ne.s32.totalorder %s277, %s280
      %p286 = scmp.eq.s32.totalorder %s29, 0
      %p287 = por %p285, %p286
      %p288 = scmp.ne.s32.totalorder %s277, %s280
      %p289 = scmp.eq.s32.totalorder %s34, 7
      %p290 = por %p288, %p289
      %p291 = scmp.ne.s32.totalorder %s280, %s281
      %p292 = scmp.eq.s32.totalorder %s34, 0
      %p293 = por %p291, %p292
      %p294 = scmp.ne.s32.totalorder %s280, %s281
      %p295 = scmp.eq.s32.totalorder %s35, 7
      %p296 = por %p294, %p295
      %p298 = scmp.ne.s32.totalorder %s281, %s297
      %p299 = scmp.eq.s32.totalorder %s35, 0
      %p300 = por %p298, %p299
      %p301 = scmp.le.s32.totalorder 1, %s29
      %p302 = scmp.lt.s32.totalorder %s29, 9
      %p303 = pnand %p301, %p302
      %p304 = pneg %p303
      // Predicated region
      $region9: #{tpu_custom_call.1} parent=5 // pred_check
        _
      $region10: #{tpu_custom_call.1} parent=5 // pred_check_branch
        %306 = sbr.rel (%p303) target = $region12
      $region11: #{tpu_custom_call.1} parent=5 // pred_region
        %s307 = ssub.s32 %s29, 1
        // Predicated region
        $region13: #{tpu_custom_call.1} parent=11 // pred_check
          %p308 = pneg %p118
        $region14: #{tpu_custom_call.1} parent=11 // pred_check_branch
          %310 = sbr.rel (%p308) target = $region16
        $region15: #{tpu_custom_call.1} parent=11 // pred_region
          %s312 = ssub.s32 320, 320
          %313 = vsyncadd [#allocation7], %s312
          %s314 = sshll.u32 [#allocation8], 4
          %s315 = int_to_ptr.vmem [resolvable:$true] %s314
          %320 = dma.hbm_to_vmem [thread:$0]  %s2, 320, %s315, [#allocation7], 64, 64, 4
        $region16: #{tpu_custom_call.1} parent=11 // pred_fallthru
          _
        // Predicated region
        $region17: #{tpu_custom_call.1} parent=11 // pred_check
          %p321 = pneg %p139
        $region18: #{tpu_custom_call.1} parent=11 // pred_check_branch
          %323 = sbr.rel (%p321) target = $region20
        $region19: #{tpu_custom_call.1} parent=11 // pred_region
          %s325 = ssub.s32 16, 16
          %326 = vsyncadd [#allocation10], %s325
          %s328 = sshll.u32 [#allocation9], 4
          %s329 = int_to_ptr.vmem [resolvable:$true] %s328
          %331 = dma.hbm_to_vmem [thread:$0]  %s3, 16, %s329, [#allocation10]
        $region20: #{tpu_custom_call.1} parent=11 // pred_fallthru
          _
        // Predicated region
        $region21: #{tpu_custom_call.1} parent=11 // pred_check
          %p332 = pneg %p160
        $region22: #{tpu_custom_call.1} parent=11 // pred_check_branch
          %334 = sbr.rel (%p332) target = $region24
        $region23: #{tpu_custom_call.1} parent=11 // pred_region
          %s336 = ssub.s32 16, 16
          %337 = vsyncadd [#allocation10], %s336
          %s339 = sshll.u32 [#allocation11], 4
          %s340 = int_to_ptr.vmem [resolvable:$true] %s339
          %342 = dma.hbm_to_vmem [thread:$0]  %s4, 16, %s340, [#allocation10]
        $region24: #{tpu_custom_call.1} parent=11 // pred_fallthru
          _
        // Predicated region
        $region25: #{tpu_custom_call.1} parent=11 // pred_check
          %p343 = pneg %p181
        $region26: #{tpu_custom_call.1} parent=11 // pred_check_branch
          %345 = sbr.rel (%p343) target = $region28
        $region27: #{tpu_custom_call.1} parent=11 // pred_region
          %s347 = ssub.s32 16, 16
          %348 = vsyncadd [#allocation13], %s347
          %s350 = sshll.u32 [#allocation12], 4
          %s351 = int_to_ptr.vmem [resolvable:$true] %s350
          %353 = dma.hbm_to_vmem [thread:$0]  %s5, 16, %s351, [#allocation13]
        $region28: #{tpu_custom_call.1} parent=11 // pred_fallthru
          _
        // Predicated region
        $region29: #{tpu_custom_call.1} parent=11 // pred_check
          %p354 = pneg %p202
        $region30: #{tpu_custom_call.1} parent=11 // pred_check_branch
          %356 = sbr.rel (%p354) target = $region32
        $region31: #{tpu_custom_call.1} parent=11 // pred_region
          %s358 = ssub.s32 576, 576
          %359 = vsyncadd [#allocation13], %s358
          %s360 = sshll.u32 [#allocation14], 4
          %s361 = int_to_ptr.vmem [resolvable:$true] %s360
          %366 = dma.hbm_to_vmem [thread:$0]  %s6, 576, %s361, [#allocation13], 64, 64, 4
        $region32: #{tpu_custom_call.1} parent=11 // pred_fallthru
          _
        // Predicated region
        $region33: #{tpu_custom_call.1} parent=11 // pred_check
          %p367 = pneg %p223
        $region34: #{tpu_custom_call.1} parent=11 // pred_check_branch
          %369 = sbr.rel (%p367) target = $region36
        $region35: #{tpu_custom_call.1} parent=11 // pred_region
          %s371 = ssub.s32 16, 16
          %372 = vsyncadd [#allocation16], %s371
          %s374 = sshll.u32 [#allocation15], 4
          %s375 = int_to_ptr.vmem [resolvable:$true] %s374
          %377 = dma.hbm_to_vmem [thread:$0]  %s7, 16, %s375, [#allocation16]
        $region36: #{tpu_custom_call.1} parent=11 // pred_fallthru
          _
        // Predicated region
        $region37: #{tpu_custom_call.1} parent=11 // pred_check
          %p378 = pneg %p244
        $region38: #{tpu_custom_call.1} parent=11 // pred_check_branch
          %380 = sbr.rel (%p378) target = $region40
        $region39: #{tpu_custom_call.1} parent=11 // pred_region
          %s382 = ssub.s32 32, 32
          %383 = vsyncadd [#allocation16], %s382
          %s385 = sshll.u32 [#allocation17], 4
          %s386 = int_to_ptr.vmem [resolvable:$true] %s385
          %388 = dma.hbm_to_vmem [thread:$0]  %s8, 32, %s386, [#allocation16]
        $region40: #{tpu_custom_call.1} parent=11 // pred_fallthru
          _
        // Predicated region
        $region41: #{tpu_custom_call.1} parent=11 // pred_check
          %p389 = pneg %p265
        $region42: #{tpu_custom_call.1} parent=11 // pred_check_branch
          %391 = sbr.rel (%p389) target = $region44
        $region43: #{tpu_custom_call.1} parent=11 // pred_region
          %s393 = ssub.s32 16, 16
          %394 = vsyncadd [#allocation19], %s393
          %s396 = sshll.u32 [#allocation18], 4
          %s397 = int_to_ptr.vmem [resolvable:$true] %s396
          %399 = dma.hbm_to_vmem [thread:$0]  %s9, 16, %s397, [#allocation19]
        $region44: #{tpu_custom_call.1} parent=11 // pred_fallthru
          _
      $region12: #{tpu_custom_call.1} parent=5 // pred_fallthru
        _
      %p400 = scmp.lt.s32.totalorder %s29, 8
      // Predicated region
      $region45: #{tpu_custom_call.1} parent=5 // pred_check
        %p401 = pneg %p400
      $region46: #{tpu_custom_call.1} parent=5 // pred_check_branch
        %403 = sbr.rel (%p401) target = $region48
      $region47: #{tpu_custom_call.1} parent=5 // pred_region
        // Predicated region
        $region49: #{tpu_custom_call.1} parent=47 // pred_check
          %p404 = pneg %p63
        $region50: #{tpu_custom_call.1} parent=47 // pred_check_branch
          %406 = sbr.rel (%p404) target = $region52
        $region51: #{tpu_custom_call.1} parent=47 // pred_region
          %s407 = sand.u32 %s53, 1
          %s408 = scalar_lea.sflag [#allocation4], %s407
          %s409 = sand.u32 %s53, 1
          %s410 = smul.addr %s409, 240
          %s411 = scalar_lea.vmem [#allocation3], %s410
          %s413 = ssub.s32 3840, 3840
          %414 = vsyncadd %s408, %s413
          %s415 = smul.addr %s37, 60
          %s416 = smul.addr %s36, 240
          %s417 = sadd.s32 %s415, %s416
          %s418 = smul.addr %s417, 64
          %s419 = scalar_lea.hbm %s0, %s418
          %s420 = sshll.u32 %s411, 4
          %s421 = int_to_ptr.vmem [resolvable:$true] %s420
          %426 = dma.hbm_to_vmem [thread:$0]  %s419, 3840, %s421, %s408, 64, 64, 4
        $region52: #{tpu_custom_call.1} parent=47 // pred_fallthru
          _
        // Predicated region
        $region53: #{tpu_custom_call.1} parent=47 // pred_check
          %p427 = pneg %p91
        $region54: #{tpu_custom_call.1} parent=47 // pred_check_branch
          %429 = sbr.rel (%p427) target = $region56
        $region55: #{tpu_custom_call.1} parent=47 // pred_region
          %s430 = sand.u32 %s29, 1
          %s431 = scalar_lea.sflag [#allocation7], %s430
          %s432 = sand.u32 %s81, 1
          %s433 = smul.addr %s432, 128
          %s434 = scalar_lea.vmem [#allocation6], %s433
          %s435 = smul.u32 32, %s37
          %s437 = ssub.s32 2048, 2048
          %438 = vsyncadd %s431, %s437
          %s439 = smul.addr %s36, 128
          %s440 = sadd.s32 %s435, %s439
          %s441 = smul.addr %s440, 64
          %s442 = scalar_lea.hbm %s1, %s441
          %s443 = sshll.u32 %s434, 4
          %s444 = int_to_ptr.vmem [resolvable:$true] %s443
          %449 = dma.hbm_to_vmem [thread:$0]  %s442, 2048, %s444, %s431, 64, 64, 4
        $region56: #{tpu_custom_call.1} parent=47 // pred_fallthru
          _
      $region48: #{tpu_custom_call.1} parent=5 // pred_fallthru
        _
      %p450 = scmp.le.s32.totalorder 1, %s29
      %p451 = scmp.lt.s32.totalorder %s29, 9
      %p452 = pnand %p450, %p451
      %p453 = pneg %p452
      // Predicated region
      $region57: #{tpu_custom_call.1} parent=5 // pred_check
        _
      $region58: #{tpu_custom_call.1} parent=5 // pred_check_branch
        %455 = sbr.rel (%p452) target = $region60
      $region59: #{tpu_custom_call.1} parent=5 // pred_region
        %s456 = ssub.s32 %s29, 1
        %s457 = sand.u32 %s56, 1
        %s458 = scalar_lea.sflag [#allocation4], %s457
        %s459 = sand.u32 %s56, 1
        %s460 = smul.addr %s459, 240
        %s461 = scalar_lea.vmem [#allocation3], %s460
        // Predicated region
        $region61: #{tpu_custom_call.1} parent=59 // pred_check
          %p462 = pneg %p69
        $region62: #{tpu_custom_call.1} parent=59 // pred_check_branch
          %464 = sbr.rel (%p462) target = $region64
        $region63: #{tpu_custom_call.1} parent=59 // pred_region
          %465 = dma.done %s458, 3840
        $region64: #{tpu_custom_call.1} parent=59 // pred_fallthru
          _
        %s466 = sand.u32 %s34, 1
        %s467 = scalar_lea.sflag [#allocation7], %s466
        %s468 = sand.u32 %s84, 1
        %s469 = smul.addr %s468, 128
        %s470 = scalar_lea.vmem [#allocation6], %s469
        // Predicated region
        $region65: #{tpu_custom_call.1} parent=59 // pred_check
          %p471 = pneg %p97
        $region66: #{tpu_custom_call.1} parent=59 // pred_check_branch
          %473 = sbr.rel (%p471) target = $region68
        $region67: #{tpu_custom_call.1} parent=59 // pred_region
          %474 = dma.done %s467, 2048
        $region68: #{tpu_custom_call.1} parent=59 // pred_fallthru
          _
        // Predicated region
        $region69: #{tpu_custom_call.1} parent=59 // pred_check
          %p475 = pneg %p118
        $region70: #{tpu_custom_call.1} parent=59 // pred_check_branch
          %477 = sbr.rel (%p475) target = $region72
        $region71: #{tpu_custom_call.1} parent=59 // pred_region
          %478 = dma.done [#allocation7], 320
        $region72: #{tpu_custom_call.1} parent=59 // pred_fallthru
          _
        // Predicated region
        $region73: #{tpu_custom_call.1} parent=59 // pred_check
          %p479 = pneg %p139
        $region74: #{tpu_custom_call.1} parent=59 // pred_check_branch
          %481 = sbr.rel (%p479) target = $region76
        $region75: #{tpu_custom_call.1} parent=59 // pred_region
          %482 = dma.done [#allocation10], 16
        $region76: #{tpu_custom_call.1} parent=59 // pred_fallthru
          _
        // Predicated region
        $region77: #{tpu_custom_call.1} parent=59 // pred_check
          %p483 = pneg %p160
        $region78: #{tpu_custom_call.1} parent=59 // pred_check_branch
          %485 = sbr.rel (%p483) target = $region80
        $region79: #{tpu_custom_call.1} parent=59 // pred_region
          %486 = dma.done [#allocation10], 16
        $region80: #{tpu_custom_call.1} parent=59 // pred_fallthru
          _
        // Predicated region
        $region81: #{tpu_custom_call.1} parent=59 // pred_check
          %p487 = pneg %p181
        $region82: #{tpu_custom_call.1} parent=59 // pred_check_branch
          %489 = sbr.rel (%p487) target = $region84
        $region83: #{tpu_custom_call.1} parent=59 // pred_region
          %490 = dma.done [#allocation13], 16
        $region84: #{tpu_custom_call.1} parent=59 // pred_fallthru
          _
        // Predicated region
        $region85: #{tpu_custom_call.1} parent=59 // pred_check
          %p491 = pneg %p202
        $region86: #{tpu_custom_call.1} parent=59 // pred_check_branch
          %493 = sbr.rel (%p491) target = $region88
        $region87: #{tpu_custom_call.1} parent=59 // pred_region
          %494 = dma.done [#allocation13], 576
        $region88: #{tpu_custom_call.1} parent=59 // pred_fallthru
          _
        // Predicated region
        $region89: #{tpu_custom_call.1} parent=59 // pred_check
          %p495 = pneg %p223
        $region90: #{tpu_custom_call.1} parent=59 // pred_check_branch
          %497 = sbr.rel (%p495) target = $region92
        $region91: #{tpu_custom_call.1} parent=59 // pred_region
          %498 = dma.done [#allocation16], 16
        $region92: #{tpu_custom_call.1} parent=59 // pred_fallthru
          _
        // Predicated region
        $region93: #{tpu_custom_call.1} parent=59 // pred_check
          %p499 = pneg %p244
        $region94: #{tpu_custom_call.1} parent=59 // pred_check_branch
          %501 = sbr.rel (%p499) target = $region96
        $region95: #{tpu_custom_call.1} parent=59 // pred_region
          %502 = dma.done [#allocation16], 32
        $region96: #{tpu_custom_call.1} parent=59 // pred_fallthru
          _
        // Predicated region
        $region97: #{tpu_custom_call.1} parent=59 // pred_check
          %p503 = pneg %p265
        $region98: #{tpu_custom_call.1} parent=59 // pred_check_branch
          %505 = sbr.rel (%p503) target = $region100
        $region99: #{tpu_custom_call.1} parent=59 // pred_region
          %506 = dma.done [#allocation19], 16
        $region100: #{tpu_custom_call.1} parent=59 // pred_fallthru
          _
        %s507 = sand.u32 %s56, 1
        %s508 = scalar_lea.sflag [#allocation4], %s507
        %s509 = sand.u32 %s56, 1
        %s510 = smul.addr %s509, 240
        %s511 = scalar_lea.vmem [#allocation3], %s510
        %p512 = pneg %p69
        %p513 = pneg %p66
        %s514 = sand.u32 %s34, 1
        %s515 = scalar_lea.sflag [#allocation7], %s514
        %s516 = sand.u32 %s84, 1
        %s517 = smul.addr %s516, 128
        %s518 = scalar_lea.vmem [#allocation6], %s517
        %p519 = pneg %p97
        %p520 = pneg %p94
        %p521 = pneg %p118
        %p522 = pneg %p115
        %p523 = pneg %p139
        %p524 = pneg %p136
        %p525 = pneg %p160
        %p526 = pneg %p157
        %p527 = pneg %p181
        %p528 = pneg %p178
        %p529 = pneg %p202
        %p530 = pneg %p199
        %p531 = pneg %p223
        %p532 = pneg %p220
        %p533 = pneg %p244
        %p534 = pneg %p241
        %p535 = pneg %p265
        %p536 = pneg %p262
        %p537 = pneg %p293
        %p538 = pneg %p290
        %s539 = sand.u32 %s280, 1
        %s540 = scalar_lea.sflag [#allocation5], %s539
        %s541 = sand.u32 %s280, 1
        %s542 = smul.addr %s541, 256
        %s543 = scalar_lea.vmem [#allocation20], %s542
        %s544 = smul.u32 32, %s39
        %s545 = smul.u32 32, %s39
        %v547 = vld [vmem:[#allocation9] sm:$0x1]
        %v548 = vld [vmem:[#allocation11] sm:$0x1]
        %v549 = vld [vmem:[#allocation12] sm:$0x1]
        %v550 = vld [vmem:[#allocation15] sm:$0x1]
        %v551 = vld [vmem:[%s461] sm:$0xf]
        %v552 = vld [vmem:[%s461 + $0x4] sm:$0xf]
        %v553 = vld [vmem:[%s461 + $0x8] sm:$0xf]
        %v554 = vld [vmem:[%s461 + $0xc] sm:$0xf]
        %v555 = vld [vmem:[%s461 + $0x14] sm:$0xf]
        %v556 = vld [vmem:[%s461 + $0x18] sm:$0xf]
        %v557 = vld [vmem:[%s461 + $0x1c] sm:$0xf]
        %v558 = vld [vmem:[%s461 + $0x20] sm:$0xf]
        %v559 = vld [vmem:[%s461 + $0x28] sm:$0xf]
        %v560 = vld [vmem:[%s461 + $0x2c] sm:$0xf]
        %v561 = vld [vmem:[%s461 + $0x30] sm:$0xf]
        %v562 = vld [vmem:[%s461 + $0x34] sm:$0xf]
        %v563 = vld [vmem:[%s461 + $0x3c] sm:$0xf]
        %v564 = vld [vmem:[%s461 + $0x40] sm:$0xf]
        %v565 = vld [vmem:[%s461 + $0x44] sm:$0xf]
        %v566 = vld [vmem:[%s461 + $0x48] sm:$0xf]
        %v567 = vld [vmem:[%s461 + $0x50] sm:$0xf]
        %v568 = vld [vmem:[%s461 + $0x54] sm:$0xf]
        %v569 = vld [vmem:[%s461 + $0x58] sm:$0xf]
        %v570 = vld [vmem:[%s461 + $0x5c] sm:$0xf]
        %v571 = vld [vmem:[%s461 + $0x64] sm:$0xf]
        %v572 = vld [vmem:[%s461 + $0x68] sm:$0xf]
        %v573 = vld [vmem:[%s461 + $0x6c] sm:$0xf]
        %v574 = vld [vmem:[%s461 + $0x70] sm:$0xf]
        %v575 = vld [vmem:[%s461 + $0x78] sm:$0xf]
        %v576 = vld [vmem:[%s461 + $0x7c] sm:$0xf]
        %v577 = vld [vmem:[%s461 + $0x80] sm:$0xf]
        %v578 = vld [vmem:[%s461 + $0x84] sm:$0xf]
        %v579 = vld [vmem:[%s461 + $0x8c] sm:$0xf]
        %v580 = vld [vmem:[%s461 + $0x90] sm:$0xf]
        %v581 = vld [vmem:[%s461 + $0x94] sm:$0xf]
        %v582 = vld [vmem:[%s461 + $0x98] sm:$0xf]
        %v583 = vld [vmem:[%s461 + $0xa0] sm:$0xf]
        %v584 = vld [vmem:[%s461 + $0xa4] sm:$0xf]
        %v585 = vld [vmem:[%s461 + $0xa8] sm:$0xf]
        %v586 = vld [vmem:[%s461 + $0xac] sm:$0xf]
        %v587 = vld [vmem:[%s461 + $0xb4] sm:$0xf]
        %v588 = vld [vmem:[%s461 + $0xb8] sm:$0xf]
        %v589 = vld [vmem:[%s461 + $0xbc] sm:$0xf]
        %v590 = vld [vmem:[%s461 + $0xc0] sm:$0xf]
        %v591 = vld [vmem:[#allocation8] sm:$0x3]
        %v592 = vld [vmem:[%s461 + $0x10] sm:$0x1]
        %v593 = vld [vmem:[%s461 + $0x24] sm:$0x1]
        %v594 = vld [vmem:[%s461 + $0x38] sm:$0x1]
        %v595 = vld [vmem:[%s461 + $0x4c] sm:$0x1]
        %v596 = vld [vmem:[%s461 + $0x60] sm:$0x1]
        %v597 = vld [vmem:[%s461 + $0x74] sm:$0x1]
        %v598 = vld [vmem:[%s461 + $0x88] sm:$0x1]
        %v599 = vld [vmem:[%s461 + $0x9c] sm:$0x1]
        %v600 = vld [vmem:[%s461 + $0xb0] sm:$0x1]
        %v601 = vld [vmem:[%s461 + $0xc4] sm:$0x1]
        %vm602 = vsmask.f32 3328
        %vm603 = vsmask.f32 7440
        %vm604 = vmor %vm602, %vm603
        %v606 = vshrl.u32 %v551, 16
        %v608 = vrot.slane %v606, 4
        %v609 = vshll.u32 %v551, 16
        %v611 = vrot.slane %v609, 5
        %v612 = vor.u32 %v608, %v611
        %v613 = vrot.slane %v612, 4
        %v615 = vshll.u32 %v552, 16
        %v617 = vrot.slane %v615, 5
        %v618 = vsel %vm604, %v613, %v617
        %v619 = vshrl.u32 %v552, 16
        %v621 = vrot.slane %v619, 4
        %v622 = vor.u32 %v621, %v617
        %v623 = vrot.slane %v622, 4
        %v625 = vshll.u32 %v553, 16
        %v627 = vrot.slane %v625, 5
        %v628 = vsel %vm604, %v623, %v627
        %v629 = vshrl.u32 %v553, 16
        %v631 = vrot.slane %v629, 4
        %v632 = vor.u32 %v631, %v627
        %v633 = vrot.slane %v632, 4
        %v635 = vshll.u32 %v554, 16
        %v637 = vrot.slane %v635, 5
        %v638 = vsel %vm604, %v633, %v637
        %v639 = vshrl.u32 %v554, 16
        %v641 = vrot.slane %v639, 4
        %v642 = vor.u32 %v641, %v637
        %v643 = vrot.slane %v642, 4
        %v645 = vshll.u32 %v592, 16
        %v647 = vrot.slane %v645, 5
        %v648 = vsel %vm604, %v643, %v647
        %v650 = vshrl.u32 %v555, 16
        %v652 = vrot.slane %v650, 4
        %v653 = vshll.u32 %v555, 16
        %v655 = vrot.slane %v653, 5
        %v656 = vor.u32 %v652, %v655
        %v657 = vrot.slane %v656, 4
        %v659 = vshll.u32 %v556, 16
        %v661 = vrot.slane %v659, 5
        %v662 = vsel %vm604, %v657, %v661
        %v663 = vshrl.u32 %v556, 16
        %v665 = vrot.slane %v663, 4
        %v666 = vor.u32 %v665, %v661
        %v667 = vrot.slane %v666, 4
        %v669 = vshll.u32 %v557, 16
        %v671 = vrot.slane %v669, 5
        %v672 = vsel %vm604, %v667, %v671
        %v673 = vshrl.u32 %v557, 16
        %v675 = vrot.slane %v673, 4
        %v676 = vor.u32 %v675, %v671
        %v677 = vrot.slane %v676, 4
        %v679 = vshll.u32 %v558, 16
        %v681 = vrot.slane %v679, 5
        %v682 = vsel %vm604, %v677, %v681
        %v683 = vshrl.u32 %v558, 16
        %v685 = vrot.slane %v683, 4
        %v686 = vor.u32 %v685, %v681
        %v687 = vrot.slane %v686, 4
        %v689 = vshll.u32 %v593, 16
        %v691 = vrot.slane %v689, 5
        %v692 = vsel %vm604, %v687, %v691
        %v694 = vshrl.u32 %v559, 16
        %v696 = vrot.slane %v694, 4
        %v697 = vshll.u32 %v559, 16
        %v699 = vrot.slane %v697, 5
        %v700 = vor.u32 %v696, %v699
        %v701 = vrot.slane %v700, 4
        %v703 = vshll.u32 %v560, 16
        %v705 = vrot.slane %v703, 5
        %v706 = vsel %vm604, %v701, %v705
        %v707 = vshrl.u32 %v560, 16
        %v709 = vrot.slane %v707, 4
        %v710 = vor.u32 %v709, %v705
        %v711 = vrot.slane %v710, 4
        %v713 = vshll.u32 %v561, 16
        %v715 = vrot.slane %v713, 5
        %v716 = vsel %vm604, %v711, %v715
        %v717 = vshrl.u32 %v561, 16
        %v719 = vrot.slane %v717, 4
        %v720 = vor.u32 %v719, %v715
        %v721 = vrot.slane %v720, 4
        %v723 = vshll.u32 %v562, 16
        %v725 = vrot.slane %v723, 5
        %v726 = vsel %vm604, %v721, %v725
        %v727 = vshrl.u32 %v562, 16
        %v729 = vrot.slane %v727, 4
        %v730 = vor.u32 %v729, %v725
        %v731 = vrot.slane %v730, 4
        %v733 = vshll.u32 %v594, 16
        %v735 = vrot.slane %v733, 5
        %v736 = vsel %vm604, %v731, %v735
        %v738 = vshrl.u32 %v563, 16
        %v740 = vrot.slane %v738, 4
        %v741 = vshll.u32 %v563, 16
        %v743 = vrot.slane %v741, 5
        %v744 = vor.u32 %v740, %v743
        %v745 = vrot.slane %v744, 4
        %v747 = vshll.u32 %v564, 16
        %v749 = vrot.slane %v747, 5
        %v750 = vsel %vm604, %v745, %v749
        %v751 = vshrl.u32 %v564, 16
        %v753 = vrot.slane %v751, 4
        %v754 = vor.u32 %v753, %v749
        %v755 = vrot.slane %v754, 4
        %v757 = vshll.u32 %v565, 16
        %v759 = vrot.slane %v757, 5
        %v760 = vsel %vm604, %v755, %v759
        %v761 = vshrl.u32 %v565, 16
        %v763 = vrot.slane %v761, 4
        %v764 = vor.u32 %v763, %v759
        %v765 = vrot.slane %v764, 4
        %v767 = vshll.u32 %v566, 16
        %v769 = vrot.slane %v767, 5
        %v770 = vsel %vm604, %v765, %v769
        %v771 = vshrl.u32 %v566, 16
        %v773 = vrot.slane %v771, 4
        %v774 = vor.u32 %v773, %v769
        %v775 = vrot.slane %v774, 4
        %v777 = vshll.u32 %v595, 16
        %v779 = vrot.slane %v777, 5
        %v780 = vsel %vm604, %v775, %v779
        %v782 = vshrl.u32 %v567, 16
        %v784 = vrot.slane %v782, 4
        %v785 = vshll.u32 %v567, 16
        %v787 = vrot.slane %v785, 5
        %v788 = vor.u32 %v784, %v787
        %v789 = vrot.slane %v788, 4
        %v791 = vshll.u32 %v568, 16
        %v793 = vrot.slane %v791, 5
        %v794 = vsel %vm604, %v789, %v793
        %v795 = vshrl.u32 %v568, 16
        %v797 = vrot.slane %v795, 4
        %v798 = vor.u32 %v797, %v793
        %v799 = vrot.slane %v798, 4
        %v801 = vshll.u32 %v569, 16
        %v803 = vrot.slane %v801, 5
        %v804 = vsel %vm604, %v799, %v803
        %v805 = vshrl.u32 %v569, 16
        %v807 = vrot.slane %v805, 4
        %v808 = vor.u32 %v807, %v803
        %v809 = vrot.slane %v808, 4
        %v811 = vshll.u32 %v570, 16
        %v813 = vrot.slane %v811, 5
        %v814 = vsel %vm604, %v809, %v813
        %v815 = vshrl.u32 %v570, 16
        %v817 = vrot.slane %v815, 4
        %v818 = vor.u32 %v817, %v813
        %v819 = vrot.slane %v818, 4
        %v821 = vshll.u32 %v596, 16
        %v823 = vrot.slane %v821, 5
        %v824 = vsel %vm604, %v819, %v823
        %v826 = vshrl.u32 %v571, 16
        %v828 = vrot.slane %v826, 4
        %v829 = vshll.u32 %v571, 16
        %v831 = vrot.slane %v829, 5
        %v832 = vor.u32 %v828, %v831
        %v833 = vrot.slane %v832, 4
        %v835 = vshll.u32 %v572, 16
        %v837 = vrot.slane %v835, 5
        %v838 = vsel %vm604, %v833, %v837
        %v839 = vshrl.u32 %v572, 16
        %v841 = vrot.slane %v839, 4
        %v842 = vor.u32 %v841, %v837
        %v843 = vrot.slane %v842, 4
        %v845 = vshll.u32 %v573, 16
        %v847 = vrot.slane %v845, 5
        %v848 = vsel %vm604, %v843, %v847
        %v849 = vshrl.u32 %v573, 16
        %v851 = vrot.slane %v849, 4
        %v852 = vor.u32 %v851, %v847
        %v853 = vrot.slane %v852, 4
        %v855 = vshll.u32 %v574, 16
        %v857 = vrot.slane %v855, 5
        %v858 = vsel %vm604, %v853, %v857
        %v859 = vshrl.u32 %v574, 16
        %v861 = vrot.slane %v859, 4
        %v862 = vor.u32 %v861, %v857
        %v863 = vrot.slane %v862, 4
        %v865 = vshll.u32 %v597, 16
        %v867 = vrot.slane %v865, 5
        %v868 = vsel %vm604, %v863, %v867
        %v870 = vshrl.u32 %v575, 16
        %v872 = vrot.slane %v870, 4
        %v873 = vshll.u32 %v575, 16
        %v875 = vrot.slane %v873, 5
        %v876 = vor.u32 %v872, %v875
        %v877 = vrot.slane %v876, 4
        %v879 = vshll.u32 %v576, 16
        %v881 = vrot.slane %v879, 5
        %v882 = vsel %vm604, %v877, %v881
        %v883 = vshrl.u32 %v576, 16
        %v885 = vrot.slane %v883, 4
        %v886 = vor.u32 %v885, %v881
        %v887 = vrot.slane %v886, 4
        %v889 = vshll.u32 %v577, 16
        %v891 = vrot.slane %v889, 5
        %v892 = vsel %vm604, %v887, %v891
        %v893 = vshrl.u32 %v577, 16
        %v895 = vrot.slane %v893, 4
        %v896 = vor.u32 %v895, %v891
        %v897 = vrot.slane %v896, 4
        %v899 = vshll.u32 %v578, 16
        %v901 = vrot.slane %v899, 5
        %v902 = vsel %vm604, %v897, %v901
        %v903 = vshrl.u32 %v578, 16
        %v905 = vrot.slane %v903, 4
        %v906 = vor.u32 %v905, %v901
        %v907 = vrot.slane %v906, 4
        %v909 = vshll.u32 %v598, 16
        %v911 = vrot.slane %v909, 5
        %v912 = vsel %vm604, %v907, %v911
        %v914 = vshrl.u32 %v579, 16
        %v916 = vrot.slane %v914, 4
        %v917 = vshll.u32 %v579, 16
        %v919 = vrot.slane %v917, 5
        %v920 = vor.u32 %v916, %v919
        %v921 = vrot.slane %v920, 4
        %v923 = vshll.u32 %v580, 16
        %v925 = vrot.slane %v923, 5
        %v926 = vsel %vm604, %v921, %v925
        %v927 = vshrl.u32 %v580, 16
        %v929 = vrot.slane %v927, 4
        %v930 = vor.u32 %v929, %v925
        %v931 = vrot.slane %v930, 4
        %v933 = vshll.u32 %v581, 16
        %v935 = vrot.slane %v933, 5
        %v936 = vsel %vm604, %v931, %v935
        %v937 = vshrl.u32 %v581, 16
        %v939 = vrot.slane %v937, 4
        %v940 = vor.u32 %v939, %v935
        %v941 = vrot.slane %v940, 4
        %v943 = vshll.u32 %v582, 16
        %v945 = vrot.slane %v943, 5
        %v946 = vsel %vm604, %v941, %v945
        %v947 = vshrl.u32 %v582, 16
        %v949 = vrot.slane %v947, 4
        %v950 = vor.u32 %v949, %v945
        %v951 = vrot.slane %v950, 4
        %v953 = vshll.u32 %v599, 16
        %v955 = vrot.slane %v953, 5
        %v956 = vsel %vm604, %v951, %v955
        %v958 = vshrl.u32 %v583, 16
        %v960 = vrot.slane %v958, 4
        %v961 = vshll.u32 %v583, 16
        %v963 = vrot.slane %v961, 5
        %v964 = vor.u32 %v960, %v963
        %v965 = vrot.slane %v964, 4
        %v967 = vshll.u32 %v584, 16
        %v969 = vrot.slane %v967, 5
        %v970 = vsel %vm604, %v965, %v969
        %v971 = vshrl.u32 %v584, 16
        %v973 = vrot.slane %v971, 4
        %v974 = vor.u32 %v973, %v969
        %v975 = vrot.slane %v974, 4
        %v977 = vshll.u32 %v585, 16
        %v979 = vrot.slane %v977, 5
        %v980 = vsel %vm604, %v975, %v979
        %v981 = vshrl.u32 %v585, 16
        %v983 = vrot.slane %v981, 4
        %v984 = vor.u32 %v983, %v979
        %v985 = vrot.slane %v984, 4
        %v987 = vshll.u32 %v586, 16
        %v989 = vrot.slane %v987, 5
        %v990 = vsel %vm604, %v985, %v989
        %v991 = vshrl.u32 %v586, 16
        %v993 = vrot.slane %v991, 4
        %v994 = vor.u32 %v993, %v989
        %v995 = vrot.slane %v994, 4
        %v997 = vshll.u32 %v600, 16
        %v999 = vrot.slane %v997, 5
        %v1000 = vsel %vm604, %v995, %v999
        %v1002 = vshrl.u32 %v587, 16
        %v1004 = vrot.slane %v1002, 4
        %v1005 = vshll.u32 %v587, 16
        %v1007 = vrot.slane %v1005, 5
        %v1008 = vor.u32 %v1004, %v1007
        %v1009 = vrot.slane %v1008, 4
        %v1011 = vshll.u32 %v588, 16
        %v1013 = vrot.slane %v1011, 5
        %v1014 = vsel %vm604, %v1009, %v1013
        %v1015 = vshrl.u32 %v588, 16
        %v1017 = vrot.slane %v1015, 4
        %v1018 = vor.u32 %v1017, %v1013
        %v1019 = vrot.slane %v1018, 4
        %v1021 = vshll.u32 %v589, 16
        %v1023 = vrot.slane %v1021, 5
        %v1024 = vsel %vm604, %v1019, %v1023
        %v1025 = vshrl.u32 %v589, 16
        %v1027 = vrot.slane %v1025, 4
        %v1028 = vor.u32 %v1027, %v1023
        %v1029 = vrot.slane %v1028, 4
        %v1031 = vshll.u32 %v590, 16
        %v1033 = vrot.slane %v1031, 5
        %v1034 = vsel %vm604, %v1029, %v1033
        %v1035 = vshrl.u32 %v590, 16
        %v1037 = vrot.slane %v1035, 4
        %v1038 = vor.u32 %v1037, %v1033
        %v1039 = vrot.slane %v1038, 4
        %v1041 = vshll.u32 %v601, 16
        %v1043 = vrot.slane %v1041, 5
        %v1044 = vsel %vm604, %v1039, %v1043
        %v1045 = vld [vmem:[#allocation8] sm:$0xc]
        %v1046 = vunpack.c.l.b16 %v618
        %v1047 = vunpack.c.l.b16 %v628
        %v1048 = vunpack.c.l.b16 %v638
        %v1049 = vunpack.c.l.b16 %v648
        %v1050 = vunpack.c.l.b16 %v662
        %v1051 = vunpack.c.l.b16 %v672
        %v1052 = vunpack.c.l.b16 %v682
        %v1053 = vunpack.c.l.b16 %v692
        %v1054 = vunpack.c.l.b16 %v706
        %v1055 = vunpack.c.l.b16 %v716
        %v1056 = vunpack.c.l.b16 %v726
        %v1057 = vunpack.c.l.b16 %v736
        %v1058 = vunpack.c.l.b16 %v750
        %v1059 = vunpack.c.l.b16 %v760
        %v1060 = vunpack.c.l.b16 %v770
        %v1061 = vunpack.c.l.b16 %v780
        %v1062 = vunpack.c.l.b16 %v794
        %v1063 = vunpack.c.l.b16 %v804
        %v1064 = vunpack.c.l.b16 %v814
        %v1065 = vunpack.c.l.b16 %v824
        %v1066 = vunpack.c.l.b16 %v838
        %v1067 = vunpack.c.l.b16 %v848
        %v1068 = vunpack.c.l.b16 %v858
        %v1069 = vunpack.c.l.b16 %v868
        %v1070 = vunpack.c.l.b16 %v882
        %v1071 = vunpack.c.l.b16 %v892
        %v1072 = vunpack.c.l.b16 %v902
        %v1073 = vunpack.c.l.b16 %v912
        %v1074 = vunpack.c.l.b16 %v926
        %v1075 = vunpack.c.l.b16 %v936
        %v1076 = vunpack.c.l.b16 %v946
        %v1077 = vunpack.c.l.b16 %v956
        %v1078 = vunpack.c.l.b16 %v970
        %v1079 = vunpack.c.l.b16 %v980
        %v1080 = vunpack.c.l.b16 %v990
        %v1081 = vunpack.c.l.b16 %v1000
        %v1082 = vunpack.c.l.b16 %v1014
        %v1083 = vunpack.c.l.b16 %v1024
        %v1084 = vunpack.c.l.b16 %v1034
        %v1085 = vunpack.c.l.b16 %v1044
        %v1086 = vpack.c.b16 %v1047, %v1046
        %v1087 = vpack.c.b16 %v1049, %v1048
        %v1088 = vpack.c.b16 %v1051, %v1050
        %v1089 = vpack.c.b16 %v1053, %v1052
        %v1090 = vpack.c.b16 %v1055, %v1054
        %v1091 = vpack.c.b16 %v1057, %v1056
        %v1092 = vpack.c.b16 %v1059, %v1058
        %v1093 = vpack.c.b16 %v1061, %v1060
        %v1094 = vpack.c.b16 %v1063, %v1062
        %v1095 = vpack.c.b16 %v1065, %v1064
        %v1096 = vpack.c.b16 %v1067, %v1066
        %v1097 = vpack.c.b16 %v1069, %v1068
        %v1098 = vpack.c.b16 %v1071, %v1070
        %v1099 = vpack.c.b16 %v1073, %v1072
        %v1100 = vpack.c.b16 %v1075, %v1074
        %v1101 = vpack.c.b16 %v1077, %v1076
        %v1102 = vpack.c.b16 %v1079, %v1078
        %v1103 = vpack.c.b16 %v1081, %v1080
        %v1104 = vpack.c.b16 %v1083, %v1082
        %v1105 = vpack.c.b16 %v1085, %v1084
        %v1107 = vunpack.c.l.b16 %v1045
        %v1108 = vpack.c.b16 %v1107, %v1107
        %v1109 = vrot.slane %v1108, 2
        %vm1110 = vcmask 31744
        %v1112 = vsel %vm1110, %v1086, 0
        %v1115 = vsel %vm1110, %v1087, 0
        %v1118 = vsel %vm1110, %v1088, 0
        %v1121 = vsel %vm1110, %v1089, 0
        %v1124 = vsel %vm1110, %v1090, 0
        %v1127 = vsel %vm1110, %v1091, 0
        %v1130 = vsel %vm1110, %v1092, 0
        %v1133 = vsel %vm1110, %v1093, 0
        %v1136 = vsel %vm1110, %v1094, 0
        %v1139 = vsel %vm1110, %v1095, 0
        %v1142 = vsel %vm1110, %v1096, 0
        %v1145 = vsel %vm1110, %v1097, 0
        %v1148 = vsel %vm1110, %v1098, 0
        %v1151 = vsel %vm1110, %v1099, 0
        %v1154 = vsel %vm1110, %v1100, 0
        %v1157 = vsel %vm1110, %v1101, 0
        %v1160 = vsel %vm1110, %v1102, 0
        %v1163 = vsel %vm1110, %v1103, 0
        %v1166 = vsel %vm1110, %v1104, 0
        %v1169 = vsel %vm1110, %v1105, 0
        %vm1171 = vcmask 1041408
        %v1173 = vsel %vm1171, %v1109, 0
        %1175 = vmatprep.subr.bf16.mxu0 0
        %1176 = vmatpush1.bf16.msra.mxu0 %v1173
        %1177 = vmatprep.subr.bf16.mxu0 0
        %1178 = vmatpush1.bf16.msra.mxu0 0
        %1179 = vmatprep.subr.bf16.mxu0 0
        %1180 = vmatpush1.bf16.msra.mxu0 0
        %1181 = vmatprep.subr.bf16.mxu0 0
        %1182 = vmatpush1.bf16.msra.mxu0 0
        %1183 = vmatprep.subr.bf16.mxu0 0
        %1184 = vmatpush1.bf16.msra.mxu0 0
        %1185 = vmatprep.subr.bf16.mxu0 0
        %1186 = vmatpush1.bf16.msra.mxu0 0
        %1187 = vmatprep.subr.bf16.mxu0 0
        %1188 = vmatpush1.bf16.msra.mxu0 0
        %1189 = vmatprep.subr.bf16.mxu0 0
        %1190 = vmatpush1.bf16.msra.mxu0 0
        %1191 = vmatprep.subr.bf16.mxu0 0
        %1192 = vmatpush1.bf16.msra.mxu0 0
        %1193 = vmatprep.subr.bf16.mxu0 0
        %1194 = vmatpush1.bf16.msra.mxu0 0
        %1195 = vmatprep.subr.bf16.mxu0 0
        %1196 = vmatpush1.bf16.msra.mxu0 0
        %1197 = vmatprep.subr.bf16.mxu0 0
        %1198 = vmatpush1.bf16.msra.mxu0 0
        %1199 = vmatprep.subr.bf16.mxu0 0
        %1200 = vmatpush1.bf16.msra.mxu0 0
        %1201 = vmatprep.subr.bf16.mxu0 0
        %1202 = vmatpush1.bf16.msra.mxu0 0
        %1203 = vmatprep.subr.bf16.mxu0 0
        %1204 = vmatpush1.bf16.msra.mxu0 0
        %1205 = vmatprep.subr.bf16.mxu0 0
        %1206 = vmatpush1.bf16.msra.mxu0 0
        %1207 = vmatprep.mubr.bf16.mxu0 0
        %1208 = vmatmul.mubr.bf16.gmra.mrb[0].mxu0 %v1112
        %v1209 = vpop.f32.mrb[0].mxu0
        %v1210 = vadd.f32 0.0, %v1209
        %v1211 = vpop.f32.mrb[0].mxu0
        %v1212 = vpop.f32.mrb[0].mxu0
        %v1213 = vadd.f32 0.0, %v1212
        %v1214 = vpop.f32.mrb[0].mxu0
        %1215 = vmatprep.mubr.bf16.mxu0 0
        %1216 = vmatmul.mubr.bf16.gmra.mrb[0].mxu0 %v1115
        %v1217 = vpop.f32.mrb[0].mxu0
        %v1218 = vadd.f32 0.0, %v1217
        %v1219 = vpop.f32.mrb[0].mxu0
        %v1220 = vpop.f32.mrb[0].mxu0
        %v1221 = vadd.f32 0.0, %v1220
        %v1222 = vpop.f32.mrb[0].mxu0
        %1223 = vmatprep.mubr.bf16.mxu0 0
        %1224 = vmatmul.mubr.bf16.gmra.mrb[0].mxu0 %v1118
        %v1225 = vpop.f32.mrb[0].mxu0
        %v1226 = vadd.f32 0.0, %v1225
        %v1227 = vpop.f32.mrb[0].mxu0
        %v1228 = vpop.f32.mrb[0].mxu0
        %v1229 = vadd.f32 0.0, %v1228
        %v1230 = vpop.f32.mrb[0].mxu0
        %1231 = vmatprep.mubr.bf16.mxu0 0
        %1232 = vmatmul.mubr.bf16.gmra.mrb[0].mxu0 %v1121
        %v1233 = vpop.f32.mrb[0].mxu0
        %v1234 = vadd.f32 0.0, %v1233
        %v1235 = vpop.f32.mrb[0].mxu0
        %v1236 = vpop.f32.mrb[0].mxu0
        %v1237 = vadd.f32 0.0, %v1236
        %v1238 = vpop.f32.mrb[0].mxu0
        %1239 = vmatprep.mubr.bf16.mxu0 0
        %1240 = vmatmul.mubr.bf16.gmra.mrb[0].mxu0 %v1124
        %v1241 = vpop.f32.mrb[0].mxu0
        %v1242 = vadd.f32 0.0, %v1241
        %v1243 = vpop.f32.mrb[0].mxu0
        %v1244 = vpop.f32.mrb[0].mxu0
        %v1245 = vadd.f32 0.0, %v1244
        %v1246 = vpop.f32.mrb[0].mxu0
        %1247 = vmatprep.mubr.bf16.mxu0 0
        %1248 = vmatmul.mubr.bf16.gmra.mrb[0].mxu0 %v1127
        %v1249 = vpop.f32.mrb[0].mxu0
        %v1250 = vadd.f32 0.0, %v1249
        %v1251 = vpop.f32.mrb[0].mxu0
        %v1252 = vpop.f32.mrb[0].mxu0
        %v1253 = vadd.f32 0.0, %v1252
        %v1254 = vpop.f32.mrb[0].mxu0
        %1255 = vmatprep.mubr.bf16.mxu0 0
        %1256 = vmatmul.mubr.bf16.gmra.mrb[0].mxu0 %v1130
        %v1257 = vpop.f32.mrb[0].mxu0
        %v1258 = vadd.f32 0.0, %v1257
        %v1259 = vpop.f32.mrb[0].mxu0
        %v1260 = vpop.f32.mrb[0].mxu0
        %v1261 = vadd.f32 0.0, %v1260
        %v1262 = vpop.f32.mrb[0].mxu0
        %1263 = vmatprep.mubr.bf16.mxu0 0
        %1264 = vmatmul.mubr.bf16.gmra.mrb[0].mxu0 %v1133
        %v1265 = vpop.f32.mrb[0].mxu0
        %v1266 = vadd.f32 0.0, %v1265
        %v1267 = vpop.f32.mrb[0].mxu0
        %v1268 = vpop.f32.mrb[0].mxu0
        %v1269 = vadd.f32 0.0, %v1268
        %v1270 = vpop.f32.mrb[0].mxu0
        %1271 = vmatprep.mubr.bf16.mxu0 0
        %1272 = vmatmul.mubr.bf16.gmra.mrb[0].mxu0 %v1136
        %v1273 = vpop.f32.mrb[0].mxu0
        %v1274 = vadd.f32 0.0, %v1273
        %v1275 = vpop.f32.mrb[0].mxu0
        %v1276 = vpop.f32.mrb[0].mxu0
        %v1277 = vadd.f32 0.0, %v1276
        %v1278 = vpop.f32.mrb[0].mxu0
        %1279 = vmatprep.mubr.bf16.mxu0 0
        %1280 = vmatmul.mubr.bf16.gmra.mrb[0].mxu0 %v1139
        %v1281 = vpop.f32.mrb[0].mxu0
        %v1282 = vadd.f32 0.0, %v1281
        %v1283 = vpop.f32.mrb[0].mxu0
        %v1284 = vpop.f32.mrb[0].mxu0
        %v1285 = vadd.f32 0.0, %v1284
        %v1286 = vpop.f32.mrb[0].mxu0
        %1287 = vmatprep.mubr.bf16.mxu0 0
        %1288 = vmatmul.mubr.bf16.gmra.mrb[0].mxu0 %v1142
        %v1289 = vpop.f32.mrb[0].mxu0
        %v1290 = vadd.f32 0.0, %v1289
        %v1291 = vpop.f32.mrb[0].mxu0
        %v1292 = vpop.f32.mrb[0].mxu0
        %v1293 = vadd.f32 0.0, %v1292
        %v1294 = vpop.f32.mrb[0].mxu0
        %1295 = vmatprep.mubr.bf16.mxu0 0
        %1296 = vmatmul.mubr.bf16.gmra.mrb[0].mxu0 %v1145
        %v1297 = vpop.f32.mrb[0].mxu0
        %v1298 = vadd.f32 0.0, %v1297
        %v1299 = vpop.f32.mrb[0].mxu0
        %v1300 = vpop.f32.mrb[0].mxu0
        %v1301 = vadd.f32 0.0, %v1300
        %v1302 = vpop.f32.mrb[0].mxu0
        %1303 = vmatprep.mubr.bf16.mxu0 0
        %1304 = vmatmul.mubr.bf16.gmra.mrb[0].mxu0 %v1148
        %v1305 = vpop.f32.mrb[0].mxu0
        %v1306 = vadd.f32 0.0, %v1305
        %v1307 = vpop.f32.mrb[0].mxu0
        %v1308 = vpop.f32.mrb[0].mxu0
        %v1309 = vadd.f32 0.0, %v1308
        %v1310 = vpop.f32.mrb[0].mxu0
        %1311 = vmatprep.mubr.bf16.mxu0 0
        %1312 = vmatmul.mubr.bf16.gmra.mrb[0].mxu0 %v1151
        %v1313 = vpop.f32.mrb[0].mxu0
        %v1314 = vadd.f32 0.0, %v1313
        %v1315 = vpop.f32.mrb[0].mxu0
        %v1316 = vpop.f32.mrb[0].mxu0
        %v1317 = vadd.f32 0.0, %v1316
        %v1318 = vpop.f32.mrb[0].mxu0
        %1319 = vmatprep.mubr.bf16.mxu0 0
        %1320 = vmatmul.mubr.bf16.gmra.mrb[0].mxu0 %v1154
        %v1321 = vpop.f32.mrb[0].mxu0
        %v1322 = vadd.f32 0.0, %v1321
        %v1323 = vpop.f32.mrb[0].mxu0
        %v1324 = vpop.f32.mrb[0].mxu0
        %v1325 = vadd.f32 0.0, %v1324
        %v1326 = vpop.f32.mrb[0].mxu0
        %1327 = vmatprep.mubr.bf16.mxu0 0
        %1328 = vmatmul.mubr.bf16.gmra.mrb[0].mxu0 %v1157
        %v1329 = vpop.f32.mrb[0].mxu0
        %v1330 = vadd.f32 0.0, %v1329
        %v1331 = vpop.f32.mrb[0].mxu0
        %v1332 = vpop.f32.mrb[0].mxu0
        %v1333 = vadd.f32 0.0, %v1332
        %v1334 = vpop.f32.mrb[0].mxu0
        %1335 = vmatprep.mubr.bf16.mxu0 0
        %1336 = vmatmul.mubr.bf16.gmra.mrb[0].mxu0 %v1160
        %v1337 = vpop.f32.mrb[0].mxu0
        %v1338 = vadd.f32 0.0, %v1337
        %v1339 = vpop.f32.mrb[0].mxu0
        %v1340 = vpop.f32.mrb[0].mxu0
        %v1341 = vadd.f32 0.0, %v1340
        %v1342 = vpop.f32.mrb[0].mxu0
        %1343 = vmatprep.mubr.bf16.mxu0 0
        %1344 = vmatmul.mubr.bf16.gmra.mrb[0].mxu0 %v1163
        %v1345 = vpop.f32.mrb[0].mxu0
        %v1346 = vadd.f32 0.0, %v1345
        %v1347 = vpop.f32.mrb[0].mxu0
        %v1348 = vpop.f32.mrb[0].mxu0
        %v1349 = vadd.f32 0.0, %v1348
        %v1350 = vpop.f32.mrb[0].mxu0
        %1351 = vmatprep.mubr.bf16.mxu0 0
        %1352 = vmatmul.mubr.bf16.gmra.mrb[0].mxu0 %v1166
        %v1353 = vpop.f32.mrb[0].mxu0
        %v1354 = vadd.f32 0.0, %v1353
        %v1355 = vpop.f32.mrb[0].mxu0
        %v1356 = vpop.f32.mrb[0].mxu0
        %v1357 = vadd.f32 0.0, %v1356
        %v1358 = vpop.f32.mrb[0].mxu0
        %1359 = vmatprep.mubr.bf16.mxu0 0
        %1360 = vmatmul.mubr.bf16.gmra.mrb[0].mxu0 %v1169
        %v1361 = vpop.f32.mrb[0].mxu0
        %v1362 = vadd.f32 0.0, %v1361
        %v1363 = vpop.f32.mrb[0].mxu0
        %v1364 = vpop.f32.mrb[0].mxu0
        %v1365 = vadd.f32 0.0, %v1364
        %v1366 = vpop.f32.mrb[0].mxu0
        %1367 = vdwg.mxu0
        %v1408 = vunpack.c.l.b16 %v551
        %v1409 = vunpack.c.l.b16 %v552
        %v1410 = vunpack.c.l.b16 %v553
        %v1411 = vunpack.c.l.b16 %v554
        %v1412 = vunpack.c.l.b16 %v555
        %v1413 = vunpack.c.l.b16 %v556
        %v1414 = vunpack.c.l.b16 %v557
        %v1415 = vunpack.c.l.b16 %v558
        %v1416 = vunpack.c.l.b16 %v559
        %v1417 = vunpack.c.l.b16 %v560
        %v1418 = vunpack.c.l.b16 %v561
        %v1419 = vunpack.c.l.b16 %v562
        %v1420 = vunpack.c.l.b16 %v563
        %v1421 = vunpack.c.l.b16 %v564
        %v1422 = vunpack.c.l.b16 %v565
        %v1423 = vunpack.c.l.b16 %v566
        %v1424 = vunpack.c.l.b16 %v567
        %v1425 = vunpack.c.l.b16 %v568
        %v1426 = vunpack.c.l.b16 %v569
        %v1427 = vunpack.c.l.b16 %v570
        %v1428 = vunpack.c.l.b16 %v571
        %v1429 = vunpack.c.l.b16 %v572
        %v1430 = vunpack.c.l.b16 %v573
        %v1431 = vunpack.c.l.b16 %v574
        %v1432 = vunpack.c.l.b16 %v575
        %v1433 = vunpack.c.l.b16 %v576
        %v1434 = vunpack.c.l.b16 %v577
        %v1435 = vunpack.c.l.b16 %v578
        %v1436 = vunpack.c.l.b16 %v579
        %v1437 = vunpack.c.l.b16 %v580
        %v1438 = vunpack.c.l.b16 %v581
        %v1439 = vunpack.c.l.b16 %v582
        %v1440 = vunpack.c.l.b16 %v583
        %v1441 = vunpack.c.l.b16 %v584
        %v1442 = vunpack.c.l.b16 %v585
        %v1443 = vunpack.c.l.b16 %v586
        %v1444 = vunpack.c.l.b16 %v587
        %v1445 = vunpack.c.l.b16 %v588
        %v1446 = vunpack.c.l.b16 %v589
        %v1447 = vunpack.c.l.b16 %v590
        %v1448 = vpack.c.b16 %v1409, %v1408
        %v1449 = vpack.c.b16 %v1411, %v1410
        %v1450 = vpack.c.b16 %v1413, %v1412
        %v1451 = vpack.c.b16 %v1415, %v1414
        %v1452 = vpack.c.b16 %v1417, %v1416
        %v1453 = vpack.c.b16 %v1419, %v1418
        %v1454 = vpack.c.b16 %v1421, %v1420
        %v1455 = vpack.c.b16 %v1423, %v1422
        %v1456 = vpack.c.b16 %v1425, %v1424
        %v1457 = vpack.c.b16 %v1427, %v1426
        %v1458 = vpack.c.b16 %v1429, %v1428
        %v1459 = vpack.c.b16 %v1431, %v1430
        %v1460 = vpack.c.b16 %v1433, %v1432
        %v1461 = vpack.c.b16 %v1435, %v1434
        %v1462 = vpack.c.b16 %v1437, %v1436
        %v1463 = vpack.c.b16 %v1439, %v1438
        %v1464 = vpack.c.b16 %v1441, %v1440
        %v1465 = vpack.c.b16 %v1443, %v1442
        %v1466 = vpack.c.b16 %v1445, %v1444
        %v1467 = vpack.c.b16 %v1447, %v1446
        %v1469 = vsel %vm1110, %v1448, 0
        %v1472 = vsel %vm1110, %v1449, 0
        %v1475 = vsel %vm1110, %v1450, 0
        %v1478 = vsel %vm1110, %v1451, 0
        %v1481 = vsel %vm1110, %v1452, 0
        %v1484 = vsel %vm1110, %v1453, 0
        %v1487 = vsel %vm1110, %v1454, 0
        %v1490 = vsel %vm1110, %v1455, 0
        %v1493 = vsel %vm1110, %v1456, 0
        %v1496 = vsel %vm1110, %v1457, 0
        %v1499 = vsel %vm1110, %v1458, 0
        %v1502 = vsel %vm1110, %v1459, 0
        %v1505 = vsel %vm1110, %v1460, 0
        %v1508 = vsel %vm1110, %v1461, 0
        %v1511 = vsel %vm1110, %v1462, 0
        %v1514 = vsel %vm1110, %v1463, 0
        %v1517 = vsel %vm1110, %v1464, 0
        %v1520 = vsel %vm1110, %v1465, 0
        %v1523 = vsel %vm1110, %v1466, 0
        %v1526 = vsel %vm1110, %v1467, 0
        %v1529 = vsel %vm1171, %v591, 0
        %1531 = vmatprep.subr.bf16.mxu0 0
        %1532 = vmatpush1.bf16.msra.mxu0 %v1529
        %1533 = vmatprep.subr.bf16.mxu0 0
        %1534 = vmatpush1.bf16.msra.mxu0 0
        %1535 = vmatprep.subr.bf16.mxu0 0
        %1536 = vmatpush1.bf16.msra.mxu0 0
        %1537 = vmatprep.subr.bf16.mxu0 0
        %1538 = vmatpush1.bf16.msra.mxu0 0
        %1539 = vmatprep.subr.bf16.mxu0 0
        %1540 = vmatpush1.bf16.msra.mxu0 0
        %1541 = vmatprep.subr.bf16.mxu0 0
        %1542 = vmatpush1.bf16.msra.mxu0 0
        %1543 = vmatprep.subr.bf16.mxu0 0
        %1544 = vmatpush1.bf16.msra.mxu0 0
        %1545 = vmatprep.subr.bf16.mxu0 0
        %1546 = vmatpush1.bf16.msra.mxu0 0
        %1547 = vmatprep.subr.bf16.mxu0 0
        %1548 = vmatpush1.bf16.msra.mxu0 0
        %1549 = vmatprep.subr.bf16.mxu0 0
        %1550 = vmatpush1.bf16.msra.mxu0 0
        %1551 = vmatprep.subr.bf16.mxu0 0
        %1552 = vmatpush1.bf16.msra.mxu0 0
        %1553 = vmatprep.subr.bf16.mxu0 0
        %1554 = vmatpush1.bf16.msra.mxu0 0
        %1555 = vmatprep.subr.bf16.mxu0 0
        %1556 = vmatpush1.bf16.msra.mxu0 0
        %1557 = vmatprep.subr.bf16.mxu0 0
        %1558 = vmatpush1.bf16.msra.mxu0 0
        %1559 = vmatprep.subr.bf16.mxu0 0
        %1560 = vmatpush1.bf16.msra.mxu0 0
        %1561 = vmatprep.subr.bf16.mxu0 0
        %1562 = vmatpush1.bf16.msra.mxu0 0
        %1563 = vmatprep.mubr.bf16.mxu0 0
        %1564 = vmatmul.mubr.bf16.gmra.mrb[0].mxu0 %v1469
        %v1565 = vpop.f32.mrb[0].mxu0
        %v1566 = vadd.f32 %v1210, %v1565
        %v1567 = vpop.f32.mrb[0].mxu0
        %v1568 = vpop.f32.mrb[0].mxu0
        %v1569 = vadd.f32 %v1213, %v1568
        %v1570 = vpop.f32.mrb[0].mxu0
        %1571 = vmatprep.mubr.bf16.mxu0 0
        %1572 = vmatmul.mubr.bf16.gmra.mrb[0].mxu0 %v1472
        %v1573 = vpop.f32.mrb[0].mxu0
        %v1574 = vadd.f32 %v1218, %v1573
        %v1575 = vpop.f32.mrb[0].mxu0
        %v1576 = vpop.f32.mrb[0].mxu0
        %v1577 = vadd.f32 %v1221, %v1576
        %v1578 = vpop.f32.mrb[0].mxu0
        %1579 = vmatprep.mubr.bf16.mxu0 0
        %1580 = vmatmul.mubr.bf16.gmra.mrb[0].mxu0 %v1475
        %v1581 = vpop.f32.mrb[0].mxu0
        %v1582 = vadd.f32 %v1226, %v1581
        %v1583 = vpop.f32.mrb[0].mxu0
        %v1584 = vpop.f32.mrb[0].mxu0
        %v1585 = vadd.f32 %v1229, %v1584
        %v1586 = vpop.f32.mrb[0].mxu0
        %1587 = vmatprep.mubr.bf16.mxu0 0
        %1588 = vmatmul.mubr.bf16.gmra.mrb[0].mxu0 %v1478
        %v1589 = vpop.f32.mrb[0].mxu0
        %v1590 = vadd.f32 %v1234, %v1589
        %v1591 = vpop.f32.mrb[0].mxu0
        %v1592 = vpop.f32.mrb[0].mxu0
        %v1593 = vadd.f32 %v1237, %v1592
        %v1594 = vpop.f32.mrb[0].mxu0
        %1595 = vmatprep.mubr.bf16.mxu0 0
        %1596 = vmatmul.mubr.bf16.gmra.mrb[0].mxu0 %v1481
        %v1597 = vpop.f32.mrb[0].mxu0
        %v1598 = vadd.f32 %v1242, %v1597
        %v1599 = vpop.f32.mrb[0].mxu0
        %v1600 = vpop.f32.mrb[0].mxu0
        %v1601 = vadd.f32 %v1245, %v1600
        %v1602 = vpop.f32.mrb[0].mxu0
        %1603 = vmatprep.mubr.bf16.mxu0 0
        %1604 = vmatmul.mubr.bf16.gmra.mrb[0].mxu0 %v1484
        %v1605 = vpop.f32.mrb[0].mxu0
        %v1606 = vadd.f32 %v1250, %v1605
        %v1607 = vpop.f32.mrb[0].mxu0
        %v1608 = vpop.f32.mrb[0].mxu0
        %v1609 = vadd.f32 %v1253, %v1608
        %v1610 = vpop.f32.mrb[0].mxu0
        %1611 = vmatprep.mubr.bf16.mxu0 0
        %1612 = vmatmul.mubr.bf16.gmra.mrb[0].mxu0 %v1487
        %v1613 = vpop.f32.mrb[0].mxu0
        %v1614 = vadd.f32 %v1258, %v1613
        %v1615 = vpop.f32.mrb[0].mxu0
        %v1616 = vpop.f32.mrb[0].mxu0
        %v1617 = vadd.f32 %v1261, %v1616
        %v1618 = vpop.f32.mrb[0].mxu0
        %1619 = vmatprep.mubr.bf16.mxu0 0
        %1620 = vmatmul.mubr.bf16.gmra.mrb[0].mxu0 %v1490
        %v1621 = vpop.f32.mrb[0].mxu0
        %v1622 = vadd.f32 %v1266, %v1621
        %v1623 = vpop.f32.mrb[0].mxu0
        %v1624 = vpop.f32.mrb[0].mxu0
        %v1625 = vadd.f32 %v1269, %v1624
        %v1626 = vpop.f32.mrb[0].mxu0
        %1627 = vmatprep.mubr.bf16.mxu0 0
        %1628 = vmatmul.mubr.bf16.gmra.mrb[0].mxu0 %v1493
        %v1629 = vpop.f32.mrb[0].mxu0
        %v1630 = vadd.f32 %v1274, %v1629
        %v1631 = vpop.f32.mrb[0].mxu0
        %v1632 = vpop.f32.mrb[0].mxu0
        %v1633 = vadd.f32 %v1277, %v1632
        %v1634 = vpop.f32.mrb[0].mxu0
        %1635 = vmatprep.mubr.bf16.mxu0 0
        %1636 = vmatmul.mubr.bf16.gmra.mrb[0].mxu0 %v1496
        %v1637 = vpop.f32.mrb[0].mxu0
        %v1638 = vadd.f32 %v1282, %v1637
        %v1639 = vpop.f32.mrb[0].mxu0
        %v1640 = vpop.f32.mrb[0].mxu0
        %v1641 = vadd.f32 %v1285, %v1640
        %v1642 = vpop.f32.mrb[0].mxu0
        %1643 = vmatprep.mubr.bf16.mxu0 0
        %1644 = vmatmul.mubr.bf16.gmra.mrb[0].mxu0 %v1499
        %v1645 = vpop.f32.mrb[0].mxu0
        %v1646 = vadd.f32 %v1290, %v1645
        %v1647 = vpop.f32.mrb[0].mxu0
        %v1648 = vpop.f32.mrb[0].mxu0
        %v1649 = vadd.f32 %v1293, %v1648
        %v1650 = vpop.f32.mrb[0].mxu0
        %1651 = vmatprep.mubr.bf16.mxu0 0
        %1652 = vmatmul.mubr.bf16.gmra.mrb[0].mxu0 %v1502
        %v1653 = vpop.f32.mrb[0].mxu0
        %v1654 = vadd.f32 %v1298, %v1653
        %v1655 = vpop.f32.mrb[0].mxu0
        %v1656 = vpop.f32.mrb[0].mxu0
        %v1657 = vadd.f32 %v1301, %v1656
        %v1658 = vpop.f32.mrb[0].mxu0
        %1659 = vmatprep.mubr.bf16.mxu0 0
        %1660 = vmatmul.mubr.bf16.gmra.mrb[0].mxu0 %v1505
        %v1661 = vpop.f32.mrb[0].mxu0
        %v1662 = vadd.f32 %v1306, %v1661
        %v1663 = vpop.f32.mrb[0].mxu0
        %v1664 = vpop.f32.mrb[0].mxu0
        %v1665 = vadd.f32 %v1309, %v1664
        %v1666 = vpop.f32.mrb[0].mxu0
        %1667 = vmatprep.mubr.bf16.mxu0 0
        %1668 = vmatmul.mubr.bf16.gmra.mrb[0].mxu0 %v1508
        %v1669 = vpop.f32.mrb[0].mxu0
        %v1670 = vadd.f32 %v1314, %v1669
        %v1671 = vpop.f32.mrb[0].mxu0
        %v1672 = vpop.f32.mrb[0].mxu0
        %v1673 = vadd.f32 %v1317, %v1672
        %v1674 = vpop.f32.mrb[0].mxu0
        %1675 = vmatprep.mubr.bf16.mxu0 0
        %1676 = vmatmul.mubr.bf16.gmra.mrb[0].mxu0 %v1511
        %v1677 = vpop.f32.mrb[0].mxu0
        %v1678 = vadd.f32 %v1322, %v1677
        %v1679 = vpop.f32.mrb[0].mxu0
        %v1680 = vpop.f32.mrb[0].mxu0
        %v1681 = vadd.f32 %v1325, %v1680
        %v1682 = vpop.f32.mrb[0].mxu0
        %1683 = vmatprep.mubr.bf16.mxu0 0
        %1684 = vmatmul.mubr.bf16.gmra.mrb[0].mxu0 %v1514
        %v1685 = vpop.f32.mrb[0].mxu0
        %v1686 = vadd.f32 %v1330, %v1685
        %v1687 = vpop.f32.mrb[0].mxu0
        %v1688 = vpop.f32.mrb[0].mxu0
        %v1689 = vadd.f32 %v1333, %v1688
        %v1690 = vpop.f32.mrb[0].mxu0
        %1691 = vmatprep.mubr.bf16.mxu0 0
        %1692 = vmatmul.mubr.bf16.gmra.mrb[0].mxu0 %v1517
        %v1693 = vpop.f32.mrb[0].mxu0
        %v1694 = vadd.f32 %v1338, %v1693
        %v1695 = vpop.f32.mrb[0].mxu0
        %v1696 = vpop.f32.mrb[0].mxu0
        %v1697 = vadd.f32 %v1341, %v1696
        %v1698 = vpop.f32.mrb[0].mxu0
        %1699 = vmatprep.mubr.bf16.mxu0 0
        %1700 = vmatmul.mubr.bf16.gmra.mrb[0].mxu0 %v1520
        %v1701 = vpop.f32.mrb[0].mxu0
        %v1702 = vadd.f32 %v1346, %v1701
        %v1703 = vpop.f32.mrb[0].mxu0
        %v1704 = vpop.f32.mrb[0].mxu0
        %v1705 = vadd.f32 %v1349, %v1704
        %v1706 = vpop.f32.mrb[0].mxu0
        %1707 = vmatprep.mubr.bf16.mxu0 0
        %1708 = vmatmul.mubr.bf16.gmra.mrb[0].mxu0 %v1523
        %v1709 = vpop.f32.mrb[0].mxu0
        %v1710 = vadd.f32 %v1354, %v1709
        %v1711 = vpop.f32.mrb[0].mxu0
        %v1712 = vpop.f32.mrb[0].mxu0
        %v1713 = vadd.f32 %v1357, %v1712
        %v1714 = vpop.f32.mrb[0].mxu0
        %1715 = vmatprep.mubr.bf16.mxu0 0
        %1716 = vmatmul.mubr.bf16.gmra.mrb[0].mxu0 %v1526
        %v1717 = vpop.f32.mrb[0].mxu0
        %v1718 = vadd.f32 %v1362, %v1717
        %v1719 = vpop.f32.mrb[0].mxu0
        %v1720 = vpop.f32.mrb[0].mxu0
        %v1721 = vadd.f32 %v1365, %v1720
        %v1722 = vpop.f32.mrb[0].mxu0
        %1723 = vdwg.mxu0
        %v1724 = vld [vmem:[%s461] sm:$0xe]
        %v1725 = vld [vmem:[%s461 + $0x14] sm:$0xe]
        %v1726 = vld [vmem:[%s461 + $0x28] sm:$0xe]
        %v1727 = vld [vmem:[%s461 + $0x3c] sm:$0xe]
        %v1728 = vld [vmem:[%s461 + $0x50] sm:$0xe]
        %v1729 = vld [vmem:[%s461 + $0x64] sm:$0xe]
        %v1730 = vld [vmem:[%s461 + $0x78] sm:$0xe]
        %v1731 = vld [vmem:[%s461 + $0x8c] sm:$0xe]
        %v1732 = vld [vmem:[%s461 + $0xa0] sm:$0xe]
        %v1733 = vld [vmem:[%s461 + $0xb4] sm:$0xe]
        %vm1754 = vcmask 1042432
        %vm1755 = vcmask 1046532
        %vm1756 = vmor %vm1754, %vm1755
        %v1757 = vrot.slane %v1724, 5
        %v1758 = vrot.slane %v1757, 4
        %v1759 = vrot.slane %v552, 5
        %v1760 = vsel %vm1756, %v1758, %v1759
        %v1761 = vrot.slane %v1759, 4
        %v1762 = vrot.slane %v553, 5
        %v1763 = vsel %vm1756, %v1761, %v1762
        %v1764 = vrot.slane %v1762, 4
        %v1765 = vrot.slane %v554, 5
        %v1766 = vsel %vm1756, %v1764, %v1765
        %v1767 = vrot.slane %v1765, 4
        %v1768 = vrot.slane %v592, 5
        %v1769 = vsel %vm1756, %v1767, %v1768
        %v1770 = vrot.slane %v1725, 5
        %v1771 = vrot.slane %v1770, 4
        %v1772 = vrot.slane %v556, 5
        %v1773 = vsel %vm1756, %v1771, %v1772
        %v1774 = vrot.slane %v1772, 4
        %v1775 = vrot.slane %v557, 5
        %v1776 = vsel %vm1756, %v1774, %v1775
        %v1777 = vrot.slane %v1775, 4
        %v1778 = vrot.slane %v558, 5
        %v1779 = vsel %vm1756, %v1777, %v1778
        %v1780 = vrot.slane %v1778, 4
        %v1781 = vrot.slane %v593, 5
        %v1782 = vsel %vm1756, %v1780, %v1781
        %v1783 = vrot.slane %v1726, 5
        %v1784 = vrot.slane %v1783, 4
        %v1785 = vrot.slane %v560, 5
        %v1786 = vsel %vm1756, %v1784, %v1785
        %v1787 = vrot.slane %v1785, 4
        %v1788 = vrot.slane %v561, 5
        %v1789 = vsel %vm1756, %v1787, %v1788
        %v1790 = vrot.slane %v1788, 4
        %v1791 = vrot.slane %v562, 5
        %v1792 = vsel %vm1756, %v1790, %v1791
        %v1793 = vrot.slane %v1791, 4
        %v1794 = vrot.slane %v594, 5
        %v1795 = vsel %vm1756, %v1793, %v1794
        %v1796 = vrot.slane %v1727, 5
        %v1797 = vrot.slane %v1796, 4
        %v1798 = vrot.slane %v564, 5
        %v1799 = vsel %vm1756, %v1797, %v1798
        %v1800 = vrot.slane %v1798, 4
        %v1801 = vrot.slane %v565, 5
        %v1802 = vsel %vm1756, %v1800, %v1801
        %v1803 = vrot.slane %v1801, 4
        %v1804 = vrot.slane %v566, 5
        %v1805 = vsel %vm1756, %v1803, %v1804
        %v1806 = vrot.slane %v1804, 4
        %v1807 = vrot.slane %v595, 5
        %v1808 = vsel %vm1756, %v1806, %v1807
        %v1809 = vrot.slane %v1728, 5
        %v1810 = vrot.slane %v1809, 4
        %v1811 = vrot.slane %v568, 5
        %v1812 = vsel %vm1756, %v1810, %v1811
        %v1813 = vrot.slane %v1811, 4
        %v1814 = vrot.slane %v569, 5
        %v1815 = vsel %vm1756, %v1813, %v1814
        %v1816 = vrot.slane %v1814, 4
        %v1817 = vrot.slane %v570, 5
        %v1818 = vsel %vm1756, %v1816, %v1817
        %v1819 = vrot.slane %v1817, 4
        %v1820 = vrot.slane %v596, 5
        %v1821 = vsel %vm1756, %v1819, %v1820
        %v1822 = vrot.slane %v1729, 5
        %v1823 = vrot.slane %v1822, 4
        %v1824 = vrot.slane %v572, 5
        %v1825 = vsel %vm1756, %v1823, %v1824
        %v1826 = vrot.slane %v1824, 4
        %v1827 = vrot.slane %v573, 5
        %v1828 = vsel %vm1756, %v1826, %v1827
        %v1829 = vrot.slane %v1827, 4
        %v1830 = vrot.slane %v574, 5
        %v1831 = vsel %vm1756, %v1829, %v1830
        %v1832 = vrot.slane %v1830, 4
        %v1833 = vrot.slane %v597, 5
        %v1834 = vsel %vm1756, %v1832, %v1833
        %v1835 = vrot.slane %v1730, 5
        %v1836 = vrot.slane %v1835, 4
        %v1837 = vrot.slane %v576, 5
        %v1838 = vsel %vm1756, %v1836, %v1837
        %v1839 = vrot.slane %v1837, 4
        %v1840 = vrot.slane %v577, 5
        %v1841 = vsel %vm1756, %v1839, %v1840
        %v1842 = vrot.slane %v1840, 4
        %v1843 = vrot.slane %v578, 5
        %v1844 = vsel %vm1756, %v1842, %v1843
        %v1845 = vrot.slane %v1843, 4
        %v1846 = vrot.slane %v598, 5
        %v1847 = vsel %vm1756, %v1845, %v1846
        %v1848 = vrot.slane %v1731, 5
        %v1849 = vrot.slane %v1848, 4
        %v1850 = vrot.slane %v580, 5
        %v1851 = vsel %vm1756, %v1849, %v1850
        %v1852 = vrot.slane %v1850, 4
        %v1853 = vrot.slane %v581, 5
        %v1854 = vsel %vm1756, %v1852, %v1853
        %v1855 = vrot.slane %v1853, 4
        %v1856 = vrot.slane %v582, 5
        %v1857 = vsel %vm1756, %v1855, %v1856
        %v1858 = vrot.slane %v1856, 4
        %v1859 = vrot.slane %v599, 5
        %v1860 = vsel %vm1756, %v1858, %v1859
        %v1861 = vrot.slane %v1732, 5
        %v1862 = vrot.slane %v1861, 4
        %v1863 = vrot.slane %v584, 5
        %v1864 = vsel %vm1756, %v1862, %v1863
        %v1865 = vrot.slane %v1863, 4
        %v1866 = vrot.slane %v585, 5
        %v1867 = vsel %vm1756, %v1865, %v1866
        %v1868 = vrot.slane %v1866, 4
        %v1869 = vrot.slane %v586, 5
        %v1870 = vsel %vm1756, %v1868, %v1869
        %v1871 = vrot.slane %v1869, 4
        %v1872 = vrot.slane %v600, 5
        %v1873 = vsel %vm1756, %v1871, %v1872
        %v1874 = vrot.slane %v1733, 5
        %v1875 = vrot.slane %v1874, 4
        %v1876 = vrot.slane %v588, 5
        %v1877 = vsel %vm1756, %v1875, %v1876
        %v1878 = vrot.slane %v1876, 4
        %v1879 = vrot.slane %v589, 5
        %v1880 = vsel %vm1756, %v1878, %v1879
        %v1881 = vrot.slane %v1879, 4
        %v1882 = vrot.slane %v590, 5
        %v1883 = vsel %vm1756, %v1881, %v1882
        %v1884 = vrot.slane %v1882, 4
        %v1885 = vrot.slane %v601, 5
        %v1886 = vsel %vm1756, %v1884, %v1885
        %v1887 = vld [vmem:[#allocation8 + $0x4] sm:$0x3]
        %v1888 = vunpack.c.l.b16 %v1760
        %v1889 = vunpack.c.l.b16 %v1763
        %v1890 = vunpack.c.l.b16 %v1766
        %v1891 = vunpack.c.l.b16 %v1769
        %v1892 = vunpack.c.l.b16 %v1773
        %v1893 = vunpack.c.l.b16 %v1776
        %v1894 = vunpack.c.l.b16 %v1779
        %v1895 = vunpack.c.l.b16 %v1782
        %v1896 = vunpack.c.l.b16 %v1786
        %v1897 = vunpack.c.l.b16 %v1789
        %v1898 = vunpack.c.l.b16 %v1792
        %v1899 = vunpack.c.l.b16 %v1795
        %v1900 = vunpack.c.l.b16 %v1799
        %v1901 = vunpack.c.l.b16 %v1802
        %v1902 = vunpack.c.l.b16 %v1805
        %v1903 = vunpack.c.l.b16 %v1808
        %v1904 = vunpack.c.l.b16 %v1812
        %v1905 = vunpack.c.l.b16 %v1815
        %v1906 = vunpack.c.l.b16 %v1818
        %v1907 = vunpack.c.l.b16 %v1821
        %v1908 = vunpack.c.l.b16 %v1825
        %v1909 = vunpack.c.l.b16 %v1828
        %v1910 = vunpack.c.l.b16 %v1831
        %v1911 = vunpack.c.l.b16 %v1834
        %v1912 = vunpack.c.l.b16 %v1838
        %v1913 = vunpack.c.l.b16 %v1841
        %v1914 = vunpack.c.l.b16 %v1844
        %v1915 = vunpack.c.l.b16 %v1847
        %v1916 = vunpack.c.l.b16 %v1851
        %v1917 = vunpack.c.l.b16 %v1854
        %v1918 = vunpack.c.l.b16 %v1857
        %v1919 = vunpack.c.l.b16 %v1860
        %v1920 = vunpack.c.l.b16 %v1864
        %v1921 = vunpack.c.l.b16 %v1867
        %v1922 = vunpack.c.l.b16 %v1870
        %v1923 = vunpack.c.l.b16 %v1873
        %v1924 = vunpack.c.l.b16 %v1877
        %v1925 = vunpack.c.l.b16 %v1880
        %v1926 = vunpack.c.l.b16 %v1883
        %v1927 = vunpack.c.l.b16 %v1886
        %v1928 = vpack.c.b16 %v1889, %v1888
        %v1929 = vpack.c.b16 %v1891, %v1890
        %v1930 = vpack.c.b16 %v1893, %v1892
        %v1931 = vpack.c.b16 %v1895, %v1894
        %v1932 = vpack.c.b16 %v1897, %v1896
        %v1933 = vpack.c.b16 %v1899, %v1898
        %v1934 = vpack.c.b16 %v1901, %v1900
        %v1935 = vpack.c.b16 %v1903, %v1902
        %v1936 = vpack.c.b16 %v1905, %v1904
        %v1937 = vpack.c.b16 %v1907, %v1906
        %v1938 = vpack.c.b16 %v1909, %v1908
        %v1939 = vpack.c.b16 %v1911, %v1910
        %v1940 = vpack.c.b16 %v1913, %v1912
        %v1941 = vpack.c.b16 %v1915, %v1914
        %v1942 = vpack.c.b16 %v1917, %v1916
        %v1943 = vpack.c.b16 %v1919, %v1918
        %v1944 = vpack.c.b16 %v1921, %v1920
        %v1945 = vpack.c.b16 %v1923, %v1922
        %v1946 = vpack.c.b16 %v1925, %v1924
        %v1947 = vpack.c.b16 %v1927, %v1926
        %v1949 = vsel %vm1110, %v1928, 0
        %v1952 = vsel %vm1110, %v1929, 0
        %v1955 = vsel %vm1110, %v1930, 0
        %v1958 = vsel %vm1110, %v1931, 0
        %v1961 = vsel %vm1110, %v1932, 0
        %v1964 = vsel %vm1110, %v1933, 0
        %v1967 = vsel %vm1110, %v1934, 0
        %v1970 = vsel %vm1110, %v1935, 0
        %v1973 = vsel %vm1110, %v1936, 0
        %v1976 = vsel %vm1110, %v1937, 0
        %v1979 = vsel %vm1110, %v1938, 0
        %v1982 = vsel %vm1110, %v1939, 0
        %v1985 = vsel %vm1110, %v1940, 0
        %v1988 = vsel %vm1110, %v1941, 0
        %v1991 = vsel %vm1110, %v1942, 0
        %v1994 = vsel %vm1110, %v1943, 0
        %v1997 = vsel %vm1110, %v1944, 0
        %v2000 = vsel %vm1110, %v1945, 0
        %v2003 = vsel %vm1110, %v1946, 0
        %v2006 = vsel %vm1110, %v1947, 0
        %v2009 = vsel %vm1171, %v1887, 0
        %2011 = vmatprep.subr.bf16.mxu0 0
        %2012 = vmatpush1.bf16.msra.mxu0 %v2009
        %2013 = vmatprep.subr.bf16.mxu0 0
        %2014 = vmatpush1.bf16.msra.mxu0 0
        %2015 = vmatprep.subr.bf16.mxu0 0
        %2016 = vmatpush1.bf16.msra.mxu0 0
        %2017 = vmatprep.subr.bf16.mxu0 0
        %2018 = vmatpush1.bf16.msra.mxu0 0
        %2019 = vmatprep.subr.bf16.mxu0 0
        %2020 = vmatpush1.bf16.msra.mxu0 0
        %2021 = vmatprep.subr.bf16.mxu0 0
        %2022 = vmatpush1.bf16.msra.mxu0 0
        %2023 = vmatprep.subr.bf16.mxu0 0
        %2024 = vmatpush1.bf16.msra.mxu0 0
        %2025 = vmatprep.subr.bf16.mxu0 0
        %2026 = vmatpush1.bf16.msra.mxu0 0
        %2027 = vmatprep.subr.bf16.mxu0 0
        %2028 = vmatpush1.bf16.msra.mxu0 0
        %2029 = vmatprep.subr.bf16.mxu0 0
        %2030 = vmatpush1.bf16.msra.mxu0 0
        %2031 = vmatprep.subr.bf16.mxu0 0
        %2032 = vmatpush1.bf16.msra.mxu0 0
        %2033 = vmatprep.subr.bf16.mxu0 0
        %2034 = vmatpush1.bf16.msra.mxu0 0
        %2035 = vmatprep.subr.bf16.mxu0 0
        %2036 = vmatpush1.bf16.msra.mxu0 0
        %2037 = vmatprep.subr.bf16.mxu0 0
        %2038 = vmatpush1.bf16.msra.mxu0 0
        %2039 = vmatprep.subr.bf16.mxu0 0
        %2040 = vmatpush1.bf16.msra.mxu0 0
        %2041 = vmatprep.subr.bf16.mxu0 0
        %2042 = vmatpush1.bf16.msra.mxu0 0
        %2043 = vmatprep.mubr.bf16.mxu0 0
        %2044 = vmatmul.mubr.bf16.gmra.mrb[0].mxu0 %v1949
        %v2045 = vpop.f32.mrb[0].mxu0
        %v2046 = vadd.f32 0.0, %v2045
        %v2047 = vpop.f32.mrb[0].mxu0
        %v2048 = vpop.f32.mrb[0].mxu0
        %v2049 = vadd.f32 0.0, %v2048
        %v2050 = vpop.f32.mrb[0].mxu0
        %2051 = vmatprep.mubr.bf16.mxu0 0
        %2052 = vmatmul.mubr.bf16.gmra.mrb[0].mxu0 %v1952
        %v2053 = vpop.f32.mrb[0].mxu0
        %v2054 = vadd.f32 0.0, %v2053
        %v2055 = vpop.f32.mrb[0].mxu0
        %v2056 = vpop.f32.mrb[0].mxu0
        %v2057 = vadd.f32 0.0, %v2056
        %v2058 = vpop.f32.mrb[0].mxu0
        %2059 = vmatprep.mubr.bf16.mxu0 0
        %2060 = vmatmul.mubr.bf16.gmra.mrb[0].mxu0 %v1955
        %v2061 = vpop.f32.mrb[0].mxu0
        %v2062 = vadd.f32 0.0, %v2061
        %v2063 = vpop.f32.mrb[0].mxu0
        %v2064 = vpop.f32.mrb[0].mxu0
        %v2065 = vadd.f32 0.0, %v2064
        %v2066 = vpop.f32.mrb[0].mxu0
        %2067 = vmatprep.mubr.bf16.mxu0 0
        %2068 = vmatmul.mubr.bf16.gmra.mrb[0].mxu0 %v1958
        %v2069 = vpop.f32.mrb[0].mxu0
        %v2070 = vadd.f32 0.0, %v2069
        %v2071 = vpop.f32.mrb[0].mxu0
        %v2072 = vpop.f32.mrb[0].mxu0
        %v2073 = vadd.f32 0.0, %v2072
        %v2074 = vpop.f32.mrb[0].mxu0
        %2075 = vmatprep.mubr.bf16.mxu0 0
        %2076 = vmatmul.mubr.bf16.gmra.mrb[0].mxu0 %v1961
        %v2077 = vpop.f32.mrb[0].mxu0
        %v2078 = vadd.f32 0.0, %v2077
        %v2079 = vpop.f32.mrb[0].mxu0
        %v2080 = vpop.f32.mrb[0].mxu0
        %v2081 = vadd.f32 0.0, %v2080
        %v2082 = vpop.f32.mrb[0].mxu0
        %2083 = vmatprep.mubr.bf16.mxu0 0
        %2084 = vmatmul.mubr.bf16.gmra.mrb[0].mxu0 %v1964
        %v2085 = vpop.f32.mrb[0].mxu0
        %v2086 = vadd.f32 0.0, %v2085
        %v2087 = vpop.f32.mrb[0].mxu0
        %v2088 = vpop.f32.mrb[0].mxu0
        %v2089 = vadd.f32 0.0, %v2088
        %v2090 = vpop.f32.mrb[0].mxu0
        %2091 = vmatprep.mubr.bf16.mxu0 0
        %2092 = vmatmul.mubr.bf16.gmra.mrb[0].mxu0 %v1967
        %v2093 = vpop.f32.mrb[0].mxu0
        %v2094 = vadd.f32 0.0, %v2093
        %v2095 = vpop.f32.mrb[0].mxu0
        %v2096 = vpop.f32.mrb[0].mxu0
        %v2097 = vadd.f32 0.0, %v2096
        %v2098 = vpop.f32.mrb[0].mxu0
        %2099 = vmatprep.mubr.bf16.mxu0 0
        %2100 = vmatmul.mubr.bf16.gmra.mrb[0].mxu0 %v1970
        %v2101 = vpop.f32.mrb[0].mxu0
        %v2102 = vadd.f32 0.0, %v2101
        %v2103 = vpop.f32.mrb[0].mxu0
        %v2104 = vpop.f32.mrb[0].mxu0
        %v2105 = vadd.f32 0.0, %v2104
        %v2106 = vpop.f32.mrb[0].mxu0
        %2107 = vmatprep.mubr.bf16.mxu0 0
        %2108 = vmatmul.mubr.bf16.gmra.mrb[0].mxu0 %v1973
        %v2109 = vpop.f32.mrb[0].mxu0
        %v2110 = vadd.f32 0.0, %v2109
        %v2111 = vpop.f32.mrb[0].mxu0
        %v2112 = vpop.f32.mrb[0].mxu0
        %v2113 = vadd.f32 0.0, %v2112
        %v2114 = vpop.f32.mrb[0].mxu0
        %2115 = vmatprep.mubr.bf16.mxu0 0
        %2116 = vmatmul.mubr.bf16.gmra.mrb[0].mxu0 %v1976
        %v2117 = vpop.f32.mrb[0].mxu0
        %v2118 = vadd.f32 0.0, %v2117
        %v2119 = vpop.f32.mrb[0].mxu0
        %v2120 = vpop.f32.mrb[0].mxu0
        %v2121 = vadd.f32 0.0, %v2120
        %v2122 = vpop.f32.mrb[0].mxu0
        %2123 = vmatprep.mubr.bf16.mxu0 0
        %2124 = vmatmul.mubr.bf16.gmra.mrb[0].mxu0 %v1979
        %v2125 = vpop.f32.mrb[0].mxu0
        %v2126 = vadd.f32 0.0, %v2125
        %v2127 = vpop.f32.mrb[0].mxu0
        %v2128 = vpop.f32.mrb[0].mxu0
        %v2129 = vadd.f32 0.0, %v2128
        %v2130 = vpop.f32.mrb[0].mxu0
        %2131 = vmatprep.mubr.bf16.mxu0 0
        %2132 = vmatmul.mubr.bf16.gmra.mrb[0].mxu0 %v1982
        %v2133 = vpop.f32.mrb[0].mxu0
        %v2134 = vadd.f32 0.0, %v2133
        %v2135 = vpop.f32.mrb[0].mxu0
        %v2136 = vpop.f32.mrb[0].mxu0
        %v2137 = vadd.f32 0.0, %v2136
        %v2138 = vpop.f32.mrb[0].mxu0
        %2139 = vmatprep.mubr.bf16.mxu0 0
        %2140 = vmatmul.mubr.bf16.gmra.mrb[0].mxu0 %v1985
        %v2141 = vpop.f32.mrb[0].mxu0
        %v2142 = vadd.f32 0.0, %v2141
        %v2143 = vpop.f32.mrb[0].mxu0
        %v2144 = vpop.f32.mrb[0].mxu0
        %v2145 = vadd.f32 0.0, %v2144
        %v2146 = vpop.f32.mrb[0].mxu0
        %2147 = vmatprep.mubr.bf16.mxu0 0
        %2148 = vmatmul.mubr.bf16.gmra.mrb[0].mxu0 %v1988
        %v2149 = vpop.f32.mrb[0].mxu0
        %v2150 = vadd.f32 0.0, %v2149
        %v2151 = vpop.f32.mrb[0].mxu0
        %v2152 = vpop.f32.mrb[0].mxu0
        %v2153 = vadd.f32 0.0, %v2152
        %v2154 = vpop.f32.mrb[0].mxu0
        %2155 = vmatprep.mubr.bf16.mxu0 0
        %2156 = vmatmul.mubr.bf16.gmra.mrb[0].mxu0 %v1991
        %v2157 = vpop.f32.mrb[0].mxu0
        %v2158 = vadd.f32 0.0, %v2157
        %v2159 = vpop.f32.mrb[0].mxu0
        %v2160 = vpop.f32.mrb[0].mxu0
        %v2161 = vadd.f32 0.0, %v2160
        %v2162 = vpop.f32.mrb[0].mxu0
        %2163 = vmatprep.mubr.bf16.mxu0 0
        %2164 = vmatmul.mubr.bf16.gmra.mrb[0].mxu0 %v1994
        %v2165 = vpop.f32.mrb[0].mxu0
        %v2166 = vadd.f32 0.0, %v2165
        %v2167 = vpop.f32.mrb[0].mxu0
        %v2168 = vpop.f32.mrb[0].mxu0
        %v2169 = vadd.f32 0.0, %v2168
        %v2170 = vpop.f32.mrb[0].mxu0
        %2171 = vmatprep.mubr.bf16.mxu0 0
        %2172 = vmatmul.mubr.bf16.gmra.mrb[0].mxu0 %v1997
        %v2173 = vpop.f32.mrb[0].mxu0
        %v2174 = vadd.f32 0.0, %v2173
        %v2175 = vpop.f32.mrb[0].mxu0
        %v2176 = vpop.f32.mrb[0].mxu0
        %v2177 = vadd.f32 0.0, %v2176
        %v2178 = vpop.f32.mrb[0].mxu0
        %2179 = vmatprep.mubr.bf16.mxu0 0
        %2180 = vmatmul.mubr.bf16.gmra.mrb[0].mxu0 %v2000
        %v2181 = vpop.f32.mrb[0].mxu0
        %v2182 = vadd.f32 0.0, %v2181
        %v2183 = vpop.f32.mrb[0].mxu0
        %v2184 = vpop.f32.mrb[0].mxu0
        %v2185 = vadd.f32 0.0, %v2184
        %v2186 = vpop.f32.mrb[0].mxu0
        %2187 = vmatprep.mubr.bf16.mxu0 0
        %2188 = vmatmul.mubr.bf16.gmra.mrb[0].mxu0 %v2003
        %v2189 = vpop.f32.mrb[0].mxu0
        %v2190 = vadd.f32 0.0, %v2189
        %v2191 = vpop.f32.mrb[0].mxu0
        %v2192 = vpop.f32.mrb[0].mxu0
        %v2193 = vadd.f32 0.0, %v2192
        %v2194 = vpop.f32.mrb[0].mxu0
        %2195 = vmatprep.mubr.bf16.mxu0 0
        %2196 = vmatmul.mubr.bf16.gmra.mrb[0].mxu0 %v2006
        %v2197 = vpop.f32.mrb[0].mxu0
        %v2198 = vadd.f32 0.0, %v2197
        %v2199 = vpop.f32.mrb[0].mxu0
        %v2200 = vpop.f32.mrb[0].mxu0
        %v2201 = vadd.f32 0.0, %v2200
        %v2202 = vpop.f32.mrb[0].mxu0
        %2203 = vdwg.mxu0
        %v2204 = vadd.f32 %v1566, %v2046
        %v2205 = vadd.f32 %v1569, %v2049
        %v2206 = vadd.f32 %v1574, %v2054
        %v2207 = vadd.f32 %v1577, %v2057
        %v2208 = vadd.f32 %v1582, %v2062
        %v2209 = vadd.f32 %v1585, %v2065
        %v2210 = vadd.f32 %v1590, %v2070
        %v2211 = vadd.f32 %v1593, %v2073
        %v2212 = vadd.f32 %v1598, %v2078
        %v2213 = vadd.f32 %v1601, %v2081
        %v2214 = vadd.f32 %v1606, %v2086
        %v2215 = vadd.f32 %v1609, %v2089
        %v2216 = vadd.f32 %v1614, %v2094
        %v2217 = vadd.f32 %v1617, %v2097
        %v2218 = vadd.f32 %v1622, %v2102
        %v2219 = vadd.f32 %v1625, %v2105
        %v2220 = vadd.f32 %v1630, %v2110
        %v2221 = vadd.f32 %v1633, %v2113
        %v2222 = vadd.f32 %v1638, %v2118
        %v2223 = vadd.f32 %v1641, %v2121
        %v2224 = vadd.f32 %v1646, %v2126
        %v2225 = vadd.f32 %v1649, %v2129
        %v2226 = vadd.f32 %v1654, %v2134
        %v2227 = vadd.f32 %v1657, %v2137
        %v2228 = vadd.f32 %v1662, %v2142
        %v2229 = vadd.f32 %v1665, %v2145
        %v2230 = vadd.f32 %v1670, %v2150
        %v2231 = vadd.f32 %v1673, %v2153
        %v2232 = vadd.f32 %v1678, %v2158
        %v2233 = vadd.f32 %v1681, %v2161
        %v2234 = vadd.f32 %v1686, %v2166
        %v2235 = vadd.f32 %v1689, %v2169
        %v2236 = vadd.f32 %v1694, %v2174
        %v2237 = vadd.f32 %v1697, %v2177
        %v2238 = vadd.f32 %v1702, %v2182
        %v2239 = vadd.f32 %v1705, %v2185
        %v2240 = vadd.f32 %v1710, %v2190
        %v2241 = vadd.f32 %v1713, %v2193
        %v2242 = vadd.f32 %v1718, %v2198
        %v2243 = vadd.f32 %v1721, %v2201
        %s2244 = scalar_lea.vmem %s461, 20 [#allocation3]
        %v2245 = vld [vmem:[%s2244] sm:$0xf]
        %v2246 = vld [vmem:[%s2244 + $0x4] sm:$0xf]
        %v2247 = vld [vmem:[%s2244 + $0x8] sm:$0xf]
        %v2248 = vld [vmem:[%s2244 + $0xc] sm:$0xf]
        %v2249 = vld [vmem:[%s2244 + $0x14] sm:$0xf]
        %v2250 = vld [vmem:[%s2244 + $0x18] sm:$0xf]
        %v2251 = vld [vmem:[%s2244 + $0x1c] sm:$0xf]
        %v2252 = vld [vmem:[%s2244 + $0x20] sm:$0xf]
        %v2253 = vld [vmem:[%s2244 + $0x28] sm:$0xf]
        %v2254 = vld [vmem:[%s2244 + $0x2c] sm:$0xf]
        %v2255 = vld [vmem:[%s2244 + $0x30] sm:$0xf]
        %v2256 = vld [vmem:[%s2244 + $0x34] sm:$0xf]
        %v2257 = vld [vmem:[%s2244 + $0x3c] sm:$0xf]
        %v2258 = vld [vmem:[%s2244 + $0x40] sm:$0xf]
        %v2259 = vld [vmem:[%s2244 + $0x44] sm:$0xf]
        %v2260 = vld [vmem:[%s2244 + $0x48] sm:$0xf]
        %v2261 = vld [vmem:[%s2244 + $0x50] sm:$0xf]
        %v2262 = vld [vmem:[%s2244 + $0x54] sm:$0xf]
        %v2263 = vld [vmem:[%s2244 + $0x58] sm:$0xf]
        %v2264 = vld [vmem:[%s2244 + $0x5c] sm:$0xf]
        %v2265 = vld [vmem:[%s2244 + $0x64] sm:$0xf]
        %v2266 = vld [vmem:[%s2244 + $0x68] sm:$0xf]
        %v2267 = vld [vmem:[%s2244 + $0x6c] sm:$0xf]
        %v2268 = vld [vmem:[%s2244 + $0x70] sm:$0xf]
        %v2269 = vld [vmem:[%s2244 + $0x78] sm:$0xf]
        %v2270 = vld [vmem:[%s2244 + $0x7c] sm:$0xf]
        %v2271 = vld [vmem:[%s2244 + $0x80] sm:$0xf]
        %v2272 = vld [vmem:[%s2244 + $0x84] sm:$0xf]
        %v2273 = vld [vmem:[%s2244 + $0x8c] sm:$0xf]
        %v2274 = vld [vmem:[%s2244 + $0x90] sm:$0xf]
        %v2275 = vld [vmem:[%s2244 + $0x94] sm:$0xf]
        %v2276 = vld [vmem:[%s2244 + $0x98] sm:$0xf]
        %v2277 = vld [vmem:[%s2244 + $0xa0] sm:$0xf]
        %v2278 = vld [vmem:[%s2244 + $0xa4] sm:$0xf]
        %v2279 = vld [vmem:[%s2244 + $0xa8] sm:$0xf]
        %v2280 = vld [vmem:[%s2244 + $0xac] sm:$0xf]
        %v2281 = vld [vmem:[%s2244 + $0xb4] sm:$0xf]
        %v2282 = vld [vmem:[%s2244 + $0xb8] sm:$0xf]
        %v2283 = vld [vmem:[%s2244 + $0xbc] sm:$0xf]
        %v2284 = vld [vmem:[%s2244 + $0xc0] sm:$0xf]
        %v2285 = vld [vmem:[#allocation8 + $0x4] sm:$0xc]
        %v2326 = vunpack.c.l.b16 %v2245
        %v2327 = vunpack.c.l.b16 %v2246
        %v2328 = vunpack.c.l.b16 %v2247
        %v2329 = vunpack.c.l.b16 %v2248
        %v2330 = vunpack.c.l.b16 %v2249
        %v2331 = vunpack.c.l.b16 %v2250
        %v2332 = vunpack.c.l.b16 %v2251
        %v2333 = vunpack.c.l.b16 %v2252
        %v2334 = vunpack.c.l.b16 %v2253
        %v2335 = vunpack.c.l.b16 %v2254
        %v2336 = vunpack.c.l.b16 %v2255
        %v2337 = vunpack.c.l.b16 %v2256
        %v2338 = vunpack.c.l.b16 %v2257
        %v2339 = vunpack.c.l.b16 %v2258
        %v2340 = vunpack.c.l.b16 %v2259
        %v2341 = vunpack.c.l.b16 %v2260
        %v2342 = vunpack.c.l.b16 %v2261
        %v2343 = vunpack.c.l.b16 %v2262
        %v2344 = vunpack.c.l.b16 %v2263
        %v2345 = vunpack.c.l.b16 %v2264
        %v2346 = vunpack.c.l.b16 %v2265
        %v2347 = vunpack.c.l.b16 %v2266
        %v2348 = vunpack.c.l.b16 %v2267
        %v2349 = vunpack.c.l.b16 %v2268
        %v2350 = vunpack.c.l.b16 %v2269
        %v2351 = vunpack.c.l.b16 %v2270
        %v2352 = vunpack.c.l.b16 %v2271
        %v2353 = vunpack.c.l.b16 %v2272
        %v2354 = vunpack.c.l.b16 %v2273
        %v2355 = vunpack.c.l.b16 %v2274
        %v2356 = vunpack.c.l.b16 %v2275
        %v2357 = vunpack.c.l.b16 %v2276
        %v2358 = vunpack.c.l.b16 %v2277
        %v2359 = vunpack.c.l.b16 %v2278
        %v2360 = vunpack.c.l.b16 %v2279
        %v2361 = vunpack.c.l.b16 %v2280
        %v2362 = vunpack.c.l.b16 %v2281
        %v2363 = vunpack.c.l.b16 %v2282
        %v2364 = vunpack.c.l.b16 %v2283
        %v2365 = vunpack.c.l.b16 %v2284
        %v2366 = vpack.c.b16 %v2327, %v2326
        %v2367 = vpack.c.b16 %v2329, %v2328
        %v2368 = vpack.c.b16 %v2331, %v2330
        %v2369 = vpack.c.b16 %v2333, %v2332
        %v2370 = vpack.c.b16 %v2335, %v2334
        %v2371 = vpack.c.b16 %v2337, %v2336
        %v2372 = vpack.c.b16 %v2339, %v2338
        %v2373 = vpack.c.b16 %v2341, %v2340
        %v2374 = vpack.c.b16 %v2343, %v2342
        %v2375 = vpack.c.b16 %v2345, %v2344
        %v2376 = vpack.c.b16 %v2347, %v2346
        %v2377 = vpack.c.b16 %v2349, %v2348
        %v2378 = vpack.c.b16 %v2351, %v2350
        %v2379 = vpack.c.b16 %v2353, %v2352
        %v2380 = vpack.c.b16 %v2355, %v2354
        %v2381 = vpack.c.b16 %v2357, %v2356
        %v2382 = vpack.c.b16 %v2359, %v2358
        %v2383 = vpack.c.b16 %v2361, %v2360
        %v2384 = vpack.c.b16 %v2363, %v2362
        %v2385 = vpack.c.b16 %v2365, %v2364
        %v2387 = vunpack.c.l.b16 %v2285
        %v2388 = vpack.c.b16 %v2387, %v2387
        %v2389 = vrot.slane %v2388, 2
        %v2391 = vsel %vm1110, %v2366, 0
        %v2394 = vsel %vm1110, %v2367, 0
        %v2397 = vsel %vm1110, %v2368, 0
        %v2400 = vsel %vm1110, %v2369, 0
        %v2403 = vsel %vm1110, %v2370, 0
        %v2406 = vsel %vm1110, %v2371, 0
        %v2409 = vsel %vm1110, %v2372, 0
        %v2412 = vsel %vm1110, %v2373, 0
        %v2415 = vsel %vm1110, %v2374, 0
        %v2418 = vsel %vm1110, %v2375, 0
        %v2421 = vsel %vm1110, %v2376, 0
        %v2424 = vsel %vm1110, %v2377, 0
        %v2427 = vsel %vm1110, %v2378, 0
        %v2430 = vsel %vm1110, %v2379, 0
        %v2433 = vsel %vm1110, %v2380, 0
        %v2436 = vsel %vm1110, %v2381, 0
        %v2439 = vsel %vm1110, %v2382, 0
        %v2442 = vsel %vm1110, %v2383, 0
        %v2445 = vsel %vm1110, %v2384, 0
        %v2448 = vsel %vm1110, %v2385, 0
        %v2451 = vsel %vm1171, %v2389, 0
        %2453 = vmatprep.subr.bf16.mxu0 0
        %2454 = vmatpush1.bf16.msra.mxu0 %v2451
        %2455 = vmatprep.subr.bf16.mxu0 0
        %2456 = vmatpush1.bf16.msra.mxu0 0
        %2457 = vmatprep.subr.bf16.mxu0 0
        %2458 = vmatpush1.bf16.msra.mxu0 0
        %2459 = vmatprep.subr.bf16.mxu0 0
        %2460 = vmatpush1.bf16.msra.mxu0 0
        %2461 = vmatprep.subr.bf16.mxu0 0
        %2462 = vmatpush1.bf16.msra.mxu0 0
        %2463 = vmatprep.subr.bf16.mxu0 0
        %2464 = vmatpush1.bf16.msra.mxu0 0
        %2465 = vmatprep.subr.bf16.mxu0 0
        %2466 = vmatpush1.bf16.msra.mxu0 0
        %2467 = vmatprep.subr.bf16.mxu0 0
        %2468 = vmatpush1.bf16.msra.mxu0 0
        %2469 = vmatprep.subr.bf16.mxu0 0
        %2470 = vmatpush1.bf16.msra.mxu0 0
        %2471 = vmatprep.subr.bf16.mxu0 0
        %2472 = vmatpush1.bf16.msra.mxu0 0
        %2473 = vmatprep.subr.bf16.mxu0 0
        %2474 = vmatpush1.bf16.msra.mxu0 0
        %2475 = vmatprep.subr.bf16.mxu0 0
        %2476 = vmatpush1.bf16.msra.mxu0 0
        %2477 = vmatprep.subr.bf16.mxu0 0
        %2478 = vmatpush1.bf16.msra.mxu0 0
        %2479 = vmatprep.subr.bf16.mxu0 0
        %2480 = vmatpush1.bf16.msra.mxu0 0
        %2481 = vmatprep.subr.bf16.mxu0 0
        %2482 = vmatpush1.bf16.msra.mxu0 0
        %2483 = vmatprep.subr.bf16.mxu0 0
        %2484 = vmatpush1.bf16.msra.mxu0 0
        %2485 = vmatprep.mubr.bf16.mxu0 0
        %2486 = vmatmul.mubr.bf16.gmra.mrb[0].mxu0 %v2391
        %v2487 = vpop.f32.mrb[0].mxu0
        %v2488 = vadd.f32 0.0, %v2487
        %v2489 = vpop.f32.mrb[0].mxu0
        %v2490 = vpop.f32.mrb[0].mxu0
        %v2491 = vadd.f32 0.0, %v2490
        %v2492 = vpop.f32.mrb[0].mxu0
        %2493 = vmatprep.mubr.bf16.mxu0 0
        %2494 = vmatmul.mubr.bf16.gmra.mrb[0].mxu0 %v2394
        %v2495 = vpop.f32.mrb[0].mxu0
        %v2496 = vadd.f32 0.0, %v2495
        %v2497 = vpop.f32.mrb[0].mxu0
        %v2498 = vpop.f32.mrb[0].mxu0
        %v2499 = vadd.f32 0.0, %v2498
        %v2500 = vpop.f32.mrb[0].mxu0
        %2501 = vmatprep.mubr.bf16.mxu0 0
        %2502 = vmatmul.mubr.bf16.gmra.mrb[0].mxu0 %v2397
        %v2503 = vpop.f32.mrb[0].mxu0
        %v2504 = vadd.f32 0.0, %v2503
        %v2505 = vpop.f32.mrb[0].mxu0
        %v2506 = vpop.f32.mrb[0].mxu0
        %v2507 = vadd.f32 0.0, %v2506
        %v2508 = vpop.f32.mrb[0].mxu0
        %2509 = vmatprep.mubr.bf16.mxu0 0
        %2510 = vmatmul.mubr.bf16.gmra.mrb[0].mxu0 %v2400
        %v2511 = vpop.f32.mrb[0].mxu0
        %v2512 = vadd.f32 0.0, %v2511
        %v2513 = vpop.f32.mrb[0].mxu0
        %v2514 = vpop.f32.mrb[0].mxu0
        %v2515 = vadd.f32 0.0, %v2514
        %v2516 = vpop.f32.mrb[0].mxu0
        %2517 = vmatprep.mubr.bf16.mxu0 0
        %2518 = vmatmul.mubr.bf16.gmra.mrb[0].mxu0 %v2403
        %v2519 = vpop.f32.mrb[0].mxu0
        %v2520 = vadd.f32 0.0, %v2519
        %v2521 = vpop.f32.mrb[0].mxu0
        %v2522 = vpop.f32.mrb[0].mxu0
        %v2523 = vadd.f32 0.0, %v2522
        %v2524 = vpop.f32.mrb[0].mxu0
        %2525 = vmatprep.mubr.bf16.mxu0 0
        %2526 = vmatmul.mubr.bf16.gmra.mrb[0].mxu0 %v2406
        %v2527 = vpop.f32.mrb[0].mxu0
        %v2528 = vadd.f32 0.0, %v2527
        %v2529 = vpop.f32.mrb[0].mxu0
        %v2530 = vpop.f32.mrb[0].mxu0
        %v2531 = vadd.f32 0.0, %v2530
        %v2532 = vpop.f32.mrb[0].mxu0
        %2533 = vmatprep.mubr.bf16.mxu0 0
        %2534 = vmatmul.mubr.bf16.gmra.mrb[0].mxu0 %v2409
        %v2535 = vpop.f32.mrb[0].mxu0
        %v2536 = vadd.f32 0.0, %v2535
        %v2537 = vpop.f32.mrb[0].mxu0
        %v2538 = vpop.f32.mrb[0].mxu0
        %v2539 = vadd.f32 0.0, %v2538
        %v2540 = vpop.f32.mrb[0].mxu0
        %2541 = vmatprep.mubr.bf16.mxu0 0
        %2542 = vmatmul.mubr.bf16.gmra.mrb[0].mxu0 %v2412
        %v2543 = vpop.f32.mrb[0].mxu0
        %v2544 = vadd.f32 0.0, %v2543
        %v2545 = vpop.f32.mrb[0].mxu0
        %v2546 = vpop.f32.mrb[0].mxu0
        %v2547 = vadd.f32 0.0, %v2546
        %v2548 = vpop.f32.mrb[0].mxu0
        %2549 = vmatprep.mubr.bf16.mxu0 0
        %2550 = vmatmul.mubr.bf16.gmra.mrb[0].mxu0 %v2415
        %v2551 = vpop.f32.mrb[0].mxu0
        %v2552 = vadd.f32 0.0, %v2551
        %v2553 = vpop.f32.mrb[0].mxu0
        %v2554 = vpop.f32.mrb[0].mxu0
        %v2555 = vadd.f32 0.0, %v2554
        %v2556 = vpop.f32.mrb[0].mxu0
        %2557 = vmatprep.mubr.bf16.mxu0 0
        %2558 = vmatmul.mubr.bf16.gmra.mrb[0].mxu0 %v2418
        %v2559 = vpop.f32.mrb[0].mxu0
        %v2560 = vadd.f32 0.0, %v2559
        %v2561 = vpop.f32.mrb[0].mxu0
        %v2562 = vpop.f32.mrb[0].mxu0
        %v2563 = vadd.f32 0.0, %v2562
        %v2564 = vpop.f32.mrb[0].mxu0
        %2565 = vmatprep.mubr.bf16.mxu0 0
        %2566 = vmatmul.mubr.bf16.gmra.mrb[0].mxu0 %v2421
        %v2567 = vpop.f32.mrb[0].mxu0
        %v2568 = vadd.f32 0.0, %v2567
        %v2569 = vpop.f32.mrb[0].mxu0
        %v2570 = vpop.f32.mrb[0].mxu0
        %v2571 = vadd.f32 0.0, %v2570
        %v2572 = vpop.f32.mrb[0].mxu0
        %2573 = vmatprep.mubr.bf16.mxu0 0
        %2574 = vmatmul.mubr.bf16.gmra.mrb[0].mxu0 %v2424
        %v2575 = vpop.f32.mrb[0].mxu0
        %v2576 = vadd.f32 0.0, %v2575
        %v2577 = vpop.f32.mrb[0].mxu0
        %v2578 = vpop.f32.mrb[0].mxu0
        %v2579 = vadd.f32 0.0, %v2578
        %v2580 = vpop.f32.mrb[0].mxu0
        %2581 = vmatprep.mubr.bf16.mxu0 0
        %2582 = vmatmul.mubr.bf16.gmra.mrb[0].mxu0 %v2427
        %v2583 = vpop.f32.mrb[0].mxu0
        %v2584 = vadd.f32 0.0, %v2583
        %v2585 = vpop.f32.mrb[0].mxu0
        %v2586 = vpop.f32.mrb[0].mxu0
        %v2587 = vadd.f32 0.0, %v2586
        %v2588 = vpop.f32.mrb[0].mxu0
        %2589 = vmatprep.mubr.bf16.mxu0 0
        %2590 = vmatmul.mubr.bf16.gmra.mrb[0].mxu0 %v2430
        %v2591 = vpop.f32.mrb[0].mxu0
        %v2592 = vadd.f32 0.0, %v2591
        %v2593 = vpop.f32.mrb[0].mxu0
        %v2594 = vpop.f32.mrb[0].mxu0
        %v2595 = vadd.f32 0.0, %v2594
        %v2596 = vpop.f32.mrb[0].mxu0
        %2597 = vmatprep.mubr.bf16.mxu0 0
        %2598 = vmatmul.mubr.bf16.gmra.mrb[0].mxu0 %v2433
        %v2599 = vpop.f32.mrb[0].mxu0
        %v2600 = vadd.f32 0.0, %v2599
        %v2601 = vpop.f32.mrb[0].mxu0
        %v2602 = vpop.f32.mrb[0].mxu0
        %v2603 = vadd.f32 0.0, %v2602
        %v2604 = vpop.f32.mrb[0].mxu0
        %2605 = vmatprep.mubr.bf16.mxu0 0
        %2606 = vmatmul.mubr.bf16.gmra.mrb[0].mxu0 %v2436
        %v2607 = vpop.f32.mrb[0].mxu0
        %v2608 = vadd.f32 0.0, %v2607
        %v2609 = vpop.f32.mrb[0].mxu0
        %v2610 = vpop.f32.mrb[0].mxu0
        %v2611 = vadd.f32 0.0, %v2610
        %v2612 = vpop.f32.mrb[0].mxu0
        %2613 = vmatprep.mubr.bf16.mxu0 0
        %2614 = vmatmul.mubr.bf16.gmra.mrb[0].mxu0 %v2439
        %v2615 = vpop.f32.mrb[0].mxu0
        %v2616 = vadd.f32 0.0, %v2615
        %v2617 = vpop.f32.mrb[0].mxu0
        %v2618 = vpop.f32.mrb[0].mxu0
        %v2619 = vadd.f32 0.0, %v2618
        %v2620 = vpop.f32.mrb[0].mxu0
        %2621 = vmatprep.mubr.bf16.mxu0 0
        %2622 = vmatmul.mubr.bf16.gmra.mrb[0].mxu0 %v2442
        %v2623 = vpop.f32.mrb[0].mxu0
        %v2624 = vadd.f32 0.0, %v2623
        %v2625 = vpop.f32.mrb[0].mxu0
        %v2626 = vpop.f32.mrb[0].mxu0
        %v2627 = vadd.f32 0.0, %v2626
        %v2628 = vpop.f32.mrb[0].mxu0
        %2629 = vmatprep.mubr.bf16.mxu0 0
        %2630 = vmatmul.mubr.bf16.gmra.mrb[0].mxu0 %v2445
        %v2631 = vpop.f32.mrb[0].mxu0
        %v2632 = vadd.f32 0.0, %v2631
        %v2633 = vpop.f32.mrb[0].mxu0
        %v2634 = vpop.f32.mrb[0].mxu0
        %v2635 = vadd.f32 0.0, %v2634
        %v2636 = vpop.f32.mrb[0].mxu0
        %2637 = vmatprep.mubr.bf16.mxu0 0
        %2638 = vmatmul.mubr.bf16.gmra.mrb[0].mxu0 %v2448
        %v2639 = vpop.f32.mrb[0].mxu0
        %v2640 = vadd.f32 0.0, %v2639
        %v2641 = vpop.f32.mrb[0].mxu0
        %v2642 = vpop.f32.mrb[0].mxu0
        %v2643 = vadd.f32 0.0, %v2642
        %v2644 = vpop.f32.mrb[0].mxu0
        %2645 = vdwg.mxu0
        %v2646 = vadd.f32 %v2204, %v2488
        %v2647 = vadd.f32 %v2205, %v2491
        %v2648 = vadd.f32 %v2206, %v2496
        %v2649 = vadd.f32 %v2207, %v2499
        %v2650 = vadd.f32 %v2208, %v2504
        %v2651 = vadd.f32 %v2209, %v2507
        %v2652 = vadd.f32 %v2210, %v2512
        %v2653 = vadd.f32 %v2211, %v2515
        %v2654 = vadd.f32 %v2212, %v2520
        %v2655 = vadd.f32 %v2213, %v2523
        %v2656 = vadd.f32 %v2214, %v2528
        %v2657 = vadd.f32 %v2215, %v2531
        %v2658 = vadd.f32 %v2216, %v2536
        %v2659 = vadd.f32 %v2217, %v2539
        %v2660 = vadd.f32 %v2218, %v2544
        %v2661 = vadd.f32 %v2219, %v2547
        %v2662 = vadd.f32 %v2220, %v2552
        %v2663 = vadd.f32 %v2221, %v2555
        %v2664 = vadd.f32 %v2222, %v2560
        %v2665 = vadd.f32 %v2223, %v2563
        %v2666 = vadd.f32 %v2224, %v2568
        %v2667 = vadd.f32 %v2225, %v2571
        %v2668 = vadd.f32 %v2226, %v2576
        %v2669 = vadd.f32 %v2227, %v2579
        %v2670 = vadd.f32 %v2228, %v2584
        %v2671 = vadd.f32 %v2229, %v2587
        %v2672 = vadd.f32 %v2230, %v2592
        %v2673 = vadd.f32 %v2231, %v2595
        %v2674 = vadd.f32 %v2232, %v2600
        %v2675 = vadd.f32 %v2233, %v2603
        %v2676 = vadd.f32 %v2234, %v2608
        %v2677 = vadd.f32 %v2235, %v2611
        %v2678 = vadd.f32 %v2236, %v2616
        %v2679 = vadd.f32 %v2237, %v2619
        %v2680 = vadd.f32 %v2238, %v2624
        %v2681 = vadd.f32 %v2239, %v2627
        %v2682 = vadd.f32 %v2240, %v2632
        %v2683 = vadd.f32 %v2241, %v2635
        %v2684 = vadd.f32 %v2242, %v2640
        %v2685 = vadd.f32 %v2243, %v2643
        %v2686 = vld [vmem:[%s2244] sm:$0xf]
        %v2687 = vld [vmem:[%s2244 + $0x4] sm:$0xf]
        %v2688 = vld [vmem:[%s2244 + $0x8] sm:$0xf]
        %v2689 = vld [vmem:[%s2244 + $0xc] sm:$0xf]
        %v2690 = vld [vmem:[%s2244 + $0x10] sm:$0x1]
        %v2691 = vld [vmem:[%s2244 + $0x14] sm:$0xf]
        %v2692 = vld [vmem:[%s2244 + $0x18] sm:$0xf]
        %v2693 = vld [vmem:[%s2244 + $0x1c] sm:$0xf]
        %v2694 = vld [vmem:[%s2244 + $0x20] sm:$0xf]
        %v2695 = vld [vmem:[%s2244 + $0x24] sm:$0x1]
        %v2696 = vld [vmem:[%s2244 + $0x28] sm:$0xf]
        %v2697 = vld [vmem:[%s2244 + $0x2c] sm:$0xf]
        %v2698 = vld [vmem:[%s2244 + $0x30] sm:$0xf]
        %v2699 = vld [vmem:[%s2244 + $0x34] sm:$0xf]
        %v2700 = vld [vmem:[%s2244 + $0x38] sm:$0x1]
        %v2701 = vld [vmem:[%s2244 + $0x3c] sm:$0xf]
        %v2702 = vld [vmem:[%s2244 + $0x40] sm:$0xf]
        %v2703 = vld [vmem:[%s2244 + $0x44] sm:$0xf]
        %v2704 = vld [vmem:[%s2244 + $0x48] sm:$0xf]
        %v2705 = vld [vmem:[%s2244 + $0x4c] sm:$0x1]
        %v2706 = vld [vmem:[%s2244 + $0x50] sm:$0xf]
        %v2707 = vld [vmem:[%s2244 + $0x54] sm:$0xf]
        %v2708 = vld [vmem:[%s2244 + $0x58] sm:$0xf]
        %v2709 = vld [vmem:[%s2244 + $0x5c] sm:$0xf]
        %v2710 = vld [vmem:[%s2244 + $0x60] sm:$0x1]
        %v2711 = vld [vmem:[%s2244 + $0x64] sm:$0xf]
        %v2712 = vld [vmem:[%s2244 + $0x68] sm:$0xf]
        %v2713 = vld [vmem:[%s2244 + $0x6c] sm:$0xf]
        %v2714 = vld [vmem:[%s2244 + $0x70] sm:$0xf]
        %v2715 = vld [vmem:[%s2244 + $0x74] sm:$0x1]
        %v2716 = vld [vmem:[%s2244 + $0x78] sm:$0xf]
        %v2717 = vld [vmem:[%s2244 + $0x7c] sm:$0xf]
        %v2718 = vld [vmem:[%s2244 + $0x80] sm:$0xf]
        %v2719 = vld [vmem:[%s2244 + $0x84] sm:$0xf]
        %v2720 = vld [vmem:[%s2244 + $0x88] sm:$0x1]
        %v2721 = vld [vmem:[%s2244 + $0x8c] sm:$0xf]
        %v2722 = vld [vmem:[%s2244 + $0x90] sm:$0xf]
        %v2723 = vld [vmem:[%s2244 + $0x94] sm:$0xf]
        %v2724 = vld [vmem:[%s2244 + $0x98] sm:$0xf]
        %v2725 = vld [vmem:[%s2244 + $0x9c] sm:$0x1]
        %v2726 = vld [vmem:[%s2244 + $0xa0] sm:$0xf]
        %v2727 = vld [vmem:[%s2244 + $0xa4] sm:$0xf]
        %v2728 = vld [vmem:[%s2244 + $0xa8] sm:$0xf]
        %v2729 = vld [vmem:[%s2244 + $0xac] sm:$0xf]
        %v2730 = vld [vmem:[%s2244 + $0xb0] sm:$0x1]
        %v2731 = vld [vmem:[%s2244 + $0xb4] sm:$0xf]
        %v2732 = vld [vmem:[%s2244 + $0xb8] sm:$0xf]
        %v2733 = vld [vmem:[%s2244 + $0xbc] sm:$0xf]
        %v2734 = vld [vmem:[%s2244 + $0xc0] sm:$0xf]
        %v2735 = vld [vmem:[%s2244 + $0xc4] sm:$0x1]
        %v2737 = vshrl.u32 %v2686, 16
        %v2739 = vrot.slane %v2737, 4
        %v2740 = vshll.u32 %v2686, 16
        %v2742 = vrot.slane %v2740, 5
        %v2743 = vor.u32 %v2739, %v2742
        %v2744 = vrot.slane %v2743, 4
        %v2746 = vshll.u32 %v2687, 16
        %v2748 = vrot.slane %v2746, 5
        %v2749 = vsel %vm604, %v2744, %v2748
        %v2750 = vshrl.u32 %v2687, 16
        %v2752 = vrot.slane %v2750, 4
        %v2753 = vor.u32 %v2752, %v2748
        %v2754 = vrot.slane %v2753, 4
        %v2756 = vshll.u32 %v2688, 16
        %v2758 = vrot.slane %v2756, 5
        %v2759 = vsel %vm604, %v2754, %v2758
        %v2760 = vshrl.u32 %v2688, 16
        %v2762 = vrot.slane %v2760, 4
        %v2763 = vor.u32 %v2762, %v2758
        %v2764 = vrot.slane %v2763, 4
        %v2766 = vshll.u32 %v2689, 16
        %v2768 = vrot.slane %v2766, 5
        %v2769 = vsel %vm604, %v2764, %v2768
        %v2770 = vshrl.u32 %v2689, 16
        %v2772 = vrot.slane %v2770, 4
        %v2773 = vor.u32 %v2772, %v2768
        %v2774 = vrot.slane %v2773, 4
        %v2776 = vshll.u32 %v2690, 16
        %v2778 = vrot.slane %v2776, 5
        %v2779 = vsel %vm604, %v2774, %v2778
        %v2781 = vshrl.u32 %v2691, 16
        %v2783 = vrot.slane %v2781, 4
        %v2784 = vshll.u32 %v2691, 16
        %v2786 = vrot.slane %v2784, 5
        %v2787 = vor.u32 %v2783, %v2786
        %v2788 = vrot.slane %v2787, 4
        %v2790 = vshll.u32 %v2692, 16
        %v2792 = vrot.slane %v2790, 5
        %v2793 = vsel %vm604, %v2788, %v2792
        %v2794 = vshrl.u32 %v2692, 16
        %v2796 = vrot.slane %v2794, 4
        %v2797 = vor.u32 %v2796, %v2792
        %v2798 = vrot.slane %v2797, 4
        %v2800 = vshll.u32 %v2693, 16
        %v2802 = vrot.slane %v2800, 5
        %v2803 = vsel %vm604, %v2798, %v2802
        %v2804 = vshrl.u32 %v2693, 16
        %v2806 = vrot.slane %v2804, 4
        %v2807 = vor.u32 %v2806, %v2802
        %v2808 = vrot.slane %v2807, 4
        %v2810 = vshll.u32 %v2694, 16
        %v2812 = vrot.slane %v2810, 5
        %v2813 = vsel %vm604, %v2808, %v2812
        %v2814 = vshrl.u32 %v2694, 16
        %v2816 = vrot.slane %v2814, 4
        %v2817 = vor.u32 %v2816, %v2812
        %v2818 = vrot.slane %v2817, 4
        %v2820 = vshll.u32 %v2695, 16
        %v2822 = vrot.slane %v2820, 5
        %v2823 = vsel %vm604, %v2818, %v2822
        %v2825 = vshrl.u32 %v2696, 16
        %v2827 = vrot.slane %v2825, 4
        %v2828 = vshll.u32 %v2696, 16
        %v2830 = vrot.slane %v2828, 5
        %v2831 = vor.u32 %v2827, %v2830
        %v2832 = vrot.slane %v2831, 4
        %v2834 = vshll.u32 %v2697, 16
        %v2836 = vrot.slane %v2834, 5
        %v2837 = vsel %vm604, %v2832, %v2836
        %v2838 = vshrl.u32 %v2697, 16
        %v2840 = vrot.slane %v2838, 4
        %v2841 = vor.u32 %v2840, %v2836
        %v2842 = vrot.slane %v2841, 4
        %v2844 = vshll.u32 %v2698, 16
        %v2846 = vrot.slane %v2844, 5
        %v2847 = vsel %vm604, %v2842, %v2846
        %v2848 = vshrl.u32 %v2698, 16
        %v2850 = vrot.slane %v2848, 4
        %v2851 = vor.u32 %v2850, %v2846
        %v2852 = vrot.slane %v2851, 4
        %v2854 = vshll.u32 %v2699, 16
        %v2856 = vrot.slane %v2854, 5
        %v2857 = vsel %vm604, %v2852, %v2856
        %v2858 = vshrl.u32 %v2699, 16
        %v2860 = vrot.slane %v2858, 4
        %v2861 = vor.u32 %v2860, %v2856
        %v2862 = vrot.slane %v2861, 4
        %v2864 = vshll.u32 %v2700, 16
        %v2866 = vrot.slane %v2864, 5
        %v2867 = vsel %vm604, %v2862, %v2866
        %v2869 = vshrl.u32 %v2701, 16
        %v2871 = vrot.slane %v2869, 4
        %v2872 = vshll.u32 %v2701, 16
        %v2874 = vrot.slane %v2872, 5
        %v2875 = vor.u32 %v2871, %v2874
        %v2876 = vrot.slane %v2875, 4
        %v2878 = vshll.u32 %v2702, 16
        %v2880 = vrot.slane %v2878, 5
        %v2881 = vsel %vm604, %v2876, %v2880
        %v2882 = vshrl.u32 %v2702, 16
        %v2884 = vrot.slane %v2882, 4
        %v2885 = vor.u32 %v2884, %v2880
        %v2886 = vrot.slane %v2885, 4
        %v2888 = vshll.u32 %v2703, 16
        %v2890 = vrot.slane %v2888, 5
        %v2891 = vsel %vm604, %v2886, %v2890
        %v2892 = vshrl.u32 %v2703, 16
        %v2894 = vrot.slane %v2892, 4
        %v2895 = vor.u32 %v2894, %v2890
        %v2896 = vrot.slane %v2895, 4
        %v2898 = vshll.u32 %v2704, 16
        %v2900 = vrot.slane %v2898, 5
        %v2901 = vsel %vm604, %v2896, %v2900
        %v2902 = vshrl.u32 %v2704, 16
        %v2904 = vrot.slane %v2902, 4
        %v2905 = vor.u32 %v2904, %v2900
        %v2906 = vrot.slane %v2905, 4
        %v2908 = vshll.u32 %v2705, 16
        %v2910 = vrot.slane %v2908, 5
        %v2911 = vsel %vm604, %v2906, %v2910
        %v2913 = vshrl.u32 %v2706, 16
        %v2915 = vrot.slane %v2913, 4
        %v2916 = vshll.u32 %v2706, 16
        %v2918 = vrot.slane %v2916, 5
        %v2919 = vor.u32 %v2915, %v2918
        %v2920 = vrot.slane %v2919, 4
        %v2922 = vshll.u32 %v2707, 16
        %v2924 = vrot.slane %v2922, 5
        %v2925 = vsel %vm604, %v2920, %v2924
        %v2926 = vshrl.u32 %v2707, 16
        %v2928 = vrot.slane %v2926, 4
        %v2929 = vor.u32 %v2928, %v2924
        %v2930 = vrot.slane %v2929, 4
        %v2932 = vshll.u32 %v2708, 16
        %v2934 = vrot.slane %v2932, 5
        %v2935 = vsel %vm604, %v2930, %v2934
        %v2936 = vshrl.u32 %v2708, 16
        %v2938 = vrot.slane %v2936, 4
        %v2939 = vor.u32 %v2938, %v2934
        %v2940 = vrot.slane %v2939, 4
        %v2942 = vshll.u32 %v2709, 16
        %v2944 = vrot.slane %v2942, 5
        %v2945 = vsel %vm604, %v2940, %v2944
        %v2946 = vshrl.u32 %v2709, 16
        %v2948 = vrot.slane %v2946, 4
        %v2949 = vor.u32 %v2948, %v2944
        %v2950 = vrot.slane %v2949, 4
        %v2952 = vshll.u32 %v2710, 16
        %v2954 = vrot.slane %v2952, 5
        %v2955 = vsel %vm604, %v2950, %v2954
        %v2957 = vshrl.u32 %v2711, 16
        %v2959 = vrot.slane %v2957, 4
        %v2960 = vshll.u32 %v2711, 16
        %v2962 = vrot.slane %v2960, 5
        %v2963 = vor.u32 %v2959, %v2962
        %v2964 = vrot.slane %v2963, 4
        %v2966 = vshll.u32 %v2712, 16
        %v2968 = vrot.slane %v2966, 5
        %v2969 = vsel %vm604, %v2964, %v2968
        %v2970 = vshrl.u32 %v2712, 16
        %v2972 = vrot.slane %v2970, 4
        %v2973 = vor.u32 %v2972, %v2968
        %v2974 = vrot.slane %v2973, 4
        %v2976 = vshll.u32 %v2713, 16
        %v2978 = vrot.slane %v2976, 5
        %v2979 = vsel %vm604, %v2974, %v2978
        %v2980 = vshrl.u32 %v2713, 16
        %v2982 = vrot.slane %v2980, 4
        %v2983 = vor.u32 %v2982, %v2978
        %v2984 = vrot.slane %v2983, 4
        %v2986 = vshll.u32 %v2714, 16
        %v2988 = vrot.slane %v2986, 5
        %v2989 = vsel %vm604, %v2984, %v2988
        %v2990 = vshrl.u32 %v2714, 16
        %v2992 = vrot.slane %v2990, 4
        %v2993 = vor.u32 %v2992, %v2988
        %v2994 = vrot.slane %v2993, 4
        %v2996 = vshll.u32 %v2715, 16
        %v2998 = vrot.slane %v2996, 5
        %v2999 = vsel %vm604, %v2994, %v2998
        %v3001 = vshrl.u32 %v2716, 16
        %v3003 = vrot.slane %v3001, 4
        %v3004 = vshll.u32 %v2716, 16
        %v3006 = vrot.slane %v3004, 5
        %v3007 = vor.u32 %v3003, %v3006
        %v3008 = vrot.slane %v3007, 4
        %v3010 = vshll.u32 %v2717, 16
        %v3012 = vrot.slane %v3010, 5
        %v3013 = vsel %vm604, %v3008, %v3012
        %v3014 = vshrl.u32 %v2717, 16
        %v3016 = vrot.slane %v3014, 4
        %v3017 = vor.u32 %v3016, %v3012
        %v3018 = vrot.slane %v3017, 4
        %v3020 = vshll.u32 %v2718, 16
        %v3022 = vrot.slane %v3020, 5
        %v3023 = vsel %vm604, %v3018, %v3022
        %v3024 = vshrl.u32 %v2718, 16
        %v3026 = vrot.slane %v3024, 4
        %v3027 = vor.u32 %v3026, %v3022
        %v3028 = vrot.slane %v3027, 4
        %v3030 = vshll.u32 %v2719, 16
        %v3032 = vrot.slane %v3030, 5
        %v3033 = vsel %vm604, %v3028, %v3032
        %v3034 = vshrl.u32 %v2719, 16
        %v3036 = vrot.slane %v3034, 4
        %v3037 = vor.u32 %v3036, %v3032
        %v3038 = vrot.slane %v3037, 4
        %v3040 = vshll.u32 %v2720, 16
        %v3042 = vrot.slane %v3040, 5
        %v3043 = vsel %vm604, %v3038, %v3042
        %v3045 = vshrl.u32 %v2721, 16
        %v3047 = vrot.slane %v3045, 4
        %v3048 = vshll.u32 %v2721, 16
        %v3050 = vrot.slane %v3048, 5
        %v3051 = vor.u32 %v3047, %v3050
        %v3052 = vrot.slane %v3051, 4
        %v3054 = vshll.u32 %v2722, 16
        %v3056 = vrot.slane %v3054, 5
        %v3057 = vsel %vm604, %v3052, %v3056
        %v3058 = vshrl.u32 %v2722, 16
        %v3060 = vrot.slane %v3058, 4
        %v3061 = vor.u32 %v3060, %v3056
        %v3062 = vrot.slane %v3061, 4
        %v3064 = vshll.u32 %v2723, 16
        %v3066 = vrot.slane %v3064, 5
        %v3067 = vsel %vm604, %v3062, %v3066
        %v3068 = vshrl.u32 %v2723, 16
        %v3070 = vrot.slane %v3068, 4
        %v3071 = vor.u32 %v3070, %v3066
        %v3072 = vrot.slane %v3071, 4
        %v3074 = vshll.u32 %v2724, 16
        %v3076 = vrot.slane %v3074, 5
        %v3077 = vsel %vm604, %v3072, %v3076
        %v3078 = vshrl.u32 %v2724, 16
        %v3080 = vrot.slane %v3078, 4
        %v3081 = vor.u32 %v3080, %v3076
        %v3082 = vrot.slane %v3081, 4
        %v3084 = vshll.u32 %v2725, 16
        %v3086 = vrot.slane %v3084, 5
        %v3087 = vsel %vm604, %v3082, %v3086
        %v3089 = vshrl.u32 %v2726, 16
        %v3091 = vrot.slane %v3089, 4
        %v3092 = vshll.u32 %v2726, 16
        %v3094 = vrot.slane %v3092, 5
        %v3095 = vor.u32 %v3091, %v3094
        %v3096 = vrot.slane %v3095, 4
        %v3098 = vshll.u32 %v2727, 16
        %v3100 = vrot.slane %v3098, 5
        %v3101 = vsel %vm604, %v3096, %v3100
        %v3102 = vshrl.u32 %v2727, 16
        %v3104 = vrot.slane %v3102, 4
        %v3105 = vor.u32 %v3104, %v3100
        %v3106 = vrot.slane %v3105, 4
        %v3108 = vshll.u32 %v2728, 16
        %v3110 = vrot.slane %v3108, 5
        %v3111 = vsel %vm604, %v3106, %v3110
        %v3112 = vshrl.u32 %v2728, 16
        %v3114 = vrot.slane %v3112, 4
        %v3115 = vor.u32 %v3114, %v3110
        %v3116 = vrot.slane %v3115, 4
        %v3118 = vshll.u32 %v2729, 16
        %v3120 = vrot.slane %v3118, 5
        %v3121 = vsel %vm604, %v3116, %v3120
        %v3122 = vshrl.u32 %v2729, 16
        %v3124 = vrot.slane %v3122, 4
        %v3125 = vor.u32 %v3124, %v3120
        %v3126 = vrot.slane %v3125, 4
        %v3128 = vshll.u32 %v2730, 16
        %v3130 = vrot.slane %v3128, 5
        %v3131 = vsel %vm604, %v3126, %v3130
        %v3133 = vshrl.u32 %v2731, 16
        %v3135 = vrot.slane %v3133, 4
        %v3136 = vshll.u32 %v2731, 16
        %v3138 = vrot.slane %v3136, 5
        %v3139 = vor.u32 %v3135, %v3138
        %v3140 = vrot.slane %v3139, 4
        %v3142 = vshll.u32 %v2732, 16
        %v3144 = vrot.slane %v3142, 5
        %v3145 = vsel %vm604, %v3140, %v3144
        %v3146 = vshrl.u32 %v2732, 16
        %v3148 = vrot.slane %v3146, 4
        %v3149 = vor.u32 %v3148, %v3144
        %v3150 = vrot.slane %v3149, 4
        %v3152 = vshll.u32 %v2733, 16
        %v3154 = vrot.slane %v3152, 5
        %v3155 = vsel %vm604, %v3150, %v3154
        %v3156 = vshrl.u32 %v2733, 16
        %v3158 = vrot.slane %v3156, 4
        %v3159 = vor.u32 %v3158, %v3154
        %v3160 = vrot.slane %v3159, 4
        %v3162 = vshll.u32 %v2734, 16
        %v3164 = vrot.slane %v3162, 5
        %v3165 = vsel %vm604, %v3160, %v3164
        %v3166 = vshrl.u32 %v2734, 16
        %v3168 = vrot.slane %v3166, 4
        %v3169 = vor.u32 %v3168, %v3164
        %v3170 = vrot.slane %v3169, 4
        %v3172 = vshll.u32 %v2735, 16
        %v3174 = vrot.slane %v3172, 5
        %v3175 = vsel %vm604, %v3170, %v3174
        %v3176 = vld [vmem:[#allocation8 + $0x8] sm:$0x3]
        %v3177 = vunpack.c.l.b16 %v2749
        %v3178 = vunpack.c.l.b16 %v2759
        %v3179 = vunpack.c.l.b16 %v2769
        %v3180 = vunpack.c.l.b16 %v2779
        %v3181 = vunpack.c.l.b16 %v2793
        %v3182 = vunpack.c.l.b16 %v2803
        %v3183 = vunpack.c.l.b16 %v2813
        %v3184 = vunpack.c.l.b16 %v2823
        %v3185 = vunpack.c.l.b16 %v2837
        %v3186 = vunpack.c.l.b16 %v2847
        %v3187 = vunpack.c.l.b16 %v2857
        %v3188 = vunpack.c.l.b16 %v2867
        %v3189 = vunpack.c.l.b16 %v2881
        %v3190 = vunpack.c.l.b16 %v2891
        %v3191 = vunpack.c.l.b16 %v2901
        %v3192 = vunpack.c.l.b16 %v2911
        %v3193 = vunpack.c.l.b16 %v2925
        %v3194 = vunpack.c.l.b16 %v2935
        %v3195 = vunpack.c.l.b16 %v2945
        %v3196 = vunpack.c.l.b16 %v2955
        %v3197 = vunpack.c.l.b16 %v2969
        %v3198 = vunpack.c.l.b16 %v2979
        %v3199 = vunpack.c.l.b16 %v2989
        %v3200 = vunpack.c.l.b16 %v2999
        %v3201 = vunpack.c.l.b16 %v3013
        %v3202 = vunpack.c.l.b16 %v3023
        %v3203 = vunpack.c.l.b16 %v3033
        %v3204 = vunpack.c.l.b16 %v3043
        %v3205 = vunpack.c.l.b16 %v3057
        %v3206 = vunpack.c.l.b16 %v3067
        %v3207 = vunpack.c.l.b16 %v3077
        %v3208 = vunpack.c.l.b16 %v3087
        %v3209 = vunpack.c.l.b16 %v3101
        %v3210 = vunpack.c.l.b16 %v3111
        %v3211 = vunpack.c.l.b16 %v3121
        %v3212 = vunpack.c.l.b16 %v3131
        %v3213 = vunpack.c.l.b16 %v3145
        %v3214 = vunpack.c.l.b16 %v3155
        %v3215 = vunpack.c.l.b16 %v3165
        %v3216 = vunpack.c.l.b16 %v3175
        %v3217 = vpack.c.b16 %v3178, %v3177
        %v3218 = vpack.c.b16 %v3180, %v3179
        %v3219 = vpack.c.b16 %v3182, %v3181
        %v3220 = vpack.c.b16 %v3184, %v3183
        %v3221 = vpack.c.b16 %v3186, %v3185
        %v3222 = vpack.c.b16 %v3188, %v3187
        %v3223 = vpack.c.b16 %v3190, %v3189
        %v3224 = vpack.c.b16 %v3192, %v3191
        %v3225 = vpack.c.b16 %v3194, %v3193
        %v3226 = vpack.c.b16 %v3196, %v3195
        %v3227 = vpack.c.b16 %v3198, %v3197
        %v3228 = vpack.c.b16 %v3200, %v3199
        %v3229 = vpack.c.b16 %v3202, %v3201
        %v3230 = vpack.c.b16 %v3204, %v3203
        %v3231 = vpack.c.b16 %v3206, %v3205
        %v3232 = vpack.c.b16 %v3208, %v3207
        %v3233 = vpack.c.b16 %v3210, %v3209
        %v3234 = vpack.c.b16 %v3212, %v3211
        %v3235 = vpack.c.b16 %v3214, %v3213
        %v3236 = vpack.c.b16 %v3216, %v3215
        %v3238 = vsel %vm1110, %v3217, 0
        %v3241 = vsel %vm1110, %v3218, 0
        %v3244 = vsel %vm1110, %v3219, 0
        %v3247 = vsel %vm1110, %v3220, 0
        %v3250 = vsel %vm1110, %v3221, 0
        %v3253 = vsel %vm1110, %v3222, 0
        %v3256 = vsel %vm1110, %v3223, 0
        %v3259 = vsel %vm1110, %v3224, 0
        %v3262 = vsel %vm1110, %v3225, 0
        %v3265 = vsel %vm1110, %v3226, 0
        %v3268 = vsel %vm1110, %v3227, 0
        %v3271 = vsel %vm1110, %v3228, 0
        %v3274 = vsel %vm1110, %v3229, 0
        %v3277 = vsel %vm1110, %v3230, 0
        %v3280 = vsel %vm1110, %v3231, 0
        %v3283 = vsel %vm1110, %v3232, 0
        %v3286 = vsel %vm1110, %v3233, 0
        %v3289 = vsel %vm1110, %v3234, 0
        %v3292 = vsel %vm1110, %v3235, 0
        %v3295 = vsel %vm1110, %v3236, 0
        %v3298 = vsel %vm1171, %v3176, 0
        %3300 = vmatprep.subr.bf16.mxu0 0
        %3301 = vmatpush1.bf16.msra.mxu0 %v3298
        %3302 = vmatprep.subr.bf16.mxu0 0
        %3303 = vmatpush1.bf16.msra.mxu0 0
        %3304 = vmatprep.subr.bf16.mxu0 0
        %3305 = vmatpush1.bf16.msra.mxu0 0
        %3306 = vmatprep.subr.bf16.mxu0 0
        %3307 = vmatpush1.bf16.msra.mxu0 0
        %3308 = vmatprep.subr.bf16.mxu0 0
        %3309 = vmatpush1.bf16.msra.mxu0 0
        %3310 = vmatprep.subr.bf16.mxu0 0
        %3311 = vmatpush1.bf16.msra.mxu0 0
        %3312 = vmatprep.subr.bf16.mxu0 0
        %3313 = vmatpush1.bf16.msra.mxu0 0
        %3314 = vmatprep.subr.bf16.mxu0 0
        %3315 = vmatpush1.bf16.msra.mxu0 0
        %3316 = vmatprep.subr.bf16.mxu0 0
        %3317 = vmatpush1.bf16.msra.mxu0 0
        %3318 = vmatprep.subr.bf16.mxu0 0
        %3319 = vmatpush1.bf16.msra.mxu0 0
        %3320 = vmatprep.subr.bf16.mxu0 0
        %3321 = vmatpush1.bf16.msra.mxu0 0
        %3322 = vmatprep.subr.bf16.mxu0 0
        %3323 = vmatpush1.bf16.msra.mxu0 0
        %3324 = vmatprep.subr.bf16.mxu0 0
        %3325 = vmatpush1.bf16.msra.mxu0 0
        %3326 = vmatprep.subr.bf16.mxu0 0
        %3327 = vmatpush1.bf16.msra.mxu0 0
        %3328 = vmatprep.subr.bf16.mxu0 0
        %3329 = vmatpush1.bf16.msra.mxu0 0
        %3330 = vmatprep.subr.bf16.mxu0 0
        %3331 = vmatpush1.bf16.msra.mxu0 0
        %3332 = vmatprep.mubr.bf16.mxu0 0
        %3333 = vmatmul.mubr.bf16.gmra.mrb[0].mxu0 %v3238
        %v3334 = vpop.f32.mrb[0].mxu0
        %v3335 = vadd.f32 0.0, %v3334
        %v3336 = vpop.f32.mrb[0].mxu0
        %v3337 = vpop.f32.mrb[0].mxu0
        %v3338 = vadd.f32 0.0, %v3337
        %v3339 = vpop.f32.mrb[0].mxu0
        %3340 = vmatprep.mubr.bf16.mxu0 0
        %3341 = vmatmul.mubr.bf16.gmra.mrb[0].mxu0 %v3241
        %v3342 = vpop.f32.mrb[0].mxu0
        %v3343 = vadd.f32 0.0, %v3342
        %v3344 = vpop.f32.mrb[0].mxu0
        %v3345 = vpop.f32.mrb[0].mxu0
        %v3346 = vadd.f32 0.0, %v3345
        %v3347 = vpop.f32.mrb[0].mxu0
        %3348 = vmatprep.mubr.bf16.mxu0 0
        %3349 = vmatmul.mubr.bf16.gmra.mrb[0].mxu0 %v3244
        %v3350 = vpop.f32.mrb[0].mxu0
        %v3351 = vadd.f32 0.0, %v3350
        %v3352 = vpop.f32.mrb[0].mxu0
        %v3353 = vpop.f32.mrb[0].mxu0
        %v3354 = vadd.f32 0.0, %v3353
        %v3355 = vpop.f32.mrb[0].mxu0
        %3356 = vmatprep.mubr.bf16.mxu0 0
        %3357 = vmatmul.mubr.bf16.gmra.mrb[0].mxu0 %v3247
        %v3358 = vpop.f32.mrb[0].mxu0
        %v3359 = vadd.f32 0.0, %v3358
        %v3360 = vpop.f32.mrb[0].mxu0
        %v3361 = vpop.f32.mrb[0].mxu0
        %v3362 = vadd.f32 0.0, %v3361
        %v3363 = vpop.f32.mrb[0].mxu0
        %3364 = vmatprep.mubr.bf16.mxu0 0
        %3365 = vmatmul.mubr.bf16.gmra.mrb[0].mxu0 %v3250
        %v3366 = vpop.f32.mrb[0].mxu0
        %v3367 = vadd.f32 0.0, %v3366
        %v3368 = vpop.f32.mrb[0].mxu0
        %v3369 = vpop.f32.mrb[0].mxu0
        %v3370 = vadd.f32 0.0, %v3369
        %v3371 = vpop.f32.mrb[0].mxu0
        %3372 = vmatprep.mubr.bf16.mxu0 0
        %3373 = vmatmul.mubr.bf16.gmra.mrb[0].mxu0 %v3253
        %v3374 = vpop.f32.mrb[0].mxu0
        %v3375 = vadd.f32 0.0, %v3374
        %v3376 = vpop.f32.mrb[0].mxu0
        %v3377 = vpop.f32.mrb[0].mxu0
        %v3378 = vadd.f32 0.0, %v3377
        %v3379 = vpop.f32.mrb[0].mxu0
        %3380 = vmatprep.mubr.bf16.mxu0 0
        %3381 = vmatmul.mubr.bf16.gmra.mrb[0].mxu0 %v3256
        %v3382 = vpop.f32.mrb[0].mxu0
        %v3383 = vadd.f32 0.0, %v3382
        %v3384 = vpop.f32.mrb[0].mxu0
        %v3385 = vpop.f32.mrb[0].mxu0
        %v3386 = vadd.f32 0.0, %v3385
        %v3387 = vpop.f32.mrb[0].mxu0
        %3388 = vmatprep.mubr.bf16.mxu0 0
        %3389 = vmatmul.mubr.bf16.gmra.mrb[0].mxu0 %v3259
        %v3390 = vpop.f32.mrb[0].mxu0
        %v3391 = vadd.f32 0.0, %v3390
        %v3392 = vpop.f32.mrb[0].mxu0
        %v3393 = vpop.f32.mrb[0].mxu0
        %v3394 = vadd.f32 0.0, %v3393
        %v3395 = vpop.f32.mrb[0].mxu0
        %3396 = vmatprep.mubr.bf16.mxu0 0
        %3397 = vmatmul.mubr.bf16.gmra.mrb[0].mxu0 %v3262
        %v3398 = vpop.f32.mrb[0].mxu0
        %v3399 = vadd.f32 0.0, %v3398
        %v3400 = vpop.f32.mrb[0].mxu0
        %v3401 = vpop.f32.mrb[0].mxu0
        %v3402 = vadd.f32 0.0, %v3401
        %v3403 = vpop.f32.mrb[0].mxu0
        %3404 = vmatprep.mubr.bf16.mxu0 0
        %3405 = vmatmul.mubr.bf16.gmra.mrb[0].mxu0 %v3265
        %v3406 = vpop.f32.mrb[0].mxu0
        %v3407 = vadd.f32 0.0, %v3406
        %v3408 = vpop.f32.mrb[0].mxu0
        %v3409 = vpop.f32.mrb[0].mxu0
        %v3410 = vadd.f32 0.0, %v3409
        %v3411 = vpop.f32.mrb[0].mxu0
        %3412 = vmatprep.mubr.bf16.mxu0 0
        %3413 = vmatmul.mubr.bf16.gmra.mrb[0].mxu0 %v3268
        %v3414 = vpop.f32.mrb[0].mxu0
        %v3415 = vadd.f32 0.0, %v3414
        %v3416 = vpop.f32.mrb[0].mxu0
        %v3417 = vpop.f32.mrb[0].mxu0
        %v3418 = vadd.f32 0.0, %v3417
        %v3419 = vpop.f32.mrb[0].mxu0
        %3420 = vmatprep.mubr.bf16.mxu0 0
        %3421 = vmatmul.mubr.bf16.gmra.mrb[0].mxu0 %v3271
        %v3422 = vpop.f32.mrb[0].mxu0
        %v3423 = vadd.f32 0.0, %v3422
        %v3424 = vpop.f32.mrb[0].mxu0
        %v3425 = vpop.f32.mrb[0].mxu0
        %v3426 = vadd.f32 0.0, %v3425
        %v3427 = vpop.f32.mrb[0].mxu0
        %3428 = vmatprep.mubr.bf16.mxu0 0
        %3429 = vmatmul.mubr.bf16.gmra.mrb[0].mxu0 %v3274
        %v3430 = vpop.f32.mrb[0].mxu0
        %v3431 = vadd.f32 0.0, %v3430
        %v3432 = vpop.f32.mrb[0].mxu0
        %v3433 = vpop.f32.mrb[0].mxu0
        %v3434 = vadd.f32 0.0, %v3433
        %v3435 = vpop.f32.mrb[0].mxu0
        %3436 = vmatprep.mubr.bf16.mxu0 0
        %3437 = vmatmul.mubr.bf16.gmra.mrb[0].mxu0 %v3277
        %v3438 = vpop.f32.mrb[0].mxu0
        %v3439 = vadd.f32 0.0, %v3438
        %v3440 = vpop.f32.mrb[0].mxu0
        %v3441 = vpop.f32.mrb[0].mxu0
        %v3442 = vadd.f32 0.0, %v3441
        %v3443 = vpop.f32.mrb[0].mxu0
        %3444 = vmatprep.mubr.bf16.mxu0 0
        %3445 = vmatmul.mubr.bf16.gmra.mrb[0].mxu0 %v3280
        %v3446 = vpop.f32.mrb[0].mxu0
        %v3447 = vadd.f32 0.0, %v3446
        %v3448 = vpop.f32.mrb[0].mxu0
        %v3449 = vpop.f32.mrb[0].mxu0
        %v3450 = vadd.f32 0.0, %v3449
        %v3451 = vpop.f32.mrb[0].mxu0
        %3452 = vmatprep.mubr.bf16.mxu0 0
        %3453 = vmatmul.mubr.bf16.gmra.mrb[0].mxu0 %v3283
        %v3454 = vpop.f32.mrb[0].mxu0
        %v3455 = vadd.f32 0.0, %v3454
        %v3456 = vpop.f32.mrb[0].mxu0
        %v3457 = vpop.f32.mrb[0].mxu0
        %v3458 = vadd.f32 0.0, %v3457
        %v3459 = vpop.f32.mrb[0].mxu0
        %3460 = vmatprep.mubr.bf16.mxu0 0
        %3461 = vmatmul.mubr.bf16.gmra.mrb[0].mxu0 %v3286
        %v3462 = vpop.f32.mrb[0].mxu0
        %v3463 = vadd.f32 0.0, %v3462
        %v3464 = vpop.f32.mrb[0].mxu0
        %v3465 = vpop.f32.mrb[0].mxu0
        %v3466 = vadd.f32 0.0, %v3465
        %v3467 = vpop.f32.mrb[0].mxu0
        %3468 = vmatprep.mubr.bf16.mxu0 0
        %3469 = vmatmul.mubr.bf16.gmra.mrb[0].mxu0 %v3289
        %v3470 = vpop.f32.mrb[0].mxu0
        %v3471 = vadd.f32 0.0, %v3470
        %v3472 = vpop.f32.mrb[0].mxu0
        %v3473 = vpop.f32.mrb[0].mxu0
        %v3474 = vadd.f32 0.0, %v3473
        %v3475 = vpop.f32.mrb[0].mxu0
        %3476 = vmatprep.mubr.bf16.mxu0 0
        %3477 = vmatmul.mubr.bf16.gmra.mrb[0].mxu0 %v3292
        %v3478 = vpop.f32.mrb[0].mxu0
        %v3479 = vadd.f32 0.0, %v3478
        %v3480 = vpop.f32.mrb[0].mxu0
        %v3481 = vpop.f32.mrb[0].mxu0
        %v3482 = vadd.f32 0.0, %v3481
        %v3483 = vpop.f32.mrb[0].mxu0
        %3484 = vmatprep.mubr.bf16.mxu0 0
        %3485 = vmatmul.mubr.bf16.gmra.mrb[0].mxu0 %v3295
        %v3486 = vpop.f32.mrb[0].mxu0
        %v3487 = vadd.f32 0.0, %v3486
        %v3488 = vpop.f32.mrb[0].mxu0
        %v3489 = vpop.f32.mrb[0].mxu0
        %v3490 = vadd.f32 0.0, %v3489
        %v3491 = vpop.f32.mrb[0].mxu0
        %3492 = vdwg.mxu0
        %v3493 = vadd.f32 %v2646, %v3335
        %v3494 = vadd.f32 %v2647, %v3338
        %v3495 = vadd.f32 %v2648, %v3343
        %v3496 = vadd.f32 %v2649, %v3346
        %v3497 = vadd.f32 %v2650, %v3351
        %v3498 = vadd.f32 %v2651, %v3354
        %v3499 = vadd.f32 %v2652, %v3359
        %v3500 = vadd.f32 %v2653, %v3362
        %v3501 = vadd.f32 %v2654, %v3367
        %v3502 = vadd.f32 %v2655, %v3370
        %v3503 = vadd.f32 %v2656, %v3375
        %v3504 = vadd.f32 %v2657, %v3378
        %v3505 = vadd.f32 %v2658, %v3383
        %v3506 = vadd.f32 %v2659, %v3386
        %v3507 = vadd.f32 %v2660, %v3391
        %v3508 = vadd.f32 %v2661, %v3394
        %v3509 = vadd.f32 %v2662, %v3399
        %v3510 = vadd.f32 %v2663, %v3402
        %v3511 = vadd.f32 %v2664, %v3407
        %v3512 = vadd.f32 %v2665, %v3410
        %v3513 = vadd.f32 %v2666, %v3415
        %v3514 = vadd.f32 %v2667, %v3418
        %v3515 = vadd.f32 %v2668, %v3423
        %v3516 = vadd.f32 %v2669, %v3426
        %v3517 = vadd.f32 %v2670, %v3431
        %v3518 = vadd.f32 %v2671, %v3434
        %v3519 = vadd.f32 %v2672, %v3439
        %v3520 = vadd.f32 %v2673, %v3442
        %v3521 = vadd.f32 %v2674, %v3447
        %v3522 = vadd.f32 %v2675, %v3450
        %v3523 = vadd.f32 %v2676, %v3455
        %v3524 = vadd.f32 %v2677, %v3458
        %v3525 = vadd.f32 %v2678, %v3463
        %v3526 = vadd.f32 %v2679, %v3466
        %v3527 = vadd.f32 %v2680, %v3471
        %v3528 = vadd.f32 %v2681, %v3474
        %v3529 = vadd.f32 %v2682, %v3479
        %v3530 = vadd.f32 %v2683, %v3482
        %v3531 = vadd.f32 %v2684, %v3487
        %v3532 = vadd.f32 %v2685, %v3490
        %v3533 = vld [vmem:[%s2244] sm:$0xe]
        %v3534 = vld [vmem:[%s2244 + $0x14] sm:$0xe]
        %v3535 = vld [vmem:[%s2244 + $0x28] sm:$0xe]
        %v3536 = vld [vmem:[%s2244 + $0x3c] sm:$0xe]
        %v3537 = vld [vmem:[%s2244 + $0x50] sm:$0xe]
        %v3538 = vld [vmem:[%s2244 + $0x64] sm:$0xe]
        %v3539 = vld [vmem:[%s2244 + $0x78] sm:$0xe]
        %v3540 = vld [vmem:[%s2244 + $0x8c] sm:$0xe]
        %v3541 = vld [vmem:[%s2244 + $0xa0] sm:$0xe]
        %v3542 = vld [vmem:[%s2244 + $0xb4] sm:$0xe]
        %v3593 = vrot.slane %v3533, 5
        %v3594 = vrot.slane %v3593, 4
        %v3595 = vrot.slane %v2687, 5
        %v3596 = vsel %vm1756, %v3594, %v3595
        %v3597 = vrot.slane %v3595, 4
        %v3598 = vrot.slane %v2688, 5
        %v3599 = vsel %vm1756, %v3597, %v3598
        %v3600 = vrot.slane %v3598, 4
        %v3601 = vrot.slane %v2689, 5
        %v3602 = vsel %vm1756, %v3600, %v3601
        %v3603 = vrot.slane %v3601, 4
        %v3604 = vrot.slane %v2690, 5
        %v3605 = vsel %vm1756, %v3603, %v3604
        %v3606 = vrot.slane %v3534, 5
        %v3607 = vrot.slane %v3606, 4
        %v3608 = vrot.slane %v2692, 5
        %v3609 = vsel %vm1756, %v3607, %v3608
        %v3610 = vrot.slane %v3608, 4
        %v3611 = vrot.slane %v2693, 5
        %v3612 = vsel %vm1756, %v3610, %v3611
        %v3613 = vrot.slane %v3611, 4
        %v3614 = vrot.slane %v2694, 5
        %v3615 = vsel %vm1756, %v3613, %v3614
        %v3616 = vrot.slane %v3614, 4
        %v3617 = vrot.slane %v2695, 5
        %v3618 = vsel %vm1756, %v3616, %v3617
        %v3619 = vrot.slane %v3535, 5
        %v3620 = vrot.slane %v3619, 4
        %v3621 = vrot.slane %v2697, 5
        %v3622 = vsel %vm1756, %v3620, %v3621
        %v3623 = vrot.slane %v3621, 4
        %v3624 = vrot.slane %v2698, 5
        %v3625 = vsel %vm1756, %v3623, %v3624
        %v3626 = vrot.slane %v3624, 4
        %v3627 = vrot.slane %v2699, 5
        %v3628 = vsel %vm1756, %v3626, %v3627
        %v3629 = vrot.slane %v3627, 4
        %v3630 = vrot.slane %v2700, 5
        %v3631 = vsel %vm1756, %v3629, %v3630
        %v3632 = vrot.slane %v3536, 5
        %v3633 = vrot.slane %v3632, 4
        %v3634 = vrot.slane %v2702, 5
        %v3635 = vsel %vm1756, %v3633, %v3634
        %v3636 = vrot.slane %v3634, 4
        %v3637 = vrot.slane %v2703, 5
        %v3638 = vsel %vm1756, %v3636, %v3637
        %v3639 = vrot.slane %v3637, 4
        %v3640 = vrot.slane %v2704, 5
        %v3641 = vsel %vm1756, %v3639, %v3640
        %v3642 = vrot.slane %v3640, 4
        %v3643 = vrot.slane %v2705, 5
        %v3644 = vsel %vm1756, %v3642, %v3643
        %v3645 = vrot.slane %v3537, 5
        %v3646 = vrot.slane %v3645, 4
        %v3647 = vrot.slane %v2707, 5
        %v3648 = vsel %vm1756, %v3646, %v3647
        %v3649 = vrot.slane %v3647, 4
        %v3650 = vrot.slane %v2708, 5
        %v3651 = vsel %vm1756, %v3649, %v3650
        %v3652 = vrot.slane %v3650, 4
        %v3653 = vrot.slane %v2709, 5
        %v3654 = vsel %vm1756, %v3652, %v3653
        %v3655 = vrot.slane %v3653, 4
        %v3656 = vrot.slane %v2710, 5
        %v3657 = vsel %vm1756, %v3655, %v3656
        %v3658 = vrot.slane %v3538, 5
        %v3659 = vrot.slane %v3658, 4
        %v3660 = vrot.slane %v2712, 5
        %v3661 = vsel %vm1756, %v3659, %v3660
        %v3662 = vrot.slane %v3660, 4
        %v3663 = vrot.slane %v2713, 5
        %v3664 = vsel %vm1756, %v3662, %v3663
        %v3665 = vrot.slane %v3663, 4
        %v3666 = vrot.slane %v2714, 5
        %v3667 = vsel %vm1756, %v3665, %v3666
        %v3668 = vrot.slane %v3666, 4
        %v3669 = vrot.slane %v2715, 5
        %v3670 = vsel %vm1756, %v3668, %v3669
        %v3671 = vrot.slane %v3539, 5
        %v3672 = vrot.slane %v3671, 4
        %v3673 = vrot.slane %v2717, 5
        %v3674 = vsel %vm1756, %v3672, %v3673
        %v3675 = vrot.slane %v3673, 4
        %v3676 = vrot.slane %v2718, 5
        %v3677 = vsel %vm1756, %v3675, %v3676
        %v3678 = vrot.slane %v3676, 4
        %v3679 = vrot.slane %v2719, 5
        %v3680 = vsel %vm1756, %v3678, %v3679
        %v3681 = vrot.slane %v3679, 4
        %v3682 = vrot.slane %v2720, 5
        %v3683 = vsel %vm1756, %v3681, %v3682
        %v3684 = vrot.slane %v3540, 5
        %v3685 = vrot.slane %v3684, 4
        %v3686 = vrot.slane %v2722, 5
        %v3687 = vsel %vm1756, %v3685, %v3686
        %v3688 = vrot.slane %v3686, 4
        %v3689 = vrot.slane %v2723, 5
        %v3690 = vsel %vm1756, %v3688, %v3689
        %v3691 = vrot.slane %v3689, 4
        %v3692 = vrot.slane %v2724, 5
        %v3693 = vsel %vm1756, %v3691, %v3692
        %v3694 = vrot.slane %v3692, 4
        %v3695 = vrot.slane %v2725, 5
        %v3696 = vsel %vm1756, %v3694, %v3695
        %v3697 = vrot.slane %v3541, 5
        %v3698 = vrot.slane %v3697, 4
        %v3699 = vrot.slane %v2727, 5
        %v3700 = vsel %vm1756, %v3698, %v3699
        %v3701 = vrot.slane %v3699, 4
        %v3702 = vrot.slane %v2728, 5
        %v3703 = vsel %vm1756, %v3701, %v3702
        %v3704 = vrot.slane %v3702, 4
        %v3705 = vrot.slane %v2729, 5
        %v3706 = vsel %vm1756, %v3704, %v3705
        %v3707 = vrot.slane %v3705, 4
        %v3708 = vrot.slane %v2730, 5
        %v3709 = vsel %vm1756, %v3707, %v3708
        %v3710 = vrot.slane %v3542, 5
        %v3711 = vrot.slane %v3710, 4
        %v3712 = vrot.slane %v2732, 5
        %v3713 = vsel %vm1756, %v3711, %v3712
        %v3714 = vrot.slane %v3712, 4
        %v3715 = vrot.slane %v2733, 5
        %v3716 = vsel %vm1756, %v3714, %v3715
        %v3717 = vrot.slane %v3715, 4
        %v3718 = vrot.slane %v2734, 5
        %v3719 = vsel %vm1756, %v3717, %v3718
        %v3720 = vrot.slane %v3718, 4
        %v3721 = vrot.slane %v2735, 5
        %v3722 = vsel %vm1756, %v3720, %v3721
        %v3723 = vld [vmem:[#allocation8 + $0x8] sm:$0xc]
        %v3724 = vunpack.c.l.b16 %v3596
        %v3725 = vunpack.c.l.b16 %v3599
        %v3726 = vunpack.c.l.b16 %v3602
        %v3727 = vunpack.c.l.b16 %v3605
        %v3728 = vunpack.c.l.b16 %v3609
        %v3729 = vunpack.c.l.b16 %v3612
        %v3730 = vunpack.c.l.b16 %v3615
        %v3731 = vunpack.c.l.b16 %v3618
        %v3732 = vunpack.c.l.b16 %v3622
        %v3733 = vunpack.c.l.b16 %v3625
        %v3734 = vunpack.c.l.b16 %v3628
        %v3735 = vunpack.c.l.b16 %v3631
        %v3736 = vunpack.c.l.b16 %v3635
        %v3737 = vunpack.c.l.b16 %v3638
        %v3738 = vunpack.c.l.b16 %v3641
        %v3739 = vunpack.c.l.b16 %v3644
        %v3740 = vunpack.c.l.b16 %v3648
        %v3741 = vunpack.c.l.b16 %v3651
        %v3742 = vunpack.c.l.b16 %v3654
        %v3743 = vunpack.c.l.b16 %v3657
        %v3744 = vunpack.c.l.b16 %v3661
        %v3745 = vunpack.c.l.b16 %v3664
        %v3746 = vunpack.c.l.b16 %v3667
        %v3747 = vunpack.c.l.b16 %v3670
        %v3748 = vunpack.c.l.b16 %v3674
        %v3749 = vunpack.c.l.b16 %v3677
        %v3750 = vunpack.c.l.b16 %v3680
        %v3751 = vunpack.c.l.b16 %v3683
        %v3752 = vunpack.c.l.b16 %v3687
        %v3753 = vunpack.c.l.b16 %v3690
        %v3754 = vunpack.c.l.b16 %v3693
        %v3755 = vunpack.c.l.b16 %v3696
        %v3756 = vunpack.c.l.b16 %v3700
        %v3757 = vunpack.c.l.b16 %v3703
        %v3758 = vunpack.c.l.b16 %v3706
        %v3759 = vunpack.c.l.b16 %v3709
        %v3760 = vunpack.c.l.b16 %v3713
        %v3761 = vunpack.c.l.b16 %v3716
        %v3762 = vunpack.c.l.b16 %v3719
        %v3763 = vunpack.c.l.b16 %v3722
        %v3764 = vpack.c.b16 %v3725, %v3724
        %v3765 = vpack.c.b16 %v3727, %v3726
        %v3766 = vpack.c.b16 %v3729, %v3728
        %v3767 = vpack.c.b16 %v3731, %v3730
        %v3768 = vpack.c.b16 %v3733, %v3732
        %v3769 = vpack.c.b16 %v3735, %v3734
        %v3770 = vpack.c.b16 %v3737, %v3736
        %v3771 = vpack.c.b16 %v3739, %v3738
        %v3772 = vpack.c.b16 %v3741, %v3740
        %v3773 = vpack.c.b16 %v3743, %v3742
        %v3774 = vpack.c.b16 %v3745, %v3744
        %v3775 = vpack.c.b16 %v3747, %v3746
        %v3776 = vpack.c.b16 %v3749, %v3748
        %v3777 = vpack.c.b16 %v3751, %v3750
        %v3778 = vpack.c.b16 %v3753, %v3752
        %v3779 = vpack.c.b16 %v3755, %v3754
        %v3780 = vpack.c.b16 %v3757, %v3756
        %v3781 = vpack.c.b16 %v3759, %v3758
        %v3782 = vpack.c.b16 %v3761, %v3760
        %v3783 = vpack.c.b16 %v3763, %v3762
        %v3785 = vunpack.c.l.b16 %v3723
        %v3786 = vpack.c.b16 %v3785, %v3785
        %v3787 = vrot.slane %v3786, 2
        %v3789 = vsel %vm1110, %v3764, 0
        %v3792 = vsel %vm1110, %v3765, 0
        %v3795 = vsel %vm1110, %v3766, 0
        %v3798 = vsel %vm1110, %v3767, 0
        %v3801 = vsel %vm1110, %v3768, 0
        %v3804 = vsel %vm1110, %v3769, 0
        %v3807 = vsel %vm1110, %v3770, 0
        %v3810 = vsel %vm1110, %v3771, 0
        %v3813 = vsel %vm1110, %v3772, 0
        %v3816 = vsel %vm1110, %v3773, 0
        %v3819 = vsel %vm1110, %v3774, 0
        %v3822 = vsel %vm1110, %v3775, 0
        %v3825 = vsel %vm1110, %v3776, 0
        %v3828 = vsel %vm1110, %v3777, 0
        %v3831 = vsel %vm1110, %v3778, 0
        %v3834 = vsel %vm1110, %v3779, 0
        %v3837 = vsel %vm1110, %v3780, 0
        %v3840 = vsel %vm1110, %v3781, 0
        %v3843 = vsel %vm1110, %v3782, 0
        %v3846 = vsel %vm1110, %v3783, 0
        %v3849 = vsel %vm1171, %v3787, 0
        %3851 = vmatprep.subr.bf16.mxu0 0
        %3852 = vmatpush1.bf16.msra.mxu0 %v3849
        %3853 = vmatprep.subr.bf16.mxu0 0
        %3854 = vmatpush1.bf16.msra.mxu0 0
        %3855 = vmatprep.subr.bf16.mxu0 0
        %3856 = vmatpush1.bf16.msra.mxu0 0
        %3857 = vmatprep.subr.bf16.mxu0 0
        %3858 = vmatpush1.bf16.msra.mxu0 0
        %3859 = vmatprep.subr.bf16.mxu0 0
        %3860 = vmatpush1.bf16.msra.mxu0 0
        %3861 = vmatprep.subr.bf16.mxu0 0
        %3862 = vmatpush1.bf16.msra.mxu0 0
        %3863 = vmatprep.subr.bf16.mxu0 0
        %3864 = vmatpush1.bf16.msra.mxu0 0
        %3865 = vmatprep.subr.bf16.mxu0 0
        %3866 = vmatpush1.bf16.msra.mxu0 0
        %3867 = vmatprep.subr.bf16.mxu0 0
        %3868 = vmatpush1.bf16.msra.mxu0 0
        %3869 = vmatprep.subr.bf16.mxu0 0
        %3870 = vmatpush1.bf16.msra.mxu0 0
        %3871 = vmatprep.subr.bf16.mxu0 0
        %3872 = vmatpush1.bf16.msra.mxu0 0
        %3873 = vmatprep.subr.bf16.mxu0 0
        %3874 = vmatpush1.bf16.msra.mxu0 0
        %3875 = vmatprep.subr.bf16.mxu0 0
        %3876 = vmatpush1.bf16.msra.mxu0 0
        %3877 = vmatprep.subr.bf16.mxu0 0
        %3878 = vmatpush1.bf16.msra.mxu0 0
        %3879 = vmatprep.subr.bf16.mxu0 0
        %3880 = vmatpush1.bf16.msra.mxu0 0
        %3881 = vmatprep.subr.bf16.mxu0 0
        %3882 = vmatpush1.bf16.msra.mxu0 0
        %3883 = vmatprep.mubr.bf16.mxu0 0
        %3884 = vmatmul.mubr.bf16.gmra.mrb[0].mxu0 %v3789
        %v3885 = vpop.f32.mrb[0].mxu0
        %v3886 = vadd.f32 0.0, %v3885
        %v3887 = vpop.f32.mrb[0].mxu0
        %v3888 = vpop.f32.mrb[0].mxu0
        %v3889 = vadd.f32 0.0, %v3888
        %v3890 = vpop.f32.mrb[0].mxu0
        %3891 = vmatprep.mubr.bf16.mxu0 0
        %3892 = vmatmul.mubr.bf16.gmra.mrb[0].mxu0 %v3792
        %v3893 = vpop.f32.mrb[0].mxu0
        %v3894 = vadd.f32 0.0, %v3893
        %v3895 = vpop.f32.mrb[0].mxu0
        %v3896 = vpop.f32.mrb[0].mxu0
        %v3897 = vadd.f32 0.0, %v3896
        %v3898 = vpop.f32.mrb[0].mxu0
        %3899 = vmatprep.mubr.bf16.mxu0 0
        %3900 = vmatmul.mubr.bf16.gmra.mrb[0].mxu0 %v3795
        %v3901 = vpop.f32.mrb[0].mxu0
        %v3902 = vadd.f32 0.0, %v3901
        %v3903 = vpop.f32.mrb[0].mxu0
        %v3904 = vpop.f32.mrb[0].mxu0
        %v3905 = vadd.f32 0.0, %v3904
        %v3906 = vpop.f32.mrb[0].mxu0
        %3907 = vmatprep.mubr.bf16.mxu0 0
        %3908 = vmatmul.mubr.bf16.gmra.mrb[0].mxu0 %v3798
        %v3909 = vpop.f32.mrb[0].mxu0
        %v3910 = vadd.f32 0.0, %v3909
        %v3911 = vpop.f32.mrb[0].mxu0
        %v3912 = vpop.f32.mrb[0].mxu0
        %v3913 = vadd.f32 0.0, %v3912
        %v3914 = vpop.f32.mrb[0].mxu0
        %3915 = vmatprep.mubr.bf16.mxu0 0
        %3916 = vmatmul.mubr.bf16.gmra.mrb[0].mxu0 %v3801
        %v3917 = vpop.f32.mrb[0].mxu0
        %v3918 = vadd.f32 0.0, %v3917
        %v3919 = vpop.f32.mrb[0].mxu0
        %v3920 = vpop.f32.mrb[0].mxu0
        %v3921 = vadd.f32 0.0, %v3920
        %v3922 = vpop.f32.mrb[0].mxu0
        %3923 = vmatprep.mubr.bf16.mxu0 0
        %3924 = vmatmul.mubr.bf16.gmra.mrb[0].mxu0 %v3804
        %v3925 = vpop.f32.mrb[0].mxu0
        %v3926 = vadd.f32 0.0, %v3925
        %v3927 = vpop.f32.mrb[0].mxu0
        %v3928 = vpop.f32.mrb[0].mxu0
        %v3929 = vadd.f32 0.0, %v3928
        %v3930 = vpop.f32.mrb[0].mxu0
        %3931 = vmatprep.mubr.bf16.mxu0 0
        %3932 = vmatmul.mubr.bf16.gmra.mrb[0].mxu0 %v3807
        %v3933 = vpop.f32.mrb[0].mxu0
        %v3934 = vadd.f32 0.0, %v3933
        %v3935 = vpop.f32.mrb[0].mxu0
        %v3936 = vpop.f32.mrb[0].mxu0
        %v3937 = vadd.f32 0.0, %v3936
        %v3938 = vpop.f32.mrb[0].mxu0
        %3939 = vmatprep.mubr.bf16.mxu0 0
        %3940 = vmatmul.mubr.bf16.gmra.mrb[0].mxu0 %v3810
        %v3941 = vpop.f32.mrb[0].mxu0
        %v3942 = vadd.f32 0.0, %v3941
        %v3943 = vpop.f32.mrb[0].mxu0
        %v3944 = vpop.f32.mrb[0].mxu0
        %v3945 = vadd.f32 0.0, %v3944
        %v3946 = vpop.f32.mrb[0].mxu0
        %3947 = vmatprep.mubr.bf16.mxu0 0
        %3948 = vmatmul.mubr.bf16.gmra.mrb[0].mxu0 %v3813
        %v3949 = vpop.f32.mrb[0].mxu0
        %v3950 = vadd.f32 0.0, %v3949
        %v3951 = vpop.f32.mrb[0].mxu0
        %v3952 = vpop.f32.mrb[0].mxu0
        %v3953 = vadd.f32 0.0, %v3952
        %v3954 = vpop.f32.mrb[0].mxu0
        %3955 = vmatprep.mubr.bf16.mxu0 0
        %3956 = vmatmul.mubr.bf16.gmra.mrb[0].mxu0 %v3816
        %v3957 = vpop.f32.mrb[0].mxu0
        %v3958 = vadd.f32 0.0, %v3957
        %v3959 = vpop.f32.mrb[0].mxu0
        %v3960 = vpop.f32.mrb[0].mxu0
        %v3961 = vadd.f32 0.0, %v3960
        %v3962 = vpop.f32.mrb[0].mxu0
        %3963 = vmatprep.mubr.bf16.mxu0 0
        %3964 = vmatmul.mubr.bf16.gmra.mrb[0].mxu0 %v3819
        %v3965 = vpop.f32.mrb[0].mxu0
        %v3966 = vadd.f32 0.0, %v3965
        %v3967 = vpop.f32.mrb[0].mxu0
        %v3968 = vpop.f32.mrb[0].mxu0
        %v3969 = vadd.f32 0.0, %v3968
        %v3970 = vpop.f32.mrb[0].mxu0
        %3971 = vmatprep.mubr.bf16.mxu0 0
        %3972 = vmatmul.mubr.bf16.gmra.mrb[0].mxu0 %v3822
        %v3973 = vpop.f32.mrb[0].mxu0
        %v3974 = vadd.f32 0.0, %v3973
        %v3975 = vpop.f32.mrb[0].mxu0
        %v3976 = vpop.f32.mrb[0].mxu0
        %v3977 = vadd.f32 0.0, %v3976
        %v3978 = vpop.f32.mrb[0].mxu0
        %3979 = vmatprep.mubr.bf16.mxu0 0
        %3980 = vmatmul.mubr.bf16.gmra.mrb[0].mxu0 %v3825
        %v3981 = vpop.f32.mrb[0].mxu0
        %v3982 = vadd.f32 0.0, %v3981
        %v3983 = vpop.f32.mrb[0].mxu0
        %v3984 = vpop.f32.mrb[0].mxu0
        %v3985 = vadd.f32 0.0, %v3984
        %v3986 = vpop.f32.mrb[0].mxu0
        %3987 = vmatprep.mubr.bf16.mxu0 0
        %3988 = vmatmul.mubr.bf16.gmra.mrb[0].mxu0 %v3828
        %v3989 = vpop.f32.mrb[0].mxu0
        %v3990 = vadd.f32 0.0, %v3989
        %v3991 = vpop.f32.mrb[0].mxu0
        %v3992 = vpop.f32.mrb[0].mxu0
        %v3993 = vadd.f32 0.0, %v3992
        %v3994 = vpop.f32.mrb[0].mxu0
        %3995 = vmatprep.mubr.bf16.mxu0 0
        %3996 = vmatmul.mubr.bf16.gmra.mrb[0].mxu0 %v3831
        %v3997 = vpop.f32.mrb[0].mxu0
        %v3998 = vadd.f32 0.0, %v3997
        %v3999 = vpop.f32.mrb[0].mxu0
        %v4000 = vpop.f32.mrb[0].mxu0
        %v4001 = vadd.f32 0.0, %v4000
        %v4002 = vpop.f32.mrb[0].mxu0
        %4003 = vmatprep.mubr.bf16.mxu0 0
        %4004 = vmatmul.mubr.bf16.gmra.mrb[0].mxu0 %v3834
        %v4005 = vpop.f32.mrb[0].mxu0
        %v4006 = vadd.f32 0.0, %v4005
        %v4007 = vpop.f32.mrb[0].mxu0
        %v4008 = vpop.f32.mrb[0].mxu0
        %v4009 = vadd.f32 0.0, %v4008
        %v4010 = vpop.f32.mrb[0].mxu0
        %4011 = vmatprep.mubr.bf16.mxu0 0
        %4012 = vmatmul.mubr.bf16.gmra.mrb[0].mxu0 %v3837
        %v4013 = vpop.f32.mrb[0].mxu0
        %v4014 = vadd.f32 0.0, %v4013
        %v4015 = vpop.f32.mrb[0].mxu0
        %v4016 = vpop.f32.mrb[0].mxu0
        %v4017 = vadd.f32 0.0, %v4016
        %v4018 = vpop.f32.mrb[0].mxu0
        %4019 = vmatprep.mubr.bf16.mxu0 0
        %4020 = vmatmul.mubr.bf16.gmra.mrb[0].mxu0 %v3840
        %v4021 = vpop.f32.mrb[0].mxu0
        %v4022 = vadd.f32 0.0, %v4021
        %v4023 = vpop.f32.mrb[0].mxu0
        %v4024 = vpop.f32.mrb[0].mxu0
        %v4025 = vadd.f32 0.0, %v4024
        %v4026 = vpop.f32.mrb[0].mxu0
        %4027 = vmatprep.mubr.bf16.mxu0 0
        %4028 = vmatmul.mubr.bf16.gmra.mrb[0].mxu0 %v3843
        %v4029 = vpop.f32.mrb[0].mxu0
        %v4030 = vadd.f32 0.0, %v4029
        %v4031 = vpop.f32.mrb[0].mxu0
        %v4032 = vpop.f32.mrb[0].mxu0
        %v4033 = vadd.f32 0.0, %v4032
        %v4034 = vpop.f32.mrb[0].mxu0
        %4035 = vmatprep.mubr.bf16.mxu0 0
        %4036 = vmatmul.mubr.bf16.gmra.mrb[0].mxu0 %v3846
        %v4037 = vpop.f32.mrb[0].mxu0
        %v4038 = vadd.f32 0.0, %v4037
        %v4039 = vpop.f32.mrb[0].mxu0
        %v4040 = vpop.f32.mrb[0].mxu0
        %v4041 = vadd.f32 0.0, %v4040
        %v4042 = vpop.f32.mrb[0].mxu0
        %4043 = vdwg.mxu0
        %v4044 = vadd.f32 %v3493, %v3886
        %v4045 = vadd.f32 %v3494, %v3889
        %v4046 = vadd.f32 %v3495, %v3894
        %v4047 = vadd.f32 %v3496, %v3897
        %v4048 = vadd.f32 %v3497, %v3902
        %v4049 = vadd.f32 %v3498, %v3905
        %v4050 = vadd.f32 %v3499, %v3910
        %v4051 = vadd.f32 %v3500, %v3913
        %v4052 = vadd.f32 %v3501, %v3918
        %v4053 = vadd.f32 %v3502, %v3921
        %v4054 = vadd.f32 %v3503, %v3926
        %v4055 = vadd.f32 %v3504, %v3929
        %v4056 = vadd.f32 %v3505, %v3934
        %v4057 = vadd.f32 %v3506, %v3937
        %v4058 = vadd.f32 %v3507, %v3942
        %v4059 = vadd.f32 %v3508, %v3945
        %v4060 = vadd.f32 %v3509, %v3950
        %v4061 = vadd.f32 %v3510, %v3953
        %v4062 = vadd.f32 %v3511, %v3958
        %v4063 = vadd.f32 %v3512, %v3961
        %v4064 = vadd.f32 %v3513, %v3966
        %v4065 = vadd.f32 %v3514, %v3969
        %v4066 = vadd.f32 %v3515, %v3974
        %v4067 = vadd.f32 %v3516, %v3977
        %v4068 = vadd.f32 %v3517, %v3982
        %v4069 = vadd.f32 %v3518, %v3985
        %v4070 = vadd.f32 %v3519, %v3990
        %v4071 = vadd.f32 %v3520, %v3993
        %v4072 = vadd.f32 %v3521, %v3998
        %v4073 = vadd.f32 %v3522, %v4001
        %v4074 = vadd.f32 %v3523, %v4006
        %v4075 = vadd.f32 %v3524, %v4009
        %v4076 = vadd.f32 %v3525, %v4014
        %v4077 = vadd.f32 %v3526, %v4017
        %v4078 = vadd.f32 %v3527, %v4022
        %v4079 = vadd.f32 %v3528, %v4025
        %v4080 = vadd.f32 %v3529, %v4030
        %v4081 = vadd.f32 %v3530, %v4033
        %v4082 = vadd.f32 %v3531, %v4038
        %v4083 = vadd.f32 %v3532, %v4041
        %s4084 = scalar_lea.vmem %s461, 40 [#allocation3]
        %v4085 = vld [vmem:[%s4084] sm:$0xf]
        %v4086 = vld [vmem:[%s4084 + $0x4] sm:$0xf]
        %v4087 = vld [vmem:[%s4084 + $0x8] sm:$0xf]
        %v4088 = vld [vmem:[%s4084 + $0xc] sm:$0xf]
        %v4089 = vld [vmem:[%s4084 + $0x14] sm:$0xf]
        %v4090 = vld [vmem:[%s4084 + $0x18] sm:$0xf]
        %v4091 = vld [vmem:[%s4084 + $0x1c] sm:$0xf]
        %v4092 = vld [vmem:[%s4084 + $0x20] sm:$0xf]
        %v4093 = vld [vmem:[%s4084 + $0x28] sm:$0xf]
        %v4094 = vld [vmem:[%s4084 + $0x2c] sm:$0xf]
        %v4095 = vld [vmem:[%s4084 + $0x30] sm:$0xf]
        %v4096 = vld [vmem:[%s4084 + $0x34] sm:$0xf]
        %v4097 = vld [vmem:[%s4084 + $0x3c] sm:$0xf]
        %v4098 = vld [vmem:[%s4084 + $0x40] sm:$0xf]
        %v4099 = vld [vmem:[%s4084 + $0x44] sm:$0xf]
        %v4100 = vld [vmem:[%s4084 + $0x48] sm:$0xf]
        %v4101 = vld [vmem:[%s4084 + $0x50] sm:$0xf]
        %v4102 = vld [vmem:[%s4084 + $0x54] sm:$0xf]
        %v4103 = vld [vmem:[%s4084 + $0x58] sm:$0xf]
        %v4104 = vld [vmem:[%s4084 + $0x5c] sm:$0xf]
        %v4105 = vld [vmem:[%s4084 + $0x64] sm:$0xf]
        %v4106 = vld [vmem:[%s4084 + $0x68] sm:$0xf]
        %v4107 = vld [vmem:[%s4084 + $0x6c] sm:$0xf]
        %v4108 = vld [vmem:[%s4084 + $0x70] sm:$0xf]
        %v4109 = vld [vmem:[%s4084 + $0x78] sm:$0xf]
        %v4110 = vld [vmem:[%s4084 + $0x7c] sm:$0xf]
        %v4111 = vld [vmem:[%s4084 + $0x80] sm:$0xf]
        %v4112 = vld [vmem:[%s4084 + $0x84] sm:$0xf]
        %v4113 = vld [vmem:[%s4084 + $0x8c] sm:$0xf]
        %v4114 = vld [vmem:[%s4084 + $0x90] sm:$0xf]
        %v4115 = vld [vmem:[%s4084 + $0x94] sm:$0xf]
        %v4116 = vld [vmem:[%s4084 + $0x98] sm:$0xf]
        %v4117 = vld [vmem:[%s4084 + $0xa0] sm:$0xf]
        %v4118 = vld [vmem:[%s4084 + $0xa4] sm:$0xf]
        %v4119 = vld [vmem:[%s4084 + $0xa8] sm:$0xf]
        %v4120 = vld [vmem:[%s4084 + $0xac] sm:$0xf]
        %v4121 = vld [vmem:[%s4084 + $0xb4] sm:$0xf]
        %v4122 = vld [vmem:[%s4084 + $0xb8] sm:$0xf]
        %v4123 = vld [vmem:[%s4084 + $0xbc] sm:$0xf]
        %v4124 = vld [vmem:[%s4084 + $0xc0] sm:$0xf]
        %v4125 = vld [vmem:[#allocation8 + $0xc] sm:$0x3]
        %v4166 = vunpack.c.l.b16 %v4085
        %v4167 = vunpack.c.l.b16 %v4086
        %v4168 = vunpack.c.l.b16 %v4087
        %v4169 = vunpack.c.l.b16 %v4088
        %v4170 = vunpack.c.l.b16 %v4089
        %v4171 = vunpack.c.l.b16 %v4090
        %v4172 = vunpack.c.l.b16 %v4091
        %v4173 = vunpack.c.l.b16 %v4092
        %v4174 = vunpack.c.l.b16 %v4093
        %v4175 = vunpack.c.l.b16 %v4094
        %v4176 = vunpack.c.l.b16 %v4095
        %v4177 = vunpack.c.l.b16 %v4096
        %v4178 = vunpack.c.l.b16 %v4097
        %v4179 = vunpack.c.l.b16 %v4098
        %v4180 = vunpack.c.l.b16 %v4099
        %v4181 = vunpack.c.l.b16 %v4100
        %v4182 = vunpack.c.l.b16 %v4101
        %v4183 = vunpack.c.l.b16 %v4102
        %v4184 = vunpack.c.l.b16 %v4103
        %v4185 = vunpack.c.l.b16 %v4104
        %v4186 = vunpack.c.l.b16 %v4105
        %v4187 = vunpack.c.l.b16 %v4106
        %v4188 = vunpack.c.l.b16 %v4107
        %v4189 = vunpack.c.l.b16 %v4108
        %v4190 = vunpack.c.l.b16 %v4109
        %v4191 = vunpack.c.l.b16 %v4110
        %v4192 = vunpack.c.l.b16 %v4111
        %v4193 = vunpack.c.l.b16 %v4112
        %v4194 = vunpack.c.l.b16 %v4113
        %v4195 = vunpack.c.l.b16 %v4114
        %v4196 = vunpack.c.l.b16 %v4115
        %v4197 = vunpack.c.l.b16 %v4116
        %v4198 = vunpack.c.l.b16 %v4117
        %v4199 = vunpack.c.l.b16 %v4118
        %v4200 = vunpack.c.l.b16 %v4119
        %v4201 = vunpack.c.l.b16 %v4120
        %v4202 = vunpack.c.l.b16 %v4121
        %v4203 = vunpack.c.l.b16 %v4122
        %v4204 = vunpack.c.l.b16 %v4123
        %v4205 = vunpack.c.l.b16 %v4124
        %v4206 = vpack.c.b16 %v4167, %v4166
        %v4207 = vpack.c.b16 %v4169, %v4168
        %v4208 = vpack.c.b16 %v4171, %v4170
        %v4209 = vpack.c.b16 %v4173, %v4172
        %v4210 = vpack.c.b16 %v4175, %v4174
        %v4211 = vpack.c.b16 %v4177, %v4176
        %v4212 = vpack.c.b16 %v4179, %v4178
        %v4213 = vpack.c.b16 %v4181, %v4180
        %v4214 = vpack.c.b16 %v4183, %v4182
        %v4215 = vpack.c.b16 %v4185, %v4184
        %v4216 = vpack.c.b16 %v4187, %v4186
        %v4217 = vpack.c.b16 %v4189, %v4188
        %v4218 = vpack.c.b16 %v4191, %v4190
        %v4219 = vpack.c.b16 %v4193, %v4192
        %v4220 = vpack.c.b16 %v4195, %v4194
        %v4221 = vpack.c.b16 %v4197, %v4196
        %v4222 = vpack.c.b16 %v4199, %v4198
        %v4223 = vpack.c.b16 %v4201, %v4200
        %v4224 = vpack.c.b16 %v4203, %v4202
        %v4225 = vpack.c.b16 %v4205, %v4204
        %v4227 = vsel %vm1110, %v4206, 0
        %v4230 = vsel %vm1110, %v4207, 0
        %v4233 = vsel %vm1110, %v4208, 0
        %v4236 = vsel %vm1110, %v4209, 0
        %v4239 = vsel %vm1110, %v4210, 0
        %v4242 = vsel %vm1110, %v4211, 0
        %v4245 = vsel %vm1110, %v4212, 0
        %v4248 = vsel %vm1110, %v4213, 0
        %v4251 = vsel %vm1110, %v4214, 0
        %v4254 = vsel %vm1110, %v4215, 0
        %v4257 = vsel %vm1110, %v4216, 0
        %v4260 = vsel %vm1110, %v4217, 0
        %v4263 = vsel %vm1110, %v4218, 0
        %v4266 = vsel %vm1110, %v4219, 0
        %v4269 = vsel %vm1110, %v4220, 0
        %v4272 = vsel %vm1110, %v4221, 0
        %v4275 = vsel %vm1110, %v4222, 0
        %v4278 = vsel %vm1110, %v4223, 0
        %v4281 = vsel %vm1110, %v4224, 0
        %v4284 = vsel %vm1110, %v4225, 0
        %v4287 = vsel %vm1171, %v4125, 0
        %4289 = vmatprep.subr.bf16.mxu0 0
        %4290 = vmatpush1.bf16.msra.mxu0 %v4287
        %4291 = vmatprep.subr.bf16.mxu0 0
        %4292 = vmatpush1.bf16.msra.mxu0 0
        %4293 = vmatprep.subr.bf16.mxu0 0
        %4294 = vmatpush1.bf16.msra.mxu0 0
        %4295 = vmatprep.subr.bf16.mxu0 0
        %4296 = vmatpush1.bf16.msra.mxu0 0
        %4297 = vmatprep.subr.bf16.mxu0 0
        %4298 = vmatpush1.bf16.msra.mxu0 0
        %4299 = vmatprep.subr.bf16.mxu0 0
        %4300 = vmatpush1.bf16.msra.mxu0 0
        %4301 = vmatprep.subr.bf16.mxu0 0
        %4302 = vmatpush1.bf16.msra.mxu0 0
        %4303 = vmatprep.subr.bf16.mxu0 0
        %4304 = vmatpush1.bf16.msra.mxu0 0
        %4305 = vmatprep.subr.bf16.mxu0 0
        %4306 = vmatpush1.bf16.msra.mxu0 0
        %4307 = vmatprep.subr.bf16.mxu0 0
        %4308 = vmatpush1.bf16.msra.mxu0 0
        %4309 = vmatprep.subr.bf16.mxu0 0
        %4310 = vmatpush1.bf16.msra.mxu0 0
        %4311 = vmatprep.subr.bf16.mxu0 0
        %4312 = vmatpush1.bf16.msra.mxu0 0
        %4313 = vmatprep.subr.bf16.mxu0 0
        %4314 = vmatpush1.bf16.msra.mxu0 0
        %4315 = vmatprep.subr.bf16.mxu0 0
        %4316 = vmatpush1.bf16.msra.mxu0 0
        %4317 = vmatprep.subr.bf16.mxu0 0
        %4318 = vmatpush1.bf16.msra.mxu0 0
        %4319 = vmatprep.subr.bf16.mxu0 0
        %4320 = vmatpush1.bf16.msra.mxu0 0
        %4321 = vmatprep.mubr.bf16.mxu0 0
        %4322 = vmatmul.mubr.bf16.gmra.mrb[0].mxu0 %v4227
        %v4323 = vpop.f32.mrb[0].mxu0
        %v4324 = vadd.f32 0.0, %v4323
        %v4325 = vpop.f32.mrb[0].mxu0
        %v4326 = vpop.f32.mrb[0].mxu0
        %v4327 = vadd.f32 0.0, %v4326
        %v4328 = vpop.f32.mrb[0].mxu0
        %4329 = vmatprep.mubr.bf16.mxu0 0
        %4330 = vmatmul.mubr.bf16.gmra.mrb[0].mxu0 %v4230
        %v4331 = vpop.f32.mrb[0].mxu0
        %v4332 = vadd.f32 0.0, %v4331
        %v4333 = vpop.f32.mrb[0].mxu0
        %v4334 = vpop.f32.mrb[0].mxu0
        %v4335 = vadd.f32 0.0, %v4334
        %v4336 = vpop.f32.mrb[0].mxu0
        %4337 = vmatprep.mubr.bf16.mxu0 0
        %4338 = vmatmul.mubr.bf16.gmra.mrb[0].mxu0 %v4233
        %v4339 = vpop.f32.mrb[0].mxu0
        %v4340 = vadd.f32 0.0, %v4339
        %v4341 = vpop.f32.mrb[0].mxu0
        %v4342 = vpop.f32.mrb[0].mxu0
        %v4343 = vadd.f32 0.0, %v4342
        %v4344 = vpop.f32.mrb[0].mxu0
        %4345 = vmatprep.mubr.bf16.mxu0 0
        %4346 = vmatmul.mubr.bf16.gmra.mrb[0].mxu0 %v4236
        %v4347 = vpop.f32.mrb[0].mxu0
        %v4348 = vadd.f32 0.0, %v4347
        %v4349 = vpop.f32.mrb[0].mxu0
        %v4350 = vpop.f32.mrb[0].mxu0
        %v4351 = vadd.f32 0.0, %v4350
        %v4352 = vpop.f32.mrb[0].mxu0
        %4353 = vmatprep.mubr.bf16.mxu0 0
        %4354 = vmatmul.mubr.bf16.gmra.mrb[0].mxu0 %v4239
        %v4355 = vpop.f32.mrb[0].mxu0
        %v4356 = vadd.f32 0.0, %v4355
        %v4357 = vpop.f32.mrb[0].mxu0
        %v4358 = vpop.f32.mrb[0].mxu0
        %v4359 = vadd.f32 0.0, %v4358
        %v4360 = vpop.f32.mrb[0].mxu0
        %4361 = vmatprep.mubr.bf16.mxu0 0
        %4362 = vmatmul.mubr.bf16.gmra.mrb[0].mxu0 %v4242
        %v4363 = vpop.f32.mrb[0].mxu0
        %v4364 = vadd.f32 0.0, %v4363
        %v4365 = vpop.f32.mrb[0].mxu0
        %v4366 = vpop.f32.mrb[0].mxu0
        %v4367 = vadd.f32 0.0, %v4366
        %v4368 = vpop.f32.mrb[0].mxu0
        %4369 = vmatprep.mubr.bf16.mxu0 0
        %4370 = vmatmul.mubr.bf16.gmra.mrb[0].mxu0 %v4245
        %v4371 = vpop.f32.mrb[0].mxu0
        %v4372 = vadd.f32 0.0, %v4371
        %v4373 = vpop.f32.mrb[0].mxu0
        %v4374 = vpop.f32.mrb[0].mxu0
        %v4375 = vadd.f32 0.0, %v4374
        %v4376 = vpop.f32.mrb[0].mxu0
        %4377 = vmatprep.mubr.bf16.mxu0 0
        %4378 = vmatmul.mubr.bf16.gmra.mrb[0].mxu0 %v4248
        %v4379 = vpop.f32.mrb[0].mxu0
        %v4380 = vadd.f32 0.0, %v4379
        %v4381 = vpop.f32.mrb[0].mxu0
        %v4382 = vpop.f32.mrb[0].mxu0
        %v4383 = vadd.f32 0.0, %v4382
        %v4384 = vpop.f32.mrb[0].mxu0
        %4385 = vmatprep.mubr.bf16.mxu0 0
        %4386 = vmatmul.mubr.bf16.gmra.mrb[0].mxu0 %v4251
        %v4387 = vpop.f32.mrb[0].mxu0
        %v4388 = vadd.f32 0.0, %v4387
        %v4389 = vpop.f32.mrb[0].mxu0
        %v4390 = vpop.f32.mrb[0].mxu0
        %v4391 = vadd.f32 0.0, %v4390
        %v4392 = vpop.f32.mrb[0].mxu0
        %4393 = vmatprep.mubr.bf16.mxu0 0
        %4394 = vmatmul.mubr.bf16.gmra.mrb[0].mxu0 %v4254
        %v4395 = vpop.f32.mrb[0].mxu0
        %v4396 = vadd.f32 0.0, %v4395
        %v4397 = vpop.f32.mrb[0].mxu0
        %v4398 = vpop.f32.mrb[0].mxu0
        %v4399 = vadd.f32 0.0, %v4398
        %v4400 = vpop.f32.mrb[0].mxu0
        %4401 = vmatprep.mubr.bf16.mxu0 0
        %4402 = vmatmul.mubr.bf16.gmra.mrb[0].mxu0 %v4257
        %v4403 = vpop.f32.mrb[0].mxu0
        %v4404 = vadd.f32 0.0, %v4403
        %v4405 = vpop.f32.mrb[0].mxu0
        %v4406 = vpop.f32.mrb[0].mxu0
        %v4407 = vadd.f32 0.0, %v4406
        %v4408 = vpop.f32.mrb[0].mxu0
        %4409 = vmatprep.mubr.bf16.mxu0 0
        %4410 = vmatmul.mubr.bf16.gmra.mrb[0].mxu0 %v4260
        %v4411 = vpop.f32.mrb[0].mxu0
        %v4412 = vadd.f32 0.0, %v4411
        %v4413 = vpop.f32.mrb[0].mxu0
        %v4414 = vpop.f32.mrb[0].mxu0
        %v4415 = vadd.f32 0.0, %v4414
        %v4416 = vpop.f32.mrb[0].mxu0
        %4417 = vmatprep.mubr.bf16.mxu0 0
        %4418 = vmatmul.mubr.bf16.gmra.mrb[0].mxu0 %v4263
        %v4419 = vpop.f32.mrb[0].mxu0
        %v4420 = vadd.f32 0.0, %v4419
        %v4421 = vpop.f32.mrb[0].mxu0
        %v4422 = vpop.f32.mrb[0].mxu0
        %v4423 = vadd.f32 0.0, %v4422
        %v4424 = vpop.f32.mrb[0].mxu0
        %4425 = vmatprep.mubr.bf16.mxu0 0
        %4426 = vmatmul.mubr.bf16.gmra.mrb[0].mxu0 %v4266
        %v4427 = vpop.f32.mrb[0].mxu0
        %v4428 = vadd.f32 0.0, %v4427
        %v4429 = vpop.f32.mrb[0].mxu0
        %v4430 = vpop.f32.mrb[0].mxu0
        %v4431 = vadd.f32 0.0, %v4430
        %v4432 = vpop.f32.mrb[0].mxu0
        %4433 = vmatprep.mubr.bf16.mxu0 0
        %4434 = vmatmul.mubr.bf16.gmra.mrb[0].mxu0 %v4269
        %v4435 = vpop.f32.mrb[0].mxu0
        %v4436 = vadd.f32 0.0, %v4435
        %v4437 = vpop.f32.mrb[0].mxu0
        %v4438 = vpop.f32.mrb[0].mxu0
        %v4439 = vadd.f32 0.0, %v4438
        %v4440 = vpop.f32.mrb[0].mxu0
        %4441 = vmatprep.mubr.bf16.mxu0 0
        %4442 = vmatmul.mubr.bf16.gmra.mrb[0].mxu0 %v4272
        %v4443 = vpop.f32.mrb[0].mxu0
        %v4444 = vadd.f32 0.0, %v4443
        %v4445 = vpop.f32.mrb[0].mxu0
        %v4446 = vpop.f32.mrb[0].mxu0
        %v4447 = vadd.f32 0.0, %v4446
        %v4448 = vpop.f32.mrb[0].mxu0
        %4449 = vmatprep.mubr.bf16.mxu0 0
        %4450 = vmatmul.mubr.bf16.gmra.mrb[0].mxu0 %v4275
        %v4451 = vpop.f32.mrb[0].mxu0
        %v4452 = vadd.f32 0.0, %v4451
        %v4453 = vpop.f32.mrb[0].mxu0
        %v4454 = vpop.f32.mrb[0].mxu0
        %v4455 = vadd.f32 0.0, %v4454
        %v4456 = vpop.f32.mrb[0].mxu0
        %4457 = vmatprep.mubr.bf16.mxu0 0
        %4458 = vmatmul.mubr.bf16.gmra.mrb[0].mxu0 %v4278
        %v4459 = vpop.f32.mrb[0].mxu0
        %v4460 = vadd.f32 0.0, %v4459
        %v4461 = vpop.f32.mrb[0].mxu0
        %v4462 = vpop.f32.mrb[0].mxu0
        %v4463 = vadd.f32 0.0, %v4462
        %v4464 = vpop.f32.mrb[0].mxu0
        %4465 = vmatprep.mubr.bf16.mxu0 0
        %4466 = vmatmul.mubr.bf16.gmra.mrb[0].mxu0 %v4281
        %v4467 = vpop.f32.mrb[0].mxu0
        %v4468 = vadd.f32 0.0, %v4467
        %v4469 = vpop.f32.mrb[0].mxu0
        %v4470 = vpop.f32.mrb[0].mxu0
        %v4471 = vadd.f32 0.0, %v4470
        %v4472 = vpop.f32.mrb[0].mxu0
        %4473 = vmatprep.mubr.bf16.mxu0 0
        %4474 = vmatmul.mubr.bf16.gmra.mrb[0].mxu0 %v4284
        %v4475 = vpop.f32.mrb[0].mxu0
        %v4476 = vadd.f32 0.0, %v4475
        %v4477 = vpop.f32.mrb[0].mxu0
        %v4478 = vpop.f32.mrb[0].mxu0
        %v4479 = vadd.f32 0.0, %v4478
        %v4480 = vpop.f32.mrb[0].mxu0
        %4481 = vdwg.mxu0
        %v4482 = vadd.f32 %v4044, %v4324
        %v4483 = vadd.f32 %v4045, %v4327
        %v4484 = vadd.f32 %v4046, %v4332
        %v4485 = vadd.f32 %v4047, %v4335
        %v4486 = vadd.f32 %v4048, %v4340
        %v4487 = vadd.f32 %v4049, %v4343
        %v4488 = vadd.f32 %v4050, %v4348
        %v4489 = vadd.f32 %v4051, %v4351
        %v4490 = vadd.f32 %v4052, %v4356
        %v4491 = vadd.f32 %v4053, %v4359
        %v4492 = vadd.f32 %v4054, %v4364
        %v4493 = vadd.f32 %v4055, %v4367
        %v4494 = vadd.f32 %v4056, %v4372
        %v4495 = vadd.f32 %v4057, %v4375
        %v4496 = vadd.f32 %v4058, %v4380
        %v4497 = vadd.f32 %v4059, %v4383
        %v4498 = vadd.f32 %v4060, %v4388
        %v4499 = vadd.f32 %v4061, %v4391
        %v4500 = vadd.f32 %v4062, %v4396
        %v4501 = vadd.f32 %v4063, %v4399
        %v4502 = vadd.f32 %v4064, %v4404
        %v4503 = vadd.f32 %v4065, %v4407
        %v4504 = vadd.f32 %v4066, %v4412
        %v4505 = vadd.f32 %v4067, %v4415
        %v4506 = vadd.f32 %v4068, %v4420
        %v4507 = vadd.f32 %v4069, %v4423
        %v4508 = vadd.f32 %v4070, %v4428
        %v4509 = vadd.f32 %v4071, %v4431
        %v4510 = vadd.f32 %v4072, %v4436
        %v4511 = vadd.f32 %v4073, %v4439
        %v4512 = vadd.f32 %v4074, %v4444
        %v4513 = vadd.f32 %v4075, %v4447
        %v4514 = vadd.f32 %v4076, %v4452
        %v4515 = vadd.f32 %v4077, %v4455
        %v4516 = vadd.f32 %v4078, %v4460
        %v4517 = vadd.f32 %v4079, %v4463
        %v4518 = vadd.f32 %v4080, %v4468
        %v4519 = vadd.f32 %v4081, %v4471
        %v4520 = vadd.f32 %v4082, %v4476
        %v4521 = vadd.f32 %v4083, %v4479
        %v4522 = vld [vmem:[%s4084] sm:$0xf]
        %v4523 = vld [vmem:[%s4084 + $0x4] sm:$0xf]
        %v4524 = vld [vmem:[%s4084 + $0x8] sm:$0xf]
        %v4525 = vld [vmem:[%s4084 + $0xc] sm:$0xf]
        %v4526 = vld [vmem:[%s4084 + $0x10] sm:$0x1]
        %v4527 = vld [vmem:[%s4084 + $0x14] sm:$0xf]
        %v4528 = vld [vmem:[%s4084 + $0x18] sm:$0xf]
        %v4529 = vld [vmem:[%s4084 + $0x1c] sm:$0xf]
        %v4530 = vld [vmem:[%s4084 + $0x20] sm:$0xf]
        %v4531 = vld [vmem:[%s4084 + $0x24] sm:$0x1]
        %v4532 = vld [vmem:[%s4084 + $0x28] sm:$0xf]
        %v4533 = vld [vmem:[%s4084 + $0x2c] sm:$0xf]
        %v4534 = vld [vmem:[%s4084 + $0x30] sm:$0xf]
        %v4535 = vld [vmem:[%s4084 + $0x34] sm:$0xf]
        %v4536 = vld [vmem:[%s4084 + $0x38] sm:$0x1]
        %v4537 = vld [vmem:[%s4084 + $0x3c] sm:$0xf]
        %v4538 = vld [vmem:[%s4084 + $0x40] sm:$0xf]
        %v4539 = vld [vmem:[%s4084 + $0x44] sm:$0xf]
        %v4540 = vld [vmem:[%s4084 + $0x48] sm:$0xf]
        %v4541 = vld [vmem:[%s4084 + $0x4c] sm:$0x1]
        %v4542 = vld [vmem:[%s4084 + $0x50] sm:$0xf]
        %v4543 = vld [vmem:[%s4084 + $0x54] sm:$0xf]
        %v4544 = vld [vmem:[%s4084 + $0x58] sm:$0xf]
        %v4545 = vld [vmem:[%s4084 + $0x5c] sm:$0xf]
        %v4546 = vld [vmem:[%s4084 + $0x60] sm:$0x1]
        %v4547 = vld [vmem:[%s4084 + $0x64] sm:$0xf]
        %v4548 = vld [vmem:[%s4084 + $0x68] sm:$0xf]
        %v4549 = vld [vmem:[%s4084 + $0x6c] sm:$0xf]
        %v4550 = vld [vmem:[%s4084 + $0x70] sm:$0xf]
        %v4551 = vld [vmem:[%s4084 + $0x74] sm:$0x1]
        %v4552 = vld [vmem:[%s4084 + $0x78] sm:$0xf]
        %v4553 = vld [vmem:[%s4084 + $0x7c] sm:$0xf]
        %v4554 = vld [vmem:[%s4084 + $0x80] sm:$0xf]
        %v4555 = vld [vmem:[%s4084 + $0x84] sm:$0xf]
        %v4556 = vld [vmem:[%s4084 + $0x88] sm:$0x1]
        %v4557 = vld [vmem:[%s4084 + $0x8c] sm:$0xf]
        %v4558 = vld [vmem:[%s4084 + $0x90] sm:$0xf]
        %v4559 = vld [vmem:[%s4084 + $0x94] sm:$0xf]
        %v4560 = vld [vmem:[%s4084 + $0x98] sm:$0xf]
        %v4561 = vld [vmem:[%s4084 + $0x9c] sm:$0x1]
        %v4562 = vld [vmem:[%s4084 + $0xa0] sm:$0xf]
        %v4563 = vld [vmem:[%s4084 + $0xa4] sm:$0xf]
        %v4564 = vld [vmem:[%s4084 + $0xa8] sm:$0xf]
        %v4565 = vld [vmem:[%s4084 + $0xac] sm:$0xf]
        %v4566 = vld [vmem:[%s4084 + $0xb0] sm:$0x1]
        %v4567 = vld [vmem:[%s4084 + $0xb4] sm:$0xf]
        %v4568 = vld [vmem:[%s4084 + $0xb8] sm:$0xf]
        %v4569 = vld [vmem:[%s4084 + $0xbc] sm:$0xf]
        %v4570 = vld [vmem:[%s4084 + $0xc0] sm:$0xf]
        %v4571 = vld [vmem:[%s4084 + $0xc4] sm:$0x1]
        %v4573 = vshrl.u32 %v4522, 16
        %v4575 = vrot.slane %v4573, 4
        %v4576 = vshll.u32 %v4522, 16
        %v4578 = vrot.slane %v4576, 5
        %v4579 = vor.u32 %v4575, %v4578
        %v4580 = vrot.slane %v4579, 4
        %v4582 = vshll.u32 %v4523, 16
        %v4584 = vrot.slane %v4582, 5
        %v4585 = vsel %vm604, %v4580, %v4584
        %v4586 = vshrl.u32 %v4523, 16
        %v4588 = vrot.slane %v4586, 4
        %v4589 = vor.u32 %v4588, %v4584
        %v4590 = vrot.slane %v4589, 4
        %v4592 = vshll.u32 %v4524, 16
        %v4594 = vrot.slane %v4592, 5
        %v4595 = vsel %vm604, %v4590, %v4594
        %v4596 = vshrl.u32 %v4524, 16
        %v4598 = vrot.slane %v4596, 4
        %v4599 = vor.u32 %v4598, %v4594
        %v4600 = vrot.slane %v4599, 4
        %v4602 = vshll.u32 %v4525, 16
        %v4604 = vrot.slane %v4602, 5
        %v4605 = vsel %vm604, %v4600, %v4604
        %v4606 = vshrl.u32 %v4525, 16
        %v4608 = vrot.slane %v4606, 4
        %v4609 = vor.u32 %v4608, %v4604
        %v4610 = vrot.slane %v4609, 4
        %v4612 = vshll.u32 %v4526, 16
        %v4614 = vrot.slane %v4612, 5
        %v4615 = vsel %vm604, %v4610, %v4614
        %v4617 = vshrl.u32 %v4527, 16
        %v4619 = vrot.slane %v4617, 4
        %v4620 = vshll.u32 %v4527, 16
        %v4622 = vrot.slane %v4620, 5
        %v4623 = vor.u32 %v4619, %v4622
        %v4624 = vrot.slane %v4623, 4
        %v4626 = vshll.u32 %v4528, 16
        %v4628 = vrot.slane %v4626, 5
        %v4629 = vsel %vm604, %v4624, %v4628
        %v4630 = vshrl.u32 %v4528, 16
        %v4632 = vrot.slane %v4630, 4
        %v4633 = vor.u32 %v4632, %v4628
        %v4634 = vrot.slane %v4633, 4
        %v4636 = vshll.u32 %v4529, 16
        %v4638 = vrot.slane %v4636, 5
        %v4639 = vsel %vm604, %v4634, %v4638
        %v4640 = vshrl.u32 %v4529, 16
        %v4642 = vrot.slane %v4640, 4
        %v4643 = vor.u32 %v4642, %v4638
        %v4644 = vrot.slane %v4643, 4
        %v4646 = vshll.u32 %v4530, 16
        %v4648 = vrot.slane %v4646, 5
        %v4649 = vsel %vm604, %v4644, %v4648
        %v4650 = vshrl.u32 %v4530, 16
        %v4652 = vrot.slane %v4650, 4
        %v4653 = vor.u32 %v4652, %v4648
        %v4654 = vrot.slane %v4653, 4
        %v4656 = vshll.u32 %v4531, 16
        %v4658 = vrot.slane %v4656, 5
        %v4659 = vsel %vm604, %v4654, %v4658
        %v4661 = vshrl.u32 %v4532, 16
        %v4663 = vrot.slane %v4661, 4
        %v4664 = vshll.u32 %v4532, 16
        %v4666 = vrot.slane %v4664, 5
        %v4667 = vor.u32 %v4663, %v4666
        %v4668 = vrot.slane %v4667, 4
        %v4670 = vshll.u32 %v4533, 16
        %v4672 = vrot.slane %v4670, 5
        %v4673 = vsel %vm604, %v4668, %v4672
        %v4674 = vshrl.u32 %v4533, 16
        %v4676 = vrot.slane %v4674, 4
        %v4677 = vor.u32 %v4676, %v4672
        %v4678 = vrot.slane %v4677, 4
        %v4680 = vshll.u32 %v4534, 16
        %v4682 = vrot.slane %v4680, 5
        %v4683 = vsel %vm604, %v4678, %v4682
        %v4684 = vshrl.u32 %v4534, 16
        %v4686 = vrot.slane %v4684, 4
        %v4687 = vor.u32 %v4686, %v4682
        %v4688 = vrot.slane %v4687, 4
        %v4690 = vshll.u32 %v4535, 16
        %v4692 = vrot.slane %v4690, 5
        %v4693 = vsel %vm604, %v4688, %v4692
        %v4694 = vshrl.u32 %v4535, 16
        %v4696 = vrot.slane %v4694, 4
        %v4697 = vor.u32 %v4696, %v4692
        %v4698 = vrot.slane %v4697, 4
        %v4700 = vshll.u32 %v4536, 16
        %v4702 = vrot.slane %v4700, 5
        %v4703 = vsel %vm604, %v4698, %v4702
        %v4705 = vshrl.u32 %v4537, 16
        %v4707 = vrot.slane %v4705, 4
        %v4708 = vshll.u32 %v4537, 16
        %v4710 = vrot.slane %v4708, 5
        %v4711 = vor.u32 %v4707, %v4710
        %v4712 = vrot.slane %v4711, 4
        %v4714 = vshll.u32 %v4538, 16
        %v4716 = vrot.slane %v4714, 5
        %v4717 = vsel %vm604, %v4712, %v4716
        %v4718 = vshrl.u32 %v4538, 16
        %v4720 = vrot.slane %v4718, 4
        %v4721 = vor.u32 %v4720, %v4716
        %v4722 = vrot.slane %v4721, 4
        %v4724 = vshll.u32 %v4539, 16
        %v4726 = vrot.slane %v4724, 5
        %v4727 = vsel %vm604, %v4722, %v4726
        %v4728 = vshrl.u32 %v4539, 16
        %v4730 = vrot.slane %v4728, 4
        %v4731 = vor.u32 %v4730, %v4726
        %v4732 = vrot.slane %v4731, 4
        %v4734 = vshll.u32 %v4540, 16
        %v4736 = vrot.slane %v4734, 5
        %v4737 = vsel %vm604, %v4732, %v4736
        %v4738 = vshrl.u32 %v4540, 16
        %v4740 = vrot.slane %v4738, 4
        %v4741 = vor.u32 %v4740, %v4736
        %v4742 = vrot.slane %v4741, 4
        %v4744 = vshll.u32 %v4541, 16
        %v4746 = vrot.slane %v4744, 5
        %v4747 = vsel %vm604, %v4742, %v4746
        %v4749 = vshrl.u32 %v4542, 16
        %v4751 = vrot.slane %v4749, 4
        %v4752 = vshll.u32 %v4542, 16
        %v4754 = vrot.slane %v4752, 5
        %v4755 = vor.u32 %v4751, %v4754
        %v4756 = vrot.slane %v4755, 4
        %v4758 = vshll.u32 %v4543, 16
        %v4760 = vrot.slane %v4758, 5
        %v4761 = vsel %vm604, %v4756, %v4760
        %v4762 = vshrl.u32 %v4543, 16
        %v4764 = vrot.slane %v4762, 4
        %v4765 = vor.u32 %v4764, %v4760
        %v4766 = vrot.slane %v4765, 4
        %v4768 = vshll.u32 %v4544, 16
        %v4770 = vrot.slane %v4768, 5
        %v4771 = vsel %vm604, %v4766, %v4770
        %v4772 = vshrl.u32 %v4544, 16
        %v4774 = vrot.slane %v4772, 4
        %v4775 = vor.u32 %v4774, %v4770
        %v4776 = vrot.slane %v4775, 4
        %v4778 = vshll.u32 %v4545, 16
        %v4780 = vrot.slane %v4778, 5
        %v4781 = vsel %vm604, %v4776, %v4780
        %v4782 = vshrl.u32 %v4545, 16
        %v4784 = vrot.slane %v4782, 4
        %v4785 = vor.u32 %v4784, %v4780
        %v4786 = vrot.slane %v4785, 4
        %v4788 = vshll.u32 %v4546, 16
        %v4790 = vrot.slane %v4788, 5
        %v4791 = vsel %vm604, %v4786, %v4790
        %v4793 = vshrl.u32 %v4547, 16
        %v4795 = vrot.slane %v4793, 4
        %v4796 = vshll.u32 %v4547, 16
        %v4798 = vrot.slane %v4796, 5
        %v4799 = vor.u32 %v4795, %v4798
        %v4800 = vrot.slane %v4799, 4
        %v4802 = vshll.u32 %v4548, 16
        %v4804 = vrot.slane %v4802, 5
        %v4805 = vsel %vm604, %v4800, %v4804
        %v4806 = vshrl.u32 %v4548, 16
        %v4808 = vrot.slane %v4806, 4
        %v4809 = vor.u32 %v4808, %v4804
        %v4810 = vrot.slane %v4809, 4
        %v4812 = vshll.u32 %v4549, 16
        %v4814 = vrot.slane %v4812, 5
        %v4815 = vsel %vm604, %v4810, %v4814
        %v4816 = vshrl.u32 %v4549, 16
        %v4818 = vrot.slane %v4816, 4
        %v4819 = vor.u32 %v4818, %v4814
        %v4820 = vrot.slane %v4819, 4
        %v4822 = vshll.u32 %v4550, 16
        %v4824 = vrot.slane %v4822, 5
        %v4825 = vsel %vm604, %v4820, %v4824
        %v4826 = vshrl.u32 %v4550, 16
        %v4828 = vrot.slane %v4826, 4
        %v4829 = vor.u32 %v4828, %v4824
        %v4830 = vrot.slane %v4829, 4
        %v4832 = vshll.u32 %v4551, 16
        %v4834 = vrot.slane %v4832, 5
        %v4835 = vsel %vm604, %v4830, %v4834
        %v4837 = vshrl.u32 %v4552, 16
        %v4839 = vrot.slane %v4837, 4
        %v4840 = vshll.u32 %v4552, 16
        %v4842 = vrot.slane %v4840, 5
        %v4843 = vor.u32 %v4839, %v4842
        %v4844 = vrot.slane %v4843, 4
        %v4846 = vshll.u32 %v4553, 16
        %v4848 = vrot.slane %v4846, 5
        %v4849 = vsel %vm604, %v4844, %v4848
        %v4850 = vshrl.u32 %v4553, 16
        %v4852 = vrot.slane %v4850, 4
        %v4853 = vor.u32 %v4852, %v4848
        %v4854 = vrot.slane %v4853, 4
        %v4856 = vshll.u32 %v4554, 16
        %v4858 = vrot.slane %v4856, 5
        %v4859 = vsel %vm604, %v4854, %v4858
        %v4860 = vshrl.u32 %v4554, 16
        %v4862 = vrot.slane %v4860, 4
        %v4863 = vor.u32 %v4862, %v4858
        %v4864 = vrot.slane %v4863, 4
        %v4866 = vshll.u32 %v4555, 16
        %v4868 = vrot.slane %v4866, 5
        %v4869 = vsel %vm604, %v4864, %v4868
        %v4870 = vshrl.u32 %v4555, 16
        %v4872 = vrot.slane %v4870, 4
        %v4873 = vor.u32 %v4872, %v4868
        %v4874 = vrot.slane %v4873, 4
        %v4876 = vshll.u32 %v4556, 16
        %v4878 = vrot.slane %v4876, 5
        %v4879 = vsel %vm604, %v4874, %v4878
        %v4881 = vshrl.u32 %v4557, 16
        %v4883 = vrot.slane %v4881, 4
        %v4884 = vshll.u32 %v4557, 16
        %v4886 = vrot.slane %v4884, 5
        %v4887 = vor.u32 %v4883, %v4886
        %v4888 = vrot.slane %v4887, 4
        %v4890 = vshll.u32 %v4558, 16
        %v4892 = vrot.slane %v4890, 5
        %v4893 = vsel %vm604, %v4888, %v4892
        %v4894 = vshrl.u32 %v4558, 16
        %v4896 = vrot.slane %v4894, 4
        %v4897 = vor.u32 %v4896, %v4892
        %v4898 = vrot.slane %v4897, 4
        %v4900 = vshll.u32 %v4559, 16
        %v4902 = vrot.slane %v4900, 5
        %v4903 = vsel %vm604, %v4898, %v4902
        %v4904 = vshrl.u32 %v4559, 16
        %v4906 = vrot.slane %v4904, 4
        %v4907 = vor.u32 %v4906, %v4902
        %v4908 = vrot.slane %v4907, 4
        %v4910 = vshll.u32 %v4560, 16
        %v4912 = vrot.slane %v4910, 5
        %v4913 = vsel %vm604, %v4908, %v4912
        %v4914 = vshrl.u32 %v4560, 16
        %v4916 = vrot.slane %v4914, 4
        %v4917 = vor.u32 %v4916, %v4912
        %v4918 = vrot.slane %v4917, 4
        %v4920 = vshll.u32 %v4561, 16
        %v4922 = vrot.slane %v4920, 5
        %v4923 = vsel %vm604, %v4918, %v4922
        %v4925 = vshrl.u32 %v4562, 16
        %v4927 = vrot.slane %v4925, 4
        %v4928 = vshll.u32 %v4562, 16
        %v4930 = vrot.slane %v4928, 5
        %v4931 = vor.u32 %v4927, %v4930
        %v4932 = vrot.slane %v4931, 4
        %v4934 = vshll.u32 %v4563, 16
        %v4936 = vrot.slane %v4934, 5
        %v4937 = vsel %vm604, %v4932, %v4936
        %v4938 = vshrl.u32 %v4563, 16
        %v4940 = vrot.slane %v4938, 4
        %v4941 = vor.u32 %v4940, %v4936
        %v4942 = vrot.slane %v4941, 4
        %v4944 = vshll.u32 %v4564, 16
        %v4946 = vrot.slane %v4944, 5
        %v4947 = vsel %vm604, %v4942, %v4946
        %v4948 = vshrl.u32 %v4564, 16
        %v4950 = vrot.slane %v4948, 4
        %v4951 = vor.u32 %v4950, %v4946
        %v4952 = vrot.slane %v4951, 4
        %v4954 = vshll.u32 %v4565, 16
        %v4956 = vrot.slane %v4954, 5
        %v4957 = vsel %vm604, %v4952, %v4956
        %v4958 = vshrl.u32 %v4565, 16
        %v4960 = vrot.slane %v4958, 4
        %v4961 = vor.u32 %v4960, %v4956
        %v4962 = vrot.slane %v4961, 4
        %v4964 = vshll.u32 %v4566, 16
        %v4966 = vrot.slane %v4964, 5
        %v4967 = vsel %vm604, %v4962, %v4966
        %v4969 = vshrl.u32 %v4567, 16
        %v4971 = vrot.slane %v4969, 4
        %v4972 = vshll.u32 %v4567, 16
        %v4974 = vrot.slane %v4972, 5
        %v4975 = vor.u32 %v4971, %v4974
        %v4976 = vrot.slane %v4975, 4
        %v4978 = vshll.u32 %v4568, 16
        %v4980 = vrot.slane %v4978, 5
        %v4981 = vsel %vm604, %v4976, %v4980
        %v4982 = vshrl.u32 %v4568, 16
        %v4984 = vrot.slane %v4982, 4
        %v4985 = vor.u32 %v4984, %v4980
        %v4986 = vrot.slane %v4985, 4
        %v4988 = vshll.u32 %v4569, 16
        %v4990 = vrot.slane %v4988, 5
        %v4991 = vsel %vm604, %v4986, %v4990
        %v4992 = vshrl.u32 %v4569, 16
        %v4994 = vrot.slane %v4992, 4
        %v4995 = vor.u32 %v4994, %v4990
        %v4996 = vrot.slane %v4995, 4
        %v4998 = vshll.u32 %v4570, 16
        %v5000 = vrot.slane %v4998, 5
        %v5001 = vsel %vm604, %v4996, %v5000
        %v5002 = vshrl.u32 %v4570, 16
        %v5004 = vrot.slane %v5002, 4
        %v5005 = vor.u32 %v5004, %v5000
        %v5006 = vrot.slane %v5005, 4
        %v5008 = vshll.u32 %v4571, 16
        %v5010 = vrot.slane %v5008, 5
        %v5011 = vsel %vm604, %v5006, %v5010
        %v5012 = vld [vmem:[#allocation8 + $0xc] sm:$0xc]
        %v5013 = vunpack.c.l.b16 %v4585
        %v5014 = vunpack.c.l.b16 %v4595
        %v5015 = vunpack.c.l.b16 %v4605
        %v5016 = vunpack.c.l.b16 %v4615
        %v5017 = vunpack.c.l.b16 %v4629
        %v5018 = vunpack.c.l.b16 %v4639
        %v5019 = vunpack.c.l.b16 %v4649
        %v5020 = vunpack.c.l.b16 %v4659
        %v5021 = vunpack.c.l.b16 %v4673
        %v5022 = vunpack.c.l.b16 %v4683
        %v5023 = vunpack.c.l.b16 %v4693
        %v5024 = vunpack.c.l.b16 %v4703
        %v5025 = vunpack.c.l.b16 %v4717
        %v5026 = vunpack.c.l.b16 %v4727
        %v5027 = vunpack.c.l.b16 %v4737
        %v5028 = vunpack.c.l.b16 %v4747
        %v5029 = vunpack.c.l.b16 %v4761
        %v5030 = vunpack.c.l.b16 %v4771
        %v5031 = vunpack.c.l.b16 %v4781
        %v5032 = vunpack.c.l.b16 %v4791
        %v5033 = vunpack.c.l.b16 %v4805
        %v5034 = vunpack.c.l.b16 %v4815
        %v5035 = vunpack.c.l.b16 %v4825
        %v5036 = vunpack.c.l.b16 %v4835
        %v5037 = vunpack.c.l.b16 %v4849
        %v5038 = vunpack.c.l.b16 %v4859
        %v5039 = vunpack.c.l.b16 %v4869
        %v5040 = vunpack.c.l.b16 %v4879
        %v5041 = vunpack.c.l.b16 %v4893
        %v5042 = vunpack.c.l.b16 %v4903
        %v5043 = vunpack.c.l.b16 %v4913
        %v5044 = vunpack.c.l.b16 %v4923
        %v5045 = vunpack.c.l.b16 %v4937
        %v5046 = vunpack.c.l.b16 %v4947
        %v5047 = vunpack.c.l.b16 %v4957
        %v5048 = vunpack.c.l.b16 %v4967
        %v5049 = vunpack.c.l.b16 %v4981
        %v5050 = vunpack.c.l.b16 %v4991
        %v5051 = vunpack.c.l.b16 %v5001
        %v5052 = vunpack.c.l.b16 %v5011
        %v5053 = vpack.c.b16 %v5014, %v5013
        %v5054 = vpack.c.b16 %v5016, %v5015
        %v5055 = vpack.c.b16 %v5018, %v5017
        %v5056 = vpack.c.b16 %v5020, %v5019
        %v5057 = vpack.c.b16 %v5022, %v5021
        %v5058 = vpack.c.b16 %v5024, %v5023
        %v5059 = vpack.c.b16 %v5026, %v5025
        %v5060 = vpack.c.b16 %v5028, %v5027
        %v5061 = vpack.c.b16 %v5030, %v5029
        %v5062 = vpack.c.b16 %v5032, %v5031
        %v5063 = vpack.c.b16 %v5034, %v5033
        %v5064 = vpack.c.b16 %v5036, %v5035
        %v5065 = vpack.c.b16 %v5038, %v5037
        %v5066 = vpack.c.b16 %v5040, %v5039
        %v5067 = vpack.c.b16 %v5042, %v5041
        %v5068 = vpack.c.b16 %v5044, %v5043
        %v5069 = vpack.c.b16 %v5046, %v5045
        %v5070 = vpack.c.b16 %v5048, %v5047
        %v5071 = vpack.c.b16 %v5050, %v5049
        %v5072 = vpack.c.b16 %v5052, %v5051
        %v5074 = vunpack.c.l.b16 %v5012
        %v5075 = vpack.c.b16 %v5074, %v5074
        %v5076 = vrot.slane %v5075, 2
        %v5078 = vsel %vm1110, %v5053, 0
        %v5081 = vsel %vm1110, %v5054, 0
        %v5084 = vsel %vm1110, %v5055, 0
        %v5087 = vsel %vm1110, %v5056, 0
        %v5090 = vsel %vm1110, %v5057, 0
        %v5093 = vsel %vm1110, %v5058, 0
        %v5096 = vsel %vm1110, %v5059, 0
        %v5099 = vsel %vm1110, %v5060, 0
        %v5102 = vsel %vm1110, %v5061, 0
        %v5105 = vsel %vm1110, %v5062, 0
        %v5108 = vsel %vm1110, %v5063, 0
        %v5111 = vsel %vm1110, %v5064, 0
        %v5114 = vsel %vm1110, %v5065, 0
        %v5117 = vsel %vm1110, %v5066, 0
        %v5120 = vsel %vm1110, %v5067, 0
        %v5123 = vsel %vm1110, %v5068, 0
        %v5126 = vsel %vm1110, %v5069, 0
        %v5129 = vsel %vm1110, %v5070, 0
        %v5132 = vsel %vm1110, %v5071, 0
        %v5135 = vsel %vm1110, %v5072, 0
        %v5138 = vsel %vm1171, %v5076, 0
        %5140 = vmatprep.subr.bf16.mxu0 0
        %5141 = vmatpush1.bf16.msra.mxu0 %v5138
        %5142 = vmatprep.subr.bf16.mxu0 0
        %5143 = vmatpush1.bf16.msra.mxu0 0
        %5144 = vmatprep.subr.bf16.mxu0 0
        %5145 = vmatpush1.bf16.msra.mxu0 0
        %5146 = vmatprep.subr.bf16.mxu0 0
        %5147 = vmatpush1.bf16.msra.mxu0 0
        %5148 = vmatprep.subr.bf16.mxu0 0
        %5149 = vmatpush1.bf16.msra.mxu0 0
        %5150 = vmatprep.subr.bf16.mxu0 0
        %5151 = vmatpush1.bf16.msra.mxu0 0
        %5152 = vmatprep.subr.bf16.mxu0 0
        %5153 = vmatpush1.bf16.msra.mxu0 0
        %5154 = vmatprep.subr.bf16.mxu0 0
        %5155 = vmatpush1.bf16.msra.mxu0 0
        %5156 = vmatprep.subr.bf16.mxu0 0
        %5157 = vmatpush1.bf16.msra.mxu0 0
        %5158 = vmatprep.subr.bf16.mxu0 0
        %5159 = vmatpush1.bf16.msra.mxu0 0
        %5160 = vmatprep.subr.bf16.mxu0 0
        %5161 = vmatpush1.bf16.msra.mxu0 0
        %5162 = vmatprep.subr.bf16.mxu0 0
        %5163 = vmatpush1.bf16.msra.mxu0 0
        %5164 = vmatprep.subr.bf16.mxu0 0
        %5165 = vmatpush1.bf16.msra.mxu0 0
        %5166 = vmatprep.subr.bf16.mxu0 0
        %5167 = vmatpush1.bf16.msra.mxu0 0
        %5168 = vmatprep.subr.bf16.mxu0 0
        %5169 = vmatpush1.bf16.msra.mxu0 0
        %5170 = vmatprep.subr.bf16.mxu0 0
        %5171 = vmatpush1.bf16.msra.mxu0 0
        %5172 = vmatprep.mubr.bf16.mxu0 0
        %5173 = vmatmul.mubr.bf16.gmra.mrb[0].mxu0 %v5078
        %v5174 = vpop.f32.mrb[0].mxu0
        %v5175 = vadd.f32 0.0, %v5174
        %v5176 = vpop.f32.mrb[0].mxu0
        %v5177 = vpop.f32.mrb[0].mxu0
        %v5178 = vadd.f32 0.0, %v5177
        %v5179 = vpop.f32.mrb[0].mxu0
        %5180 = vmatprep.mubr.bf16.mxu0 0
        %5181 = vmatmul.mubr.bf16.gmra.mrb[0].mxu0 %v5081
        %v5182 = vpop.f32.mrb[0].mxu0
        %v5183 = vadd.f32 0.0, %v5182
        %v5184 = vpop.f32.mrb[0].mxu0
        %v5185 = vpop.f32.mrb[0].mxu0
        %v5186 = vadd.f32 0.0, %v5185
        %v5187 = vpop.f32.mrb[0].mxu0
        %5188 = vmatprep.mubr.bf16.mxu0 0
        %5189 = vmatmul.mubr.bf16.gmra.mrb[0].mxu0 %v5084
        %v5190 = vpop.f32.mrb[0].mxu0
        %v5191 = vadd.f32 0.0, %v5190
        %v5192 = vpop.f32.mrb[0].mxu0
        %v5193 = vpop.f32.mrb[0].mxu0
        %v5194 = vadd.f32 0.0, %v5193
        %v5195 = vpop.f32.mrb[0].mxu0
        %5196 = vmatprep.mubr.bf16.mxu0 0
        %5197 = vmatmul.mubr.bf16.gmra.mrb[0].mxu0 %v5087
        %v5198 = vpop.f32.mrb[0].mxu0
        %v5199 = vadd.f32 0.0, %v5198
        %v5200 = vpop.f32.mrb[0].mxu0
        %v5201 = vpop.f32.mrb[0].mxu0
        %v5202 = vadd.f32 0.0, %v5201
        %v5203 = vpop.f32.mrb[0].mxu0
        %5204 = vmatprep.mubr.bf16.mxu0 0
        %5205 = vmatmul.mubr.bf16.gmra.mrb[0].mxu0 %v5090
        %v5206 = vpop.f32.mrb[0].mxu0
        %v5207 = vadd.f32 0.0, %v5206
        %v5208 = vpop.f32.mrb[0].mxu0
        %v5209 = vpop.f32.mrb[0].mxu0
        %v5210 = vadd.f32 0.0, %v5209
        %v5211 = vpop.f32.mrb[0].mxu0
        %5212 = vmatprep.mubr.bf16.mxu0 0
        %5213 = vmatmul.mubr.bf16.gmra.mrb[0].mxu0 %v5093
        %v5214 = vpop.f32.mrb[0].mxu0
        %v5215 = vadd.f32 0.0, %v5214
        %v5216 = vpop.f32.mrb[0].mxu0
        %v5217 = vpop.f32.mrb[0].mxu0
        %v5218 = vadd.f32 0.0, %v5217
        %v5219 = vpop.f32.mrb[0].mxu0
        %5220 = vmatprep.mubr.bf16.mxu0 0
        %5221 = vmatmul.mubr.bf16.gmra.mrb[0].mxu0 %v5096
        %v5222 = vpop.f32.mrb[0].mxu0
        %v5223 = vadd.f32 0.0, %v5222
        %v5224 = vpop.f32.mrb[0].mxu0
        %v5225 = vpop.f32.mrb[0].mxu0
        %v5226 = vadd.f32 0.0, %v5225
        %v5227 = vpop.f32.mrb[0].mxu0
        %5228 = vmatprep.mubr.bf16.mxu0 0
        %5229 = vmatmul.mubr.bf16.gmra.mrb[0].mxu0 %v5099
        %v5230 = vpop.f32.mrb[0].mxu0
        %v5231 = vadd.f32 0.0, %v5230
        %v5232 = vpop.f32.mrb[0].mxu0
        %v5233 = vpop.f32.mrb[0].mxu0
        %v5234 = vadd.f32 0.0, %v5233
        %v5235 = vpop.f32.mrb[0].mxu0
        %5236 = vmatprep.mubr.bf16.mxu0 0
        %5237 = vmatmul.mubr.bf16.gmra.mrb[0].mxu0 %v5102
        %v5238 = vpop.f32.mrb[0].mxu0
        %v5239 = vadd.f32 0.0, %v5238
        %v5240 = vpop.f32.mrb[0].mxu0
        %v5241 = vpop.f32.mrb[0].mxu0
        %v5242 = vadd.f32 0.0, %v5241
        %v5243 = vpop.f32.mrb[0].mxu0
        %5244 = vmatprep.mubr.bf16.mxu0 0
        %5245 = vmatmul.mubr.bf16.gmra.mrb[0].mxu0 %v5105
        %v5246 = vpop.f32.mrb[0].mxu0
        %v5247 = vadd.f32 0.0, %v5246
        %v5248 = vpop.f32.mrb[0].mxu0
        %v5249 = vpop.f32.mrb[0].mxu0
        %v5250 = vadd.f32 0.0, %v5249
        %v5251 = vpop.f32.mrb[0].mxu0
        %5252 = vmatprep.mubr.bf16.mxu0 0
        %5253 = vmatmul.mubr.bf16.gmra.mrb[0].mxu0 %v5108
        %v5254 = vpop.f32.mrb[0].mxu0
        %v5255 = vadd.f32 0.0, %v5254
        %v5256 = vpop.f32.mrb[0].mxu0
        %v5257 = vpop.f32.mrb[0].mxu0
        %v5258 = vadd.f32 0.0, %v5257
        %v5259 = vpop.f32.mrb[0].mxu0
        %5260 = vmatprep.mubr.bf16.mxu0 0
        %5261 = vmatmul.mubr.bf16.gmra.mrb[0].mxu0 %v5111
        %v5262 = vpop.f32.mrb[0].mxu0
        %v5263 = vadd.f32 0.0, %v5262
        %v5264 = vpop.f32.mrb[0].mxu0
        %v5265 = vpop.f32.mrb[0].mxu0
        %v5266 = vadd.f32 0.0, %v5265
        %v5267 = vpop.f32.mrb[0].mxu0
        %5268 = vmatprep.mubr.bf16.mxu0 0
        %5269 = vmatmul.mubr.bf16.gmra.mrb[0].mxu0 %v5114
        %v5270 = vpop.f32.mrb[0].mxu0
        %v5271 = vadd.f32 0.0, %v5270
        %v5272 = vpop.f32.mrb[0].mxu0
        %v5273 = vpop.f32.mrb[0].mxu0
        %v5274 = vadd.f32 0.0, %v5273
        %v5275 = vpop.f32.mrb[0].mxu0
        %5276 = vmatprep.mubr.bf16.mxu0 0
        %5277 = vmatmul.mubr.bf16.gmra.mrb[0].mxu0 %v5117
        %v5278 = vpop.f32.mrb[0].mxu0
        %v5279 = vadd.f32 0.0, %v5278
        %v5280 = vpop.f32.mrb[0].mxu0
        %v5281 = vpop.f32.mrb[0].mxu0
        %v5282 = vadd.f32 0.0, %v5281
        %v5283 = vpop.f32.mrb[0].mxu0
        %5284 = vmatprep.mubr.bf16.mxu0 0
        %5285 = vmatmul.mubr.bf16.gmra.mrb[0].mxu0 %v5120
        %v5286 = vpop.f32.mrb[0].mxu0
        %v5287 = vadd.f32 0.0, %v5286
        %v5288 = vpop.f32.mrb[0].mxu0
        %v5289 = vpop.f32.mrb[0].mxu0
        %v5290 = vadd.f32 0.0, %v5289
        %v5291 = vpop.f32.mrb[0].mxu0
        %5292 = vmatprep.mubr.bf16.mxu0 0
        %5293 = vmatmul.mubr.bf16.gmra.mrb[0].mxu0 %v5123
        %v5294 = vpop.f32.mrb[0].mxu0
        %v5295 = vadd.f32 0.0, %v5294
        %v5296 = vpop.f32.mrb[0].mxu0
        %v5297 = vpop.f32.mrb[0].mxu0
        %v5298 = vadd.f32 0.0, %v5297
        %v5299 = vpop.f32.mrb[0].mxu0
        %5300 = vmatprep.mubr.bf16.mxu0 0
        %5301 = vmatmul.mubr.bf16.gmra.mrb[0].mxu0 %v5126
        %v5302 = vpop.f32.mrb[0].mxu0
        %v5303 = vadd.f32 0.0, %v5302
        %v5304 = vpop.f32.mrb[0].mxu0
        %v5305 = vpop.f32.mrb[0].mxu0
        %v5306 = vadd.f32 0.0, %v5305
        %v5307 = vpop.f32.mrb[0].mxu0
        %5308 = vmatprep.mubr.bf16.mxu0 0
        %5309 = vmatmul.mubr.bf16.gmra.mrb[0].mxu0 %v5129
        %v5310 = vpop.f32.mrb[0].mxu0
        %v5311 = vadd.f32 0.0, %v5310
        %v5312 = vpop.f32.mrb[0].mxu0
        %v5313 = vpop.f32.mrb[0].mxu0
        %v5314 = vadd.f32 0.0, %v5313
        %v5315 = vpop.f32.mrb[0].mxu0
        %5316 = vmatprep.mubr.bf16.mxu0 0
        %5317 = vmatmul.mubr.bf16.gmra.mrb[0].mxu0 %v5132
        %v5318 = vpop.f32.mrb[0].mxu0
        %v5319 = vadd.f32 0.0, %v5318
        %v5320 = vpop.f32.mrb[0].mxu0
        %v5321 = vpop.f32.mrb[0].mxu0
        %v5322 = vadd.f32 0.0, %v5321
        %v5323 = vpop.f32.mrb[0].mxu0
        %5324 = vmatprep.mubr.bf16.mxu0 0
        %5325 = vmatmul.mubr.bf16.gmra.mrb[0].mxu0 %v5135
        %v5326 = vpop.f32.mrb[0].mxu0
        %v5327 = vadd.f32 0.0, %v5326
        %v5328 = vpop.f32.mrb[0].mxu0
        %v5329 = vpop.f32.mrb[0].mxu0
        %v5330 = vadd.f32 0.0, %v5329
        %v5331 = vpop.f32.mrb[0].mxu0
        %5332 = vdwg.mxu0
        %v5333 = vadd.f32 %v4482, %v5175
        %v5334 = vadd.f32 %v4483, %v5178
        %v5335 = vadd.f32 %v4484, %v5183
        %v5336 = vadd.f32 %v4485, %v5186
        %v5337 = vadd.f32 %v4486, %v5191
        %v5338 = vadd.f32 %v4487, %v5194
        %v5339 = vadd.f32 %v4488, %v5199
        %v5340 = vadd.f32 %v4489, %v5202
        %v5341 = vadd.f32 %v4490, %v5207
        %v5342 = vadd.f32 %v4491, %v5210
        %v5343 = vadd.f32 %v4492, %v5215
        %v5344 = vadd.f32 %v4493, %v5218
        %v5345 = vadd.f32 %v4494, %v5223
        %v5346 = vadd.f32 %v4495, %v5226
        %v5347 = vadd.f32 %v4496, %v5231
        %v5348 = vadd.f32 %v4497, %v5234
        %v5349 = vadd.f32 %v4498, %v5239
        %v5350 = vadd.f32 %v4499, %v5242
        %v5351 = vadd.f32 %v4500, %v5247
        %v5352 = vadd.f32 %v4501, %v5250
        %v5353 = vadd.f32 %v4502, %v5255
        %v5354 = vadd.f32 %v4503, %v5258
        %v5355 = vadd.f32 %v4504, %v5263
        %v5356 = vadd.f32 %v4505, %v5266
        %v5357 = vadd.f32 %v4506, %v5271
        %v5358 = vadd.f32 %v4507, %v5274
        %v5359 = vadd.f32 %v4508, %v5279
        %v5360 = vadd.f32 %v4509, %v5282
        %v5361 = vadd.f32 %v4510, %v5287
        %v5362 = vadd.f32 %v4511, %v5290
        %v5363 = vadd.f32 %v4512, %v5295
        %v5364 = vadd.f32 %v4513, %v5298
        %v5365 = vadd.f32 %v4514, %v5303
        %v5366 = vadd.f32 %v4515, %v5306
        %v5367 = vadd.f32 %v4516, %v5311
        %v5368 = vadd.f32 %v4517, %v5314
        %v5369 = vadd.f32 %v4518, %v5319
        %v5370 = vadd.f32 %v4519, %v5322
        %v5371 = vadd.f32 %v4520, %v5327
        %v5372 = vadd.f32 %v4521, %v5330
        %v5373 = vld [vmem:[%s4084] sm:$0xe]
        %v5374 = vld [vmem:[%s4084 + $0x14] sm:$0xe]
        %v5375 = vld [vmem:[%s4084 + $0x28] sm:$0xe]
        %v5376 = vld [vmem:[%s4084 + $0x3c] sm:$0xe]
        %v5377 = vld [vmem:[%s4084 + $0x50] sm:$0xe]
        %v5378 = vld [vmem:[%s4084 + $0x64] sm:$0xe]
        %v5379 = vld [vmem:[%s4084 + $0x78] sm:$0xe]
        %v5380 = vld [vmem:[%s4084 + $0x8c] sm:$0xe]
        %v5381 = vld [vmem:[%s4084 + $0xa0] sm:$0xe]
        %v5382 = vld [vmem:[%s4084 + $0xb4] sm:$0xe]
        %v5433 = vrot.slane %v5373, 5
        %v5434 = vrot.slane %v5433, 4
        %v5435 = vrot.slane %v4523, 5
        %v5436 = vsel %vm1756, %v5434, %v5435
        %v5437 = vrot.slane %v5435, 4
        %v5438 = vrot.slane %v4524, 5
        %v5439 = vsel %vm1756, %v5437, %v5438
        %v5440 = vrot.slane %v5438, 4
        %v5441 = vrot.slane %v4525, 5
        %v5442 = vsel %vm1756, %v5440, %v5441
        %v5443 = vrot.slane %v5441, 4
        %v5444 = vrot.slane %v4526, 5
        %v5445 = vsel %vm1756, %v5443, %v5444
        %v5446 = vrot.slane %v5374, 5
        %v5447 = vrot.slane %v5446, 4
        %v5448 = vrot.slane %v4528, 5
        %v5449 = vsel %vm1756, %v5447, %v5448
        %v5450 = vrot.slane %v5448, 4
        %v5451 = vrot.slane %v4529, 5
        %v5452 = vsel %vm1756, %v5450, %v5451
        %v5453 = vrot.slane %v5451, 4
        %v5454 = vrot.slane %v4530, 5
        %v5455 = vsel %vm1756, %v5453, %v5454
        %v5456 = vrot.slane %v5454, 4
        %v5457 = vrot.slane %v4531, 5
        %v5458 = vsel %vm1756, %v5456, %v5457
        %v5459 = vrot.slane %v5375, 5
        %v5460 = vrot.slane %v5459, 4
        %v5461 = vrot.slane %v4533, 5
        %v5462 = vsel %vm1756, %v5460, %v5461
        %v5463 = vrot.slane %v5461, 4
        %v5464 = vrot.slane %v4534, 5
        %v5465 = vsel %vm1756, %v5463, %v5464
        %v5466 = vrot.slane %v5464, 4
        %v5467 = vrot.slane %v4535, 5
        %v5468 = vsel %vm1756, %v5466, %v5467
        %v5469 = vrot.slane %v5467, 4
        %v5470 = vrot.slane %v4536, 5
        %v5471 = vsel %vm1756, %v5469, %v5470
        %v5472 = vrot.slane %v5376, 5
        %v5473 = vrot.slane %v5472, 4
        %v5474 = vrot.slane %v4538, 5
        %v5475 = vsel %vm1756, %v5473, %v5474
        %v5476 = vrot.slane %v5474, 4
        %v5477 = vrot.slane %v4539, 5
        %v5478 = vsel %vm1756, %v5476, %v5477
        %v5479 = vrot.slane %v5477, 4
        %v5480 = vrot.slane %v4540, 5
        %v5481 = vsel %vm1756, %v5479, %v5480
        %v5482 = vrot.slane %v5480, 4
        %v5483 = vrot.slane %v4541, 5
        %v5484 = vsel %vm1756, %v5482, %v5483
        %v5485 = vrot.slane %v5377, 5
        %v5486 = vrot.slane %v5485, 4
        %v5487 = vrot.slane %v4543, 5
        %v5488 = vsel %vm1756, %v5486, %v5487
        %v5489 = vrot.slane %v5487, 4
        %v5490 = vrot.slane %v4544, 5
        %v5491 = vsel %vm1756, %v5489, %v5490
        %v5492 = vrot.slane %v5490, 4
        %v5493 = vrot.slane %v4545, 5
        %v5494 = vsel %vm1756, %v5492, %v5493
        %v5495 = vrot.slane %v5493, 4
        %v5496 = vrot.slane %v4546, 5
        %v5497 = vsel %vm1756, %v5495, %v5496
        %v5498 = vrot.slane %v5378, 5
        %v5499 = vrot.slane %v5498, 4
        %v5500 = vrot.slane %v4548, 5
        %v5501 = vsel %vm1756, %v5499, %v5500
        %v5502 = vrot.slane %v5500, 4
        %v5503 = vrot.slane %v4549, 5
        %v5504 = vsel %vm1756, %v5502, %v5503
        %v5505 = vrot.slane %v5503, 4
        %v5506 = vrot.slane %v4550, 5
        %v5507 = vsel %vm1756, %v5505, %v5506
        %v5508 = vrot.slane %v5506, 4
        %v5509 = vrot.slane %v4551, 5
        %v5510 = vsel %vm1756, %v5508, %v5509
        %v5511 = vrot.slane %v5379, 5
        %v5512 = vrot.slane %v5511, 4
        %v5513 = vrot.slane %v4553, 5
        %v5514 = vsel %vm1756, %v5512, %v5513
        %v5515 = vrot.slane %v5513, 4
        %v5516 = vrot.slane %v4554, 5
        %v5517 = vsel %vm1756, %v5515, %v5516
        %v5518 = vrot.slane %v5516, 4
        %v5519 = vrot.slane %v4555, 5
        %v5520 = vsel %vm1756, %v5518, %v5519
        %v5521 = vrot.slane %v5519, 4
        %v5522 = vrot.slane %v4556, 5
        %v5523 = vsel %vm1756, %v5521, %v5522
        %v5524 = vrot.slane %v5380, 5
        %v5525 = vrot.slane %v5524, 4
        %v5526 = vrot.slane %v4558, 5
        %v5527 = vsel %vm1756, %v5525, %v5526
        %v5528 = vrot.slane %v5526, 4
        %v5529 = vrot.slane %v4559, 5
        %v5530 = vsel %vm1756, %v5528, %v5529
        %v5531 = vrot.slane %v5529, 4
        %v5532 = vrot.slane %v4560, 5
        %v5533 = vsel %vm1756, %v5531, %v5532
        %v5534 = vrot.slane %v5532, 4
        %v5535 = vrot.slane %v4561, 5
        %v5536 = vsel %vm1756, %v5534, %v5535
        %v5537 = vrot.slane %v5381, 5
        %v5538 = vrot.slane %v5537, 4
        %v5539 = vrot.slane %v4563, 5
        %v5540 = vsel %vm1756, %v5538, %v5539
        %v5541 = vrot.slane %v5539, 4
        %v5542 = vrot.slane %v4564, 5
        %v5543 = vsel %vm1756, %v5541, %v5542
        %v5544 = vrot.slane %v5542, 4
        %v5545 = vrot.slane %v4565, 5
        %v5546 = vsel %vm1756, %v5544, %v5545
        %v5547 = vrot.slane %v5545, 4
        %v5548 = vrot.slane %v4566, 5
        %v5549 = vsel %vm1756, %v5547, %v5548
        %v5550 = vrot.slane %v5382, 5
        %v5551 = vrot.slane %v5550, 4
        %v5552 = vrot.slane %v4568, 5
        %v5553 = vsel %vm1756, %v5551, %v5552
        %v5554 = vrot.slane %v5552, 4
        %v5555 = vrot.slane %v4569, 5
        %v5556 = vsel %vm1756, %v5554, %v5555
        %v5557 = vrot.slane %v5555, 4
        %v5558 = vrot.slane %v4570, 5
        %v5559 = vsel %vm1756, %v5557, %v5558
        %v5560 = vrot.slane %v5558, 4
        %v5561 = vrot.slane %v4571, 5
        %v5562 = vsel %vm1756, %v5560, %v5561
        %v5563 = vld [vmem:[#allocation8 + $0x10] sm:$0x3]
        %v5564 = vunpack.c.l.b16 %v5436
        %v5565 = vunpack.c.l.b16 %v5439
        %v5566 = vunpack.c.l.b16 %v5442
        %v5567 = vunpack.c.l.b16 %v5445
        %v5568 = vunpack.c.l.b16 %v5449
        %v5569 = vunpack.c.l.b16 %v5452
        %v5570 = vunpack.c.l.b16 %v5455
        %v5571 = vunpack.c.l.b16 %v5458
        %v5572 = vunpack.c.l.b16 %v5462
        %v5573 = vunpack.c.l.b16 %v5465
        %v5574 = vunpack.c.l.b16 %v5468
        %v5575 = vunpack.c.l.b16 %v5471
        %v5576 = vunpack.c.l.b16 %v5475
        %v5577 = vunpack.c.l.b16 %v5478
        %v5578 = vunpack.c.l.b16 %v5481
        %v5579 = vunpack.c.l.b16 %v5484
        %v5580 = vunpack.c.l.b16 %v5488
        %v5581 = vunpack.c.l.b16 %v5491
        %v5582 = vunpack.c.l.b16 %v5494
        %v5583 = vunpack.c.l.b16 %v5497
        %v5584 = vunpack.c.l.b16 %v5501
        %v5585 = vunpack.c.l.b16 %v5504
        %v5586 = vunpack.c.l.b16 %v5507
        %v5587 = vunpack.c.l.b16 %v5510
        %v5588 = vunpack.c.l.b16 %v5514
        %v5589 = vunpack.c.l.b16 %v5517
        %v5590 = vunpack.c.l.b16 %v5520
        %v5591 = vunpack.c.l.b16 %v5523
        %v5592 = vunpack.c.l.b16 %v5527
        %v5593 = vunpack.c.l.b16 %v5530
        %v5594 = vunpack.c.l.b16 %v5533
        %v5595 = vunpack.c.l.b16 %v5536
        %v5596 = vunpack.c.l.b16 %v5540
        %v5597 = vunpack.c.l.b16 %v5543
        %v5598 = vunpack.c.l.b16 %v5546
        %v5599 = vunpack.c.l.b16 %v5549
        %v5600 = vunpack.c.l.b16 %v5553
        %v5601 = vunpack.c.l.b16 %v5556
        %v5602 = vunpack.c.l.b16 %v5559
        %v5603 = vunpack.c.l.b16 %v5562
        %v5604 = vpack.c.b16 %v5565, %v5564
        %v5605 = vpack.c.b16 %v5567, %v5566
        %v5606 = vpack.c.b16 %v5569, %v5568
        %v5607 = vpack.c.b16 %v5571, %v5570
        %v5608 = vpack.c.b16 %v5573, %v5572
        %v5609 = vpack.c.b16 %v5575, %v5574
        %v5610 = vpack.c.b16 %v5577, %v5576
        %v5611 = vpack.c.b16 %v5579, %v5578
        %v5612 = vpack.c.b16 %v5581, %v5580
        %v5613 = vpack.c.b16 %v5583, %v5582
        %v5614 = vpack.c.b16 %v5585, %v5584
        %v5615 = vpack.c.b16 %v5587, %v5586
        %v5616 = vpack.c.b16 %v5589, %v5588
        %v5617 = vpack.c.b16 %v5591, %v5590
        %v5618 = vpack.c.b16 %v5593, %v5592
        %v5619 = vpack.c.b16 %v5595, %v5594
        %v5620 = vpack.c.b16 %v5597, %v5596
        %v5621 = vpack.c.b16 %v5599, %v5598
        %v5622 = vpack.c.b16 %v5601, %v5600
        %v5623 = vpack.c.b16 %v5603, %v5602
        %v5625 = vsel %vm1110, %v5604, 0
        %v5628 = vsel %vm1110, %v5605, 0
        %v5631 = vsel %vm1110, %v5606, 0
        %v5634 = vsel %vm1110, %v5607, 0
        %v5637 = vsel %vm1110, %v5608, 0
        %v5640 = vsel %vm1110, %v5609, 0
        %v5643 = vsel %vm1110, %v5610, 0
        %v5646 = vsel %vm1110, %v5611, 0
        %v5649 = vsel %vm1110, %v5612, 0
        %v5652 = vsel %vm1110, %v5613, 0
        %v5655 = vsel %vm1110, %v5614, 0
        %v5658 = vsel %vm1110, %v5615, 0
        %v5661 = vsel %vm1110, %v5616, 0
        %v5664 = vsel %vm1110, %v5617, 0
        %v5667 = vsel %vm1110, %v5618, 0
        %v5670 = vsel %vm1110, %v5619, 0
        %v5673 = vsel %vm1110, %v5620, 0
        %v5676 = vsel %vm1110, %v5621, 0
        %v5679 = vsel %vm1110, %v5622, 0
        %v5682 = vsel %vm1110, %v5623, 0
        %v5685 = vsel %vm1171, %v5563, 0
        %5687 = vmatprep.subr.bf16.mxu0 0
        %5688 = vmatpush1.bf16.msra.mxu0 %v5685
        %5689 = vmatprep.subr.bf16.mxu0 0
        %5690 = vmatpush1.bf16.msra.mxu0 0
        %5691 = vmatprep.subr.bf16.mxu0 0
        %5692 = vmatpush1.bf16.msra.mxu0 0
        %5693 = vmatprep.subr.bf16.mxu0 0
        %5694 = vmatpush1.bf16.msra.mxu0 0
        %5695 = vmatprep.subr.bf16.mxu0 0
        %5696 = vmatpush1.bf16.msra.mxu0 0
        %5697 = vmatprep.subr.bf16.mxu0 0
        %5698 = vmatpush1.bf16.msra.mxu0 0
        %5699 = vmatprep.subr.bf16.mxu0 0
        %5700 = vmatpush1.bf16.msra.mxu0 0
        %5701 = vmatprep.subr.bf16.mxu0 0
        %5702 = vmatpush1.bf16.msra.mxu0 0
        %5703 = vmatprep.subr.bf16.mxu0 0
        %5704 = vmatpush1.bf16.msra.mxu0 0
        %5705 = vmatprep.subr.bf16.mxu0 0
        %5706 = vmatpush1.bf16.msra.mxu0 0
        %5707 = vmatprep.subr.bf16.mxu0 0
        %5708 = vmatpush1.bf16.msra.mxu0 0
        %5709 = vmatprep.subr.bf16.mxu0 0
        %5710 = vmatpush1.bf16.msra.mxu0 0
        %5711 = vmatprep.subr.bf16.mxu0 0
        %5712 = vmatpush1.bf16.msra.mxu0 0
        %5713 = vmatprep.subr.bf16.mxu0 0
        %5714 = vmatpush1.bf16.msra.mxu0 0
        %5715 = vmatprep.subr.bf16.mxu0 0
        %5716 = vmatpush1.bf16.msra.mxu0 0
        %5717 = vmatprep.subr.bf16.mxu0 0
        %5718 = vmatpush1.bf16.msra.mxu0 0
        %5719 = vmatprep.mubr.bf16.mxu0 0
        %5720 = vmatmul.mubr.bf16.gmra.mrb[0].mxu0 %v5625
        %v5721 = vpop.f32.mrb[0].mxu0
        %v5722 = vadd.f32 0.0, %v5721
        %v5723 = vpop.f32.mrb[0].mxu0
        %v5724 = vpop.f32.mrb[0].mxu0
        %v5725 = vadd.f32 0.0, %v5724
        %v5726 = vpop.f32.mrb[0].mxu0
        %5727 = vmatprep.mubr.bf16.mxu0 0
        %5728 = vmatmul.mubr.bf16.gmra.mrb[0].mxu0 %v5628
        %v5729 = vpop.f32.mrb[0].mxu0
        %v5730 = vadd.f32 0.0, %v5729
        %v5731 = vpop.f32.mrb[0].mxu0
        %v5732 = vpop.f32.mrb[0].mxu0
        %v5733 = vadd.f32 0.0, %v5732
        %v5734 = vpop.f32.mrb[0].mxu0
        %5735 = vmatprep.mubr.bf16.mxu0 0
        %5736 = vmatmul.mubr.bf16.gmra.mrb[0].mxu0 %v5631
        %v5737 = vpop.f32.mrb[0].mxu0
        %v5738 = vadd.f32 0.0, %v5737
        %v5739 = vpop.f32.mrb[0].mxu0
        %v5740 = vpop.f32.mrb[0].mxu0
        %v5741 = vadd.f32 0.0, %v5740
        %v5742 = vpop.f32.mrb[0].mxu0
        %5743 = vmatprep.mubr.bf16.mxu0 0
        %5744 = vmatmul.mubr.bf16.gmra.mrb[0].mxu0 %v5634
        %v5745 = vpop.f32.mrb[0].mxu0
        %v5746 = vadd.f32 0.0, %v5745
        %v5747 = vpop.f32.mrb[0].mxu0
        %v5748 = vpop.f32.mrb[0].mxu0
        %v5749 = vadd.f32 0.0, %v5748
        %v5750 = vpop.f32.mrb[0].mxu0
        %5751 = vmatprep.mubr.bf16.mxu0 0
        %5752 = vmatmul.mubr.bf16.gmra.mrb[0].mxu0 %v5637
        %v5753 = vpop.f32.mrb[0].mxu0
        %v5754 = vadd.f32 0.0, %v5753
        %v5755 = vpop.f32.mrb[0].mxu0
        %v5756 = vpop.f32.mrb[0].mxu0
        %v5757 = vadd.f32 0.0, %v5756
        %v5758 = vpop.f32.mrb[0].mxu0
        %5759 = vmatprep.mubr.bf16.mxu0 0
        %5760 = vmatmul.mubr.bf16.gmra.mrb[0].mxu0 %v5640
        %v5761 = vpop.f32.mrb[0].mxu0
        %v5762 = vadd.f32 0.0, %v5761
        %v5763 = vpop.f32.mrb[0].mxu0
        %v5764 = vpop.f32.mrb[0].mxu0
        %v5765 = vadd.f32 0.0, %v5764
        %v5766 = vpop.f32.mrb[0].mxu0
        %5767 = vmatprep.mubr.bf16.mxu0 0
        %5768 = vmatmul.mubr.bf16.gmra.mrb[0].mxu0 %v5643
        %v5769 = vpop.f32.mrb[0].mxu0
        %v5770 = vadd.f32 0.0, %v5769
        %v5771 = vpop.f32.mrb[0].mxu0
        %v5772 = vpop.f32.mrb[0].mxu0
        %v5773 = vadd.f32 0.0, %v5772
        %v5774 = vpop.f32.mrb[0].mxu0
        %5775 = vmatprep.mubr.bf16.mxu0 0
        %5776 = vmatmul.mubr.bf16.gmra.mrb[0].mxu0 %v5646
        %v5777 = vpop.f32.mrb[0].mxu0
        %v5778 = vadd.f32 0.0, %v5777
        %v5779 = vpop.f32.mrb[0].mxu0
        %v5780 = vpop.f32.mrb[0].mxu0
        %v5781 = vadd.f32 0.0, %v5780
        %v5782 = vpop.f32.mrb[0].mxu0
        %5783 = vmatprep.mubr.bf16.mxu0 0
        %5784 = vmatmul.mubr.bf16.gmra.mrb[0].mxu0 %v5649
        %v5785 = vpop.f32.mrb[0].mxu0
        %v5786 = vadd.f32 0.0, %v5785
        %v5787 = vpop.f32.mrb[0].mxu0
        %v5788 = vpop.f32.mrb[0].mxu0
        %v5789 = vadd.f32 0.0, %v5788
        %v5790 = vpop.f32.mrb[0].mxu0
        %5791 = vmatprep.mubr.bf16.mxu0 0
        %5792 = vmatmul.mubr.bf16.gmra.mrb[0].mxu0 %v5652
        %v5793 = vpop.f32.mrb[0].mxu0
        %v5794 = vadd.f32 0.0, %v5793
        %v5795 = vpop.f32.mrb[0].mxu0
        %v5796 = vpop.f32.mrb[0].mxu0
        %v5797 = vadd.f32 0.0, %v5796
        %v5798 = vpop.f32.mrb[0].mxu0
        %5799 = vmatprep.mubr.bf16.mxu0 0
        %5800 = vmatmul.mubr.bf16.gmra.mrb[0].mxu0 %v5655
        %v5801 = vpop.f32.mrb[0].mxu0
        %v5802 = vadd.f32 0.0, %v5801
        %v5803 = vpop.f32.mrb[0].mxu0
        %v5804 = vpop.f32.mrb[0].mxu0
        %v5805 = vadd.f32 0.0, %v5804
        %v5806 = vpop.f32.mrb[0].mxu0
        %5807 = vmatprep.mubr.bf16.mxu0 0
        %5808 = vmatmul.mubr.bf16.gmra.mrb[0].mxu0 %v5658
        %v5809 = vpop.f32.mrb[0].mxu0
        %v5810 = vadd.f32 0.0, %v5809
        %v5811 = vpop.f32.mrb[0].mxu0
        %v5812 = vpop.f32.mrb[0].mxu0
        %v5813 = vadd.f32 0.0, %v5812
        %v5814 = vpop.f32.mrb[0].mxu0
        %5815 = vmatprep.mubr.bf16.mxu0 0
        %5816 = vmatmul.mubr.bf16.gmra.mrb[0].mxu0 %v5661
        %v5817 = vpop.f32.mrb[0].mxu0
        %v5818 = vadd.f32 0.0, %v5817
        %v5819 = vpop.f32.mrb[0].mxu0
        %v5820 = vpop.f32.mrb[0].mxu0
        %v5821 = vadd.f32 0.0, %v5820
        %v5822 = vpop.f32.mrb[0].mxu0
        %5823 = vmatprep.mubr.bf16.mxu0 0
        %5824 = vmatmul.mubr.bf16.gmra.mrb[0].mxu0 %v5664
        %v5825 = vpop.f32.mrb[0].mxu0
        %v5826 = vadd.f32 0.0, %v5825
        %v5827 = vpop.f32.mrb[0].mxu0
        %v5828 = vpop.f32.mrb[0].mxu0
        %v5829 = vadd.f32 0.0, %v5828
        %v5830 = vpop.f32.mrb[0].mxu0
        %5831 = vmatprep.mubr.bf16.mxu0 0
        %5832 = vmatmul.mubr.bf16.gmra.mrb[0].mxu0 %v5667
        %v5833 = vpop.f32.mrb[0].mxu0
        %v5834 = vadd.f32 0.0, %v5833
        %v5835 = vpop.f32.mrb[0].mxu0
        %v5836 = vpop.f32.mrb[0].mxu0
        %v5837 = vadd.f32 0.0, %v5836
        %v5838 = vpop.f32.mrb[0].mxu0
        %5839 = vmatprep.mubr.bf16.mxu0 0
        %5840 = vmatmul.mubr.bf16.gmra.mrb[0].mxu0 %v5670
        %v5841 = vpop.f32.mrb[0].mxu0
        %v5842 = vadd.f32 0.0, %v5841
        %v5843 = vpop.f32.mrb[0].mxu0
        %v5844 = vpop.f32.mrb[0].mxu0
        %v5845 = vadd.f32 0.0, %v5844
        %v5846 = vpop.f32.mrb[0].mxu0
        %5847 = vmatprep.mubr.bf16.mxu0 0
        %5848 = vmatmul.mubr.bf16.gmra.mrb[0].mxu0 %v5673
        %v5849 = vpop.f32.mrb[0].mxu0
        %v5850 = vadd.f32 0.0, %v5849
        %v5851 = vpop.f32.mrb[0].mxu0
        %v5852 = vpop.f32.mrb[0].mxu0
        %v5853 = vadd.f32 0.0, %v5852
        %v5854 = vpop.f32.mrb[0].mxu0
        %5855 = vmatprep.mubr.bf16.mxu0 0
        %5856 = vmatmul.mubr.bf16.gmra.mrb[0].mxu0 %v5676
        %v5857 = vpop.f32.mrb[0].mxu0
        %v5858 = vadd.f32 0.0, %v5857
        %v5859 = vpop.f32.mrb[0].mxu0
        %v5860 = vpop.f32.mrb[0].mxu0
        %v5861 = vadd.f32 0.0, %v5860
        %v5862 = vpop.f32.mrb[0].mxu0
        %5863 = vmatprep.mubr.bf16.mxu0 0
        %5864 = vmatmul.mubr.bf16.gmra.mrb[0].mxu0 %v5679
        %v5865 = vpop.f32.mrb[0].mxu0
        %v5866 = vadd.f32 0.0, %v5865
        %v5867 = vpop.f32.mrb[0].mxu0
        %v5868 = vpop.f32.mrb[0].mxu0
        %v5869 = vadd.f32 0.0, %v5868
        %v5870 = vpop.f32.mrb[0].mxu0
        %5871 = vmatprep.mubr.bf16.mxu0 0
        %5872 = vmatmul.mubr.bf16.gmra.mrb[0].mxu0 %v5682
        %v5873 = vpop.f32.mrb[0].mxu0
        %v5874 = vadd.f32 0.0, %v5873
        %v5875 = vpop.f32.mrb[0].mxu0
        %v5876 = vpop.f32.mrb[0].mxu0
        %v5877 = vadd.f32 0.0, %v5876
        %v5878 = vpop.f32.mrb[0].mxu0
        %5879 = vdwg.mxu0
        %v5880 = vadd.f32 %v5333, %v5722
        %v5881 = vadd.f32 %v5334, %v5725
        %v5882 = vadd.f32 %v5335, %v5730
        %v5883 = vadd.f32 %v5336, %v5733
        %v5884 = vadd.f32 %v5337, %v5738
        %v5885 = vadd.f32 %v5338, %v5741
        %v5886 = vadd.f32 %v5339, %v5746
        %v5887 = vadd.f32 %v5340, %v5749
        %v5888 = vadd.f32 %v5341, %v5754
        %v5889 = vadd.f32 %v5342, %v5757
        %v5890 = vadd.f32 %v5343, %v5762
        %v5891 = vadd.f32 %v5344, %v5765
        %v5892 = vadd.f32 %v5345, %v5770
        %v5893 = vadd.f32 %v5346, %v5773
        %v5894 = vadd.f32 %v5347, %v5778
        %v5895 = vadd.f32 %v5348, %v5781
        %v5896 = vadd.f32 %v5349, %v5786
        %v5897 = vadd.f32 %v5350, %v5789
        %v5898 = vadd.f32 %v5351, %v5794
        %v5899 = vadd.f32 %v5352, %v5797
        %v5900 = vadd.f32 %v5353, %v5802
        %v5901 = vadd.f32 %v5354, %v5805
        %v5902 = vadd.f32 %v5355, %v5810
        %v5903 = vadd.f32 %v5356, %v5813
        %v5904 = vadd.f32 %v5357, %v5818
        %v5905 = vadd.f32 %v5358, %v5821
        %v5906 = vadd.f32 %v5359, %v5826
        %v5907 = vadd.f32 %v5360, %v5829
        %v5908 = vadd.f32 %v5361, %v5834
        %v5909 = vadd.f32 %v5362, %v5837
        %v5910 = vadd.f32 %v5363, %v5842
        %v5911 = vadd.f32 %v5364, %v5845
        %v5912 = vadd.f32 %v5365, %v5850
        %v5913 = vadd.f32 %v5366, %v5853
        %v5914 = vadd.f32 %v5367, %v5858
        %v5915 = vadd.f32 %v5368, %v5861
        %v5916 = vadd.f32 %v5369, %v5866
        %v5917 = vadd.f32 %v5370, %v5869
        %v5918 = vadd.f32 %v5371, %v5874
        %v5919 = vadd.f32 %v5372, %v5877
        %v5921 = vlaneseq
        %v5922 = vshrl.u32 %v5921, 7
        %v5923 = vsub.s32 0, %v5922
        %v5924 = vrot.slane %v547, %v5923
        %v5926 = vadd.f32 %v5880, %v5924
        %v5927 = vadd.f32 %v5881, %v5924
        %v5928 = vadd.f32 %v5882, %v5924
        %v5929 = vadd.f32 %v5883, %v5924
        %v5930 = vadd.f32 %v5884, %v5924
        %v5931 = vadd.f32 %v5885, %v5924
        %v5932 = vadd.f32 %v5886, %v5924
        %v5933 = vadd.f32 %v5887, %v5924
        %v5934 = vadd.f32 %v5888, %v5924
        %v5935 = vadd.f32 %v5889, %v5924
        %v5936 = vadd.f32 %v5890, %v5924
        %v5937 = vadd.f32 %v5891, %v5924
        %v5938 = vadd.f32 %v5892, %v5924
        %v5939 = vadd.f32 %v5893, %v5924
        %v5940 = vadd.f32 %v5894, %v5924
        %v5941 = vadd.f32 %v5895, %v5924
        %v5942 = vadd.f32 %v5896, %v5924
        %v5943 = vadd.f32 %v5897, %v5924
        %v5944 = vadd.f32 %v5898, %v5924
        %v5945 = vadd.f32 %v5899, %v5924
        %v5946 = vadd.f32 %v5900, %v5924
        %v5947 = vadd.f32 %v5901, %v5924
        %v5948 = vadd.f32 %v5902, %v5924
        %v5949 = vadd.f32 %v5903, %v5924
        %v5950 = vadd.f32 %v5904, %v5924
        %v5951 = vadd.f32 %v5905, %v5924
        %v5952 = vadd.f32 %v5906, %v5924
        %v5953 = vadd.f32 %v5907, %v5924
        %v5954 = vadd.f32 %v5908, %v5924
        %v5955 = vadd.f32 %v5909, %v5924
        %v5956 = vadd.f32 %v5910, %v5924
        %v5957 = vadd.f32 %v5911, %v5924
        %v5958 = vadd.f32 %v5912, %v5924
        %v5959 = vadd.f32 %v5913, %v5924
        %v5960 = vadd.f32 %v5914, %v5924
        %v5961 = vadd.f32 %v5915, %v5924
        %v5962 = vadd.f32 %v5916, %v5924
        %v5963 = vadd.f32 %v5917, %v5924
        %v5964 = vadd.f32 %v5918, %v5924
        %v5965 = vadd.f32 %v5919, %v5924
        %v5967 = vlaneseq
        %v5968 = vshrl.u32 %v5967, 7
        %v5969 = vsub.s32 0, %v5968
        %v5970 = vrot.slane %v548, %v5969
        %v5972 = vmul.f32 %v5926, %v5970
        %v5973 = vmul.f32 %v5927, %v5970
        %v5974 = vmul.f32 %v5928, %v5970
        %v5975 = vmul.f32 %v5929, %v5970
        %v5976 = vmul.f32 %v5930, %v5970
        %v5977 = vmul.f32 %v5931, %v5970
        %v5978 = vmul.f32 %v5932, %v5970
        %v5979 = vmul.f32 %v5933, %v5970
        %v5980 = vmul.f32 %v5934, %v5970
        %v5981 = vmul.f32 %v5935, %v5970
        %v5982 = vmul.f32 %v5936, %v5970
        %v5983 = vmul.f32 %v5937, %v5970
        %v5984 = vmul.f32 %v5938, %v5970
        %v5985 = vmul.f32 %v5939, %v5970
        %v5986 = vmul.f32 %v5940, %v5970
        %v5987 = vmul.f32 %v5941, %v5970
        %v5988 = vmul.f32 %v5942, %v5970
        %v5989 = vmul.f32 %v5943, %v5970
        %v5990 = vmul.f32 %v5944, %v5970
        %v5991 = vmul.f32 %v5945, %v5970
        %v5992 = vmul.f32 %v5946, %v5970
        %v5993 = vmul.f32 %v5947, %v5970
        %v5994 = vmul.f32 %v5948, %v5970
        %v5995 = vmul.f32 %v5949, %v5970
        %v5996 = vmul.f32 %v5950, %v5970
        %v5997 = vmul.f32 %v5951, %v5970
        %v5998 = vmul.f32 %v5952, %v5970
        %v5999 = vmul.f32 %v5953, %v5970
        %v6000 = vmul.f32 %v5954, %v5970
        %v6001 = vmul.f32 %v5955, %v5970
        %v6002 = vmul.f32 %v5956, %v5970
        %v6003 = vmul.f32 %v5957, %v5970
        %v6004 = vmul.f32 %v5958, %v5970
        %v6005 = vmul.f32 %v5959, %v5970
        %v6006 = vmul.f32 %v5960, %v5970
        %v6007 = vmul.f32 %v5961, %v5970
        %v6008 = vmul.f32 %v5962, %v5970
        %v6009 = vmul.f32 %v5963, %v5970
        %v6010 = vmul.f32 %v5964, %v5970
        %v6011 = vmul.f32 %v5965, %v5970
        %v6013 = vlaneseq
        %v6014 = vshrl.u32 %v6013, 7
        %v6015 = vsub.s32 0, %v6014
        %v6016 = vrot.slane %v549, %v6015
        %v6018 = vadd.f32 %v5972, %v6016
        %v6019 = vadd.f32 %v5973, %v6016
        %v6020 = vadd.f32 %v5974, %v6016
        %v6021 = vadd.f32 %v5975, %v6016
        %v6022 = vadd.f32 %v5976, %v6016
        %v6023 = vadd.f32 %v5977, %v6016
        %v6024 = vadd.f32 %v5978, %v6016
        %v6025 = vadd.f32 %v5979, %v6016
        %v6026 = vadd.f32 %v5980, %v6016
        %v6027 = vadd.f32 %v5981, %v6016
        %v6028 = vadd.f32 %v5982, %v6016
        %v6029 = vadd.f32 %v5983, %v6016
        %v6030 = vadd.f32 %v5984, %v6016
        %v6031 = vadd.f32 %v5985, %v6016
        %v6032 = vadd.f32 %v5986, %v6016
        %v6033 = vadd.f32 %v5987, %v6016
        %v6034 = vadd.f32 %v5988, %v6016
        %v6035 = vadd.f32 %v5989, %v6016
        %v6036 = vadd.f32 %v5990, %v6016
        %v6037 = vadd.f32 %v5991, %v6016
        %v6038 = vadd.f32 %v5992, %v6016
        %v6039 = vadd.f32 %v5993, %v6016
        %v6040 = vadd.f32 %v5994, %v6016
        %v6041 = vadd.f32 %v5995, %v6016
        %v6042 = vadd.f32 %v5996, %v6016
        %v6043 = vadd.f32 %v5997, %v6016
        %v6044 = vadd.f32 %v5998, %v6016
        %v6045 = vadd.f32 %v5999, %v6016
        %v6046 = vadd.f32 %v6000, %v6016
        %v6047 = vadd.f32 %v6001, %v6016
        %v6048 = vadd.f32 %v6002, %v6016
        %v6049 = vadd.f32 %v6003, %v6016
        %v6050 = vadd.f32 %v6004, %v6016
        %v6051 = vadd.f32 %v6005, %v6016
        %v6052 = vadd.f32 %v6006, %v6016
        %v6053 = vadd.f32 %v6007, %v6016
        %v6054 = vadd.f32 %v6008, %v6016
        %v6055 = vadd.f32 %v6009, %v6016
        %v6056 = vadd.f32 %v6010, %v6016
        %v6057 = vadd.f32 %v6011, %v6016
        %v6058 = vmax.f32 %v6018, 0.0
        %v6059 = vmax.f32 %v6019, 0.0
        %v6060 = vmax.f32 %v6020, 0.0
        %v6061 = vmax.f32 %v6021, 0.0
        %v6062 = vmax.f32 %v6022, 0.0
        %v6063 = vmax.f32 %v6023, 0.0
        %v6064 = vmax.f32 %v6024, 0.0
        %v6065 = vmax.f32 %v6025, 0.0
        %v6066 = vmax.f32 %v6026, 0.0
        %v6067 = vmax.f32 %v6027, 0.0
        %v6068 = vmax.f32 %v6028, 0.0
        %v6069 = vmax.f32 %v6029, 0.0
        %v6070 = vmax.f32 %v6030, 0.0
        %v6071 = vmax.f32 %v6031, 0.0
        %v6072 = vmax.f32 %v6032, 0.0
        %v6073 = vmax.f32 %v6033, 0.0
        %v6074 = vmax.f32 %v6034, 0.0
        %v6075 = vmax.f32 %v6035, 0.0
        %v6076 = vmax.f32 %v6036, 0.0
        %v6077 = vmax.f32 %v6037, 0.0
        %v6078 = vmax.f32 %v6038, 0.0
        %v6079 = vmax.f32 %v6039, 0.0
        %v6080 = vmax.f32 %v6040, 0.0
        %v6081 = vmax.f32 %v6041, 0.0
        %v6082 = vmax.f32 %v6042, 0.0
        %v6083 = vmax.f32 %v6043, 0.0
        %v6084 = vmax.f32 %v6044, 0.0
        %v6085 = vmax.f32 %v6045, 0.0
        %v6086 = vmax.f32 %v6046, 0.0
        %v6087 = vmax.f32 %v6047, 0.0
        %v6088 = vmax.f32 %v6048, 0.0
        %v6089 = vmax.f32 %v6049, 0.0
        %v6090 = vmax.f32 %v6050, 0.0
        %v6091 = vmax.f32 %v6051, 0.0
        %v6092 = vmax.f32 %v6052, 0.0
        %v6093 = vmax.f32 %v6053, 0.0
        %v6094 = vmax.f32 %v6054, 0.0
        %v6095 = vmax.f32 %v6055, 0.0
        %v6096 = vmax.f32 %v6056, 0.0
        %v6097 = vmax.f32 %v6057, 0.0
        %vm6098 = vcmask 57344
        %vm6099 = vsmask.f32 256
        %vm6100 = vmand %vm6098, %vm6099
        %v6101 = vld [vmem:[#allocation2] sm:$0x1]
        %v6102 = vsel %vm6100, 0, %v6101
        %6103 = vst [vmem:[#allocation2] sm:$0x1] %v6102
        %v6104 = vld [vmem:[#allocation2 + $0x14] sm:$0x1]
        %v6105 = vsel %vm6100, 0, %v6104
        %6106 = vst [vmem:[#allocation2 + $0x14] sm:$0x1] %v6105
        %v6107 = vld [vmem:[#allocation2 + $0x28] sm:$0x1]
        %v6108 = vsel %vm6100, 0, %v6107
        %6109 = vst [vmem:[#allocation2 + $0x28] sm:$0x1] %v6108
        %v6110 = vld [vmem:[#allocation2 + $0x3c] sm:$0x1]
        %v6111 = vsel %vm6100, 0, %v6110
        %6112 = vst [vmem:[#allocation2 + $0x3c] sm:$0x1] %v6111
        %v6113 = vld [vmem:[#allocation2 + $0x50] sm:$0x1]
        %v6114 = vsel %vm6100, 0, %v6113
        %6115 = vst [vmem:[#allocation2 + $0x50] sm:$0x1] %v6114
        %v6116 = vld [vmem:[#allocation2 + $0x64] sm:$0x1]
        %v6117 = vsel %vm6100, 0, %v6116
        %6118 = vst [vmem:[#allocation2 + $0x64] sm:$0x1] %v6117
        %v6119 = vld [vmem:[#allocation2 + $0x78] sm:$0x1]
        %v6120 = vsel %vm6100, 0, %v6119
        %6121 = vst [vmem:[#allocation2 + $0x78] sm:$0x1] %v6120
        %v6122 = vld [vmem:[#allocation2 + $0x8c] sm:$0x1]
        %v6123 = vsel %vm6100, 0, %v6122
        %6124 = vst [vmem:[#allocation2 + $0x8c] sm:$0x1] %v6123
        %v6125 = vld [vmem:[#allocation2 + $0xa0] sm:$0x1]
        %v6126 = vsel %vm6100, 0, %v6125
        %6127 = vst [vmem:[#allocation2 + $0xa0] sm:$0x1] %v6126
        %v6128 = vld [vmem:[#allocation2 + $0xb4] sm:$0x1]
        %v6129 = vsel %vm6100, 0, %v6128
        %6130 = vst [vmem:[#allocation2 + $0xb4] sm:$0x1] %v6129
        %vm6131 = vsmask.f32 7938
        %vm6132 = vmand %vm6098, %vm6131
        %v6133 = vld [vmem:[#allocation2 + $0x10] sm:$0x1]
        %v6134 = vsel %vm6132, 0, %v6133
        %6135 = vst [vmem:[#allocation2 + $0x10] sm:$0x1] %v6134
        %v6136 = vld [vmem:[#allocation2 + $0x24] sm:$0x1]
        %v6137 = vsel %vm6132, 0, %v6136
        %6138 = vst [vmem:[#allocation2 + $0x24] sm:$0x1] %v6137
        %v6139 = vld [vmem:[#allocation2 + $0x38] sm:$0x1]
        %v6140 = vsel %vm6132, 0, %v6139
        %6141 = vst [vmem:[#allocation2 + $0x38] sm:$0x1] %v6140
        %v6142 = vld [vmem:[#allocation2 + $0x4c] sm:$0x1]
        %v6143 = vsel %vm6132, 0, %v6142
        %6144 = vst [vmem:[#allocation2 + $0x4c] sm:$0x1] %v6143
        %v6145 = vld [vmem:[#allocation2 + $0x60] sm:$0x1]
        %v6146 = vsel %vm6132, 0, %v6145
        %6147 = vst [vmem:[#allocation2 + $0x60] sm:$0x1] %v6146
        %v6148 = vld [vmem:[#allocation2 + $0x74] sm:$0x1]
        %v6149 = vsel %vm6132, 0, %v6148
        %6150 = vst [vmem:[#allocation2 + $0x74] sm:$0x1] %v6149
        %v6151 = vld [vmem:[#allocation2 + $0x88] sm:$0x1]
        %v6152 = vsel %vm6132, 0, %v6151
        %6153 = vst [vmem:[#allocation2 + $0x88] sm:$0x1] %v6152
        %v6154 = vld [vmem:[#allocation2 + $0x9c] sm:$0x1]
        %v6155 = vsel %vm6132, 0, %v6154
        %6156 = vst [vmem:[#allocation2 + $0x9c] sm:$0x1] %v6155
        %v6157 = vld [vmem:[#allocation2 + $0xb0] sm:$0x1]
        %v6158 = vsel %vm6132, 0, %v6157
        %6159 = vst [vmem:[#allocation2 + $0xb0] sm:$0x1] %v6158
        %v6160 = vld [vmem:[#allocation2 + $0xc4] sm:$0x1]
        %v6161 = vsel %vm6132, 0, %v6160
        %6162 = vst [vmem:[#allocation2 + $0xc4] sm:$0x1] %v6161
        %v6163 = vpack.c.bf16 %v6059, %v6058
        %v6164 = vpack.c.bf16 %v6061, %v6060
        %v6165 = vpack.c.bf16 %v6063, %v6062
        %v6166 = vpack.c.bf16 %v6065, %v6064
        %v6167 = vpack.c.bf16 %v6067, %v6066
        %v6168 = vpack.c.bf16 %v6069, %v6068
        %v6169 = vpack.c.bf16 %v6071, %v6070
        %v6170 = vpack.c.bf16 %v6073, %v6072
        %v6171 = vpack.c.bf16 %v6075, %v6074
        %v6172 = vpack.c.bf16 %v6077, %v6076
        %v6173 = vpack.c.bf16 %v6079, %v6078
        %v6174 = vpack.c.bf16 %v6081, %v6080
        %v6175 = vpack.c.bf16 %v6083, %v6082
        %v6176 = vpack.c.bf16 %v6085, %v6084
        %v6177 = vpack.c.bf16 %v6087, %v6086
        %v6178 = vpack.c.bf16 %v6089, %v6088
        %v6179 = vpack.c.bf16 %v6091, %v6090
        %v6180 = vpack.c.bf16 %v6093, %v6092
        %v6181 = vpack.c.bf16 %v6095, %v6094
        %v6182 = vpack.c.bf16 %v6097, %v6096
        %v6203 = vunpack.c.l.b16 %v6163
        %v6204 = vunpack.c.h.b16 %v6163
        %v6205 = vunpack.c.l.b16 %v6164
        %v6206 = vunpack.c.h.b16 %v6164
        %v6207 = vunpack.c.l.b16 %v6165
        %v6208 = vunpack.c.h.b16 %v6165
        %v6209 = vunpack.c.l.b16 %v6166
        %v6210 = vunpack.c.h.b16 %v6166
        %v6211 = vunpack.c.l.b16 %v6167
        %v6212 = vunpack.c.h.b16 %v6167
        %v6213 = vunpack.c.l.b16 %v6168
        %v6214 = vunpack.c.h.b16 %v6168
        %v6215 = vunpack.c.l.b16 %v6169
        %v6216 = vunpack.c.h.b16 %v6169
        %v6217 = vunpack.c.l.b16 %v6170
        %v6218 = vunpack.c.h.b16 %v6170
        %v6219 = vunpack.c.l.b16 %v6171
        %v6220 = vunpack.c.h.b16 %v6171
        %v6221 = vunpack.c.l.b16 %v6172
        %v6222 = vunpack.c.h.b16 %v6172
        %v6223 = vunpack.c.l.b16 %v6173
        %v6224 = vunpack.c.h.b16 %v6173
        %v6225 = vunpack.c.l.b16 %v6174
        %v6226 = vunpack.c.h.b16 %v6174
        %v6227 = vunpack.c.l.b16 %v6175
        %v6228 = vunpack.c.h.b16 %v6175
        %v6229 = vunpack.c.l.b16 %v6176
        %v6230 = vunpack.c.h.b16 %v6176
        %v6231 = vunpack.c.l.b16 %v6177
        %v6232 = vunpack.c.h.b16 %v6177
        %v6233 = vunpack.c.l.b16 %v6178
        %v6234 = vunpack.c.h.b16 %v6178
        %v6235 = vunpack.c.l.b16 %v6179
        %v6236 = vunpack.c.h.b16 %v6179
        %v6237 = vunpack.c.l.b16 %v6180
        %v6238 = vunpack.c.h.b16 %v6180
        %v6239 = vunpack.c.l.b16 %v6181
        %v6240 = vunpack.c.h.b16 %v6181
        %v6241 = vunpack.c.l.b16 %v6182
        %v6242 = vunpack.c.h.b16 %v6182
        %v6243 = vpack.c.b16 %v6203, %v6203
        %v6244 = vpack.c.b16 %v6204, %v6204
        %v6245 = vpack.c.b16 %v6205, %v6205
        %v6246 = vpack.c.b16 %v6206, %v6206
        %v6247 = vpack.c.b16 %v6207, %v6207
        %v6248 = vpack.c.b16 %v6208, %v6208
        %v6249 = vpack.c.b16 %v6209, %v6209
        %v6250 = vpack.c.b16 %v6210, %v6210
        %v6251 = vpack.c.b16 %v6211, %v6211
        %v6252 = vpack.c.b16 %v6212, %v6212
        %v6253 = vpack.c.b16 %v6213, %v6213
        %v6254 = vpack.c.b16 %v6214, %v6214
        %v6255 = vpack.c.b16 %v6215, %v6215
        %v6256 = vpack.c.b16 %v6216, %v6216
        %v6257 = vpack.c.b16 %v6217, %v6217
        %v6258 = vpack.c.b16 %v6218, %v6218
        %v6259 = vpack.c.b16 %v6219, %v6219
        %v6260 = vpack.c.b16 %v6220, %v6220
        %v6261 = vpack.c.b16 %v6221, %v6221
        %v6262 = vpack.c.b16 %v6222, %v6222
        %v6263 = vpack.c.b16 %v6223, %v6223
        %v6264 = vpack.c.b16 %v6224, %v6224
        %v6265 = vpack.c.b16 %v6225, %v6225
        %v6266 = vpack.c.b16 %v6226, %v6226
        %v6267 = vpack.c.b16 %v6227, %v6227
        %v6268 = vpack.c.b16 %v6228, %v6228
        %v6269 = vpack.c.b16 %v6229, %v6229
        %v6270 = vpack.c.b16 %v6230, %v6230
        %v6271 = vpack.c.b16 %v6231, %v6231
        %v6272 = vpack.c.b16 %v6232, %v6232
        %v6273 = vpack.c.b16 %v6233, %v6233
        %v6274 = vpack.c.b16 %v6234, %v6234
        %v6275 = vpack.c.b16 %v6235, %v6235
        %v6276 = vpack.c.b16 %v6236, %v6236
        %v6277 = vpack.c.b16 %v6237, %v6237
        %v6278 = vpack.c.b16 %v6238, %v6238
        %v6279 = vpack.c.b16 %v6239, %v6239
        %v6280 = vpack.c.b16 %v6240, %v6240
        %v6281 = vpack.c.b16 %v6241, %v6241
        %v6282 = vpack.c.b16 %v6242, %v6242
        %vm6283 = vsmask.f32 4368
        %vm6284 = vmor %vm6099, %vm6283
        %v6286 = vshrl.u32 %v6243, 16
        %v6288 = vrot.slane %v6286, 7
        %v6289 = vshll.u32 %v6243, 16
        %v6291 = vor.u32 %v6288, %v6289
        %v6292 = vrot.slane %v6288, 4
        %v6294 = vshrl.u32 %v6244, 16
        %v6296 = vrot.slane %v6294, 7
        %v6297 = vshll.u32 %v6244, 16
        %v6299 = vor.u32 %v6296, %v6297
        %v6300 = vsel %vm6284, %v6292, %v6299
        %v6301 = vrot.slane %v6296, 4
        %v6303 = vshrl.u32 %v6245, 16
        %v6305 = vrot.slane %v6303, 7
        %v6306 = vshll.u32 %v6245, 16
        %v6308 = vor.u32 %v6305, %v6306
        %v6309 = vsel %vm6284, %v6301, %v6308
        %v6310 = vrot.slane %v6305, 4
        %v6312 = vshrl.u32 %v6246, 16
        %v6314 = vrot.slane %v6312, 7
        %v6315 = vshll.u32 %v6246, 16
        %v6317 = vor.u32 %v6314, %v6315
        %v6318 = vsel %vm6284, %v6310, %v6317
        %v6319 = vrot.slane %v6314, 4
        %v6321 = vshrl.u32 %v6247, 16
        %v6323 = vrot.slane %v6321, 7
        %v6324 = vshll.u32 %v6247, 16
        %v6326 = vor.u32 %v6323, %v6324
        %v6327 = vrot.slane %v6323, 4
        %v6329 = vshrl.u32 %v6248, 16
        %v6331 = vrot.slane %v6329, 7
        %v6332 = vshll.u32 %v6248, 16
        %v6334 = vor.u32 %v6331, %v6332
        %v6335 = vsel %vm6284, %v6327, %v6334
        %v6336 = vrot.slane %v6331, 4
        %v6338 = vshrl.u32 %v6249, 16
        %v6340 = vrot.slane %v6338, 7
        %v6341 = vshll.u32 %v6249, 16
        %v6343 = vor.u32 %v6340, %v6341
        %v6344 = vsel %vm6284, %v6336, %v6343
        %v6345 = vrot.slane %v6340, 4
        %v6347 = vshrl.u32 %v6250, 16
        %v6349 = vrot.slane %v6347, 7
        %v6350 = vshll.u32 %v6250, 16
        %v6352 = vor.u32 %v6349, %v6350
        %v6353 = vsel %vm6284, %v6345, %v6352
        %v6354 = vrot.slane %v6349, 4
        %v6356 = vshrl.u32 %v6251, 16
        %v6358 = vrot.slane %v6356, 7
        %v6359 = vshll.u32 %v6251, 16
        %v6361 = vor.u32 %v6358, %v6359
        %v6362 = vrot.slane %v6358, 4
        %v6364 = vshrl.u32 %v6252, 16
        %v6366 = vrot.slane %v6364, 7
        %v6367 = vshll.u32 %v6252, 16
        %v6369 = vor.u32 %v6366, %v6367
        %v6370 = vsel %vm6284, %v6362, %v6369
        %v6371 = vrot.slane %v6366, 4
        %v6373 = vshrl.u32 %v6253, 16
        %v6375 = vrot.slane %v6373, 7
        %v6376 = vshll.u32 %v6253, 16
        %v6378 = vor.u32 %v6375, %v6376
        %v6379 = vsel %vm6284, %v6371, %v6378
        %v6380 = vrot.slane %v6375, 4
        %v6382 = vshrl.u32 %v6254, 16
        %v6384 = vrot.slane %v6382, 7
        %v6385 = vshll.u32 %v6254, 16
        %v6387 = vor.u32 %v6384, %v6385
        %v6388 = vsel %vm6284, %v6380, %v6387
        %v6389 = vrot.slane %v6384, 4
        %v6391 = vshrl.u32 %v6255, 16
        %v6393 = vrot.slane %v6391, 7
        %v6394 = vshll.u32 %v6255, 16
        %v6396 = vor.u32 %v6393, %v6394
        %v6397 = vrot.slane %v6393, 4
        %v6399 = vshrl.u32 %v6256, 16
        %v6401 = vrot.slane %v6399, 7
        %v6402 = vshll.u32 %v6256, 16
        %v6404 = vor.u32 %v6401, %v6402
        %v6405 = vsel %vm6284, %v6397, %v6404
        %v6406 = vrot.slane %v6401, 4
        %v6408 = vshrl.u32 %v6257, 16
        %v6410 = vrot.slane %v6408, 7
        %v6411 = vshll.u32 %v6257, 16
        %v6413 = vor.u32 %v6410, %v6411
        %v6414 = vsel %vm6284, %v6406, %v6413
        %v6415 = vrot.slane %v6410, 4
        %v6417 = vshrl.u32 %v6258, 16
        %v6419 = vrot.slane %v6417, 7
        %v6420 = vshll.u32 %v6258, 16
        %v6422 = vor.u32 %v6419, %v6420
        %v6423 = vsel %vm6284, %v6415, %v6422
        %v6424 = vrot.slane %v6419, 4
        %v6426 = vshrl.u32 %v6259, 16
        %v6428 = vrot.slane %v6426, 7
        %v6429 = vshll.u32 %v6259, 16
        %v6431 = vor.u32 %v6428, %v6429
        %v6432 = vrot.slane %v6428, 4
        %v6434 = vshrl.u32 %v6260, 16
        %v6436 = vrot.slane %v6434, 7
        %v6437 = vshll.u32 %v6260, 16
        %v6439 = vor.u32 %v6436, %v6437
        %v6440 = vsel %vm6284, %v6432, %v6439
        %v6441 = vrot.slane %v6436, 4
        %v6443 = vshrl.u32 %v6261, 16
        %v6445 = vrot.slane %v6443, 7
        %v6446 = vshll.u32 %v6261, 16
        %v6448 = vor.u32 %v6445, %v6446
        %v6449 = vsel %vm6284, %v6441, %v6448
        %v6450 = vrot.slane %v6445, 4
        %v6452 = vshrl.u32 %v6262, 16
        %v6454 = vrot.slane %v6452, 7
        %v6455 = vshll.u32 %v6262, 16
        %v6457 = vor.u32 %v6454, %v6455
        %v6458 = vsel %vm6284, %v6450, %v6457
        %v6459 = vrot.slane %v6454, 4
        %v6461 = vshrl.u32 %v6263, 16
        %v6463 = vrot.slane %v6461, 7
        %v6464 = vshll.u32 %v6263, 16
        %v6466 = vor.u32 %v6463, %v6464
        %v6467 = vrot.slane %v6463, 4
        %v6469 = vshrl.u32 %v6264, 16
        %v6471 = vrot.slane %v6469, 7
        %v6472 = vshll.u32 %v6264, 16
        %v6474 = vor.u32 %v6471, %v6472
        %v6475 = vsel %vm6284, %v6467, %v6474
        %v6476 = vrot.slane %v6471, 4
        %v6478 = vshrl.u32 %v6265, 16
        %v6480 = vrot.slane %v6478, 7
        %v6481 = vshll.u32 %v6265, 16
        %v6483 = vor.u32 %v6480, %v6481
        %v6484 = vsel %vm6284, %v6476, %v6483
        %v6485 = vrot.slane %v6480, 4
        %v6487 = vshrl.u32 %v6266, 16
        %v6489 = vrot.slane %v6487, 7
        %v6490 = vshll.u32 %v6266, 16
        %v6492 = vor.u32 %v6489, %v6490
        %v6493 = vsel %vm6284, %v6485, %v6492
        %v6494 = vrot.slane %v6489, 4
        %v6496 = vshrl.u32 %v6267, 16
        %v6498 = vrot.slane %v6496, 7
        %v6499 = vshll.u32 %v6267, 16
        %v6501 = vor.u32 %v6498, %v6499
        %v6502 = vrot.slane %v6498, 4
        %v6504 = vshrl.u32 %v6268, 16
        %v6506 = vrot.slane %v6504, 7
        %v6507 = vshll.u32 %v6268, 16
        %v6509 = vor.u32 %v6506, %v6507
        %v6510 = vsel %vm6284, %v6502, %v6509
        %v6511 = vrot.slane %v6506, 4
        %v6513 = vshrl.u32 %v6269, 16
        %v6515 = vrot.slane %v6513, 7
        %v6516 = vshll.u32 %v6269, 16
        %v6518 = vor.u32 %v6515, %v6516
        %v6519 = vsel %vm6284, %v6511, %v6518
        %v6520 = vrot.slane %v6515, 4
        %v6522 = vshrl.u32 %v6270, 16
        %v6524 = vrot.slane %v6522, 7
        %v6525 = vshll.u32 %v6270, 16
        %v6527 = vor.u32 %v6524, %v6525
        %v6528 = vsel %vm6284, %v6520, %v6527
        %v6529 = vrot.slane %v6524, 4
        %v6531 = vshrl.u32 %v6271, 16
        %v6533 = vrot.slane %v6531, 7
        %v6534 = vshll.u32 %v6271, 16
        %v6536 = vor.u32 %v6533, %v6534
        %v6537 = vrot.slane %v6533, 4
        %v6539 = vshrl.u32 %v6272, 16
        %v6541 = vrot.slane %v6539, 7
        %v6542 = vshll.u32 %v6272, 16
        %v6544 = vor.u32 %v6541, %v6542
        %v6545 = vsel %vm6284, %v6537, %v6544
        %v6546 = vrot.slane %v6541, 4
        %v6548 = vshrl.u32 %v6273, 16
        %v6550 = vrot.slane %v6548, 7
        %v6551 = vshll.u32 %v6273, 16
        %v6553 = vor.u32 %v6550, %v6551
        %v6554 = vsel %vm6284, %v6546, %v6553
        %v6555 = vrot.slane %v6550, 4
        %v6557 = vshrl.u32 %v6274, 16
        %v6559 = vrot.slane %v6557, 7
        %v6560 = vshll.u32 %v6274, 16
        %v6562 = vor.u32 %v6559, %v6560
        %v6563 = vsel %vm6284, %v6555, %v6562
        %v6564 = vrot.slane %v6559, 4
        %v6566 = vshrl.u32 %v6275, 16
        %v6568 = vrot.slane %v6566, 7
        %v6569 = vshll.u32 %v6275, 16
        %v6571 = vor.u32 %v6568, %v6569
        %v6572 = vrot.slane %v6568, 4
        %v6574 = vshrl.u32 %v6276, 16
        %v6576 = vrot.slane %v6574, 7
        %v6577 = vshll.u32 %v6276, 16
        %v6579 = vor.u32 %v6576, %v6577
        %v6580 = vsel %vm6284, %v6572, %v6579
        %v6581 = vrot.slane %v6576, 4
        %v6583 = vshrl.u32 %v6277, 16
        %v6585 = vrot.slane %v6583, 7
        %v6586 = vshll.u32 %v6277, 16
        %v6588 = vor.u32 %v6585, %v6586
        %v6589 = vsel %vm6284, %v6581, %v6588
        %v6590 = vrot.slane %v6585, 4
        %v6592 = vshrl.u32 %v6278, 16
        %v6594 = vrot.slane %v6592, 7
        %v6595 = vshll.u32 %v6278, 16
        %v6597 = vor.u32 %v6594, %v6595
        %v6598 = vsel %vm6284, %v6590, %v6597
        %v6599 = vrot.slane %v6594, 4
        %v6601 = vshrl.u32 %v6279, 16
        %v6603 = vrot.slane %v6601, 7
        %v6604 = vshll.u32 %v6279, 16
        %v6606 = vor.u32 %v6603, %v6604
        %v6607 = vrot.slane %v6603, 4
        %v6609 = vshrl.u32 %v6280, 16
        %v6611 = vrot.slane %v6609, 7
        %v6612 = vshll.u32 %v6280, 16
        %v6614 = vor.u32 %v6611, %v6612
        %v6615 = vsel %vm6284, %v6607, %v6614
        %v6616 = vrot.slane %v6611, 4
        %v6618 = vshrl.u32 %v6281, 16
        %v6620 = vrot.slane %v6618, 7
        %v6621 = vshll.u32 %v6281, 16
        %v6623 = vor.u32 %v6620, %v6621
        %v6624 = vsel %vm6284, %v6616, %v6623
        %v6625 = vrot.slane %v6620, 4
        %v6627 = vshrl.u32 %v6282, 16
        %v6629 = vrot.slane %v6627, 7
        %v6630 = vshll.u32 %v6282, 16
        %v6632 = vor.u32 %v6629, %v6630
        %v6633 = vsel %vm6284, %v6625, %v6632
        %v6634 = vrot.slane %v6629, 4
        %vm6685 = vcmask 60416
        %vm6686 = vmand %vm6685, %vm6131
        %v6687 = vld [vmem:[#allocation2] sm:$0xf]
        %v6688 = vsel %vm6686, %v6291, %v6687
        %6689 = vst [vmem:[#allocation2] sm:$0xf] %v6688
        %vm6690 = vcmask 60416
        %6691 = vst.msk [vmem:[#allocation2 + $0x4] sm:$0xf] %vm6690, %v6300
        %6692 = vst.msk [vmem:[#allocation2 + $0x8] sm:$0xf] %vm6690, %v6309
        %6693 = vst.msk [vmem:[#allocation2 + $0xc] sm:$0xf] %vm6690, %v6318
        %v6694 = vld [vmem:[#allocation2 + $0x10] sm:$0x1]
        %v6695 = vsel %vm6100, %v6319, %v6694
        %6696 = vst [vmem:[#allocation2 + $0x10] sm:$0x1] %v6695
        %v6697 = vld [vmem:[#allocation2 + $0x14] sm:$0xf]
        %v6698 = vsel %vm6686, %v6326, %v6697
        %6699 = vst [vmem:[#allocation2 + $0x14] sm:$0xf] %v6698
        %6700 = vst.msk [vmem:[#allocation2 + $0x18] sm:$0xf] %vm6690, %v6335
        %6701 = vst.msk [vmem:[#allocation2 + $0x1c] sm:$0xf] %vm6690, %v6344
        %6702 = vst.msk [vmem:[#allocation2 + $0x20] sm:$0xf] %vm6690, %v6353
        %v6703 = vld [vmem:[#allocation2 + $0x24] sm:$0x1]
        %v6704 = vsel %vm6100, %v6354, %v6703
        %6705 = vst [vmem:[#allocation2 + $0x24] sm:$0x1] %v6704
        %v6706 = vld [vmem:[#allocation2 + $0x28] sm:$0xf]
        %v6707 = vsel %vm6686, %v6361, %v6706
        %6708 = vst [vmem:[#allocation2 + $0x28] sm:$0xf] %v6707
        %6709 = vst.msk [vmem:[#allocation2 + $0x2c] sm:$0xf] %vm6690, %v6370
        %6710 = vst.msk [vmem:[#allocation2 + $0x30] sm:$0xf] %vm6690, %v6379
        %6711 = vst.msk [vmem:[#allocation2 + $0x34] sm:$0xf] %vm6690, %v6388
        %v6712 = vld [vmem:[#allocation2 + $0x38] sm:$0x1]
        %v6713 = vsel %vm6100, %v6389, %v6712
        %6714 = vst [vmem:[#allocation2 + $0x38] sm:$0x1] %v6713
        %v6715 = vld [vmem:[#allocation2 + $0x3c] sm:$0xf]
        %v6716 = vsel %vm6686, %v6396, %v6715
        %6717 = vst [vmem:[#allocation2 + $0x3c] sm:$0xf] %v6716
        %6718 = vst.msk [vmem:[#allocation2 + $0x40] sm:$0xf] %vm6690, %v6405
        %6719 = vst.msk [vmem:[#allocation2 + $0x44] sm:$0xf] %vm6690, %v6414
        %6720 = vst.msk [vmem:[#allocation2 + $0x48] sm:$0xf] %vm6690, %v6423
        %v6721 = vld [vmem:[#allocation2 + $0x4c] sm:$0x1]
        %v6722 = vsel %vm6100, %v6424, %v6721
        %6723 = vst [vmem:[#allocation2 + $0x4c] sm:$0x1] %v6722
        %v6724 = vld [vmem:[#allocation2 + $0x50] sm:$0xf]
        %v6725 = vsel %vm6686, %v6431, %v6724
        %6726 = vst [vmem:[#allocation2 + $0x50] sm:$0xf] %v6725
        %6727 = vst.msk [vmem:[#allocation2 + $0x54] sm:$0xf] %vm6690, %v6440
        %6728 = vst.msk [vmem:[#allocation2 + $0x58] sm:$0xf] %vm6690, %v6449
        %6729 = vst.msk [vmem:[#allocation2 + $0x5c] sm:$0xf] %vm6690, %v6458
        %v6730 = vld [vmem:[#allocation2 + $0x60] sm:$0x1]
        %v6731 = vsel %vm6100, %v6459, %v6730
        %6732 = vst [vmem:[#allocation2 + $0x60] sm:$0x1] %v6731
        %v6733 = vld [vmem:[#allocation2 + $0x64] sm:$0xf]
        %v6734 = vsel %vm6686, %v6466, %v6733
        %6735 = vst [vmem:[#allocation2 + $0x64] sm:$0xf] %v6734
        %6736 = vst.msk [vmem:[#allocation2 + $0x68] sm:$0xf] %vm6690, %v6475
        %6737 = vst.msk [vmem:[#allocation2 + $0x6c] sm:$0xf] %vm6690, %v6484
        %6738 = vst.msk [vmem:[#allocation2 + $0x70] sm:$0xf] %vm6690, %v6493
        %v6739 = vld [vmem:[#allocation2 + $0x74] sm:$0x1]
        %v6740 = vsel %vm6100, %v6494, %v6739
        %6741 = vst [vmem:[#allocation2 + $0x74] sm:$0x1] %v6740
        %v6742 = vld [vmem:[#allocation2 + $0x78] sm:$0xf]
        %v6743 = vsel %vm6686, %v6501, %v6742
        %6744 = vst [vmem:[#allocation2 + $0x78] sm:$0xf] %v6743
        %6745 = vst.msk [vmem:[#allocation2 + $0x7c] sm:$0xf] %vm6690, %v6510
        %6746 = vst.msk [vmem:[#allocation2 + $0x80] sm:$0xf] %vm6690, %v6519
        %6747 = vst.msk [vmem:[#allocation2 + $0x84] sm:$0xf] %vm6690, %v6528
        %v6748 = vld [vmem:[#allocation2 + $0x88] sm:$0x1]
        %v6749 = vsel %vm6100, %v6529, %v6748
        %6750 = vst [vmem:[#allocation2 + $0x88] sm:$0x1] %v6749
        %v6751 = vld [vmem:[#allocation2 + $0x8c] sm:$0xf]
        %v6752 = vsel %vm6686, %v6536, %v6751
        %6753 = vst [vmem:[#allocation2 + $0x8c] sm:$0xf] %v6752
        %6754 = vst.msk [vmem:[#allocation2 + $0x90] sm:$0xf] %vm6690, %v6545
        %6755 = vst.msk [vmem:[#allocation2 + $0x94] sm:$0xf] %vm6690, %v6554
        %6756 = vst.msk [vmem:[#allocation2 + $0x98] sm:$0xf] %vm6690, %v6563
        %v6757 = vld [vmem:[#allocation2 + $0x9c] sm:$0x1]
        %v6758 = vsel %vm6100, %v6564, %v6757
        %6759 = vst [vmem:[#allocation2 + $0x9c] sm:$0x1] %v6758
        %v6760 = vld [vmem:[#allocation2 + $0xa0] sm:$0xf]
        %v6761 = vsel %vm6686, %v6571, %v6760
        %6762 = vst [vmem:[#allocation2 + $0xa0] sm:$0xf] %v6761
        %6763 = vst.msk [vmem:[#allocation2 + $0xa4] sm:$0xf] %vm6690, %v6580
        %6764 = vst.msk [vmem:[#allocation2 + $0xa8] sm:$0xf] %vm6690, %v6589
        %6765 = vst.msk [vmem:[#allocation2 + $0xac] sm:$0xf] %vm6690, %v6598
        %v6766 = vld [vmem:[#allocation2 + $0xb0] sm:$0x1]
        %v6767 = vsel %vm6100, %v6599, %v6766
        %6768 = vst [vmem:[#allocation2 + $0xb0] sm:$0x1] %v6767
        %v6769 = vld [vmem:[#allocation2 + $0xb4] sm:$0xf]
        %v6770 = vsel %vm6686, %v6606, %v6769
        %6771 = vst [vmem:[#allocation2 + $0xb4] sm:$0xf] %v6770
        %6772 = vst.msk [vmem:[#allocation2 + $0xb8] sm:$0xf] %vm6690, %v6615
        %6773 = vst.msk [vmem:[#allocation2 + $0xbc] sm:$0xf] %vm6690, %v6624
        %6774 = vst.msk [vmem:[#allocation2 + $0xc0] sm:$0xf] %vm6690, %v6633
        %v6775 = vld [vmem:[#allocation2 + $0xc4] sm:$0x1]
        %v6776 = vsel %vm6100, %v6634, %v6775
        %6777 = vst [vmem:[#allocation2 + $0xc4] sm:$0x1] %v6776
        %p6778 = scmp.eq.s32.totalorder %s39, 0
        // Predicated region
        $region101: #{tpu_custom_call.1} parent=59 // pred_check
          %p6779 = pneg %p6778
        $region102: #{tpu_custom_call.1} parent=59 // pred_check_branch
          %6781 = sbr.rel (%p6779) target = $region104
        $region103: #{tpu_custom_call.1} parent=59 // pred_region
          %6782 = vst.msk [vmem:[#allocation2] sm:$0xf] %vm6690, 0
          %6783 = vst.msk [vmem:[#allocation2 + $0x4] sm:$0xf] %vm6690, 0
          %6784 = vst.msk [vmem:[#allocation2 + $0x8] sm:$0xf] %vm6690, 0
          %6785 = vst.msk [vmem:[#allocation2 + $0xc] sm:$0xf] %vm6690, 0
          %vm6786 = vcmask 57344
          %6787 = vst.msk [vmem:[#allocation2 + $0x10] sm:$0x1] %vm6786, 0
        $region104: #{tpu_custom_call.1} parent=59 // pred_fallthru
          _
        %p6788 = scmp.eq.s32.totalorder %s39, 3
        // Predicated region
        $region105: #{tpu_custom_call.1} parent=59 // pred_check
          %p6789 = pneg %p6788
        $region106: #{tpu_custom_call.1} parent=59 // pred_check_branch
          %6791 = sbr.rel (%p6789) target = $region108
        $region107: #{tpu_custom_call.1} parent=59 // pred_region
          %s6792 = scalar_lea.vmem [#allocation2], 180
          %6793 = vst.msk [vmem:[%s6792] sm:$0xf] %vm6690, 0
          %6794 = vst.msk [vmem:[%s6792 + $0x4] sm:$0xf] %vm6690, 0
          %6795 = vst.msk [vmem:[%s6792 + $0x8] sm:$0xf] %vm6690, 0
          %6796 = vst.msk [vmem:[%s6792 + $0xc] sm:$0xf] %vm6690, 0
          %vm6797 = vcmask 57344
          %6798 = vst.msk [vmem:[%s6792 + $0x10] sm:$0x1] %vm6797, 0
        $region108: #{tpu_custom_call.1} parent=59 // pred_fallthru
          _
        %v6799 = vld [vmem:[#allocation2] sm:$0xf]
        %v6800 = vld [vmem:[#allocation2 + $0x4] sm:$0xf]
        %v6801 = vld [vmem:[#allocation2 + $0x8] sm:$0xf]
        %v6802 = vld [vmem:[#allocation2 + $0xc] sm:$0xf]
        %v6803 = vld [vmem:[#allocation2 + $0x14] sm:$0xf]
        %v6804 = vld [vmem:[#allocation2 + $0x18] sm:$0xf]
        %v6805 = vld [vmem:[#allocation2 + $0x1c] sm:$0xf]
        %v6806 = vld [vmem:[#allocation2 + $0x20] sm:$0xf]
        %v6807 = vld [vmem:[#allocation2 + $0x28] sm:$0xf]
        %v6808 = vld [vmem:[#allocation2 + $0x2c] sm:$0xf]
        %v6809 = vld [vmem:[#allocation2 + $0x30] sm:$0xf]
        %v6810 = vld [vmem:[#allocation2 + $0x34] sm:$0xf]
        %v6811 = vld [vmem:[#allocation2 + $0x3c] sm:$0xf]
        %v6812 = vld [vmem:[#allocation2 + $0x40] sm:$0xf]
        %v6813 = vld [vmem:[#allocation2 + $0x44] sm:$0xf]
        %v6814 = vld [vmem:[#allocation2 + $0x48] sm:$0xf]
        %v6815 = vld [vmem:[#allocation2 + $0x50] sm:$0xf]
        %v6816 = vld [vmem:[#allocation2 + $0x54] sm:$0xf]
        %v6817 = vld [vmem:[#allocation2 + $0x58] sm:$0xf]
        %v6818 = vld [vmem:[#allocation2 + $0x5c] sm:$0xf]
        %v6819 = vld [vmem:[#allocation2 + $0x64] sm:$0xf]
        %v6820 = vld [vmem:[#allocation2 + $0x68] sm:$0xf]
        %v6821 = vld [vmem:[#allocation2 + $0x6c] sm:$0xf]
        %v6822 = vld [vmem:[#allocation2 + $0x70] sm:$0xf]
        %v6823 = vld [vmem:[#allocation2 + $0x78] sm:$0xf]
        %v6824 = vld [vmem:[#allocation2 + $0x7c] sm:$0xf]
        %v6825 = vld [vmem:[#allocation2 + $0x80] sm:$0xf]
        %v6826 = vld [vmem:[#allocation2 + $0x84] sm:$0xf]
        %v6827 = vld [vmem:[#allocation2 + $0x8c] sm:$0xf]
        %v6828 = vld [vmem:[#allocation2 + $0x90] sm:$0xf]
        %v6829 = vld [vmem:[#allocation2 + $0x94] sm:$0xf]
        %v6830 = vld [vmem:[#allocation2 + $0x98] sm:$0xf]
        %v6831 = vld [vmem:[#allocation14] sm:$0xf]
        %v6832 = vld [vmem:[#allocation2 + $0x10] sm:$0x1]
        %v6833 = vld [vmem:[#allocation2 + $0x24] sm:$0x1]
        %v6834 = vld [vmem:[#allocation2 + $0x38] sm:$0x1]
        %v6835 = vld [vmem:[#allocation2 + $0x4c] sm:$0x1]
        %v6836 = vld [vmem:[#allocation2 + $0x60] sm:$0x1]
        %v6837 = vld [vmem:[#allocation2 + $0x74] sm:$0x1]
        %v6838 = vld [vmem:[#allocation2 + $0x88] sm:$0x1]
        %v6839 = vld [vmem:[#allocation2 + $0x9c] sm:$0x1]
        %v6841 = vshrl.u32 %v6799, 16
        %v6843 = vrot.slane %v6841, 4
        %v6844 = vshll.u32 %v6799, 16
        %v6846 = vrot.slane %v6844, 5
        %v6847 = vor.u32 %v6843, %v6846
        %v6848 = vrot.slane %v6847, 4
        %v6850 = vshll.u32 %v6800, 16
        %v6852 = vrot.slane %v6850, 5
        %v6853 = vsel %vm604, %v6848, %v6852
        %v6854 = vshrl.u32 %v6800, 16
        %v6856 = vrot.slane %v6854, 4
        %v6857 = vor.u32 %v6856, %v6852
        %v6858 = vrot.slane %v6857, 4
        %v6860 = vshll.u32 %v6801, 16
        %v6862 = vrot.slane %v6860, 5
        %v6863 = vsel %vm604, %v6858, %v6862
        %v6864 = vshrl.u32 %v6801, 16
        %v6866 = vrot.slane %v6864, 4
        %v6867 = vor.u32 %v6866, %v6862
        %v6868 = vrot.slane %v6867, 4
        %v6870 = vshll.u32 %v6802, 16
        %v6872 = vrot.slane %v6870, 5
        %v6873 = vsel %vm604, %v6868, %v6872
        %v6874 = vshrl.u32 %v6802, 16
        %v6876 = vrot.slane %v6874, 4
        %v6877 = vor.u32 %v6876, %v6872
        %v6878 = vrot.slane %v6877, 4
        %v6880 = vshll.u32 %v6832, 16
        %v6882 = vrot.slane %v6880, 5
        %v6883 = vsel %vm604, %v6878, %v6882
        %v6885 = vshrl.u32 %v6803, 16
        %v6887 = vrot.slane %v6885, 4
        %v6888 = vshll.u32 %v6803, 16
        %v6890 = vrot.slane %v6888, 5
        %v6891 = vor.u32 %v6887, %v6890
        %v6892 = vrot.slane %v6891, 4
        %v6894 = vshll.u32 %v6804, 16
        %v6896 = vrot.slane %v6894, 5
        %v6897 = vsel %vm604, %v6892, %v6896
        %v6898 = vshrl.u32 %v6804, 16
        %v6900 = vrot.slane %v6898, 4
        %v6901 = vor.u32 %v6900, %v6896
        %v6902 = vrot.slane %v6901, 4
        %v6904 = vshll.u32 %v6805, 16
        %v6906 = vrot.slane %v6904, 5
        %v6907 = vsel %vm604, %v6902, %v6906
        %v6908 = vshrl.u32 %v6805, 16
        %v6910 = vrot.slane %v6908, 4
        %v6911 = vor.u32 %v6910, %v6906
        %v6912 = vrot.slane %v6911, 4
        %v6914 = vshll.u32 %v6806, 16
        %v6916 = vrot.slane %v6914, 5
        %v6917 = vsel %vm604, %v6912, %v6916
        %v6918 = vshrl.u32 %v6806, 16
        %v6920 = vrot.slane %v6918, 4
        %v6921 = vor.u32 %v6920, %v6916
        %v6922 = vrot.slane %v6921, 4
        %v6924 = vshll.u32 %v6833, 16
        %v6926 = vrot.slane %v6924, 5
        %v6927 = vsel %vm604, %v6922, %v6926
        %v6929 = vshrl.u32 %v6807, 16
        %v6931 = vrot.slane %v6929, 4
        %v6932 = vshll.u32 %v6807, 16
        %v6934 = vrot.slane %v6932, 5
        %v6935 = vor.u32 %v6931, %v6934
        %v6936 = vrot.slane %v6935, 4
        %v6938 = vshll.u32 %v6808, 16
        %v6940 = vrot.slane %v6938, 5
        %v6941 = vsel %vm604, %v6936, %v6940
        %v6942 = vshrl.u32 %v6808, 16
        %v6944 = vrot.slane %v6942, 4
        %v6945 = vor.u32 %v6944, %v6940
        %v6946 = vrot.slane %v6945, 4
        %v6948 = vshll.u32 %v6809, 16
        %v6950 = vrot.slane %v6948, 5
        %v6951 = vsel %vm604, %v6946, %v6950
        %v6952 = vshrl.u32 %v6809, 16
        %v6954 = vrot.slane %v6952, 4
        %v6955 = vor.u32 %v6954, %v6950
        %v6956 = vrot.slane %v6955, 4
        %v6958 = vshll.u32 %v6810, 16
        %v6960 = vrot.slane %v6958, 5
        %v6961 = vsel %vm604, %v6956, %v6960
        %v6962 = vshrl.u32 %v6810, 16
        %v6964 = vrot.slane %v6962, 4
        %v6965 = vor.u32 %v6964, %v6960
        %v6966 = vrot.slane %v6965, 4
        %v6968 = vshll.u32 %v6834, 16
        %v6970 = vrot.slane %v6968, 5
        %v6971 = vsel %vm604, %v6966, %v6970
        %v6973 = vshrl.u32 %v6811, 16
        %v6975 = vrot.slane %v6973, 4
        %v6976 = vshll.u32 %v6811, 16
        %v6978 = vrot.slane %v6976, 5
        %v6979 = vor.u32 %v6975, %v6978
        %v6980 = vrot.slane %v6979, 4
        %v6982 = vshll.u32 %v6812, 16
        %v6984 = vrot.slane %v6982, 5
        %v6985 = vsel %vm604, %v6980, %v6984
        %v6986 = vshrl.u32 %v6812, 16
        %v6988 = vrot.slane %v6986, 4
        %v6989 = vor.u32 %v6988, %v6984
        %v6990 = vrot.slane %v6989, 4
        %v6992 = vshll.u32 %v6813, 16
        %v6994 = vrot.slane %v6992, 5
        %v6995 = vsel %vm604, %v6990, %v6994
        %v6996 = vshrl.u32 %v6813, 16
        %v6998 = vrot.slane %v6996, 4
        %v6999 = vor.u32 %v6998, %v6994
        %v7000 = vrot.slane %v6999, 4
        %v7002 = vshll.u32 %v6814, 16
        %v7004 = vrot.slane %v7002, 5
        %v7005 = vsel %vm604, %v7000, %v7004
        %v7006 = vshrl.u32 %v6814, 16
        %v7008 = vrot.slane %v7006, 4
        %v7009 = vor.u32 %v7008, %v7004
        %v7010 = vrot.slane %v7009, 4
        %v7012 = vshll.u32 %v6835, 16
        %v7014 = vrot.slane %v7012, 5
        %v7015 = vsel %vm604, %v7010, %v7014
        %v7017 = vshrl.u32 %v6815, 16
        %v7019 = vrot.slane %v7017, 4
        %v7020 = vshll.u32 %v6815, 16
        %v7022 = vrot.slane %v7020, 5
        %v7023 = vor.u32 %v7019, %v7022
        %v7024 = vrot.slane %v7023, 4
        %v7026 = vshll.u32 %v6816, 16
        %v7028 = vrot.slane %v7026, 5
        %v7029 = vsel %vm604, %v7024, %v7028
        %v7030 = vshrl.u32 %v6816, 16
        %v7032 = vrot.slane %v7030, 4
        %v7033 = vor.u32 %v7032, %v7028
        %v7034 = vrot.slane %v7033, 4
        %v7036 = vshll.u32 %v6817, 16
        %v7038 = vrot.slane %v7036, 5
        %v7039 = vsel %vm604, %v7034, %v7038
        %v7040 = vshrl.u32 %v6817, 16
        %v7042 = vrot.slane %v7040, 4
        %v7043 = vor.u32 %v7042, %v7038
        %v7044 = vrot.slane %v7043, 4
        %v7046 = vshll.u32 %v6818, 16
        %v7048 = vrot.slane %v7046, 5
        %v7049 = vsel %vm604, %v7044, %v7048
        %v7050 = vshrl.u32 %v6818, 16
        %v7052 = vrot.slane %v7050, 4
        %v7053 = vor.u32 %v7052, %v7048
        %v7054 = vrot.slane %v7053, 4
        %v7056 = vshll.u32 %v6836, 16
        %v7058 = vrot.slane %v7056, 5
        %v7059 = vsel %vm604, %v7054, %v7058
        %v7061 = vshrl.u32 %v6819, 16
        %v7063 = vrot.slane %v7061, 4
        %v7064 = vshll.u32 %v6819, 16
        %v7066 = vrot.slane %v7064, 5
        %v7067 = vor.u32 %v7063, %v7066
        %v7068 = vrot.slane %v7067, 4
        %v7070 = vshll.u32 %v6820, 16
        %v7072 = vrot.slane %v7070, 5
        %v7073 = vsel %vm604, %v7068, %v7072
        %v7074 = vshrl.u32 %v6820, 16
        %v7076 = vrot.slane %v7074, 4
        %v7077 = vor.u32 %v7076, %v7072
        %v7078 = vrot.slane %v7077, 4
        %v7080 = vshll.u32 %v6821, 16
        %v7082 = vrot.slane %v7080, 5
        %v7083 = vsel %vm604, %v7078, %v7082
        %v7084 = vshrl.u32 %v6821, 16
        %v7086 = vrot.slane %v7084, 4
        %v7087 = vor.u32 %v7086, %v7082
        %v7088 = vrot.slane %v7087, 4
        %v7090 = vshll.u32 %v6822, 16
        %v7092 = vrot.slane %v7090, 5
        %v7093 = vsel %vm604, %v7088, %v7092
        %v7094 = vshrl.u32 %v6822, 16
        %v7096 = vrot.slane %v7094, 4
        %v7097 = vor.u32 %v7096, %v7092
        %v7098 = vrot.slane %v7097, 4
        %v7100 = vshll.u32 %v6837, 16
        %v7102 = vrot.slane %v7100, 5
        %v7103 = vsel %vm604, %v7098, %v7102
        %v7105 = vshrl.u32 %v6823, 16
        %v7107 = vrot.slane %v7105, 4
        %v7108 = vshll.u32 %v6823, 16
        %v7110 = vrot.slane %v7108, 5
        %v7111 = vor.u32 %v7107, %v7110
        %v7112 = vrot.slane %v7111, 4
        %v7114 = vshll.u32 %v6824, 16
        %v7116 = vrot.slane %v7114, 5
        %v7117 = vsel %vm604, %v7112, %v7116
        %v7118 = vshrl.u32 %v6824, 16
        %v7120 = vrot.slane %v7118, 4
        %v7121 = vor.u32 %v7120, %v7116
        %v7122 = vrot.slane %v7121, 4
        %v7124 = vshll.u32 %v6825, 16
        %v7126 = vrot.slane %v7124, 5
        %v7127 = vsel %vm604, %v7122, %v7126
        %v7128 = vshrl.u32 %v6825, 16
        %v7130 = vrot.slane %v7128, 4
        %v7131 = vor.u32 %v7130, %v7126
        %v7132 = vrot.slane %v7131, 4
        %v7134 = vshll.u32 %v6826, 16
        %v7136 = vrot.slane %v7134, 5
        %v7137 = vsel %vm604, %v7132, %v7136
        %v7138 = vshrl.u32 %v6826, 16
        %v7140 = vrot.slane %v7138, 4
        %v7141 = vor.u32 %v7140, %v7136
        %v7142 = vrot.slane %v7141, 4
        %v7144 = vshll.u32 %v6838, 16
        %v7146 = vrot.slane %v7144, 5
        %v7147 = vsel %vm604, %v7142, %v7146
        %v7149 = vshrl.u32 %v6827, 16
        %v7151 = vrot.slane %v7149, 4
        %v7152 = vshll.u32 %v6827, 16
        %v7154 = vrot.slane %v7152, 5
        %v7155 = vor.u32 %v7151, %v7154
        %v7156 = vrot.slane %v7155, 4
        %v7158 = vshll.u32 %v6828, 16
        %v7160 = vrot.slane %v7158, 5
        %v7161 = vsel %vm604, %v7156, %v7160
        %v7162 = vshrl.u32 %v6828, 16
        %v7164 = vrot.slane %v7162, 4
        %v7165 = vor.u32 %v7164, %v7160
        %v7166 = vrot.slane %v7165, 4
        %v7168 = vshll.u32 %v6829, 16
        %v7170 = vrot.slane %v7168, 5
        %v7171 = vsel %vm604, %v7166, %v7170
        %v7172 = vshrl.u32 %v6829, 16
        %v7174 = vrot.slane %v7172, 4
        %v7175 = vor.u32 %v7174, %v7170
        %v7176 = vrot.slane %v7175, 4
        %v7178 = vshll.u32 %v6830, 16
        %v7180 = vrot.slane %v7178, 5
        %v7181 = vsel %vm604, %v7176, %v7180
        %v7182 = vshrl.u32 %v6830, 16
        %v7184 = vrot.slane %v7182, 4
        %v7185 = vor.u32 %v7184, %v7180
        %v7186 = vrot.slane %v7185, 4
        %v7188 = vshll.u32 %v6839, 16
        %v7190 = vrot.slane %v7188, 5
        %v7191 = vsel %vm604, %v7186, %v7190
        %v7192 = vld [vmem:[#allocation14 + $0x4] sm:$0xf]
        %v7193 = vunpack.c.l.b16 %v6853
        %v7194 = vunpack.c.l.b16 %v6863
        %v7195 = vunpack.c.l.b16 %v6873
        %v7196 = vunpack.c.l.b16 %v6883
        %v7197 = vunpack.c.l.b16 %v6897
        %v7198 = vunpack.c.l.b16 %v6907
        %v7199 = vunpack.c.l.b16 %v6917
        %v7200 = vunpack.c.l.b16 %v6927
        %v7201 = vunpack.c.l.b16 %v6941
        %v7202 = vunpack.c.l.b16 %v6951
        %v7203 = vunpack.c.l.b16 %v6961
        %v7204 = vunpack.c.l.b16 %v6971
        %v7205 = vunpack.c.l.b16 %v6985
        %v7206 = vunpack.c.l.b16 %v6995
        %v7207 = vunpack.c.l.b16 %v7005
        %v7208 = vunpack.c.l.b16 %v7015
        %v7209 = vunpack.c.l.b16 %v7029
        %v7210 = vunpack.c.l.b16 %v7039
        %v7211 = vunpack.c.l.b16 %v7049
        %v7212 = vunpack.c.l.b16 %v7059
        %v7213 = vunpack.c.l.b16 %v7073
        %v7214 = vunpack.c.l.b16 %v7083
        %v7215 = vunpack.c.l.b16 %v7093
        %v7216 = vunpack.c.l.b16 %v7103
        %v7217 = vunpack.c.l.b16 %v7117
        %v7218 = vunpack.c.l.b16 %v7127
        %v7219 = vunpack.c.l.b16 %v7137
        %v7220 = vunpack.c.l.b16 %v7147
        %v7221 = vunpack.c.l.b16 %v7161
        %v7222 = vunpack.c.l.b16 %v7171
        %v7223 = vunpack.c.l.b16 %v7181
        %v7224 = vunpack.c.l.b16 %v7191
        %v7225 = vpack.c.b16 %v7194, %v7193
        %v7226 = vpack.c.b16 %v7196, %v7195
        %v7227 = vpack.c.b16 %v7198, %v7197
        %v7228 = vpack.c.b16 %v7200, %v7199
        %v7229 = vpack.c.b16 %v7202, %v7201
        %v7230 = vpack.c.b16 %v7204, %v7203
        %v7231 = vpack.c.b16 %v7206, %v7205
        %v7232 = vpack.c.b16 %v7208, %v7207
        %v7233 = vpack.c.b16 %v7210, %v7209
        %v7234 = vpack.c.b16 %v7212, %v7211
        %v7235 = vpack.c.b16 %v7214, %v7213
        %v7236 = vpack.c.b16 %v7216, %v7215
        %v7237 = vpack.c.b16 %v7218, %v7217
        %v7238 = vpack.c.b16 %v7220, %v7219
        %v7239 = vpack.c.b16 %v7222, %v7221
        %v7240 = vpack.c.b16 %v7224, %v7223
        %vm7241 = vcmask 64512
        %v7243 = vsel %vm7241, %v7225, 0
        %v7246 = vsel %vm7241, %v7226, 0
        %v7249 = vsel %vm7241, %v7227, 0
        %v7252 = vsel %vm7241, %v7228, 0
        %v7255 = vsel %vm7241, %v7229, 0
        %v7258 = vsel %vm7241, %v7230, 0
        %v7261 = vsel %vm7241, %v7231, 0
        %v7264 = vsel %vm7241, %v7232, 0
        %v7267 = vsel %vm7241, %v7233, 0
        %v7270 = vsel %vm7241, %v7234, 0
        %v7273 = vsel %vm7241, %v7235, 0
        %v7276 = vsel %vm7241, %v7236, 0
        %v7279 = vsel %vm7241, %v7237, 0
        %v7282 = vsel %vm7241, %v7238, 0
        %v7285 = vsel %vm7241, %v7239, 0
        %v7288 = vsel %vm7241, %v7240, 0
        %vm7290 = vcmask 1043456
        %v7292 = vsel %vm7290, %v7192, 0
        %7294 = vmatprep.subr.bf16.mxu0 0
        %7295 = vmatpush1.bf16.msra.mxu0 %v7292
        %7296 = vmatprep.subr.bf16.mxu0 0
        %7297 = vmatpush1.bf16.msra.mxu0 0
        %7298 = vmatprep.subr.bf16.mxu0 0
        %7299 = vmatpush1.bf16.msra.mxu0 0
        %7300 = vmatprep.subr.bf16.mxu0 0
        %7301 = vmatpush1.bf16.msra.mxu0 0
        %7302 = vmatprep.subr.bf16.mxu0 0
        %7303 = vmatpush1.bf16.msra.mxu0 0
        %7304 = vmatprep.subr.bf16.mxu0 0
        %7305 = vmatpush1.bf16.msra.mxu0 0
        %7306 = vmatprep.subr.bf16.mxu0 0
        %7307 = vmatpush1.bf16.msra.mxu0 0
        %7308 = vmatprep.subr.bf16.mxu0 0
        %7309 = vmatpush1.bf16.msra.mxu0 0
        %7310 = vmatprep.subr.bf16.mxu0 0
        %7311 = vmatpush1.bf16.msra.mxu0 0
        %7312 = vmatprep.subr.bf16.mxu0 0
        %7313 = vmatpush1.bf16.msra.mxu0 0
        %7314 = vmatprep.subr.bf16.mxu0 0
        %7315 = vmatpush1.bf16.msra.mxu0 0
        %7316 = vmatprep.subr.bf16.mxu0 0
        %7317 = vmatpush1.bf16.msra.mxu0 0
        %7318 = vmatprep.subr.bf16.mxu0 0
        %7319 = vmatpush1.bf16.msra.mxu0 0
        %7320 = vmatprep.subr.bf16.mxu0 0
        %7321 = vmatpush1.bf16.msra.mxu0 0
        %7322 = vmatprep.subr.bf16.mxu0 0
        %7323 = vmatpush1.bf16.msra.mxu0 0
        %7324 = vmatprep.subr.bf16.mxu0 0
        %7325 = vmatpush1.bf16.msra.mxu0 0
        %7326 = vmatprep.mubr.bf16.mxu0 0
        %7327 = vmatmul.mubr.bf16.gmra.mrb[0].mxu0 %v7243
        %v7328 = vpop.f32.mrb[0].mxu0
        %v7329 = vadd.f32 0.0, %v7328
        %v7330 = vpop.f32.mrb[0].mxu0
        %v7331 = vpop.f32.mrb[0].mxu0
        %v7332 = vadd.f32 0.0, %v7331
        %v7333 = vpop.f32.mrb[0].mxu0
        %7334 = vmatprep.mubr.bf16.mxu0 0
        %7335 = vmatmul.mubr.bf16.gmra.mrb[0].mxu0 %v7246
        %v7336 = vpop.f32.mrb[0].mxu0
        %v7337 = vadd.f32 0.0, %v7336
        %v7338 = vpop.f32.mrb[0].mxu0
        %v7339 = vpop.f32.mrb[0].mxu0
        %v7340 = vadd.f32 0.0, %v7339
        %v7341 = vpop.f32.mrb[0].mxu0
        %7342 = vmatprep.mubr.bf16.mxu0 0
        %7343 = vmatmul.mubr.bf16.gmra.mrb[0].mxu0 %v7249
        %v7344 = vpop.f32.mrb[0].mxu0
        %v7345 = vadd.f32 0.0, %v7344
        %v7346 = vpop.f32.mrb[0].mxu0
        %v7347 = vpop.f32.mrb[0].mxu0
        %v7348 = vadd.f32 0.0, %v7347
        %v7349 = vpop.f32.mrb[0].mxu0
        %7350 = vmatprep.mubr.bf16.mxu0 0
        %7351 = vmatmul.mubr.bf16.gmra.mrb[0].mxu0 %v7252
        %v7352 = vpop.f32.mrb[0].mxu0
        %v7353 = vadd.f32 0.0, %v7352
        %v7354 = vpop.f32.mrb[0].mxu0
        %v7355 = vpop.f32.mrb[0].mxu0
        %v7356 = vadd.f32 0.0, %v7355
        %v7357 = vpop.f32.mrb[0].mxu0
        %7358 = vmatprep.mubr.bf16.mxu0 0
        %7359 = vmatmul.mubr.bf16.gmra.mrb[0].mxu0 %v7255
        %v7360 = vpop.f32.mrb[0].mxu0
        %v7361 = vadd.f32 0.0, %v7360
        %v7362 = vpop.f32.mrb[0].mxu0
        %v7363 = vpop.f32.mrb[0].mxu0
        %v7364 = vadd.f32 0.0, %v7363
        %v7365 = vpop.f32.mrb[0].mxu0
        %7366 = vmatprep.mubr.bf16.mxu0 0
        %7367 = vmatmul.mubr.bf16.gmra.mrb[0].mxu0 %v7258
        %v7368 = vpop.f32.mrb[0].mxu0
        %v7369 = vadd.f32 0.0, %v7368
        %v7370 = vpop.f32.mrb[0].mxu0
        %v7371 = vpop.f32.mrb[0].mxu0
        %v7372 = vadd.f32 0.0, %v7371
        %v7373 = vpop.f32.mrb[0].mxu0
        %7374 = vmatprep.mubr.bf16.mxu0 0
        %7375 = vmatmul.mubr.bf16.gmra.mrb[0].mxu0 %v7261
        %v7376 = vpop.f32.mrb[0].mxu0
        %v7377 = vadd.f32 0.0, %v7376
        %v7378 = vpop.f32.mrb[0].mxu0
        %v7379 = vpop.f32.mrb[0].mxu0
        %v7380 = vadd.f32 0.0, %v7379
        %v7381 = vpop.f32.mrb[0].mxu0
        %7382 = vmatprep.mubr.bf16.mxu0 0
        %7383 = vmatmul.mubr.bf16.gmra.mrb[0].mxu0 %v7264
        %v7384 = vpop.f32.mrb[0].mxu0
        %v7385 = vadd.f32 0.0, %v7384
        %v7386 = vpop.f32.mrb[0].mxu0
        %v7387 = vpop.f32.mrb[0].mxu0
        %v7388 = vadd.f32 0.0, %v7387
        %v7389 = vpop.f32.mrb[0].mxu0
        %7390 = vmatprep.mubr.bf16.mxu0 0
        %7391 = vmatmul.mubr.bf16.gmra.mrb[0].mxu0 %v7267
        %v7392 = vpop.f32.mrb[0].mxu0
        %v7393 = vadd.f32 0.0, %v7392
        %v7394 = vpop.f32.mrb[0].mxu0
        %v7395 = vpop.f32.mrb[0].mxu0
        %v7396 = vadd.f32 0.0, %v7395
        %v7397 = vpop.f32.mrb[0].mxu0
        %7398 = vmatprep.mubr.bf16.mxu0 0
        %7399 = vmatmul.mubr.bf16.gmra.mrb[0].mxu0 %v7270
        %v7400 = vpop.f32.mrb[0].mxu0
        %v7401 = vadd.f32 0.0, %v7400
        %v7402 = vpop.f32.mrb[0].mxu0
        %v7403 = vpop.f32.mrb[0].mxu0
        %v7404 = vadd.f32 0.0, %v7403
        %v7405 = vpop.f32.mrb[0].mxu0
        %7406 = vmatprep.mubr.bf16.mxu0 0
        %7407 = vmatmul.mubr.bf16.gmra.mrb[0].mxu0 %v7273
        %v7408 = vpop.f32.mrb[0].mxu0
        %v7409 = vadd.f32 0.0, %v7408
        %v7410 = vpop.f32.mrb[0].mxu0
        %v7411 = vpop.f32.mrb[0].mxu0
        %v7412 = vadd.f32 0.0, %v7411
        %v7413 = vpop.f32.mrb[0].mxu0
        %7414 = vmatprep.mubr.bf16.mxu0 0
        %7415 = vmatmul.mubr.bf16.gmra.mrb[0].mxu0 %v7276
        %v7416 = vpop.f32.mrb[0].mxu0
        %v7417 = vadd.f32 0.0, %v7416
        %v7418 = vpop.f32.mrb[0].mxu0
        %v7419 = vpop.f32.mrb[0].mxu0
        %v7420 = vadd.f32 0.0, %v7419
        %v7421 = vpop.f32.mrb[0].mxu0
        %7422 = vmatprep.mubr.bf16.mxu0 0
        %7423 = vmatmul.mubr.bf16.gmra.mrb[0].mxu0 %v7279
        %v7424 = vpop.f32.mrb[0].mxu0
        %v7425 = vadd.f32 0.0, %v7424
        %v7426 = vpop.f32.mrb[0].mxu0
        %v7427 = vpop.f32.mrb[0].mxu0
        %v7428 = vadd.f32 0.0, %v7427
        %v7429 = vpop.f32.mrb[0].mxu0
        %7430 = vmatprep.mubr.bf16.mxu0 0
        %7431 = vmatmul.mubr.bf16.gmra.mrb[0].mxu0 %v7282
        %v7432 = vpop.f32.mrb[0].mxu0
        %v7433 = vadd.f32 0.0, %v7432
        %v7434 = vpop.f32.mrb[0].mxu0
        %v7435 = vpop.f32.mrb[0].mxu0
        %v7436 = vadd.f32 0.0, %v7435
        %v7437 = vpop.f32.mrb[0].mxu0
        %7438 = vmatprep.mubr.bf16.mxu0 0
        %7439 = vmatmul.mubr.bf16.gmra.mrb[0].mxu0 %v7285
        %v7440 = vpop.f32.mrb[0].mxu0
        %v7441 = vadd.f32 0.0, %v7440
        %v7442 = vpop.f32.mrb[0].mxu0
        %v7443 = vpop.f32.mrb[0].mxu0
        %v7444 = vadd.f32 0.0, %v7443
        %v7445 = vpop.f32.mrb[0].mxu0
        %7446 = vmatprep.mubr.bf16.mxu0 0
        %7447 = vmatmul.mubr.bf16.gmra.mrb[0].mxu0 %v7288
        %v7448 = vpop.f32.mrb[0].mxu0
        %v7449 = vadd.f32 0.0, %v7448
        %v7450 = vpop.f32.mrb[0].mxu0
        %v7451 = vpop.f32.mrb[0].mxu0
        %v7452 = vadd.f32 0.0, %v7451
        %v7453 = vpop.f32.mrb[0].mxu0
        %7454 = vdwg.mxu0
        %v7487 = vunpack.c.l.b16 %v6799
        %v7488 = vunpack.c.l.b16 %v6800
        %v7489 = vunpack.c.l.b16 %v6801
        %v7490 = vunpack.c.l.b16 %v6802
        %v7491 = vunpack.c.l.b16 %v6803
        %v7492 = vunpack.c.l.b16 %v6804
        %v7493 = vunpack.c.l.b16 %v6805
        %v7494 = vunpack.c.l.b16 %v6806
        %v7495 = vunpack.c.l.b16 %v6807
        %v7496 = vunpack.c.l.b16 %v6808
        %v7497 = vunpack.c.l.b16 %v6809
        %v7498 = vunpack.c.l.b16 %v6810
        %v7499 = vunpack.c.l.b16 %v6811
        %v7500 = vunpack.c.l.b16 %v6812
        %v7501 = vunpack.c.l.b16 %v6813
        %v7502 = vunpack.c.l.b16 %v6814
        %v7503 = vunpack.c.l.b16 %v6815
        %v7504 = vunpack.c.l.b16 %v6816
        %v7505 = vunpack.c.l.b16 %v6817
        %v7506 = vunpack.c.l.b16 %v6818
        %v7507 = vunpack.c.l.b16 %v6819
        %v7508 = vunpack.c.l.b16 %v6820
        %v7509 = vunpack.c.l.b16 %v6821
        %v7510 = vunpack.c.l.b16 %v6822
        %v7511 = vunpack.c.l.b16 %v6823
        %v7512 = vunpack.c.l.b16 %v6824
        %v7513 = vunpack.c.l.b16 %v6825
        %v7514 = vunpack.c.l.b16 %v6826
        %v7515 = vunpack.c.l.b16 %v6827
        %v7516 = vunpack.c.l.b16 %v6828
        %v7517 = vunpack.c.l.b16 %v6829
        %v7518 = vunpack.c.l.b16 %v6830
        %v7519 = vpack.c.b16 %v7488, %v7487
        %v7520 = vpack.c.b16 %v7490, %v7489
        %v7521 = vpack.c.b16 %v7492, %v7491
        %v7522 = vpack.c.b16 %v7494, %v7493
        %v7523 = vpack.c.b16 %v7496, %v7495
        %v7524 = vpack.c.b16 %v7498, %v7497
        %v7525 = vpack.c.b16 %v7500, %v7499
        %v7526 = vpack.c.b16 %v7502, %v7501
        %v7527 = vpack.c.b16 %v7504, %v7503
        %v7528 = vpack.c.b16 %v7506, %v7505
        %v7529 = vpack.c.b16 %v7508, %v7507
        %v7530 = vpack.c.b16 %v7510, %v7509
        %v7531 = vpack.c.b16 %v7512, %v7511
        %v7532 = vpack.c.b16 %v7514, %v7513
        %v7533 = vpack.c.b16 %v7516, %v7515
        %v7534 = vpack.c.b16 %v7518, %v7517
        %v7536 = vsel %vm7241, %v7519, 0
        %v7539 = vsel %vm7241, %v7520, 0
        %v7542 = vsel %vm7241, %v7521, 0
        %v7545 = vsel %vm7241, %v7522, 0
        %v7548 = vsel %vm7241, %v7523, 0
        %v7551 = vsel %vm7241, %v7524, 0
        %v7554 = vsel %vm7241, %v7525, 0
        %v7557 = vsel %vm7241, %v7526, 0
        %v7560 = vsel %vm7241, %v7527, 0
        %v7563 = vsel %vm7241, %v7528, 0
        %v7566 = vsel %vm7241, %v7529, 0
        %v7569 = vsel %vm7241, %v7530, 0
        %v7572 = vsel %vm7241, %v7531, 0
        %v7575 = vsel %vm7241, %v7532, 0
        %v7578 = vsel %vm7241, %v7533, 0
        %v7581 = vsel %vm7241, %v7534, 0
        %v7584 = vsel %vm7290, %v6831, 0
        %7586 = vmatprep.subr.bf16.mxu0 0
        %7587 = vmatpush1.bf16.msra.mxu0 %v7584
        %7588 = vmatprep.subr.bf16.mxu0 0
        %7589 = vmatpush1.bf16.msra.mxu0 0
        %7590 = vmatprep.subr.bf16.mxu0 0
        %7591 = vmatpush1.bf16.msra.mxu0 0
        %7592 = vmatprep.subr.bf16.mxu0 0
        %7593 = vmatpush1.bf16.msra.mxu0 0
        %7594 = vmatprep.subr.bf16.mxu0 0
        %7595 = vmatpush1.bf16.msra.mxu0 0
        %7596 = vmatprep.subr.bf16.mxu0 0
        %7597 = vmatpush1.bf16.msra.mxu0 0
        %7598 = vmatprep.subr.bf16.mxu0 0
        %7599 = vmatpush1.bf16.msra.mxu0 0
        %7600 = vmatprep.subr.bf16.mxu0 0
        %7601 = vmatpush1.bf16.msra.mxu0 0
        %7602 = vmatprep.subr.bf16.mxu0 0
        %7603 = vmatpush1.bf16.msra.mxu0 0
        %7604 = vmatprep.subr.bf16.mxu0 0
        %7605 = vmatpush1.bf16.msra.mxu0 0
        %7606 = vmatprep.subr.bf16.mxu0 0
        %7607 = vmatpush1.bf16.msra.mxu0 0
        %7608 = vmatprep.subr.bf16.mxu0 0
        %7609 = vmatpush1.bf16.msra.mxu0 0
        %7610 = vmatprep.subr.bf16.mxu0 0
        %7611 = vmatpush1.bf16.msra.mxu0 0
        %7612 = vmatprep.subr.bf16.mxu0 0
        %7613 = vmatpush1.bf16.msra.mxu0 0
        %7614 = vmatprep.subr.bf16.mxu0 0
        %7615 = vmatpush1.bf16.msra.mxu0 0
        %7616 = vmatprep.subr.bf16.mxu0 0
        %7617 = vmatpush1.bf16.msra.mxu0 0
        %7618 = vmatprep.mubr.bf16.mxu0 0
        %7619 = vmatmul.mubr.bf16.gmra.mrb[0].mxu0 %v7536
        %v7620 = vpop.f32.mrb[0].mxu0
        %v7621 = vadd.f32 %v7329, %v7620
        %v7622 = vpop.f32.mrb[0].mxu0
        %v7623 = vpop.f32.mrb[0].mxu0
        %v7624 = vadd.f32 %v7332, %v7623
        %v7625 = vpop.f32.mrb[0].mxu0
        %7626 = vmatprep.mubr.bf16.mxu0 0
        %7627 = vmatmul.mubr.bf16.gmra.mrb[0].mxu0 %v7539
        %v7628 = vpop.f32.mrb[0].mxu0
        %v7629 = vadd.f32 %v7337, %v7628
        %v7630 = vpop.f32.mrb[0].mxu0
        %v7631 = vpop.f32.mrb[0].mxu0
        %v7632 = vadd.f32 %v7340, %v7631
        %v7633 = vpop.f32.mrb[0].mxu0
        %7634 = vmatprep.mubr.bf16.mxu0 0
        %7635 = vmatmul.mubr.bf16.gmra.mrb[0].mxu0 %v7542
        %v7636 = vpop.f32.mrb[0].mxu0
        %v7637 = vadd.f32 %v7345, %v7636
        %v7638 = vpop.f32.mrb[0].mxu0
        %v7639 = vpop.f32.mrb[0].mxu0
        %v7640 = vadd.f32 %v7348, %v7639
        %v7641 = vpop.f32.mrb[0].mxu0
        %7642 = vmatprep.mubr.bf16.mxu0 0
        %7643 = vmatmul.mubr.bf16.gmra.mrb[0].mxu0 %v7545
        %v7644 = vpop.f32.mrb[0].mxu0
        %v7645 = vadd.f32 %v7353, %v7644
        %v7646 = vpop.f32.mrb[0].mxu0
        %v7647 = vpop.f32.mrb[0].mxu0
        %v7648 = vadd.f32 %v7356, %v7647
        %v7649 = vpop.f32.mrb[0].mxu0
        %7650 = vmatprep.mubr.bf16.mxu0 0
        %7651 = vmatmul.mubr.bf16.gmra.mrb[0].mxu0 %v7548
        %v7652 = vpop.f32.mrb[0].mxu0
        %v7653 = vadd.f32 %v7361, %v7652
        %v7654 = vpop.f32.mrb[0].mxu0
        %v7655 = vpop.f32.mrb[0].mxu0
        %v7656 = vadd.f32 %v7364, %v7655
        %v7657 = vpop.f32.mrb[0].mxu0
        %7658 = vmatprep.mubr.bf16.mxu0 0
        %7659 = vmatmul.mubr.bf16.gmra.mrb[0].mxu0 %v7551
        %v7660 = vpop.f32.mrb[0].mxu0
        %v7661 = vadd.f32 %v7369, %v7660
        %v7662 = vpop.f32.mrb[0].mxu0
        %v7663 = vpop.f32.mrb[0].mxu0
        %v7664 = vadd.f32 %v7372, %v7663
        %v7665 = vpop.f32.mrb[0].mxu0
        %7666 = vmatprep.mubr.bf16.mxu0 0
        %7667 = vmatmul.mubr.bf16.gmra.mrb[0].mxu0 %v7554
        %v7668 = vpop.f32.mrb[0].mxu0
        %v7669 = vadd.f32 %v7377, %v7668
        %v7670 = vpop.f32.mrb[0].mxu0
        %v7671 = vpop.f32.mrb[0].mxu0
        %v7672 = vadd.f32 %v7380, %v7671
        %v7673 = vpop.f32.mrb[0].mxu0
        %7674 = vmatprep.mubr.bf16.mxu0 0
        %7675 = vmatmul.mubr.bf16.gmra.mrb[0].mxu0 %v7557
        %v7676 = vpop.f32.mrb[0].mxu0
        %v7677 = vadd.f32 %v7385, %v7676
        %v7678 = vpop.f32.mrb[0].mxu0
        %v7679 = vpop.f32.mrb[0].mxu0
        %v7680 = vadd.f32 %v7388, %v7679
        %v7681 = vpop.f32.mrb[0].mxu0
        %7682 = vmatprep.mubr.bf16.mxu0 0
        %7683 = vmatmul.mubr.bf16.gmra.mrb[0].mxu0 %v7560
        %v7684 = vpop.f32.mrb[0].mxu0
        %v7685 = vadd.f32 %v7393, %v7684
        %v7686 = vpop.f32.mrb[0].mxu0
        %v7687 = vpop.f32.mrb[0].mxu0
        %v7688 = vadd.f32 %v7396, %v7687
        %v7689 = vpop.f32.mrb[0].mxu0
        %7690 = vmatprep.mubr.bf16.mxu0 0
        %7691 = vmatmul.mubr.bf16.gmra.mrb[0].mxu0 %v7563
        %v7692 = vpop.f32.mrb[0].mxu0
        %v7693 = vadd.f32 %v7401, %v7692
        %v7694 = vpop.f32.mrb[0].mxu0
        %v7695 = vpop.f32.mrb[0].mxu0
        %v7696 = vadd.f32 %v7404, %v7695
        %v7697 = vpop.f32.mrb[0].mxu0
        %7698 = vmatprep.mubr.bf16.mxu0 0
        %7699 = vmatmul.mubr.bf16.gmra.mrb[0].mxu0 %v7566
        %v7700 = vpop.f32.mrb[0].mxu0
        %v7701 = vadd.f32 %v7409, %v7700
        %v7702 = vpop.f32.mrb[0].mxu0
        %v7703 = vpop.f32.mrb[0].mxu0
        %v7704 = vadd.f32 %v7412, %v7703
        %v7705 = vpop.f32.mrb[0].mxu0
        %7706 = vmatprep.mubr.bf16.mxu0 0
        %7707 = vmatmul.mubr.bf16.gmra.mrb[0].mxu0 %v7569
        %v7708 = vpop.f32.mrb[0].mxu0
        %v7709 = vadd.f32 %v7417, %v7708
        %v7710 = vpop.f32.mrb[0].mxu0
        %v7711 = vpop.f32.mrb[0].mxu0
        %v7712 = vadd.f32 %v7420, %v7711
        %v7713 = vpop.f32.mrb[0].mxu0
        %7714 = vmatprep.mubr.bf16.mxu0 0
        %7715 = vmatmul.mubr.bf16.gmra.mrb[0].mxu0 %v7572
        %v7716 = vpop.f32.mrb[0].mxu0
        %v7717 = vadd.f32 %v7425, %v7716
        %v7718 = vpop.f32.mrb[0].mxu0
        %v7719 = vpop.f32.mrb[0].mxu0
        %v7720 = vadd.f32 %v7428, %v7719
        %v7721 = vpop.f32.mrb[0].mxu0
        %7722 = vmatprep.mubr.bf16.mxu0 0
        %7723 = vmatmul.mubr.bf16.gmra.mrb[0].mxu0 %v7575
        %v7724 = vpop.f32.mrb[0].mxu0
        %v7725 = vadd.f32 %v7433, %v7724
        %v7726 = vpop.f32.mrb[0].mxu0
        %v7727 = vpop.f32.mrb[0].mxu0
        %v7728 = vadd.f32 %v7436, %v7727
        %v7729 = vpop.f32.mrb[0].mxu0
        %7730 = vmatprep.mubr.bf16.mxu0 0
        %7731 = vmatmul.mubr.bf16.gmra.mrb[0].mxu0 %v7578
        %v7732 = vpop.f32.mrb[0].mxu0
        %v7733 = vadd.f32 %v7441, %v7732
        %v7734 = vpop.f32.mrb[0].mxu0
        %v7735 = vpop.f32.mrb[0].mxu0
        %v7736 = vadd.f32 %v7444, %v7735
        %v7737 = vpop.f32.mrb[0].mxu0
        %7738 = vmatprep.mubr.bf16.mxu0 0
        %7739 = vmatmul.mubr.bf16.gmra.mrb[0].mxu0 %v7581
        %v7740 = vpop.f32.mrb[0].mxu0
        %v7741 = vadd.f32 %v7449, %v7740
        %v7742 = vpop.f32.mrb[0].mxu0
        %v7743 = vpop.f32.mrb[0].mxu0
        %v7744 = vadd.f32 %v7452, %v7743
        %v7745 = vpop.f32.mrb[0].mxu0
        %7746 = vdwg.mxu0
        %v7747 = vld [vmem:[#allocation2] sm:$0xe]
        %v7748 = vld [vmem:[#allocation2 + $0x14] sm:$0xe]
        %v7749 = vld [vmem:[#allocation2 + $0x28] sm:$0xe]
        %v7750 = vld [vmem:[#allocation2 + $0x3c] sm:$0xe]
        %v7751 = vld [vmem:[#allocation2 + $0x50] sm:$0xe]
        %v7752 = vld [vmem:[#allocation2 + $0x64] sm:$0xe]
        %v7753 = vld [vmem:[#allocation2 + $0x78] sm:$0xe]
        %v7754 = vld [vmem:[#allocation2 + $0x8c] sm:$0xe]
        %v7771 = vrot.slane %v7747, 5
        %v7772 = vrot.slane %v7771, 4
        %v7773 = vrot.slane %v6800, 5
        %v7774 = vsel %vm1756, %v7772, %v7773
        %v7775 = vrot.slane %v7773, 4
        %v7776 = vrot.slane %v6801, 5
        %v7777 = vsel %vm1756, %v7775, %v7776
        %v7778 = vrot.slane %v7776, 4
        %v7779 = vrot.slane %v6802, 5
        %v7780 = vsel %vm1756, %v7778, %v7779
        %v7781 = vrot.slane %v7779, 4
        %v7782 = vrot.slane %v6832, 5
        %v7783 = vsel %vm1756, %v7781, %v7782
        %v7784 = vrot.slane %v7748, 5
        %v7785 = vrot.slane %v7784, 4
        %v7786 = vrot.slane %v6804, 5
        %v7787 = vsel %vm1756, %v7785, %v7786
        %v7788 = vrot.slane %v7786, 4
        %v7789 = vrot.slane %v6805, 5
        %v7790 = vsel %vm1756, %v7788, %v7789
        %v7791 = vrot.slane %v7789, 4
        %v7792 = vrot.slane %v6806, 5
        %v7793 = vsel %vm1756, %v7791, %v7792
        %v7794 = vrot.slane %v7792, 4
        %v7795 = vrot.slane %v6833, 5
        %v7796 = vsel %vm1756, %v7794, %v7795
        %v7797 = vrot.slane %v7749, 5
        %v7798 = vrot.slane %v7797, 4
        %v7799 = vrot.slane %v6808, 5
        %v7800 = vsel %vm1756, %v7798, %v7799
        %v7801 = vrot.slane %v7799, 4
        %v7802 = vrot.slane %v6809, 5
        %v7803 = vsel %vm1756, %v7801, %v7802
        %v7804 = vrot.slane %v7802, 4
        %v7805 = vrot.slane %v6810, 5
        %v7806 = vsel %vm1756, %v7804, %v7805
        %v7807 = vrot.slane %v7805, 4
        %v7808 = vrot.slane %v6834, 5
        %v7809 = vsel %vm1756, %v7807, %v7808
        %v7810 = vrot.slane %v7750, 5
        %v7811 = vrot.slane %v7810, 4
        %v7812 = vrot.slane %v6812, 5
        %v7813 = vsel %vm1756, %v7811, %v7812
        %v7814 = vrot.slane %v7812, 4
        %v7815 = vrot.slane %v6813, 5
        %v7816 = vsel %vm1756, %v7814, %v7815
        %v7817 = vrot.slane %v7815, 4
        %v7818 = vrot.slane %v6814, 5
        %v7819 = vsel %vm1756, %v7817, %v7818
        %v7820 = vrot.slane %v7818, 4
        %v7821 = vrot.slane %v6835, 5
        %v7822 = vsel %vm1756, %v7820, %v7821
        %v7823 = vrot.slane %v7751, 5
        %v7824 = vrot.slane %v7823, 4
        %v7825 = vrot.slane %v6816, 5
        %v7826 = vsel %vm1756, %v7824, %v7825
        %v7827 = vrot.slane %v7825, 4
        %v7828 = vrot.slane %v6817, 5
        %v7829 = vsel %vm1756, %v7827, %v7828
        %v7830 = vrot.slane %v7828, 4
        %v7831 = vrot.slane %v6818, 5
        %v7832 = vsel %vm1756, %v7830, %v7831
        %v7833 = vrot.slane %v7831, 4
        %v7834 = vrot.slane %v6836, 5
        %v7835 = vsel %vm1756, %v7833, %v7834
        %v7836 = vrot.slane %v7752, 5
        %v7837 = vrot.slane %v7836, 4
        %v7838 = vrot.slane %v6820, 5
        %v7839 = vsel %vm1756, %v7837, %v7838
        %v7840 = vrot.slane %v7838, 4
        %v7841 = vrot.slane %v6821, 5
        %v7842 = vsel %vm1756, %v7840, %v7841
        %v7843 = vrot.slane %v7841, 4
        %v7844 = vrot.slane %v6822, 5
        %v7845 = vsel %vm1756, %v7843, %v7844
        %v7846 = vrot.slane %v7844, 4
        %v7847 = vrot.slane %v6837, 5
        %v7848 = vsel %vm1756, %v7846, %v7847
        %v7849 = vrot.slane %v7753, 5
        %v7850 = vrot.slane %v7849, 4
        %v7851 = vrot.slane %v6824, 5
        %v7852 = vsel %vm1756, %v7850, %v7851
        %v7853 = vrot.slane %v7851, 4
        %v7854 = vrot.slane %v6825, 5
        %v7855 = vsel %vm1756, %v7853, %v7854
        %v7856 = vrot.slane %v7854, 4
        %v7857 = vrot.slane %v6826, 5
        %v7858 = vsel %vm1756, %v7856, %v7857
        %v7859 = vrot.slane %v7857, 4
        %v7860 = vrot.slane %v6838, 5
        %v7861 = vsel %vm1756, %v7859, %v7860
        %v7862 = vrot.slane %v7754, 5
        %v7863 = vrot.slane %v7862, 4
        %v7864 = vrot.slane %v6828, 5
        %v7865 = vsel %vm1756, %v7863, %v7864
        %v7866 = vrot.slane %v7864, 4
        %v7867 = vrot.slane %v6829, 5
        %v7868 = vsel %vm1756, %v7866, %v7867
        %v7869 = vrot.slane %v7867, 4
        %v7870 = vrot.slane %v6830, 5
        %v7871 = vsel %vm1756, %v7869, %v7870
        %v7872 = vrot.slane %v7870, 4
        %v7873 = vrot.slane %v6839, 5
        %v7874 = vsel %vm1756, %v7872, %v7873
        %v7875 = vld [vmem:[#allocation14 + $0x8] sm:$0xf]
        %v7876 = vunpack.c.l.b16 %v7774
        %v7877 = vunpack.c.l.b16 %v7777
        %v7878 = vunpack.c.l.b16 %v7780
        %v7879 = vunpack.c.l.b16 %v7783
        %v7880 = vunpack.c.l.b16 %v7787
        %v7881 = vunpack.c.l.b16 %v7790
        %v7882 = vunpack.c.l.b16 %v7793
        %v7883 = vunpack.c.l.b16 %v7796
        %v7884 = vunpack.c.l.b16 %v7800
        %v7885 = vunpack.c.l.b16 %v7803
        %v7886 = vunpack.c.l.b16 %v7806
        %v7887 = vunpack.c.l.b16 %v7809
        %v7888 = vunpack.c.l.b16 %v7813
        %v7889 = vunpack.c.l.b16 %v7816
        %v7890 = vunpack.c.l.b16 %v7819
        %v7891 = vunpack.c.l.b16 %v7822
        %v7892 = vunpack.c.l.b16 %v7826
        %v7893 = vunpack.c.l.b16 %v7829
        %v7894 = vunpack.c.l.b16 %v7832
        %v7895 = vunpack.c.l.b16 %v7835
        %v7896 = vunpack.c.l.b16 %v7839
        %v7897 = vunpack.c.l.b16 %v7842
        %v7898 = vunpack.c.l.b16 %v7845
        %v7899 = vunpack.c.l.b16 %v7848
        %v7900 = vunpack.c.l.b16 %v7852
        %v7901 = vunpack.c.l.b16 %v7855
        %v7902 = vunpack.c.l.b16 %v7858
        %v7903 = vunpack.c.l.b16 %v7861
        %v7904 = vunpack.c.l.b16 %v7865
        %v7905 = vunpack.c.l.b16 %v7868
        %v7906 = vunpack.c.l.b16 %v7871
        %v7907 = vunpack.c.l.b16 %v7874
        %v7908 = vpack.c.b16 %v7877, %v7876
        %v7909 = vpack.c.b16 %v7879, %v7878
        %v7910 = vpack.c.b16 %v7881, %v7880
        %v7911 = vpack.c.b16 %v7883, %v7882
        %v7912 = vpack.c.b16 %v7885, %v7884
        %v7913 = vpack.c.b16 %v7887, %v7886
        %v7914 = vpack.c.b16 %v7889, %v7888
        %v7915 = vpack.c.b16 %v7891, %v7890
        %v7916 = vpack.c.b16 %v7893, %v7892
        %v7917 = vpack.c.b16 %v7895, %v7894
        %v7918 = vpack.c.b16 %v7897, %v7896
        %v7919 = vpack.c.b16 %v7899, %v7898
        %v7920 = vpack.c.b16 %v7901, %v7900
        %v7921 = vpack.c.b16 %v7903, %v7902
        %v7922 = vpack.c.b16 %v7905, %v7904
        %v7923 = vpack.c.b16 %v7907, %v7906
        %v7925 = vsel %vm7241, %v7908, 0
        %v7928 = vsel %vm7241, %v7909, 0
        %v7931 = vsel %vm7241, %v7910, 0
        %v7934 = vsel %vm7241, %v7911, 0
        %v7937 = vsel %vm7241, %v7912, 0
        %v7940 = vsel %vm7241, %v7913, 0
        %v7943 = vsel %vm7241, %v7914, 0
        %v7946 = vsel %vm7241, %v7915, 0
        %v7949 = vsel %vm7241, %v7916, 0
        %v7952 = vsel %vm7241, %v7917, 0
        %v7955 = vsel %vm7241, %v7918, 0
        %v7958 = vsel %vm7241, %v7919, 0
        %v7961 = vsel %vm7241, %v7920, 0
        %v7964 = vsel %vm7241, %v7921, 0
        %v7967 = vsel %vm7241, %v7922, 0
        %v7970 = vsel %vm7241, %v7923, 0
        %v7973 = vsel %vm7290, %v7875, 0
        %7975 = vmatprep.subr.bf16.mxu0 0
        %7976 = vmatpush1.bf16.msra.mxu0 %v7973
        %7977 = vmatprep.subr.bf16.mxu0 0
        %7978 = vmatpush1.bf16.msra.mxu0 0
        %7979 = vmatprep.subr.bf16.mxu0 0
        %7980 = vmatpush1.bf16.msra.mxu0 0
        %7981 = vmatprep.subr.bf16.mxu0 0
        %7982 = vmatpush1.bf16.msra.mxu0 0
        %7983 = vmatprep.subr.bf16.mxu0 0
        %7984 = vmatpush1.bf16.msra.mxu0 0
        %7985 = vmatprep.subr.bf16.mxu0 0
        %7986 = vmatpush1.bf16.msra.mxu0 0
        %7987 = vmatprep.subr.bf16.mxu0 0
        %7988 = vmatpush1.bf16.msra.mxu0 0
        %7989 = vmatprep.subr.bf16.mxu0 0
        %7990 = vmatpush1.bf16.msra.mxu0 0
        %7991 = vmatprep.subr.bf16.mxu0 0
        %7992 = vmatpush1.bf16.msra.mxu0 0
        %7993 = vmatprep.subr.bf16.mxu0 0
        %7994 = vmatpush1.bf16.msra.mxu0 0
        %7995 = vmatprep.subr.bf16.mxu0 0
        %7996 = vmatpush1.bf16.msra.mxu0 0
        %7997 = vmatprep.subr.bf16.mxu0 0
        %7998 = vmatpush1.bf16.msra.mxu0 0
        %7999 = vmatprep.subr.bf16.mxu0 0
        %8000 = vmatpush1.bf16.msra.mxu0 0
        %8001 = vmatprep.subr.bf16.mxu0 0
        %8002 = vmatpush1.bf16.msra.mxu0 0
        %8003 = vmatprep.subr.bf16.mxu0 0
        %8004 = vmatpush1.bf16.msra.mxu0 0
        %8005 = vmatprep.subr.bf16.mxu0 0
        %8006 = vmatpush1.bf16.msra.mxu0 0
        %8007 = vmatprep.mubr.bf16.mxu0 0
        %8008 = vmatmul.mubr.bf16.gmra.mrb[0].mxu0 %v7925
        %v8009 = vpop.f32.mrb[0].mxu0
        %v8010 = vadd.f32 0.0, %v8009
        %v8011 = vpop.f32.mrb[0].mxu0
        %v8012 = vpop.f32.mrb[0].mxu0
        %v8013 = vadd.f32 0.0, %v8012
        %v8014 = vpop.f32.mrb[0].mxu0
        %8015 = vmatprep.mubr.bf16.mxu0 0
        %8016 = vmatmul.mubr.bf16.gmra.mrb[0].mxu0 %v7928
        %v8017 = vpop.f32.mrb[0].mxu0
        %v8018 = vadd.f32 0.0, %v8017
        %v8019 = vpop.f32.mrb[0].mxu0
        %v8020 = vpop.f32.mrb[0].mxu0
        %v8021 = vadd.f32 0.0, %v8020
        %v8022 = vpop.f32.mrb[0].mxu0
        %8023 = vmatprep.mubr.bf16.mxu0 0
        %8024 = vmatmul.mubr.bf16.gmra.mrb[0].mxu0 %v7931
        %v8025 = vpop.f32.mrb[0].mxu0
        %v8026 = vadd.f32 0.0, %v8025
        %v8027 = vpop.f32.mrb[0].mxu0
        %v8028 = vpop.f32.mrb[0].mxu0
        %v8029 = vadd.f32 0.0, %v8028
        %v8030 = vpop.f32.mrb[0].mxu0
        %8031 = vmatprep.mubr.bf16.mxu0 0
        %8032 = vmatmul.mubr.bf16.gmra.mrb[0].mxu0 %v7934
        %v8033 = vpop.f32.mrb[0].mxu0
        %v8034 = vadd.f32 0.0, %v8033
        %v8035 = vpop.f32.mrb[0].mxu0
        %v8036 = vpop.f32.mrb[0].mxu0
        %v8037 = vadd.f32 0.0, %v8036
        %v8038 = vpop.f32.mrb[0].mxu0
        %8039 = vmatprep.mubr.bf16.mxu0 0
        %8040 = vmatmul.mubr.bf16.gmra.mrb[0].mxu0 %v7937
        %v8041 = vpop.f32.mrb[0].mxu0
        %v8042 = vadd.f32 0.0, %v8041
        %v8043 = vpop.f32.mrb[0].mxu0
        %v8044 = vpop.f32.mrb[0].mxu0
        %v8045 = vadd.f32 0.0, %v8044
        %v8046 = vpop.f32.mrb[0].mxu0
        %8047 = vmatprep.mubr.bf16.mxu0 0
        %8048 = vmatmul.mubr.bf16.gmra.mrb[0].mxu0 %v7940
        %v8049 = vpop.f32.mrb[0].mxu0
        %v8050 = vadd.f32 0.0, %v8049
        %v8051 = vpop.f32.mrb[0].mxu0
        %v8052 = vpop.f32.mrb[0].mxu0
        %v8053 = vadd.f32 0.0, %v8052
        %v8054 = vpop.f32.mrb[0].mxu0
        %8055 = vmatprep.mubr.bf16.mxu0 0
        %8056 = vmatmul.mubr.bf16.gmra.mrb[0].mxu0 %v7943
        %v8057 = vpop.f32.mrb[0].mxu0
        %v8058 = vadd.f32 0.0, %v8057
        %v8059 = vpop.f32.mrb[0].mxu0
        %v8060 = vpop.f32.mrb[0].mxu0
        %v8061 = vadd.f32 0.0, %v8060
        %v8062 = vpop.f32.mrb[0].mxu0
        %8063 = vmatprep.mubr.bf16.mxu0 0
        %8064 = vmatmul.mubr.bf16.gmra.mrb[0].mxu0 %v7946
        %v8065 = vpop.f32.mrb[0].mxu0
        %v8066 = vadd.f32 0.0, %v8065
        %v8067 = vpop.f32.mrb[0].mxu0
        %v8068 = vpop.f32.mrb[0].mxu0
        %v8069 = vadd.f32 0.0, %v8068
        %v8070 = vpop.f32.mrb[0].mxu0
        %8071 = vmatprep.mubr.bf16.mxu0 0
        %8072 = vmatmul.mubr.bf16.gmra.mrb[0].mxu0 %v7949
        %v8073 = vpop.f32.mrb[0].mxu0
        %v8074 = vadd.f32 0.0, %v8073
        %v8075 = vpop.f32.mrb[0].mxu0
        %v8076 = vpop.f32.mrb[0].mxu0
        %v8077 = vadd.f32 0.0, %v8076
        %v8078 = vpop.f32.mrb[0].mxu0
        %8079 = vmatprep.mubr.bf16.mxu0 0
        %8080 = vmatmul.mubr.bf16.gmra.mrb[0].mxu0 %v7952
        %v8081 = vpop.f32.mrb[0].mxu0
        %v8082 = vadd.f32 0.0, %v8081
        %v8083 = vpop.f32.mrb[0].mxu0
        %v8084 = vpop.f32.mrb[0].mxu0
        %v8085 = vadd.f32 0.0, %v8084
        %v8086 = vpop.f32.mrb[0].mxu0
        %8087 = vmatprep.mubr.bf16.mxu0 0
        %8088 = vmatmul.mubr.bf16.gmra.mrb[0].mxu0 %v7955
        %v8089 = vpop.f32.mrb[0].mxu0
        %v8090 = vadd.f32 0.0, %v8089
        %v8091 = vpop.f32.mrb[0].mxu0
        %v8092 = vpop.f32.mrb[0].mxu0
        %v8093 = vadd.f32 0.0, %v8092
        %v8094 = vpop.f32.mrb[0].mxu0
        %8095 = vmatprep.mubr.bf16.mxu0 0
        %8096 = vmatmul.mubr.bf16.gmra.mrb[0].mxu0 %v7958
        %v8097 = vpop.f32.mrb[0].mxu0
        %v8098 = vadd.f32 0.0, %v8097
        %v8099 = vpop.f32.mrb[0].mxu0
        %v8100 = vpop.f32.mrb[0].mxu0
        %v8101 = vadd.f32 0.0, %v8100
        %v8102 = vpop.f32.mrb[0].mxu0
        %8103 = vmatprep.mubr.bf16.mxu0 0
        %8104 = vmatmul.mubr.bf16.gmra.mrb[0].mxu0 %v7961
        %v8105 = vpop.f32.mrb[0].mxu0
        %v8106 = vadd.f32 0.0, %v8105
        %v8107 = vpop.f32.mrb[0].mxu0
        %v8108 = vpop.f32.mrb[0].mxu0
        %v8109 = vadd.f32 0.0, %v8108
        %v8110 = vpop.f32.mrb[0].mxu0
        %8111 = vmatprep.mubr.bf16.mxu0 0
        %8112 = vmatmul.mubr.bf16.gmra.mrb[0].mxu0 %v7964
        %v8113 = vpop.f32.mrb[0].mxu0
        %v8114 = vadd.f32 0.0, %v8113
        %v8115 = vpop.f32.mrb[0].mxu0
        %v8116 = vpop.f32.mrb[0].mxu0
        %v8117 = vadd.f32 0.0, %v8116
        %v8118 = vpop.f32.mrb[0].mxu0
        %8119 = vmatprep.mubr.bf16.mxu0 0
        %8120 = vmatmul.mubr.bf16.gmra.mrb[0].mxu0 %v7967
        %v8121 = vpop.f32.mrb[0].mxu0
        %v8122 = vadd.f32 0.0, %v8121
        %v8123 = vpop.f32.mrb[0].mxu0
        %v8124 = vpop.f32.mrb[0].mxu0
        %v8125 = vadd.f32 0.0, %v8124
        %v8126 = vpop.f32.mrb[0].mxu0
        %8127 = vmatprep.mubr.bf16.mxu0 0
        %8128 = vmatmul.mubr.bf16.gmra.mrb[0].mxu0 %v7970
        %v8129 = vpop.f32.mrb[0].mxu0
        %v8130 = vadd.f32 0.0, %v8129
        %v8131 = vpop.f32.mrb[0].mxu0
        %v8132 = vpop.f32.mrb[0].mxu0
        %v8133 = vadd.f32 0.0, %v8132
        %v8134 = vpop.f32.mrb[0].mxu0
        %8135 = vdwg.mxu0
        %v8136 = vadd.f32 %v7621, %v8010
        %v8137 = vadd.f32 %v7624, %v8013
        %v8138 = vadd.f32 %v7629, %v8018
        %v8139 = vadd.f32 %v7632, %v8021
        %v8140 = vadd.f32 %v7637, %v8026
        %v8141 = vadd.f32 %v7640, %v8029
        %v8142 = vadd.f32 %v7645, %v8034
        %v8143 = vadd.f32 %v7648, %v8037
        %v8144 = vadd.f32 %v7653, %v8042
        %v8145 = vadd.f32 %v7656, %v8045
        %v8146 = vadd.f32 %v7661, %v8050
        %v8147 = vadd.f32 %v7664, %v8053
        %v8148 = vadd.f32 %v7669, %v8058
        %v8149 = vadd.f32 %v7672, %v8061
        %v8150 = vadd.f32 %v7677, %v8066
        %v8151 = vadd.f32 %v7680, %v8069
        %v8152 = vadd.f32 %v7685, %v8074
        %v8153 = vadd.f32 %v7688, %v8077
        %v8154 = vadd.f32 %v7693, %v8082
        %v8155 = vadd.f32 %v7696, %v8085
        %v8156 = vadd.f32 %v7701, %v8090
        %v8157 = vadd.f32 %v7704, %v8093
        %v8158 = vadd.f32 %v7709, %v8098
        %v8159 = vadd.f32 %v7712, %v8101
        %v8160 = vadd.f32 %v7717, %v8106
        %v8161 = vadd.f32 %v7720, %v8109
        %v8162 = vadd.f32 %v7725, %v8114
        %v8163 = vadd.f32 %v7728, %v8117
        %v8164 = vadd.f32 %v7733, %v8122
        %v8165 = vadd.f32 %v7736, %v8125
        %v8166 = vadd.f32 %v7741, %v8130
        %v8167 = vadd.f32 %v7744, %v8133
        %s8168 = scalar_lea.vmem [#allocation2], 20
        %v8169 = vld [vmem:[%s8168] sm:$0xf]
        %v8170 = vld [vmem:[%s8168 + $0x4] sm:$0xf]
        %v8171 = vld [vmem:[%s8168 + $0x8] sm:$0xf]
        %v8172 = vld [vmem:[%s8168 + $0xc] sm:$0xf]
        %v8173 = vld [vmem:[%s8168 + $0x14] sm:$0xf]
        %v8174 = vld [vmem:[%s8168 + $0x18] sm:$0xf]
        %v8175 = vld [vmem:[%s8168 + $0x1c] sm:$0xf]
        %v8176 = vld [vmem:[%s8168 + $0x20] sm:$0xf]
        %v8177 = vld [vmem:[%s8168 + $0x28] sm:$0xf]
        %v8178 = vld [vmem:[%s8168 + $0x2c] sm:$0xf]
        %v8179 = vld [vmem:[%s8168 + $0x30] sm:$0xf]
        %v8180 = vld [vmem:[%s8168 + $0x34] sm:$0xf]
        %v8181 = vld [vmem:[%s8168 + $0x3c] sm:$0xf]
        %v8182 = vld [vmem:[%s8168 + $0x40] sm:$0xf]
        %v8183 = vld [vmem:[%s8168 + $0x44] sm:$0xf]
        %v8184 = vld [vmem:[%s8168 + $0x48] sm:$0xf]
        %v8185 = vld [vmem:[%s8168 + $0x50] sm:$0xf]
        %v8186 = vld [vmem:[%s8168 + $0x54] sm:$0xf]
        %v8187 = vld [vmem:[%s8168 + $0x58] sm:$0xf]
        %v8188 = vld [vmem:[%s8168 + $0x5c] sm:$0xf]
        %v8189 = vld [vmem:[%s8168 + $0x64] sm:$0xf]
        %v8190 = vld [vmem:[%s8168 + $0x68] sm:$0xf]
        %v8191 = vld [vmem:[%s8168 + $0x6c] sm:$0xf]
        %v8192 = vld [vmem:[%s8168 + $0x70] sm:$0xf]
        %v8193 = vld [vmem:[%s8168 + $0x78] sm:$0xf]
        %v8194 = vld [vmem:[%s8168 + $0x7c] sm:$0xf]
        %v8195 = vld [vmem:[%s8168 + $0x80] sm:$0xf]
        %v8196 = vld [vmem:[%s8168 + $0x84] sm:$0xf]
        %v8197 = vld [vmem:[%s8168 + $0x8c] sm:$0xf]
        %v8198 = vld [vmem:[%s8168 + $0x90] sm:$0xf]
        %v8199 = vld [vmem:[%s8168 + $0x94] sm:$0xf]
        %v8200 = vld [vmem:[%s8168 + $0x98] sm:$0xf]
        %v8201 = vld [vmem:[#allocation14 + $0xc] sm:$0xf]
        %v8234 = vunpack.c.l.b16 %v8169
        %v8235 = vunpack.c.l.b16 %v8170
        %v8236 = vunpack.c.l.b16 %v8171
        %v8237 = vunpack.c.l.b16 %v8172
        %v8238 = vunpack.c.l.b16 %v8173
        %v8239 = vunpack.c.l.b16 %v8174
        %v8240 = vunpack.c.l.b16 %v8175
        %v8241 = vunpack.c.l.b16 %v8176
        %v8242 = vunpack.c.l.b16 %v8177
        %v8243 = vunpack.c.l.b16 %v8178
        %v8244 = vunpack.c.l.b16 %v8179
        %v8245 = vunpack.c.l.b16 %v8180
        %v8246 = vunpack.c.l.b16 %v8181
        %v8247 = vunpack.c.l.b16 %v8182
        %v8248 = vunpack.c.l.b16 %v8183
        %v8249 = vunpack.c.l.b16 %v8184
        %v8250 = vunpack.c.l.b16 %v8185
        %v8251 = vunpack.c.l.b16 %v8186
        %v8252 = vunpack.c.l.b16 %v8187
        %v8253 = vunpack.c.l.b16 %v8188
        %v8254 = vunpack.c.l.b16 %v8189
        %v8255 = vunpack.c.l.b16 %v8190
        %v8256 = vunpack.c.l.b16 %v8191
        %v8257 = vunpack.c.l.b16 %v8192
        %v8258 = vunpack.c.l.b16 %v8193
        %v8259 = vunpack.c.l.b16 %v8194
        %v8260 = vunpack.c.l.b16 %v8195
        %v8261 = vunpack.c.l.b16 %v8196
        %v8262 = vunpack.c.l.b16 %v8197
        %v8263 = vunpack.c.l.b16 %v8198
        %v8264 = vunpack.c.l.b16 %v8199
        %v8265 = vunpack.c.l.b16 %v8200
        %v8266 = vpack.c.b16 %v8235, %v8234
        %v8267 = vpack.c.b16 %v8237, %v8236
        %v8268 = vpack.c.b16 %v8239, %v8238
        %v8269 = vpack.c.b16 %v8241, %v8240
        %v8270 = vpack.c.b16 %v8243, %v8242
        %v8271 = vpack.c.b16 %v8245, %v8244
        %v8272 = vpack.c.b16 %v8247, %v8246
        %v8273 = vpack.c.b16 %v8249, %v8248
        %v8274 = vpack.c.b16 %v8251, %v8250
        %v8275 = vpack.c.b16 %v8253, %v8252
        %v8276 = vpack.c.b16 %v8255, %v8254
        %v8277 = vpack.c.b16 %v8257, %v8256
        %v8278 = vpack.c.b16 %v8259, %v8258
        %v8279 = vpack.c.b16 %v8261, %v8260
        %v8280 = vpack.c.b16 %v8263, %v8262
        %v8281 = vpack.c.b16 %v8265, %v8264
        %v8283 = vsel %vm7241, %v8266, 0
        %v8286 = vsel %vm7241, %v8267, 0
        %v8289 = vsel %vm7241, %v8268, 0
        %v8292 = vsel %vm7241, %v8269, 0
        %v8295 = vsel %vm7241, %v8270, 0
        %v8298 = vsel %vm7241, %v8271, 0
        %v8301 = vsel %vm7241, %v8272, 0
        %v8304 = vsel %vm7241, %v8273, 0
        %v8307 = vsel %vm7241, %v8274, 0
        %v8310 = vsel %vm7241, %v8275, 0
        %v8313 = vsel %vm7241, %v8276, 0
        %v8316 = vsel %vm7241, %v8277, 0
        %v8319 = vsel %vm7241, %v8278, 0
        %v8322 = vsel %vm7241, %v8279, 0
        %v8325 = vsel %vm7241, %v8280, 0
        %v8328 = vsel %vm7241, %v8281, 0
        %v8331 = vsel %vm7290, %v8201, 0
        %8333 = vmatprep.subr.bf16.mxu0 0
        %8334 = vmatpush1.bf16.msra.mxu0 %v8331
        %8335 = vmatprep.subr.bf16.mxu0 0
        %8336 = vmatpush1.bf16.msra.mxu0 0
        %8337 = vmatprep.subr.bf16.mxu0 0
        %8338 = vmatpush1.bf16.msra.mxu0 0
        %8339 = vmatprep.subr.bf16.mxu0 0
        %8340 = vmatpush1.bf16.msra.mxu0 0
        %8341 = vmatprep.subr.bf16.mxu0 0
        %8342 = vmatpush1.bf16.msra.mxu0 0
        %8343 = vmatprep.subr.bf16.mxu0 0
        %8344 = vmatpush1.bf16.msra.mxu0 0
        %8345 = vmatprep.subr.bf16.mxu0 0
        %8346 = vmatpush1.bf16.msra.mxu0 0
        %8347 = vmatprep.subr.bf16.mxu0 0
        %8348 = vmatpush1.bf16.msra.mxu0 0
        %8349 = vmatprep.subr.bf16.mxu0 0
        %8350 = vmatpush1.bf16.msra.mxu0 0
        %8351 = vmatprep.subr.bf16.mxu0 0
        %8352 = vmatpush1.bf16.msra.mxu0 0
        %8353 = vmatprep.subr.bf16.mxu0 0
        %8354 = vmatpush1.bf16.msra.mxu0 0
        %8355 = vmatprep.subr.bf16.mxu0 0
        %8356 = vmatpush1.bf16.msra.mxu0 0
        %8357 = vmatprep.subr.bf16.mxu0 0
        %8358 = vmatpush1.bf16.msra.mxu0 0
        %8359 = vmatprep.subr.bf16.mxu0 0
        %8360 = vmatpush1.bf16.msra.mxu0 0
        %8361 = vmatprep.subr.bf16.mxu0 0
        %8362 = vmatpush1.bf16.msra.mxu0 0
        %8363 = vmatprep.subr.bf16.mxu0 0
        %8364 = vmatpush1.bf16.msra.mxu0 0
        %8365 = vmatprep.mubr.bf16.mxu0 0
        %8366 = vmatmul.mubr.bf16.gmra.mrb[0].mxu0 %v8283
        %v8367 = vpop.f32.mrb[0].mxu0
        %v8368 = vadd.f32 0.0, %v8367
        %v8369 = vpop.f32.mrb[0].mxu0
        %v8370 = vpop.f32.mrb[0].mxu0
        %v8371 = vadd.f32 0.0, %v8370
        %v8372 = vpop.f32.mrb[0].mxu0
        %8373 = vmatprep.mubr.bf16.mxu0 0
        %8374 = vmatmul.mubr.bf16.gmra.mrb[0].mxu0 %v8286
        %v8375 = vpop.f32.mrb[0].mxu0
        %v8376 = vadd.f32 0.0, %v8375
        %v8377 = vpop.f32.mrb[0].mxu0
        %v8378 = vpop.f32.mrb[0].mxu0
        %v8379 = vadd.f32 0.0, %v8378
        %v8380 = vpop.f32.mrb[0].mxu0
        %8381 = vmatprep.mubr.bf16.mxu0 0
        %8382 = vmatmul.mubr.bf16.gmra.mrb[0].mxu0 %v8289
        %v8383 = vpop.f32.mrb[0].mxu0
        %v8384 = vadd.f32 0.0, %v8383
        %v8385 = vpop.f32.mrb[0].mxu0
        %v8386 = vpop.f32.mrb[0].mxu0
        %v8387 = vadd.f32 0.0, %v8386
        %v8388 = vpop.f32.mrb[0].mxu0
        %8389 = vmatprep.mubr.bf16.mxu0 0
        %8390 = vmatmul.mubr.bf16.gmra.mrb[0].mxu0 %v8292
        %v8391 = vpop.f32.mrb[0].mxu0
        %v8392 = vadd.f32 0.0, %v8391
        %v8393 = vpop.f32.mrb[0].mxu0
        %v8394 = vpop.f32.mrb[0].mxu0
        %v8395 = vadd.f32 0.0, %v8394
        %v8396 = vpop.f32.mrb[0].mxu0
        %8397 = vmatprep.mubr.bf16.mxu0 0
        %8398 = vmatmul.mubr.bf16.gmra.mrb[0].mxu0 %v8295
        %v8399 = vpop.f32.mrb[0].mxu0
        %v8400 = vadd.f32 0.0, %v8399
        %v8401 = vpop.f32.mrb[0].mxu0
        %v8402 = vpop.f32.mrb[0].mxu0
        %v8403 = vadd.f32 0.0, %v8402
        %v8404 = vpop.f32.mrb[0].mxu0
        %8405 = vmatprep.mubr.bf16.mxu0 0
        %8406 = vmatmul.mubr.bf16.gmra.mrb[0].mxu0 %v8298
        %v8407 = vpop.f32.mrb[0].mxu0
        %v8408 = vadd.f32 0.0, %v8407
        %v8409 = vpop.f32.mrb[0].mxu0
        %v8410 = vpop.f32.mrb[0].mxu0
        %v8411 = vadd.f32 0.0, %v8410
        %v8412 = vpop.f32.mrb[0].mxu0
        %8413 = vmatprep.mubr.bf16.mxu0 0
        %8414 = vmatmul.mubr.bf16.gmra.mrb[0].mxu0 %v8301
        %v8415 = vpop.f32.mrb[0].mxu0
        %v8416 = vadd.f32 0.0, %v8415
        %v8417 = vpop.f32.mrb[0].mxu0
        %v8418 = vpop.f32.mrb[0].mxu0
        %v8419 = vadd.f32 0.0, %v8418
        %v8420 = vpop.f32.mrb[0].mxu0
        %8421 = vmatprep.mubr.bf16.mxu0 0
        %8422 = vmatmul.mubr.bf16.gmra.mrb[0].mxu0 %v8304
        %v8423 = vpop.f32.mrb[0].mxu0
        %v8424 = vadd.f32 0.0, %v8423
        %v8425 = vpop.f32.mrb[0].mxu0
        %v8426 = vpop.f32.mrb[0].mxu0
        %v8427 = vadd.f32 0.0, %v8426
        %v8428 = vpop.f32.mrb[0].mxu0
        %8429 = vmatprep.mubr.bf16.mxu0 0
        %8430 = vmatmul.mubr.bf16.gmra.mrb[0].mxu0 %v8307
        %v8431 = vpop.f32.mrb[0].mxu0
        %v8432 = vadd.f32 0.0, %v8431
        %v8433 = vpop.f32.mrb[0].mxu0
        %v8434 = vpop.f32.mrb[0].mxu0
        %v8435 = vadd.f32 0.0, %v8434
        %v8436 = vpop.f32.mrb[0].mxu0
        %8437 = vmatprep.mubr.bf16.mxu0 0
        %8438 = vmatmul.mubr.bf16.gmra.mrb[0].mxu0 %v8310
        %v8439 = vpop.f32.mrb[0].mxu0
        %v8440 = vadd.f32 0.0, %v8439
        %v8441 = vpop.f32.mrb[0].mxu0
        %v8442 = vpop.f32.mrb[0].mxu0
        %v8443 = vadd.f32 0.0, %v8442
        %v8444 = vpop.f32.mrb[0].mxu0
        %8445 = vmatprep.mubr.bf16.mxu0 0
        %8446 = vmatmul.mubr.bf16.gmra.mrb[0].mxu0 %v8313
        %v8447 = vpop.f32.mrb[0].mxu0
        %v8448 = vadd.f32 0.0, %v8447
        %v8449 = vpop.f32.mrb[0].mxu0
        %v8450 = vpop.f32.mrb[0].mxu0
        %v8451 = vadd.f32 0.0, %v8450
        %v8452 = vpop.f32.mrb[0].mxu0
        %8453 = vmatprep.mubr.bf16.mxu0 0
        %8454 = vmatmul.mubr.bf16.gmra.mrb[0].mxu0 %v8316
        %v8455 = vpop.f32.mrb[0].mxu0
        %v8456 = vadd.f32 0.0, %v8455
        %v8457 = vpop.f32.mrb[0].mxu0
        %v8458 = vpop.f32.mrb[0].mxu0
        %v8459 = vadd.f32 0.0, %v8458
        %v8460 = vpop.f32.mrb[0].mxu0
        %8461 = vmatprep.mubr.bf16.mxu0 0
        %8462 = vmatmul.mubr.bf16.gmra.mrb[0].mxu0 %v8319
        %v8463 = vpop.f32.mrb[0].mxu0
        %v8464 = vadd.f32 0.0, %v8463
        %v8465 = vpop.f32.mrb[0].mxu0
        %v8466 = vpop.f32.mrb[0].mxu0
        %v8467 = vadd.f32 0.0, %v8466
        %v8468 = vpop.f32.mrb[0].mxu0
        %8469 = vmatprep.mubr.bf16.mxu0 0
        %8470 = vmatmul.mubr.bf16.gmra.mrb[0].mxu0 %v8322
        %v8471 = vpop.f32.mrb[0].mxu0
        %v8472 = vadd.f32 0.0, %v8471
        %v8473 = vpop.f32.mrb[0].mxu0
        %v8474 = vpop.f32.mrb[0].mxu0
        %v8475 = vadd.f32 0.0, %v8474
        %v8476 = vpop.f32.mrb[0].mxu0
        %8477 = vmatprep.mubr.bf16.mxu0 0
        %8478 = vmatmul.mubr.bf16.gmra.mrb[0].mxu0 %v8325
        %v8479 = vpop.f32.mrb[0].mxu0
        %v8480 = vadd.f32 0.0, %v8479
        %v8481 = vpop.f32.mrb[0].mxu0
        %v8482 = vpop.f32.mrb[0].mxu0
        %v8483 = vadd.f32 0.0, %v8482
        %v8484 = vpop.f32.mrb[0].mxu0
        %8485 = vmatprep.mubr.bf16.mxu0 0
        %8486 = vmatmul.mubr.bf16.gmra.mrb[0].mxu0 %v8328
        %v8487 = vpop.f32.mrb[0].mxu0
        %v8488 = vadd.f32 0.0, %v8487
        %v8489 = vpop.f32.mrb[0].mxu0
        %v8490 = vpop.f32.mrb[0].mxu0
        %v8491 = vadd.f32 0.0, %v8490
        %v8492 = vpop.f32.mrb[0].mxu0
        %8493 = vdwg.mxu0
        %v8494 = vadd.f32 %v8136, %v8368
        %v8495 = vadd.f32 %v8137, %v8371
        %v8496 = vadd.f32 %v8138, %v8376
        %v8497 = vadd.f32 %v8139, %v8379
        %v8498 = vadd.f32 %v8140, %v8384
        %v8499 = vadd.f32 %v8141, %v8387
        %v8500 = vadd.f32 %v8142, %v8392
        %v8501 = vadd.f32 %v8143, %v8395
        %v8502 = vadd.f32 %v8144, %v8400
        %v8503 = vadd.f32 %v8145, %v8403
        %v8504 = vadd.f32 %v8146, %v8408
        %v8505 = vadd.f32 %v8147, %v8411
        %v8506 = vadd.f32 %v8148, %v8416
        %v8507 = vadd.f32 %v8149, %v8419
        %v8508 = vadd.f32 %v8150, %v8424
        %v8509 = vadd.f32 %v8151, %v8427
        %v8510 = vadd.f32 %v8152, %v8432
        %v8511 = vadd.f32 %v8153, %v8435
        %v8512 = vadd.f32 %v8154, %v8440
        %v8513 = vadd.f32 %v8155, %v8443
        %v8514 = vadd.f32 %v8156, %v8448
        %v8515 = vadd.f32 %v8157, %v8451
        %v8516 = vadd.f32 %v8158, %v8456
        %v8517 = vadd.f32 %v8159, %v8459
        %v8518 = vadd.f32 %v8160, %v8464
        %v8519 = vadd.f32 %v8161, %v8467
        %v8520 = vadd.f32 %v8162, %v8472
        %v8521 = vadd.f32 %v8163, %v8475
        %v8522 = vadd.f32 %v8164, %v8480
        %v8523 = vadd.f32 %v8165, %v8483
        %v8524 = vadd.f32 %v8166, %v8488
        %v8525 = vadd.f32 %v8167, %v8491
        %v8526 = vld [vmem:[%s8168] sm:$0xf]
        %v8527 = vld [vmem:[%s8168 + $0x4] sm:$0xf]
        %v8528 = vld [vmem:[%s8168 + $0x8] sm:$0xf]
        %v8529 = vld [vmem:[%s8168 + $0xc] sm:$0xf]
        %v8530 = vld [vmem:[%s8168 + $0x10] sm:$0x1]
        %v8531 = vld [vmem:[%s8168 + $0x14] sm:$0xf]
        %v8532 = vld [vmem:[%s8168 + $0x18] sm:$0xf]
        %v8533 = vld [vmem:[%s8168 + $0x1c] sm:$0xf]
        %v8534 = vld [vmem:[%s8168 + $0x20] sm:$0xf]
        %v8535 = vld [vmem:[%s8168 + $0x24] sm:$0x1]
        %v8536 = vld [vmem:[%s8168 + $0x28] sm:$0xf]
        %v8537 = vld [vmem:[%s8168 + $0x2c] sm:$0xf]
        %v8538 = vld [vmem:[%s8168 + $0x30] sm:$0xf]
        %v8539 = vld [vmem:[%s8168 + $0x34] sm:$0xf]
        %v8540 = vld [vmem:[%s8168 + $0x38] sm:$0x1]
        %v8541 = vld [vmem:[%s8168 + $0x3c] sm:$0xf]
        %v8542 = vld [vmem:[%s8168 + $0x40] sm:$0xf]
        %v8543 = vld [vmem:[%s8168 + $0x44] sm:$0xf]
        %v8544 = vld [vmem:[%s8168 + $0x48] sm:$0xf]
        %v8545 = vld [vmem:[%s8168 + $0x4c] sm:$0x1]
        %v8546 = vld [vmem:[%s8168 + $0x50] sm:$0xf]
        %v8547 = vld [vmem:[%s8168 + $0x54] sm:$0xf]
        %v8548 = vld [vmem:[%s8168 + $0x58] sm:$0xf]
        %v8549 = vld [vmem:[%s8168 + $0x5c] sm:$0xf]
        %v8550 = vld [vmem:[%s8168 + $0x60] sm:$0x1]
        %v8551 = vld [vmem:[%s8168 + $0x64] sm:$0xf]
        %v8552 = vld [vmem:[%s8168 + $0x68] sm:$0xf]
        %v8553 = vld [vmem:[%s8168 + $0x6c] sm:$0xf]
        %v8554 = vld [vmem:[%s8168 + $0x70] sm:$0xf]
        %v8555 = vld [vmem:[%s8168 + $0x74] sm:$0x1]
        %v8556 = vld [vmem:[%s8168 + $0x78] sm:$0xf]
        %v8557 = vld [vmem:[%s8168 + $0x7c] sm:$0xf]
        %v8558 = vld [vmem:[%s8168 + $0x80] sm:$0xf]
        %v8559 = vld [vmem:[%s8168 + $0x84] sm:$0xf]
        %v8560 = vld [vmem:[%s8168 + $0x88] sm:$0x1]
        %v8561 = vld [vmem:[%s8168 + $0x8c] sm:$0xf]
        %v8562 = vld [vmem:[%s8168 + $0x90] sm:$0xf]
        %v8563 = vld [vmem:[%s8168 + $0x94] sm:$0xf]
        %v8564 = vld [vmem:[%s8168 + $0x98] sm:$0xf]
        %v8565 = vld [vmem:[%s8168 + $0x9c] sm:$0x1]
        %v8567 = vshrl.u32 %v8526, 16
        %v8569 = vrot.slane %v8567, 4
        %v8570 = vshll.u32 %v8526, 16
        %v8572 = vrot.slane %v8570, 5
        %v8573 = vor.u32 %v8569, %v8572
        %v8574 = vrot.slane %v8573, 4
        %v8576 = vshll.u32 %v8527, 16
        %v8578 = vrot.slane %v8576, 5
        %v8579 = vsel %vm604, %v8574, %v8578
        %v8580 = vshrl.u32 %v8527, 16
        %v8582 = vrot.slane %v8580, 4
        %v8583 = vor.u32 %v8582, %v8578
        %v8584 = vrot.slane %v8583, 4
        %v8586 = vshll.u32 %v8528, 16
        %v8588 = vrot.slane %v8586, 5
        %v8589 = vsel %vm604, %v8584, %v8588
        %v8590 = vshrl.u32 %v8528, 16
        %v8592 = vrot.slane %v8590, 4
        %v8593 = vor.u32 %v8592, %v8588
        %v8594 = vrot.slane %v8593, 4
        %v8596 = vshll.u32 %v8529, 16
        %v8598 = vrot.slane %v8596, 5
        %v8599 = vsel %vm604, %v8594, %v8598
        %v8600 = vshrl.u32 %v8529, 16
        %v8602 = vrot.slane %v8600, 4
        %v8603 = vor.u32 %v8602, %v8598
        %v8604 = vrot.slane %v8603, 4
        %v8606 = vshll.u32 %v8530, 16
        %v8608 = vrot.slane %v8606, 5
        %v8609 = vsel %vm604, %v8604, %v8608
        %v8611 = vshrl.u32 %v8531, 16
        %v8613 = vrot.slane %v8611, 4
        %v8614 = vshll.u32 %v8531, 16
        %v8616 = vrot.slane %v8614, 5
        %v8617 = vor.u32 %v8613, %v8616
        %v8618 = vrot.slane %v8617, 4
        %v8620 = vshll.u32 %v8532, 16
        %v8622 = vrot.slane %v8620, 5
        %v8623 = vsel %vm604, %v8618, %v8622
        %v8624 = vshrl.u32 %v8532, 16
        %v8626 = vrot.slane %v8624, 4
        %v8627 = vor.u32 %v8626, %v8622
        %v8628 = vrot.slane %v8627, 4
        %v8630 = vshll.u32 %v8533, 16
        %v8632 = vrot.slane %v8630, 5
        %v8633 = vsel %vm604, %v8628, %v8632
        %v8634 = vshrl.u32 %v8533, 16
        %v8636 = vrot.slane %v8634, 4
        %v8637 = vor.u32 %v8636, %v8632
        %v8638 = vrot.slane %v8637, 4
        %v8640 = vshll.u32 %v8534, 16
        %v8642 = vrot.slane %v8640, 5
        %v8643 = vsel %vm604, %v8638, %v8642
        %v8644 = vshrl.u32 %v8534, 16
        %v8646 = vrot.slane %v8644, 4
        %v8647 = vor.u32 %v8646, %v8642
        %v8648 = vrot.slane %v8647, 4
        %v8650 = vshll.u32 %v8535, 16
        %v8652 = vrot.slane %v8650, 5
        %v8653 = vsel %vm604, %v8648, %v8652
        %v8655 = vshrl.u32 %v8536, 16
        %v8657 = vrot.slane %v8655, 4
        %v8658 = vshll.u32 %v8536, 16
        %v8660 = vrot.slane %v8658, 5
        %v8661 = vor.u32 %v8657, %v8660
        %v8662 = vrot.slane %v8661, 4
        %v8664 = vshll.u32 %v8537, 16
        %v8666 = vrot.slane %v8664, 5
        %v8667 = vsel %vm604, %v8662, %v8666
        %v8668 = vshrl.u32 %v8537, 16
        %v8670 = vrot.slane %v8668, 4
        %v8671 = vor.u32 %v8670, %v8666
        %v8672 = vrot.slane %v8671, 4
        %v8674 = vshll.u32 %v8538, 16
        %v8676 = vrot.slane %v8674, 5
        %v8677 = vsel %vm604, %v8672, %v8676
        %v8678 = vshrl.u32 %v8538, 16
        %v8680 = vrot.slane %v8678, 4
        %v8681 = vor.u32 %v8680, %v8676
        %v8682 = vrot.slane %v8681, 4
        %v8684 = vshll.u32 %v8539, 16
        %v8686 = vrot.slane %v8684, 5
        %v8687 = vsel %vm604, %v8682, %v8686
        %v8688 = vshrl.u32 %v8539, 16
        %v8690 = vrot.slane %v8688, 4
        %v8691 = vor.u32 %v8690, %v8686
        %v8692 = vrot.slane %v8691, 4
        %v8694 = vshll.u32 %v8540, 16
        %v8696 = vrot.slane %v8694, 5
        %v8697 = vsel %vm604, %v8692, %v8696
        %v8699 = vshrl.u32 %v8541, 16
        %v8701 = vrot.slane %v8699, 4
        %v8702 = vshll.u32 %v8541, 16
        %v8704 = vrot.slane %v8702, 5
        %v8705 = vor.u32 %v8701, %v8704
        %v8706 = vrot.slane %v8705, 4
        %v8708 = vshll.u32 %v8542, 16
        %v8710 = vrot.slane %v8708, 5
        %v8711 = vsel %vm604, %v8706, %v8710
        %v8712 = vshrl.u32 %v8542, 16
        %v8714 = vrot.slane %v8712, 4
        %v8715 = vor.u32 %v8714, %v8710
        %v8716 = vrot.slane %v8715, 4
        %v8718 = vshll.u32 %v8543, 16
        %v8720 = vrot.slane %v8718, 5
        %v8721 = vsel %vm604, %v8716, %v8720
        %v8722 = vshrl.u32 %v8543, 16
        %v8724 = vrot.slane %v8722, 4
        %v8725 = vor.u32 %v8724, %v8720
        %v8726 = vrot.slane %v8725, 4
        %v8728 = vshll.u32 %v8544, 16
        %v8730 = vrot.slane %v8728, 5
        %v8731 = vsel %vm604, %v8726, %v8730
        %v8732 = vshrl.u32 %v8544, 16
        %v8734 = vrot.slane %v8732, 4
        %v8735 = vor.u32 %v8734, %v8730
        %v8736 = vrot.slane %v8735, 4
        %v8738 = vshll.u32 %v8545, 16
        %v8740 = vrot.slane %v8738, 5
        %v8741 = vsel %vm604, %v8736, %v8740
        %v8743 = vshrl.u32 %v8546, 16
        %v8745 = vrot.slane %v8743, 4
        %v8746 = vshll.u32 %v8546, 16
        %v8748 = vrot.slane %v8746, 5
        %v8749 = vor.u32 %v8745, %v8748
        %v8750 = vrot.slane %v8749, 4
        %v8752 = vshll.u32 %v8547, 16
        %v8754 = vrot.slane %v8752, 5
        %v8755 = vsel %vm604, %v8750, %v8754
        %v8756 = vshrl.u32 %v8547, 16
        %v8758 = vrot.slane %v8756, 4
        %v8759 = vor.u32 %v8758, %v8754
        %v8760 = vrot.slane %v8759, 4
        %v8762 = vshll.u32 %v8548, 16
        %v8764 = vrot.slane %v8762, 5
        %v8765 = vsel %vm604, %v8760, %v8764
        %v8766 = vshrl.u32 %v8548, 16
        %v8768 = vrot.slane %v8766, 4
        %v8769 = vor.u32 %v8768, %v8764
        %v8770 = vrot.slane %v8769, 4
        %v8772 = vshll.u32 %v8549, 16
        %v8774 = vrot.slane %v8772, 5
        %v8775 = vsel %vm604, %v8770, %v8774
        %v8776 = vshrl.u32 %v8549, 16
        %v8778 = vrot.slane %v8776, 4
        %v8779 = vor.u32 %v8778, %v8774
        %v8780 = vrot.slane %v8779, 4
        %v8782 = vshll.u32 %v8550, 16
        %v8784 = vrot.slane %v8782, 5
        %v8785 = vsel %vm604, %v8780, %v8784
        %v8787 = vshrl.u32 %v8551, 16
        %v8789 = vrot.slane %v8787, 4
        %v8790 = vshll.u32 %v8551, 16
        %v8792 = vrot.slane %v8790, 5
        %v8793 = vor.u32 %v8789, %v8792
        %v8794 = vrot.slane %v8793, 4
        %v8796 = vshll.u32 %v8552, 16
        %v8798 = vrot.slane %v8796, 5
        %v8799 = vsel %vm604, %v8794, %v8798
        %v8800 = vshrl.u32 %v8552, 16
        %v8802 = vrot.slane %v8800, 4
        %v8803 = vor.u32 %v8802, %v8798
        %v8804 = vrot.slane %v8803, 4
        %v8806 = vshll.u32 %v8553, 16
        %v8808 = vrot.slane %v8806, 5
        %v8809 = vsel %vm604, %v8804, %v8808
        %v8810 = vshrl.u32 %v8553, 16
        %v8812 = vrot.slane %v8810, 4
        %v8813 = vor.u32 %v8812, %v8808
        %v8814 = vrot.slane %v8813, 4
        %v8816 = vshll.u32 %v8554, 16
        %v8818 = vrot.slane %v8816, 5
        %v8819 = vsel %vm604, %v8814, %v8818
        %v8820 = vshrl.u32 %v8554, 16
        %v8822 = vrot.slane %v8820, 4
        %v8823 = vor.u32 %v8822, %v8818
        %v8824 = vrot.slane %v8823, 4
        %v8826 = vshll.u32 %v8555, 16
        %v8828 = vrot.slane %v8826, 5
        %v8829 = vsel %vm604, %v8824, %v8828
        %v8831 = vshrl.u32 %v8556, 16
        %v8833 = vrot.slane %v8831, 4
        %v8834 = vshll.u32 %v8556, 16
        %v8836 = vrot.slane %v8834, 5
        %v8837 = vor.u32 %v8833, %v8836
        %v8838 = vrot.slane %v8837, 4
        %v8840 = vshll.u32 %v8557, 16
        %v8842 = vrot.slane %v8840, 5
        %v8843 = vsel %vm604, %v8838, %v8842
        %v8844 = vshrl.u32 %v8557, 16
        %v8846 = vrot.slane %v8844, 4
        %v8847 = vor.u32 %v8846, %v8842
        %v8848 = vrot.slane %v8847, 4
        %v8850 = vshll.u32 %v8558, 16
        %v8852 = vrot.slane %v8850, 5
        %v8853 = vsel %vm604, %v8848, %v8852
        %v8854 = vshrl.u32 %v8558, 16
        %v8856 = vrot.slane %v8854, 4
        %v8857 = vor.u32 %v8856, %v8852
        %v8858 = vrot.slane %v8857, 4
        %v8860 = vshll.u32 %v8559, 16
        %v8862 = vrot.slane %v8860, 5
        %v8863 = vsel %vm604, %v8858, %v8862
        %v8864 = vshrl.u32 %v8559, 16
        %v8866 = vrot.slane %v8864, 4
        %v8867 = vor.u32 %v8866, %v8862
        %v8868 = vrot.slane %v8867, 4
        %v8870 = vshll.u32 %v8560, 16
        %v8872 = vrot.slane %v8870, 5
        %v8873 = vsel %vm604, %v8868, %v8872
        %v8875 = vshrl.u32 %v8561, 16
        %v8877 = vrot.slane %v8875, 4
        %v8878 = vshll.u32 %v8561, 16
        %v8880 = vrot.slane %v8878, 5
        %v8881 = vor.u32 %v8877, %v8880
        %v8882 = vrot.slane %v8881, 4
        %v8884 = vshll.u32 %v8562, 16
        %v8886 = vrot.slane %v8884, 5
        %v8887 = vsel %vm604, %v8882, %v8886
        %v8888 = vshrl.u32 %v8562, 16
        %v8890 = vrot.slane %v8888, 4
        %v8891 = vor.u32 %v8890, %v8886
        %v8892 = vrot.slane %v8891, 4
        %v8894 = vshll.u32 %v8563, 16
        %v8896 = vrot.slane %v8894, 5
        %v8897 = vsel %vm604, %v8892, %v8896
        %v8898 = vshrl.u32 %v8563, 16
        %v8900 = vrot.slane %v8898, 4
        %v8901 = vor.u32 %v8900, %v8896
        %v8902 = vrot.slane %v8901, 4
        %v8904 = vshll.u32 %v8564, 16
        %v8906 = vrot.slane %v8904, 5
        %v8907 = vsel %vm604, %v8902, %v8906
        %v8908 = vshrl.u32 %v8564, 16
        %v8910 = vrot.slane %v8908, 4
        %v8911 = vor.u32 %v8910, %v8906
        %v8912 = vrot.slane %v8911, 4
        %v8914 = vshll.u32 %v8565, 16
        %v8916 = vrot.slane %v8914, 5
        %v8917 = vsel %vm604, %v8912, %v8916
        %v8918 = vld [vmem:[#allocation14 + $0x10] sm:$0xf]
        %v8919 = vunpack.c.l.b16 %v8579
        %v8920 = vunpack.c.l.b16 %v8589
        %v8921 = vunpack.c.l.b16 %v8599
        %v8922 = vunpack.c.l.b16 %v8609
        %v8923 = vunpack.c.l.b16 %v8623
        %v8924 = vunpack.c.l.b16 %v8633
        %v8925 = vunpack.c.l.b16 %v8643
        %v8926 = vunpack.c.l.b16 %v8653
        %v8927 = vunpack.c.l.b16 %v8667
        %v8928 = vunpack.c.l.b16 %v8677
        %v8929 = vunpack.c.l.b16 %v8687
        %v8930 = vunpack.c.l.b16 %v8697
        %v8931 = vunpack.c.l.b16 %v8711
        %v8932 = vunpack.c.l.b16 %v8721
        %v8933 = vunpack.c.l.b16 %v8731
        %v8934 = vunpack.c.l.b16 %v8741
        %v8935 = vunpack.c.l.b16 %v8755
        %v8936 = vunpack.c.l.b16 %v8765
        %v8937 = vunpack.c.l.b16 %v8775
        %v8938 = vunpack.c.l.b16 %v8785
        %v8939 = vunpack.c.l.b16 %v8799
        %v8940 = vunpack.c.l.b16 %v8809
        %v8941 = vunpack.c.l.b16 %v8819
        %v8942 = vunpack.c.l.b16 %v8829
        %v8943 = vunpack.c.l.b16 %v8843
        %v8944 = vunpack.c.l.b16 %v8853
        %v8945 = vunpack.c.l.b16 %v8863
        %v8946 = vunpack.c.l.b16 %v8873
        %v8947 = vunpack.c.l.b16 %v8887
        %v8948 = vunpack.c.l.b16 %v8897
        %v8949 = vunpack.c.l.b16 %v8907
        %v8950 = vunpack.c.l.b16 %v8917
        %v8951 = vpack.c.b16 %v8920, %v8919
        %v8952 = vpack.c.b16 %v8922, %v8921
        %v8953 = vpack.c.b16 %v8924, %v8923
        %v8954 = vpack.c.b16 %v8926, %v8925
        %v8955 = vpack.c.b16 %v8928, %v8927
        %v8956 = vpack.c.b16 %v8930, %v8929
        %v8957 = vpack.c.b16 %v8932, %v8931
        %v8958 = vpack.c.b16 %v8934, %v8933
        %v8959 = vpack.c.b16 %v8936, %v8935
        %v8960 = vpack.c.b16 %v8938, %v8937
        %v8961 = vpack.c.b16 %v8940, %v8939
        %v8962 = vpack.c.b16 %v8942, %v8941
        %v8963 = vpack.c.b16 %v8944, %v8943
        %v8964 = vpack.c.b16 %v8946, %v8945
        %v8965 = vpack.c.b16 %v8948, %v8947
        %v8966 = vpack.c.b16 %v8950, %v8949
        %v8968 = vsel %vm7241, %v8951, 0
        %v8971 = vsel %vm7241, %v8952, 0
        %v8974 = vsel %vm7241, %v8953, 0
        %v8977 = vsel %vm7241, %v8954, 0
        %v8980 = vsel %vm7241, %v8955, 0
        %v8983 = vsel %vm7241, %v8956, 0
        %v8986 = vsel %vm7241, %v8957, 0
        %v8989 = vsel %vm7241, %v8958, 0
        %v8992 = vsel %vm7241, %v8959, 0
        %v8995 = vsel %vm7241, %v8960, 0
        %v8998 = vsel %vm7241, %v8961, 0
        %v9001 = vsel %vm7241, %v8962, 0
        %v9004 = vsel %vm7241, %v8963, 0
        %v9007 = vsel %vm7241, %v8964, 0
        %v9010 = vsel %vm7241, %v8965, 0
        %v9013 = vsel %vm7241, %v8966, 0
        %v9016 = vsel %vm7290, %v8918, 0
        %9018 = vmatprep.subr.bf16.mxu0 0
        %9019 = vmatpush1.bf16.msra.mxu0 %v9016
        %9020 = vmatprep.subr.bf16.mxu0 0
        %9021 = vmatpush1.bf16.msra.mxu0 0
        %9022 = vmatprep.subr.bf16.mxu0 0
        %9023 = vmatpush1.bf16.msra.mxu0 0
        %9024 = vmatprep.subr.bf16.mxu0 0
        %9025 = vmatpush1.bf16.msra.mxu0 0
        %9026 = vmatprep.subr.bf16.mxu0 0
        %9027 = vmatpush1.bf16.msra.mxu0 0
        %9028 = vmatprep.subr.bf16.mxu0 0
        %9029 = vmatpush1.bf16.msra.mxu0 0
        %9030 = vmatprep.subr.bf16.mxu0 0
        %9031 = vmatpush1.bf16.msra.mxu0 0
        %9032 = vmatprep.subr.bf16.mxu0 0
        %9033 = vmatpush1.bf16.msra.mxu0 0
        %9034 = vmatprep.subr.bf16.mxu0 0
        %9035 = vmatpush1.bf16.msra.mxu0 0
        %9036 = vmatprep.subr.bf16.mxu0 0
        %9037 = vmatpush1.bf16.msra.mxu0 0
        %9038 = vmatprep.subr.bf16.mxu0 0
        %9039 = vmatpush1.bf16.msra.mxu0 0
        %9040 = vmatprep.subr.bf16.mxu0 0
        %9041 = vmatpush1.bf16.msra.mxu0 0
        %9042 = vmatprep.subr.bf16.mxu0 0
        %9043 = vmatpush1.bf16.msra.mxu0 0
        %9044 = vmatprep.subr.bf16.mxu0 0
        %9045 = vmatpush1.bf16.msra.mxu0 0
        %9046 = vmatprep.subr.bf16.mxu0 0
        %9047 = vmatpush1.bf16.msra.mxu0 0
        %9048 = vmatprep.subr.bf16.mxu0 0
        %9049 = vmatpush1.bf16.msra.mxu0 0
        %9050 = vmatprep.mubr.bf16.mxu0 0
        %9051 = vmatmul.mubr.bf16.gmra.mrb[0].mxu0 %v8968
        %v9052 = vpop.f32.mrb[0].mxu0
        %v9053 = vadd.f32 0.0, %v9052
        %v9054 = vpop.f32.mrb[0].mxu0
        %v9055 = vpop.f32.mrb[0].mxu0
        %v9056 = vadd.f32 0.0, %v9055
        %v9057 = vpop.f32.mrb[0].mxu0
        %9058 = vmatprep.mubr.bf16.mxu0 0
        %9059 = vmatmul.mubr.bf16.gmra.mrb[0].mxu0 %v8971
        %v9060 = vpop.f32.mrb[0].mxu0
        %v9061 = vadd.f32 0.0, %v9060
        %v9062 = vpop.f32.mrb[0].mxu0
        %v9063 = vpop.f32.mrb[0].mxu0
        %v9064 = vadd.f32 0.0, %v9063
        %v9065 = vpop.f32.mrb[0].mxu0
        %9066 = vmatprep.mubr.bf16.mxu0 0
        %9067 = vmatmul.mubr.bf16.gmra.mrb[0].mxu0 %v8974
        %v9068 = vpop.f32.mrb[0].mxu0
        %v9069 = vadd.f32 0.0, %v9068
        %v9070 = vpop.f32.mrb[0].mxu0
        %v9071 = vpop.f32.mrb[0].mxu0
        %v9072 = vadd.f32 0.0, %v9071
        %v9073 = vpop.f32.mrb[0].mxu0
        %9074 = vmatprep.mubr.bf16.mxu0 0
        %9075 = vmatmul.mubr.bf16.gmra.mrb[0].mxu0 %v8977
        %v9076 = vpop.f32.mrb[0].mxu0
        %v9077 = vadd.f32 0.0, %v9076
        %v9078 = vpop.f32.mrb[0].mxu0
        %v9079 = vpop.f32.mrb[0].mxu0
        %v9080 = vadd.f32 0.0, %v9079
        %v9081 = vpop.f32.mrb[0].mxu0
        %9082 = vmatprep.mubr.bf16.mxu0 0
        %9083 = vmatmul.mubr.bf16.gmra.mrb[0].mxu0 %v8980
        %v9084 = vpop.f32.mrb[0].mxu0
        %v9085 = vadd.f32 0.0, %v9084
        %v9086 = vpop.f32.mrb[0].mxu0
        %v9087 = vpop.f32.mrb[0].mxu0
        %v9088 = vadd.f32 0.0, %v9087
        %v9089 = vpop.f32.mrb[0].mxu0
        %9090 = vmatprep.mubr.bf16.mxu0 0
        %9091 = vmatmul.mubr.bf16.gmra.mrb[0].mxu0 %v8983
        %v9092 = vpop.f32.mrb[0].mxu0
        %v9093 = vadd.f32 0.0, %v9092
        %v9094 = vpop.f32.mrb[0].mxu0
        %v9095 = vpop.f32.mrb[0].mxu0
        %v9096 = vadd.f32 0.0, %v9095
        %v9097 = vpop.f32.mrb[0].mxu0
        %9098 = vmatprep.mubr.bf16.mxu0 0
        %9099 = vmatmul.mubr.bf16.gmra.mrb[0].mxu0 %v8986
        %v9100 = vpop.f32.mrb[0].mxu0
        %v9101 = vadd.f32 0.0, %v9100
        %v9102 = vpop.f32.mrb[0].mxu0
        %v9103 = vpop.f32.mrb[0].mxu0
        %v9104 = vadd.f32 0.0, %v9103
        %v9105 = vpop.f32.mrb[0].mxu0
        %9106 = vmatprep.mubr.bf16.mxu0 0
        %9107 = vmatmul.mubr.bf16.gmra.mrb[0].mxu0 %v8989
        %v9108 = vpop.f32.mrb[0].mxu0
        %v9109 = vadd.f32 0.0, %v9108
        %v9110 = vpop.f32.mrb[0].mxu0
        %v9111 = vpop.f32.mrb[0].mxu0
        %v9112 = vadd.f32 0.0, %v9111
        %v9113 = vpop.f32.mrb[0].mxu0
        %9114 = vmatprep.mubr.bf16.mxu0 0
        %9115 = vmatmul.mubr.bf16.gmra.mrb[0].mxu0 %v8992
        %v9116 = vpop.f32.mrb[0].mxu0
        %v9117 = vadd.f32 0.0, %v9116
        %v9118 = vpop.f32.mrb[0].mxu0
        %v9119 = vpop.f32.mrb[0].mxu0
        %v9120 = vadd.f32 0.0, %v9119
        %v9121 = vpop.f32.mrb[0].mxu0
        %9122 = vmatprep.mubr.bf16.mxu0 0
        %9123 = vmatmul.mubr.bf16.gmra.mrb[0].mxu0 %v8995
        %v9124 = vpop.f32.mrb[0].mxu0
        %v9125 = vadd.f32 0.0, %v9124
        %v9126 = vpop.f32.mrb[0].mxu0
        %v9127 = vpop.f32.mrb[0].mxu0
        %v9128 = vadd.f32 0.0, %v9127
        %v9129 = vpop.f32.mrb[0].mxu0
        %9130 = vmatprep.mubr.bf16.mxu0 0
        %9131 = vmatmul.mubr.bf16.gmra.mrb[0].mxu0 %v8998
        %v9132 = vpop.f32.mrb[0].mxu0
        %v9133 = vadd.f32 0.0, %v9132
        %v9134 = vpop.f32.mrb[0].mxu0
        %v9135 = vpop.f32.mrb[0].mxu0
        %v9136 = vadd.f32 0.0, %v9135
        %v9137 = vpop.f32.mrb[0].mxu0
        %9138 = vmatprep.mubr.bf16.mxu0 0
        %9139 = vmatmul.mubr.bf16.gmra.mrb[0].mxu0 %v9001
        %v9140 = vpop.f32.mrb[0].mxu0
        %v9141 = vadd.f32 0.0, %v9140
        %v9142 = vpop.f32.mrb[0].mxu0
        %v9143 = vpop.f32.mrb[0].mxu0
        %v9144 = vadd.f32 0.0, %v9143
        %v9145 = vpop.f32.mrb[0].mxu0
        %9146 = vmatprep.mubr.bf16.mxu0 0
        %9147 = vmatmul.mubr.bf16.gmra.mrb[0].mxu0 %v9004
        %v9148 = vpop.f32.mrb[0].mxu0
        %v9149 = vadd.f32 0.0, %v9148
        %v9150 = vpop.f32.mrb[0].mxu0
        %v9151 = vpop.f32.mrb[0].mxu0
        %v9152 = vadd.f32 0.0, %v9151
        %v9153 = vpop.f32.mrb[0].mxu0
        %9154 = vmatprep.mubr.bf16.mxu0 0
        %9155 = vmatmul.mubr.bf16.gmra.mrb[0].mxu0 %v9007
        %v9156 = vpop.f32.mrb[0].mxu0
        %v9157 = vadd.f32 0.0, %v9156
        %v9158 = vpop.f32.mrb[0].mxu0
        %v9159 = vpop.f32.mrb[0].mxu0
        %v9160 = vadd.f32 0.0, %v9159
        %v9161 = vpop.f32.mrb[0].mxu0
        %9162 = vmatprep.mubr.bf16.mxu0 0
        %9163 = vmatmul.mubr.bf16.gmra.mrb[0].mxu0 %v9010
        %v9164 = vpop.f32.mrb[0].mxu0
        %v9165 = vadd.f32 0.0, %v9164
        %v9166 = vpop.f32.mrb[0].mxu0
        %v9167 = vpop.f32.mrb[0].mxu0
        %v9168 = vadd.f32 0.0, %v9167
        %v9169 = vpop.f32.mrb[0].mxu0
        %9170 = vmatprep.mubr.bf16.mxu0 0
        %9171 = vmatmul.mubr.bf16.gmra.mrb[0].mxu0 %v9013
        %v9172 = vpop.f32.mrb[0].mxu0
        %v9173 = vadd.f32 0.0, %v9172
        %v9174 = vpop.f32.mrb[0].mxu0
        %v9175 = vpop.f32.mrb[0].mxu0
        %v9176 = vadd.f32 0.0, %v9175
        %v9177 = vpop.f32.mrb[0].mxu0
        %9178 = vdwg.mxu0
        %v9179 = vadd.f32 %v8494, %v9053
        %v9180 = vadd.f32 %v8495, %v9056
        %v9181 = vadd.f32 %v8496, %v9061
        %v9182 = vadd.f32 %v8497, %v9064
        %v9183 = vadd.f32 %v8498, %v9069
        %v9184 = vadd.f32 %v8499, %v9072
        %v9185 = vadd.f32 %v8500, %v9077
        %v9186 = vadd.f32 %v8501, %v9080
        %v9187 = vadd.f32 %v8502, %v9085
        %v9188 = vadd.f32 %v8503, %v9088
        %v9189 = vadd.f32 %v8504, %v9093
        %v9190 = vadd.f32 %v8505, %v9096
        %v9191 = vadd.f32 %v8506, %v9101
        %v9192 = vadd.f32 %v8507, %v9104
        %v9193 = vadd.f32 %v8508, %v9109
        %v9194 = vadd.f32 %v8509, %v9112
        %v9195 = vadd.f32 %v8510, %v9117
        %v9196 = vadd.f32 %v8511, %v9120
        %v9197 = vadd.f32 %v8512, %v9125
        %v9198 = vadd.f32 %v8513, %v9128
        %v9199 = vadd.f32 %v8514, %v9133
        %v9200 = vadd.f32 %v8515, %v9136
        %v9201 = vadd.f32 %v8516, %v9141
        %v9202 = vadd.f32 %v8517, %v9144
        %v9203 = vadd.f32 %v8518, %v9149
        %v9204 = vadd.f32 %v8519, %v9152
        %v9205 = vadd.f32 %v8520, %v9157
        %v9206 = vadd.f32 %v8521, %v9160
        %v9207 = vadd.f32 %v8522, %v9165
        %v9208 = vadd.f32 %v8523, %v9168
        %v9209 = vadd.f32 %v8524, %v9173
        %v9210 = vadd.f32 %v8525, %v9176
        %v9211 = vld [vmem:[%s8168] sm:$0xe]
        %v9212 = vld [vmem:[%s8168 + $0x14] sm:$0xe]
        %v9213 = vld [vmem:[%s8168 + $0x28] sm:$0xe]
        %v9214 = vld [vmem:[%s8168 + $0x3c] sm:$0xe]
        %v9215 = vld [vmem:[%s8168 + $0x50] sm:$0xe]
        %v9216 = vld [vmem:[%s8168 + $0x64] sm:$0xe]
        %v9217 = vld [vmem:[%s8168 + $0x78] sm:$0xe]
        %v9218 = vld [vmem:[%s8168 + $0x8c] sm:$0xe]
        %v9259 = vrot.slane %v9211, 5
        %v9260 = vrot.slane %v9259, 4
        %v9261 = vrot.slane %v8527, 5
        %v9262 = vsel %vm1756, %v9260, %v9261
        %v9263 = vrot.slane %v9261, 4
        %v9264 = vrot.slane %v8528, 5
        %v9265 = vsel %vm1756, %v9263, %v9264
        %v9266 = vrot.slane %v9264, 4
        %v9267 = vrot.slane %v8529, 5
        %v9268 = vsel %vm1756, %v9266, %v9267
        %v9269 = vrot.slane %v9267, 4
        %v9270 = vrot.slane %v8530, 5
        %v9271 = vsel %vm1756, %v9269, %v9270
        %v9272 = vrot.slane %v9212, 5
        %v9273 = vrot.slane %v9272, 4
        %v9274 = vrot.slane %v8532, 5
        %v9275 = vsel %vm1756, %v9273, %v9274
        %v9276 = vrot.slane %v9274, 4
        %v9277 = vrot.slane %v8533, 5
        %v9278 = vsel %vm1756, %v9276, %v9277
        %v9279 = vrot.slane %v9277, 4
        %v9280 = vrot.slane %v8534, 5
        %v9281 = vsel %vm1756, %v9279, %v9280
        %v9282 = vrot.slane %v9280, 4
        %v9283 = vrot.slane %v8535, 5
        %v9284 = vsel %vm1756, %v9282, %v9283
        %v9285 = vrot.slane %v9213, 5
        %v9286 = vrot.slane %v9285, 4
        %v9287 = vrot.slane %v8537, 5
        %v9288 = vsel %vm1756, %v9286, %v9287
        %v9289 = vrot.slane %v9287, 4
        %v9290 = vrot.slane %v8538, 5
        %v9291 = vsel %vm1756, %v9289, %v9290
        %v9292 = vrot.slane %v9290, 4
        %v9293 = vrot.slane %v8539, 5
        %v9294 = vsel %vm1756, %v9292, %v9293
        %v9295 = vrot.slane %v9293, 4
        %v9296 = vrot.slane %v8540, 5
        %v9297 = vsel %vm1756, %v9295, %v9296
        %v9298 = vrot.slane %v9214, 5
        %v9299 = vrot.slane %v9298, 4
        %v9300 = vrot.slane %v8542, 5
        %v9301 = vsel %vm1756, %v9299, %v9300
        %v9302 = vrot.slane %v9300, 4
        %v9303 = vrot.slane %v8543, 5
        %v9304 = vsel %vm1756, %v9302, %v9303
        %v9305 = vrot.slane %v9303, 4
        %v9306 = vrot.slane %v8544, 5
        %v9307 = vsel %vm1756, %v9305, %v9306
        %v9308 = vrot.slane %v9306, 4
        %v9309 = vrot.slane %v8545, 5
        %v9310 = vsel %vm1756, %v9308, %v9309
        %v9311 = vrot.slane %v9215, 5
        %v9312 = vrot.slane %v9311, 4
        %v9313 = vrot.slane %v8547, 5
        %v9314 = vsel %vm1756, %v9312, %v9313
        %v9315 = vrot.slane %v9313, 4
        %v9316 = vrot.slane %v8548, 5
        %v9317 = vsel %vm1756, %v9315, %v9316
        %v9318 = vrot.slane %v9316, 4
        %v9319 = vrot.slane %v8549, 5
        %v9320 = vsel %vm1756, %v9318, %v9319
        %v9321 = vrot.slane %v9319, 4
        %v9322 = vrot.slane %v8550, 5
        %v9323 = vsel %vm1756, %v9321, %v9322
        %v9324 = vrot.slane %v9216, 5
        %v9325 = vrot.slane %v9324, 4
        %v9326 = vrot.slane %v8552, 5
        %v9327 = vsel %vm1756, %v9325, %v9326
        %v9328 = vrot.slane %v9326, 4
        %v9329 = vrot.slane %v8553, 5
        %v9330 = vsel %vm1756, %v9328, %v9329
        %v9331 = vrot.slane %v9329, 4
        %v9332 = vrot.slane %v8554, 5
        %v9333 = vsel %vm1756, %v9331, %v9332
        %v9334 = vrot.slane %v9332, 4
        %v9335 = vrot.slane %v8555, 5
        %v9336 = vsel %vm1756, %v9334, %v9335
        %v9337 = vrot.slane %v9217, 5
        %v9338 = vrot.slane %v9337, 4
        %v9339 = vrot.slane %v8557, 5
        %v9340 = vsel %vm1756, %v9338, %v9339
        %v9341 = vrot.slane %v9339, 4
        %v9342 = vrot.slane %v8558, 5
        %v9343 = vsel %vm1756, %v9341, %v9342
        %v9344 = vrot.slane %v9342, 4
        %v9345 = vrot.slane %v8559, 5
        %v9346 = vsel %vm1756, %v9344, %v9345
        %v9347 = vrot.slane %v9345, 4
        %v9348 = vrot.slane %v8560, 5
        %v9349 = vsel %vm1756, %v9347, %v9348
        %v9350 = vrot.slane %v9218, 5
        %v9351 = vrot.slane %v9350, 4
        %v9352 = vrot.slane %v8562, 5
        %v9353 = vsel %vm1756, %v9351, %v9352
        %v9354 = vrot.slane %v9352, 4
        %v9355 = vrot.slane %v8563, 5
        %v9356 = vsel %vm1756, %v9354, %v9355
        %v9357 = vrot.slane %v9355, 4
        %v9358 = vrot.slane %v8564, 5
        %v9359 = vsel %vm1756, %v9357, %v9358
        %v9360 = vrot.slane %v9358, 4
        %v9361 = vrot.slane %v8565, 5
        %v9362 = vsel %vm1756, %v9360, %v9361
        %v9363 = vld [vmem:[#allocation14 + $0x14] sm:$0xf]
        %v9364 = vunpack.c.l.b16 %v9262
        %v9365 = vunpack.c.l.b16 %v9265
        %v9366 = vunpack.c.l.b16 %v9268
        %v9367 = vunpack.c.l.b16 %v9271
        %v9368 = vunpack.c.l.b16 %v9275
        %v9369 = vunpack.c.l.b16 %v9278
        %v9370 = vunpack.c.l.b16 %v9281
        %v9371 = vunpack.c.l.b16 %v9284
        %v9372 = vunpack.c.l.b16 %v9288
        %v9373 = vunpack.c.l.b16 %v9291
        %v9374 = vunpack.c.l.b16 %v9294
        %v9375 = vunpack.c.l.b16 %v9297
        %v9376 = vunpack.c.l.b16 %v9301
        %v9377 = vunpack.c.l.b16 %v9304
        %v9378 = vunpack.c.l.b16 %v9307
        %v9379 = vunpack.c.l.b16 %v9310
        %v9380 = vunpack.c.l.b16 %v9314
        %v9381 = vunpack.c.l.b16 %v9317
        %v9382 = vunpack.c.l.b16 %v9320
        %v9383 = vunpack.c.l.b16 %v9323
        %v9384 = vunpack.c.l.b16 %v9327
        %v9385 = vunpack.c.l.b16 %v9330
        %v9386 = vunpack.c.l.b16 %v9333
        %v9387 = vunpack.c.l.b16 %v9336
        %v9388 = vunpack.c.l.b16 %v9340
        %v9389 = vunpack.c.l.b16 %v9343
        %v9390 = vunpack.c.l.b16 %v9346
        %v9391 = vunpack.c.l.b16 %v9349
        %v9392 = vunpack.c.l.b16 %v9353
        %v9393 = vunpack.c.l.b16 %v9356
        %v9394 = vunpack.c.l.b16 %v9359
        %v9395 = vunpack.c.l.b16 %v9362
        %v9396 = vpack.c.b16 %v9365, %v9364
        %v9397 = vpack.c.b16 %v9367, %v9366
        %v9398 = vpack.c.b16 %v9369, %v9368
        %v9399 = vpack.c.b16 %v9371, %v9370
        %v9400 = vpack.c.b16 %v9373, %v9372
        %v9401 = vpack.c.b16 %v9375, %v9374
        %v9402 = vpack.c.b16 %v9377, %v9376
        %v9403 = vpack.c.b16 %v9379, %v9378
        %v9404 = vpack.c.b16 %v9381, %v9380
        %v9405 = vpack.c.b16 %v9383, %v9382
        %v9406 = vpack.c.b16 %v9385, %v9384
        %v9407 = vpack.c.b16 %v9387, %v9386
        %v9408 = vpack.c.b16 %v9389, %v9388
        %v9409 = vpack.c.b16 %v9391, %v9390
        %v9410 = vpack.c.b16 %v9393, %v9392
        %v9411 = vpack.c.b16 %v9395, %v9394
        %v9413 = vsel %vm7241, %v9396, 0
        %v9416 = vsel %vm7241, %v9397, 0
        %v9419 = vsel %vm7241, %v9398, 0
        %v9422 = vsel %vm7241, %v9399, 0
        %v9425 = vsel %vm7241, %v9400, 0
        %v9428 = vsel %vm7241, %v9401, 0
        %v9431 = vsel %vm7241, %v9402, 0
        %v9434 = vsel %vm7241, %v9403, 0
        %v9437 = vsel %vm7241, %v9404, 0
        %v9440 = vsel %vm7241, %v9405, 0
        %v9443 = vsel %vm7241, %v9406, 0
        %v9446 = vsel %vm7241, %v9407, 0
        %v9449 = vsel %vm7241, %v9408, 0
        %v9452 = vsel %vm7241, %v9409, 0
        %v9455 = vsel %vm7241, %v9410, 0
        %v9458 = vsel %vm7241, %v9411, 0
        %v9461 = vsel %vm7290, %v9363, 0
        %9463 = vmatprep.subr.bf16.mxu0 0
        %9464 = vmatpush1.bf16.msra.mxu0 %v9461
        %9465 = vmatprep.subr.bf16.mxu0 0
        %9466 = vmatpush1.bf16.msra.mxu0 0
        %9467 = vmatprep.subr.bf16.mxu0 0
        %9468 = vmatpush1.bf16.msra.mxu0 0
        %9469 = vmatprep.subr.bf16.mxu0 0
        %9470 = vmatpush1.bf16.msra.mxu0 0
        %9471 = vmatprep.subr.bf16.mxu0 0
        %9472 = vmatpush1.bf16.msra.mxu0 0
        %9473 = vmatprep.subr.bf16.mxu0 0
        %9474 = vmatpush1.bf16.msra.mxu0 0
        %9475 = vmatprep.subr.bf16.mxu0 0
        %9476 = vmatpush1.bf16.msra.mxu0 0
        %9477 = vmatprep.subr.bf16.mxu0 0
        %9478 = vmatpush1.bf16.msra.mxu0 0
        %9479 = vmatprep.subr.bf16.mxu0 0
        %9480 = vmatpush1.bf16.msra.mxu0 0
        %9481 = vmatprep.subr.bf16.mxu0 0
        %9482 = vmatpush1.bf16.msra.mxu0 0
        %9483 = vmatprep.subr.bf16.mxu0 0
        %9484 = vmatpush1.bf16.msra.mxu0 0
        %9485 = vmatprep.subr.bf16.mxu0 0
        %9486 = vmatpush1.bf16.msra.mxu0 0
        %9487 = vmatprep.subr.bf16.mxu0 0
        %9488 = vmatpush1.bf16.msra.mxu0 0
        %9489 = vmatprep.subr.bf16.mxu0 0
        %9490 = vmatpush1.bf16.msra.mxu0 0
        %9491 = vmatprep.subr.bf16.mxu0 0
        %9492 = vmatpush1.bf16.msra.mxu0 0
        %9493 = vmatprep.subr.bf16.mxu0 0
        %9494 = vmatpush1.bf16.msra.mxu0 0
        %9495 = vmatprep.mubr.bf16.mxu0 0
        %9496 = vmatmul.mubr.bf16.gmra.mrb[0].mxu0 %v9413
        %v9497 = vpop.f32.mrb[0].mxu0
        %v9498 = vadd.f32 0.0, %v9497
        %v9499 = vpop.f32.mrb[0].mxu0
        %v9500 = vpop.f32.mrb[0].mxu0
        %v9501 = vadd.f32 0.0, %v9500
        %v9502 = vpop.f32.mrb[0].mxu0
        %9503 = vmatprep.mubr.bf16.mxu0 0
        %9504 = vmatmul.mubr.bf16.gmra.mrb[0].mxu0 %v9416
        %v9505 = vpop.f32.mrb[0].mxu0
        %v9506 = vadd.f32 0.0, %v9505
        %v9507 = vpop.f32.mrb[0].mxu0
        %v9508 = vpop.f32.mrb[0].mxu0
        %v9509 = vadd.f32 0.0, %v9508
        %v9510 = vpop.f32.mrb[0].mxu0
        %9511 = vmatprep.mubr.bf16.mxu0 0
        %9512 = vmatmul.mubr.bf16.gmra.mrb[0].mxu0 %v9419
        %v9513 = vpop.f32.mrb[0].mxu0
        %v9514 = vadd.f32 0.0, %v9513
        %v9515 = vpop.f32.mrb[0].mxu0
        %v9516 = vpop.f32.mrb[0].mxu0
        %v9517 = vadd.f32 0.0, %v9516
        %v9518 = vpop.f32.mrb[0].mxu0
        %9519 = vmatprep.mubr.bf16.mxu0 0
        %9520 = vmatmul.mubr.bf16.gmra.mrb[0].mxu0 %v9422
        %v9521 = vpop.f32.mrb[0].mxu0
        %v9522 = vadd.f32 0.0, %v9521
        %v9523 = vpop.f32.mrb[0].mxu0
        %v9524 = vpop.f32.mrb[0].mxu0
        %v9525 = vadd.f32 0.0, %v9524
        %v9526 = vpop.f32.mrb[0].mxu0
        %9527 = vmatprep.mubr.bf16.mxu0 0
        %9528 = vmatmul.mubr.bf16.gmra.mrb[0].mxu0 %v9425
        %v9529 = vpop.f32.mrb[0].mxu0
        %v9530 = vadd.f32 0.0, %v9529
        %v9531 = vpop.f32.mrb[0].mxu0
        %v9532 = vpop.f32.mrb[0].mxu0
        %v9533 = vadd.f32 0.0, %v9532
        %v9534 = vpop.f32.mrb[0].mxu0
        %9535 = vmatprep.mubr.bf16.mxu0 0
        %9536 = vmatmul.mubr.bf16.gmra.mrb[0].mxu0 %v9428
        %v9537 = vpop.f32.mrb[0].mxu0
        %v9538 = vadd.f32 0.0, %v9537
        %v9539 = vpop.f32.mrb[0].mxu0
        %v9540 = vpop.f32.mrb[0].mxu0
        %v9541 = vadd.f32 0.0, %v9540
        %v9542 = vpop.f32.mrb[0].mxu0
        %9543 = vmatprep.mubr.bf16.mxu0 0
        %9544 = vmatmul.mubr.bf16.gmra.mrb[0].mxu0 %v9431
        %v9545 = vpop.f32.mrb[0].mxu0
        %v9546 = vadd.f32 0.0, %v9545
        %v9547 = vpop.f32.mrb[0].mxu0
        %v9548 = vpop.f32.mrb[0].mxu0
        %v9549 = vadd.f32 0.0, %v9548
        %v9550 = vpop.f32.mrb[0].mxu0
        %9551 = vmatprep.mubr.bf16.mxu0 0
        %9552 = vmatmul.mubr.bf16.gmra.mrb[0].mxu0 %v9434
        %v9553 = vpop.f32.mrb[0].mxu0
        %v9554 = vadd.f32 0.0, %v9553
        %v9555 = vpop.f32.mrb[0].mxu0
        %v9556 = vpop.f32.mrb[0].mxu0
        %v9557 = vadd.f32 0.0, %v9556
        %v9558 = vpop.f32.mrb[0].mxu0
        %9559 = vmatprep.mubr.bf16.mxu0 0
        %9560 = vmatmul.mubr.bf16.gmra.mrb[0].mxu0 %v9437
        %v9561 = vpop.f32.mrb[0].mxu0
        %v9562 = vadd.f32 0.0, %v9561
        %v9563 = vpop.f32.mrb[0].mxu0
        %v9564 = vpop.f32.mrb[0].mxu0
        %v9565 = vadd.f32 0.0, %v9564
        %v9566 = vpop.f32.mrb[0].mxu0
        %9567 = vmatprep.mubr.bf16.mxu0 0
        %9568 = vmatmul.mubr.bf16.gmra.mrb[0].mxu0 %v9440
        %v9569 = vpop.f32.mrb[0].mxu0
        %v9570 = vadd.f32 0.0, %v9569
        %v9571 = vpop.f32.mrb[0].mxu0
        %v9572 = vpop.f32.mrb[0].mxu0
        %v9573 = vadd.f32 0.0, %v9572
        %v9574 = vpop.f32.mrb[0].mxu0
        %9575 = vmatprep.mubr.bf16.mxu0 0
        %9576 = vmatmul.mubr.bf16.gmra.mrb[0].mxu0 %v9443
        %v9577 = vpop.f32.mrb[0].mxu0
        %v9578 = vadd.f32 0.0, %v9577
        %v9579 = vpop.f32.mrb[0].mxu0
        %v9580 = vpop.f32.mrb[0].mxu0
        %v9581 = vadd.f32 0.0, %v9580
        %v9582 = vpop.f32.mrb[0].mxu0
        %9583 = vmatprep.mubr.bf16.mxu0 0
        %9584 = vmatmul.mubr.bf16.gmra.mrb[0].mxu0 %v9446
        %v9585 = vpop.f32.mrb[0].mxu0
        %v9586 = vadd.f32 0.0, %v9585
        %v9587 = vpop.f32.mrb[0].mxu0
        %v9588 = vpop.f32.mrb[0].mxu0
        %v9589 = vadd.f32 0.0, %v9588
        %v9590 = vpop.f32.mrb[0].mxu0
        %9591 = vmatprep.mubr.bf16.mxu0 0
        %9592 = vmatmul.mubr.bf16.gmra.mrb[0].mxu0 %v9449
        %v9593 = vpop.f32.mrb[0].mxu0
        %v9594 = vadd.f32 0.0, %v9593
        %v9595 = vpop.f32.mrb[0].mxu0
        %v9596 = vpop.f32.mrb[0].mxu0
        %v9597 = vadd.f32 0.0, %v9596
        %v9598 = vpop.f32.mrb[0].mxu0
        %9599 = vmatprep.mubr.bf16.mxu0 0
        %9600 = vmatmul.mubr.bf16.gmra.mrb[0].mxu0 %v9452
        %v9601 = vpop.f32.mrb[0].mxu0
        %v9602 = vadd.f32 0.0, %v9601
        %v9603 = vpop.f32.mrb[0].mxu0
        %v9604 = vpop.f32.mrb[0].mxu0
        %v9605 = vadd.f32 0.0, %v9604
        %v9606 = vpop.f32.mrb[0].mxu0
        %9607 = vmatprep.mubr.bf16.mxu0 0
        %9608 = vmatmul.mubr.bf16.gmra.mrb[0].mxu0 %v9455
        %v9609 = vpop.f32.mrb[0].mxu0
        %v9610 = vadd.f32 0.0, %v9609
        %v9611 = vpop.f32.mrb[0].mxu0
        %v9612 = vpop.f32.mrb[0].mxu0
        %v9613 = vadd.f32 0.0, %v9612
        %v9614 = vpop.f32.mrb[0].mxu0
        %9615 = vmatprep.mubr.bf16.mxu0 0
        %9616 = vmatmul.mubr.bf16.gmra.mrb[0].mxu0 %v9458
        %v9617 = vpop.f32.mrb[0].mxu0
        %v9618 = vadd.f32 0.0, %v9617
        %v9619 = vpop.f32.mrb[0].mxu0
        %v9620 = vpop.f32.mrb[0].mxu0
        %v9621 = vadd.f32 0.0, %v9620
        %v9622 = vpop.f32.mrb[0].mxu0
        %9623 = vdwg.mxu0
        %v9624 = vadd.f32 %v9179, %v9498
        %v9625 = vadd.f32 %v9180, %v9501
        %v9626 = vadd.f32 %v9181, %v9506
        %v9627 = vadd.f32 %v9182, %v9509
        %v9628 = vadd.f32 %v9183, %v9514
        %v9629 = vadd.f32 %v9184, %v9517
        %v9630 = vadd.f32 %v9185, %v9522
        %v9631 = vadd.f32 %v9186, %v9525
        %v9632 = vadd.f32 %v9187, %v9530
        %v9633 = vadd.f32 %v9188, %v9533
        %v9634 = vadd.f32 %v9189, %v9538
        %v9635 = vadd.f32 %v9190, %v9541
        %v9636 = vadd.f32 %v9191, %v9546
        %v9637 = vadd.f32 %v9192, %v9549
        %v9638 = vadd.f32 %v9193, %v9554
        %v9639 = vadd.f32 %v9194, %v9557
        %v9640 = vadd.f32 %v9195, %v9562
        %v9641 = vadd.f32 %v9196, %v9565
        %v9642 = vadd.f32 %v9197, %v9570
        %v9643 = vadd.f32 %v9198, %v9573
        %v9644 = vadd.f32 %v9199, %v9578
        %v9645 = vadd.f32 %v9200, %v9581
        %v9646 = vadd.f32 %v9201, %v9586
        %v9647 = vadd.f32 %v9202, %v9589
        %v9648 = vadd.f32 %v9203, %v9594
        %v9649 = vadd.f32 %v9204, %v9597
        %v9650 = vadd.f32 %v9205, %v9602
        %v9651 = vadd.f32 %v9206, %v9605
        %v9652 = vadd.f32 %v9207, %v9610
        %v9653 = vadd.f32 %v9208, %v9613
        %v9654 = vadd.f32 %v9209, %v9618
        %v9655 = vadd.f32 %v9210, %v9621
        %s9656 = scalar_lea.vmem [#allocation2], 40
        %v9657 = vld [vmem:[%s9656] sm:$0xf]
        %v9658 = vld [vmem:[%s9656 + $0x4] sm:$0xf]
        %v9659 = vld [vmem:[%s9656 + $0x8] sm:$0xf]
        %v9660 = vld [vmem:[%s9656 + $0xc] sm:$0xf]
        %v9661 = vld [vmem:[%s9656 + $0x14] sm:$0xf]
        %v9662 = vld [vmem:[%s9656 + $0x18] sm:$0xf]
        %v9663 = vld [vmem:[%s9656 + $0x1c] sm:$0xf]
        %v9664 = vld [vmem:[%s9656 + $0x20] sm:$0xf]
        %v9665 = vld [vmem:[%s9656 + $0x28] sm:$0xf]
        %v9666 = vld [vmem:[%s9656 + $0x2c] sm:$0xf]
        %v9667 = vld [vmem:[%s9656 + $0x30] sm:$0xf]
        %v9668 = vld [vmem:[%s9656 + $0x34] sm:$0xf]
        %v9669 = vld [vmem:[%s9656 + $0x3c] sm:$0xf]
        %v9670 = vld [vmem:[%s9656 + $0x40] sm:$0xf]
        %v9671 = vld [vmem:[%s9656 + $0x44] sm:$0xf]
        %v9672 = vld [vmem:[%s9656 + $0x48] sm:$0xf]
        %v9673 = vld [vmem:[%s9656 + $0x50] sm:$0xf]
        %v9674 = vld [vmem:[%s9656 + $0x54] sm:$0xf]
        %v9675 = vld [vmem:[%s9656 + $0x58] sm:$0xf]
        %v9676 = vld [vmem:[%s9656 + $0x5c] sm:$0xf]
        %v9677 = vld [vmem:[%s9656 + $0x64] sm:$0xf]
        %v9678 = vld [vmem:[%s9656 + $0x68] sm:$0xf]
        %v9679 = vld [vmem:[%s9656 + $0x6c] sm:$0xf]
        %v9680 = vld [vmem:[%s9656 + $0x70] sm:$0xf]
        %v9681 = vld [vmem:[%s9656 + $0x78] sm:$0xf]
        %v9682 = vld [vmem:[%s9656 + $0x7c] sm:$0xf]
        %v9683 = vld [vmem:[%s9656 + $0x80] sm:$0xf]
        %v9684 = vld [vmem:[%s9656 + $0x84] sm:$0xf]
        %v9685 = vld [vmem:[%s9656 + $0x8c] sm:$0xf]
        %v9686 = vld [vmem:[%s9656 + $0x90] sm:$0xf]
        %v9687 = vld [vmem:[%s9656 + $0x94] sm:$0xf]
        %v9688 = vld [vmem:[%s9656 + $0x98] sm:$0xf]
        %v9689 = vld [vmem:[#allocation14 + $0x18] sm:$0xf]
        %v9722 = vunpack.c.l.b16 %v9657
        %v9723 = vunpack.c.l.b16 %v9658
        %v9724 = vunpack.c.l.b16 %v9659
        %v9725 = vunpack.c.l.b16 %v9660
        %v9726 = vunpack.c.l.b16 %v9661
        %v9727 = vunpack.c.l.b16 %v9662
        %v9728 = vunpack.c.l.b16 %v9663
        %v9729 = vunpack.c.l.b16 %v9664
        %v9730 = vunpack.c.l.b16 %v9665
        %v9731 = vunpack.c.l.b16 %v9666
        %v9732 = vunpack.c.l.b16 %v9667
        %v9733 = vunpack.c.l.b16 %v9668
        %v9734 = vunpack.c.l.b16 %v9669
        %v9735 = vunpack.c.l.b16 %v9670
        %v9736 = vunpack.c.l.b16 %v9671
        %v9737 = vunpack.c.l.b16 %v9672
        %v9738 = vunpack.c.l.b16 %v9673
        %v9739 = vunpack.c.l.b16 %v9674
        %v9740 = vunpack.c.l.b16 %v9675
        %v9741 = vunpack.c.l.b16 %v9676
        %v9742 = vunpack.c.l.b16 %v9677
        %v9743 = vunpack.c.l.b16 %v9678
        %v9744 = vunpack.c.l.b16 %v9679
        %v9745 = vunpack.c.l.b16 %v9680
        %v9746 = vunpack.c.l.b16 %v9681
        %v9747 = vunpack.c.l.b16 %v9682
        %v9748 = vunpack.c.l.b16 %v9683
        %v9749 = vunpack.c.l.b16 %v9684
        %v9750 = vunpack.c.l.b16 %v9685
        %v9751 = vunpack.c.l.b16 %v9686
        %v9752 = vunpack.c.l.b16 %v9687
        %v9753 = vunpack.c.l.b16 %v9688
        %v9754 = vpack.c.b16 %v9723, %v9722
        %v9755 = vpack.c.b16 %v9725, %v9724
        %v9756 = vpack.c.b16 %v9727, %v9726
        %v9757 = vpack.c.b16 %v9729, %v9728
        %v9758 = vpack.c.b16 %v9731, %v9730
        %v9759 = vpack.c.b16 %v9733, %v9732
        %v9760 = vpack.c.b16 %v9735, %v9734
        %v9761 = vpack.c.b16 %v9737, %v9736
        %v9762 = vpack.c.b16 %v9739, %v9738
        %v9763 = vpack.c.b16 %v9741, %v9740
        %v9764 = vpack.c.b16 %v9743, %v9742
        %v9765 = vpack.c.b16 %v9745, %v9744
        %v9766 = vpack.c.b16 %v9747, %v9746
        %v9767 = vpack.c.b16 %v9749, %v9748
        %v9768 = vpack.c.b16 %v9751, %v9750
        %v9769 = vpack.c.b16 %v9753, %v9752
        %v9771 = vsel %vm7241, %v9754, 0
        %v9774 = vsel %vm7241, %v9755, 0
        %v9777 = vsel %vm7241, %v9756, 0
        %v9780 = vsel %vm7241, %v9757, 0
        %v9783 = vsel %vm7241, %v9758, 0
        %v9786 = vsel %vm7241, %v9759, 0
        %v9789 = vsel %vm7241, %v9760, 0
        %v9792 = vsel %vm7241, %v9761, 0
        %v9795 = vsel %vm7241, %v9762, 0
        %v9798 = vsel %vm7241, %v9763, 0
        %v9801 = vsel %vm7241, %v9764, 0
        %v9804 = vsel %vm7241, %v9765, 0
        %v9807 = vsel %vm7241, %v9766, 0
        %v9810 = vsel %vm7241, %v9767, 0
        %v9813 = vsel %vm7241, %v9768, 0
        %v9816 = vsel %vm7241, %v9769, 0
        %v9819 = vsel %vm7290, %v9689, 0
        %9821 = vmatprep.subr.bf16.mxu0 0
        %9822 = vmatpush1.bf16.msra.mxu0 %v9819
        %9823 = vmatprep.subr.bf16.mxu0 0
        %9824 = vmatpush1.bf16.msra.mxu0 0
        %9825 = vmatprep.subr.bf16.mxu0 0
        %9826 = vmatpush1.bf16.msra.mxu0 0
        %9827 = vmatprep.subr.bf16.mxu0 0
        %9828 = vmatpush1.bf16.msra.mxu0 0
        %9829 = vmatprep.subr.bf16.mxu0 0
        %9830 = vmatpush1.bf16.msra.mxu0 0
        %9831 = vmatprep.subr.bf16.mxu0 0
        %9832 = vmatpush1.bf16.msra.mxu0 0
        %9833 = vmatprep.subr.bf16.mxu0 0
        %9834 = vmatpush1.bf16.msra.mxu0 0
        %9835 = vmatprep.subr.bf16.mxu0 0
        %9836 = vmatpush1.bf16.msra.mxu0 0
        %9837 = vmatprep.subr.bf16.mxu0 0
        %9838 = vmatpush1.bf16.msra.mxu0 0
        %9839 = vmatprep.subr.bf16.mxu0 0
        %9840 = vmatpush1.bf16.msra.mxu0 0
        %9841 = vmatprep.subr.bf16.mxu0 0
        %9842 = vmatpush1.bf16.msra.mxu0 0
        %9843 = vmatprep.subr.bf16.mxu0 0
        %9844 = vmatpush1.bf16.msra.mxu0 0
        %9845 = vmatprep.subr.bf16.mxu0 0
        %9846 = vmatpush1.bf16.msra.mxu0 0
        %9847 = vmatprep.subr.bf16.mxu0 0
        %9848 = vmatpush1.bf16.msra.mxu0 0
        %9849 = vmatprep.subr.bf16.mxu0 0
        %9850 = vmatpush1.bf16.msra.mxu0 0
        %9851 = vmatprep.subr.bf16.mxu0 0
        %9852 = vmatpush1.bf16.msra.mxu0 0
        %9853 = vmatprep.mubr.bf16.mxu0 0
        %9854 = vmatmul.mubr.bf16.gmra.mrb[0].mxu0 %v9771
        %v9855 = vpop.f32.mrb[0].mxu0
        %v9856 = vadd.f32 0.0, %v9855
        %v9857 = vpop.f32.mrb[0].mxu0
        %v9858 = vpop.f32.mrb[0].mxu0
        %v9859 = vadd.f32 0.0, %v9858
        %v9860 = vpop.f32.mrb[0].mxu0
        %9861 = vmatprep.mubr.bf16.mxu0 0
        %9862 = vmatmul.mubr.bf16.gmra.mrb[0].mxu0 %v9774
        %v9863 = vpop.f32.mrb[0].mxu0
        %v9864 = vadd.f32 0.0, %v9863
        %v9865 = vpop.f32.mrb[0].mxu0
        %v9866 = vpop.f32.mrb[0].mxu0
        %v9867 = vadd.f32 0.0, %v9866
        %v9868 = vpop.f32.mrb[0].mxu0
        %9869 = vmatprep.mubr.bf16.mxu0 0
        %9870 = vmatmul.mubr.bf16.gmra.mrb[0].mxu0 %v9777
        %v9871 = vpop.f32.mrb[0].mxu0
        %v9872 = vadd.f32 0.0, %v9871
        %v9873 = vpop.f32.mrb[0].mxu0
        %v9874 = vpop.f32.mrb[0].mxu0
        %v9875 = vadd.f32 0.0, %v9874
        %v9876 = vpop.f32.mrb[0].mxu0
        %9877 = vmatprep.mubr.bf16.mxu0 0
        %9878 = vmatmul.mubr.bf16.gmra.mrb[0].mxu0 %v9780
        %v9879 = vpop.f32.mrb[0].mxu0
        %v9880 = vadd.f32 0.0, %v9879
        %v9881 = vpop.f32.mrb[0].mxu0
        %v9882 = vpop.f32.mrb[0].mxu0
        %v9883 = vadd.f32 0.0, %v9882
        %v9884 = vpop.f32.mrb[0].mxu0
        %9885 = vmatprep.mubr.bf16.mxu0 0
        %9886 = vmatmul.mubr.bf16.gmra.mrb[0].mxu0 %v9783
        %v9887 = vpop.f32.mrb[0].mxu0
        %v9888 = vadd.f32 0.0, %v9887
        %v9889 = vpop.f32.mrb[0].mxu0
        %v9890 = vpop.f32.mrb[0].mxu0
        %v9891 = vadd.f32 0.0, %v9890
        %v9892 = vpop.f32.mrb[0].mxu0
        %9893 = vmatprep.mubr.bf16.mxu0 0
        %9894 = vmatmul.mubr.bf16.gmra.mrb[0].mxu0 %v9786
        %v9895 = vpop.f32.mrb[0].mxu0
        %v9896 = vadd.f32 0.0, %v9895
        %v9897 = vpop.f32.mrb[0].mxu0
        %v9898 = vpop.f32.mrb[0].mxu0
        %v9899 = vadd.f32 0.0, %v9898
        %v9900 = vpop.f32.mrb[0].mxu0
        %9901 = vmatprep.mubr.bf16.mxu0 0
        %9902 = vmatmul.mubr.bf16.gmra.mrb[0].mxu0 %v9789
        %v9903 = vpop.f32.mrb[0].mxu0
        %v9904 = vadd.f32 0.0, %v9903
        %v9905 = vpop.f32.mrb[0].mxu0
        %v9906 = vpop.f32.mrb[0].mxu0
        %v9907 = vadd.f32 0.0, %v9906
        %v9908 = vpop.f32.mrb[0].mxu0
        %9909 = vmatprep.mubr.bf16.mxu0 0
        %9910 = vmatmul.mubr.bf16.gmra.mrb[0].mxu0 %v9792
        %v9911 = vpop.f32.mrb[0].mxu0
        %v9912 = vadd.f32 0.0, %v9911
        %v9913 = vpop.f32.mrb[0].mxu0
        %v9914 = vpop.f32.mrb[0].mxu0
        %v9915 = vadd.f32 0.0, %v9914
        %v9916 = vpop.f32.mrb[0].mxu0
        %9917 = vmatprep.mubr.bf16.mxu0 0
        %9918 = vmatmul.mubr.bf16.gmra.mrb[0].mxu0 %v9795
        %v9919 = vpop.f32.mrb[0].mxu0
        %v9920 = vadd.f32 0.0, %v9919
        %v9921 = vpop.f32.mrb[0].mxu0
        %v9922 = vpop.f32.mrb[0].mxu0
        %v9923 = vadd.f32 0.0, %v9922
        %v9924 = vpop.f32.mrb[0].mxu0
        %9925 = vmatprep.mubr.bf16.mxu0 0
        %9926 = vmatmul.mubr.bf16.gmra.mrb[0].mxu0 %v9798
        %v9927 = vpop.f32.mrb[0].mxu0
        %v9928 = vadd.f32 0.0, %v9927
        %v9929 = vpop.f32.mrb[0].mxu0
        %v9930 = vpop.f32.mrb[0].mxu0
        %v9931 = vadd.f32 0.0, %v9930
        %v9932 = vpop.f32.mrb[0].mxu0
        %9933 = vmatprep.mubr.bf16.mxu0 0
        %9934 = vmatmul.mubr.bf16.gmra.mrb[0].mxu0 %v9801
        %v9935 = vpop.f32.mrb[0].mxu0
        %v9936 = vadd.f32 0.0, %v9935
        %v9937 = vpop.f32.mrb[0].mxu0
        %v9938 = vpop.f32.mrb[0].mxu0
        %v9939 = vadd.f32 0.0, %v9938
        %v9940 = vpop.f32.mrb[0].mxu0
        %9941 = vmatprep.mubr.bf16.mxu0 0
        %9942 = vmatmul.mubr.bf16.gmra.mrb[0].mxu0 %v9804
        %v9943 = vpop.f32.mrb[0].mxu0
        %v9944 = vadd.f32 0.0, %v9943
        %v9945 = vpop.f32.mrb[0].mxu0
        %v9946 = vpop.f32.mrb[0].mxu0
        %v9947 = vadd.f32 0.0, %v9946
        %v9948 = vpop.f32.mrb[0].mxu0
        %9949 = vmatprep.mubr.bf16.mxu0 0
        %9950 = vmatmul.mubr.bf16.gmra.mrb[0].mxu0 %v9807
        %v9951 = vpop.f32.mrb[0].mxu0
        %v9952 = vadd.f32 0.0, %v9951
        %v9953 = vpop.f32.mrb[0].mxu0
        %v9954 = vpop.f32.mrb[0].mxu0
        %v9955 = vadd.f32 0.0, %v9954
        %v9956 = vpop.f32.mrb[0].mxu0
        %9957 = vmatprep.mubr.bf16.mxu0 0
        %9958 = vmatmul.mubr.bf16.gmra.mrb[0].mxu0 %v9810
        %v9959 = vpop.f32.mrb[0].mxu0
        %v9960 = vadd.f32 0.0, %v9959
        %v9961 = vpop.f32.mrb[0].mxu0
        %v9962 = vpop.f32.mrb[0].mxu0
        %v9963 = vadd.f32 0.0, %v9962
        %v9964 = vpop.f32.mrb[0].mxu0
        %9965 = vmatprep.mubr.bf16.mxu0 0
        %9966 = vmatmul.mubr.bf16.gmra.mrb[0].mxu0 %v9813
        %v9967 = vpop.f32.mrb[0].mxu0
        %v9968 = vadd.f32 0.0, %v9967
        %v9969 = vpop.f32.mrb[0].mxu0
        %v9970 = vpop.f32.mrb[0].mxu0
        %v9971 = vadd.f32 0.0, %v9970
        %v9972 = vpop.f32.mrb[0].mxu0
        %9973 = vmatprep.mubr.bf16.mxu0 0
        %9974 = vmatmul.mubr.bf16.gmra.mrb[0].mxu0 %v9816
        %v9975 = vpop.f32.mrb[0].mxu0
        %v9976 = vadd.f32 0.0, %v9975
        %v9977 = vpop.f32.mrb[0].mxu0
        %v9978 = vpop.f32.mrb[0].mxu0
        %v9979 = vadd.f32 0.0, %v9978
        %v9980 = vpop.f32.mrb[0].mxu0
        %9981 = vdwg.mxu0
        %v9982 = vadd.f32 %v9624, %v9856
        %v9983 = vadd.f32 %v9625, %v9859
        %v9984 = vadd.f32 %v9626, %v9864
        %v9985 = vadd.f32 %v9627, %v9867
        %v9986 = vadd.f32 %v9628, %v9872
        %v9987 = vadd.f32 %v9629, %v9875
        %v9988 = vadd.f32 %v9630, %v9880
        %v9989 = vadd.f32 %v9631, %v9883
        %v9990 = vadd.f32 %v9632, %v9888
        %v9991 = vadd.f32 %v9633, %v9891
        %v9992 = vadd.f32 %v9634, %v9896
        %v9993 = vadd.f32 %v9635, %v9899
        %v9994 = vadd.f32 %v9636, %v9904
        %v9995 = vadd.f32 %v9637, %v9907
        %v9996 = vadd.f32 %v9638, %v9912
        %v9997 = vadd.f32 %v9639, %v9915
        %v9998 = vadd.f32 %v9640, %v9920
        %v9999 = vadd.f32 %v9641, %v9923
        %v10000 = vadd.f32 %v9642, %v9928
        %v10001 = vadd.f32 %v9643, %v9931
        %v10002 = vadd.f32 %v9644, %v9936
        %v10003 = vadd.f32 %v9645, %v9939
        %v10004 = vadd.f32 %v9646, %v9944
        %v10005 = vadd.f32 %v9647, %v9947
        %v10006 = vadd.f32 %v9648, %v9952
        %v10007 = vadd.f32 %v9649, %v9955
        %v10008 = vadd.f32 %v9650, %v9960
        %v10009 = vadd.f32 %v9651, %v9963
        %v10010 = vadd.f32 %v9652, %v9968
        %v10011 = vadd.f32 %v9653, %v9971
        %v10012 = vadd.f32 %v9654, %v9976
        %v10013 = vadd.f32 %v9655, %v9979
        %v10014 = vld [vmem:[%s9656] sm:$0xf]
        %v10015 = vld [vmem:[%s9656 + $0x4] sm:$0xf]
        %v10016 = vld [vmem:[%s9656 + $0x8] sm:$0xf]
        %v10017 = vld [vmem:[%s9656 + $0xc] sm:$0xf]
        %v10018 = vld [vmem:[%s9656 + $0x10] sm:$0x1]
        %v10019 = vld [vmem:[%s9656 + $0x14] sm:$0xf]
        %v10020 = vld [vmem:[%s9656 + $0x18] sm:$0xf]
        %v10021 = vld [vmem:[%s9656 + $0x1c] sm:$0xf]
        %v10022 = vld [vmem:[%s9656 + $0x20] sm:$0xf]
        %v10023 = vld [vmem:[%s9656 + $0x24] sm:$0x1]
        %v10024 = vld [vmem:[%s9656 + $0x28] sm:$0xf]
        %v10025 = vld [vmem:[%s9656 + $0x2c] sm:$0xf]
        %v10026 = vld [vmem:[%s9656 + $0x30] sm:$0xf]
        %v10027 = vld [vmem:[%s9656 + $0x34] sm:$0xf]
        %v10028 = vld [vmem:[%s9656 + $0x38] sm:$0x1]
        %v10029 = vld [vmem:[%s9656 + $0x3c] sm:$0xf]
        %v10030 = vld [vmem:[%s9656 + $0x40] sm:$0xf]
        %v10031 = vld [vmem:[%s9656 + $0x44] sm:$0xf]
        %v10032 = vld [vmem:[%s9656 + $0x48] sm:$0xf]
        %v10033 = vld [vmem:[%s9656 + $0x4c] sm:$0x1]
        %v10034 = vld [vmem:[%s9656 + $0x50] sm:$0xf]
        %v10035 = vld [vmem:[%s9656 + $0x54] sm:$0xf]
        %v10036 = vld [vmem:[%s9656 + $0x58] sm:$0xf]
        %v10037 = vld [vmem:[%s9656 + $0x5c] sm:$0xf]
        %v10038 = vld [vmem:[%s9656 + $0x60] sm:$0x1]
        %v10039 = vld [vmem:[%s9656 + $0x64] sm:$0xf]
        %v10040 = vld [vmem:[%s9656 + $0x68] sm:$0xf]
        %v10041 = vld [vmem:[%s9656 + $0x6c] sm:$0xf]
        %v10042 = vld [vmem:[%s9656 + $0x70] sm:$0xf]
        %v10043 = vld [vmem:[%s9656 + $0x74] sm:$0x1]
        %v10044 = vld [vmem:[%s9656 + $0x78] sm:$0xf]
        %v10045 = vld [vmem:[%s9656 + $0x7c] sm:$0xf]
        %v10046 = vld [vmem:[%s9656 + $0x80] sm:$0xf]
        %v10047 = vld [vmem:[%s9656 + $0x84] sm:$0xf]
        %v10048 = vld [vmem:[%s9656 + $0x88] sm:$0x1]
        %v10049 = vld [vmem:[%s9656 + $0x8c] sm:$0xf]
        %v10050 = vld [vmem:[%s9656 + $0x90] sm:$0xf]
        %v10051 = vld [vmem:[%s9656 + $0x94] sm:$0xf]
        %v10052 = vld [vmem:[%s9656 + $0x98] sm:$0xf]
        %v10053 = vld [vmem:[%s9656 + $0x9c] sm:$0x1]
        %v10055 = vshrl.u32 %v10014, 16
        %v10057 = vrot.slane %v10055, 4
        %v10058 = vshll.u32 %v10014, 16
        %v10060 = vrot.slane %v10058, 5
        %v10061 = vor.u32 %v10057, %v10060
        %v10062 = vrot.slane %v10061, 4
        %v10064 = vshll.u32 %v10015, 16
        %v10066 = vrot.slane %v10064, 5
        %v10067 = vsel %vm604, %v10062, %v10066
        %v10068 = vshrl.u32 %v10015, 16
        %v10070 = vrot.slane %v10068, 4
        %v10071 = vor.u32 %v10070, %v10066
        %v10072 = vrot.slane %v10071, 4
        %v10074 = vshll.u32 %v10016, 16
        %v10076 = vrot.slane %v10074, 5
        %v10077 = vsel %vm604, %v10072, %v10076
        %v10078 = vshrl.u32 %v10016, 16
        %v10080 = vrot.slane %v10078, 4
        %v10081 = vor.u32 %v10080, %v10076
        %v10082 = vrot.slane %v10081, 4
        %v10084 = vshll.u32 %v10017, 16
        %v10086 = vrot.slane %v10084, 5
        %v10087 = vsel %vm604, %v10082, %v10086
        %v10088 = vshrl.u32 %v10017, 16
        %v10090 = vrot.slane %v10088, 4
        %v10091 = vor.u32 %v10090, %v10086
        %v10092 = vrot.slane %v10091, 4
        %v10094 = vshll.u32 %v10018, 16
        %v10096 = vrot.slane %v10094, 5
        %v10097 = vsel %vm604, %v10092, %v10096
        %v10099 = vshrl.u32 %v10019, 16
        %v10101 = vrot.slane %v10099, 4
        %v10102 = vshll.u32 %v10019, 16
        %v10104 = vrot.slane %v10102, 5
        %v10105 = vor.u32 %v10101, %v10104
        %v10106 = vrot.slane %v10105, 4
        %v10108 = vshll.u32 %v10020, 16
        %v10110 = vrot.slane %v10108, 5
        %v10111 = vsel %vm604, %v10106, %v10110
        %v10112 = vshrl.u32 %v10020, 16
        %v10114 = vrot.slane %v10112, 4
        %v10115 = vor.u32 %v10114, %v10110
        %v10116 = vrot.slane %v10115, 4
        %v10118 = vshll.u32 %v10021, 16
        %v10120 = vrot.slane %v10118, 5
        %v10121 = vsel %vm604, %v10116, %v10120
        %v10122 = vshrl.u32 %v10021, 16
        %v10124 = vrot.slane %v10122, 4
        %v10125 = vor.u32 %v10124, %v10120
        %v10126 = vrot.slane %v10125, 4
        %v10128 = vshll.u32 %v10022, 16
        %v10130 = vrot.slane %v10128, 5
        %v10131 = vsel %vm604, %v10126, %v10130
        %v10132 = vshrl.u32 %v10022, 16
        %v10134 = vrot.slane %v10132, 4
        %v10135 = vor.u32 %v10134, %v10130
        %v10136 = vrot.slane %v10135, 4
        %v10138 = vshll.u32 %v10023, 16
        %v10140 = vrot.slane %v10138, 5
        %v10141 = vsel %vm604, %v10136, %v10140
        %v10143 = vshrl.u32 %v10024, 16
        %v10145 = vrot.slane %v10143, 4
        %v10146 = vshll.u32 %v10024, 16
        %v10148 = vrot.slane %v10146, 5
        %v10149 = vor.u32 %v10145, %v10148
        %v10150 = vrot.slane %v10149, 4
        %v10152 = vshll.u32 %v10025, 16
        %v10154 = vrot.slane %v10152, 5
        %v10155 = vsel %vm604, %v10150, %v10154
        %v10156 = vshrl.u32 %v10025, 16
        %v10158 = vrot.slane %v10156, 4
        %v10159 = vor.u32 %v10158, %v10154
        %v10160 = vrot.slane %v10159, 4
        %v10162 = vshll.u32 %v10026, 16
        %v10164 = vrot.slane %v10162, 5
        %v10165 = vsel %vm604, %v10160, %v10164
        %v10166 = vshrl.u32 %v10026, 16
        %v10168 = vrot.slane %v10166, 4
        %v10169 = vor.u32 %v10168, %v10164
        %v10170 = vrot.slane %v10169, 4
        %v10172 = vshll.u32 %v10027, 16
        %v10174 = vrot.slane %v10172, 5
        %v10175 = vsel %vm604, %v10170, %v10174
        %v10176 = vshrl.u32 %v10027, 16
        %v10178 = vrot.slane %v10176, 4
        %v10179 = vor.u32 %v10178, %v10174
        %v10180 = vrot.slane %v10179, 4
        %v10182 = vshll.u32 %v10028, 16
        %v10184 = vrot.slane %v10182, 5
        %v10185 = vsel %vm604, %v10180, %v10184
        %v10187 = vshrl.u32 %v10029, 16
        %v10189 = vrot.slane %v10187, 4
        %v10190 = vshll.u32 %v10029, 16
        %v10192 = vrot.slane %v10190, 5
        %v10193 = vor.u32 %v10189, %v10192
        %v10194 = vrot.slane %v10193, 4
        %v10196 = vshll.u32 %v10030, 16
        %v10198 = vrot.slane %v10196, 5
        %v10199 = vsel %vm604, %v10194, %v10198
        %v10200 = vshrl.u32 %v10030, 16
        %v10202 = vrot.slane %v10200, 4
        %v10203 = vor.u32 %v10202, %v10198
        %v10204 = vrot.slane %v10203, 4
        %v10206 = vshll.u32 %v10031, 16
        %v10208 = vrot.slane %v10206, 5
        %v10209 = vsel %vm604, %v10204, %v10208
        %v10210 = vshrl.u32 %v10031, 16
        %v10212 = vrot.slane %v10210, 4
        %v10213 = vor.u32 %v10212, %v10208
        %v10214 = vrot.slane %v10213, 4
        %v10216 = vshll.u32 %v10032, 16
        %v10218 = vrot.slane %v10216, 5
        %v10219 = vsel %vm604, %v10214, %v10218
        %v10220 = vshrl.u32 %v10032, 16
        %v10222 = vrot.slane %v10220, 4
        %v10223 = vor.u32 %v10222, %v10218
        %v10224 = vrot.slane %v10223, 4
        %v10226 = vshll.u32 %v10033, 16
        %v10228 = vrot.slane %v10226, 5
        %v10229 = vsel %vm604, %v10224, %v10228
        %v10231 = vshrl.u32 %v10034, 16
        %v10233 = vrot.slane %v10231, 4
        %v10234 = vshll.u32 %v10034, 16
        %v10236 = vrot.slane %v10234, 5
        %v10237 = vor.u32 %v10233, %v10236
        %v10238 = vrot.slane %v10237, 4
        %v10240 = vshll.u32 %v10035, 16
        %v10242 = vrot.slane %v10240, 5
        %v10243 = vsel %vm604, %v10238, %v10242
        %v10244 = vshrl.u32 %v10035, 16
        %v10246 = vrot.slane %v10244, 4
        %v10247 = vor.u32 %v10246, %v10242
        %v10248 = vrot.slane %v10247, 4
        %v10250 = vshll.u32 %v10036, 16
        %v10252 = vrot.slane %v10250, 5
        %v10253 = vsel %vm604, %v10248, %v10252
        %v10254 = vshrl.u32 %v10036, 16
        %v10256 = vrot.slane %v10254, 4
        %v10257 = vor.u32 %v10256, %v10252
        %v10258 = vrot.slane %v10257, 4
        %v10260 = vshll.u32 %v10037, 16
        %v10262 = vrot.slane %v10260, 5
        %v10263 = vsel %vm604, %v10258, %v10262
        %v10264 = vshrl.u32 %v10037, 16
        %v10266 = vrot.slane %v10264, 4
        %v10267 = vor.u32 %v10266, %v10262
        %v10268 = vrot.slane %v10267, 4
        %v10270 = vshll.u32 %v10038, 16
        %v10272 = vrot.slane %v10270, 5
        %v10273 = vsel %vm604, %v10268, %v10272
        %v10275 = vshrl.u32 %v10039, 16
        %v10277 = vrot.slane %v10275, 4
        %v10278 = vshll.u32 %v10039, 16
        %v10280 = vrot.slane %v10278, 5
        %v10281 = vor.u32 %v10277, %v10280
        %v10282 = vrot.slane %v10281, 4
        %v10284 = vshll.u32 %v10040, 16
        %v10286 = vrot.slane %v10284, 5
        %v10287 = vsel %vm604, %v10282, %v10286
        %v10288 = vshrl.u32 %v10040, 16
        %v10290 = vrot.slane %v10288, 4
        %v10291 = vor.u32 %v10290, %v10286
        %v10292 = vrot.slane %v10291, 4
        %v10294 = vshll.u32 %v10041, 16
        %v10296 = vrot.slane %v10294, 5
        %v10297 = vsel %vm604, %v10292, %v10296
        %v10298 = vshrl.u32 %v10041, 16
        %v10300 = vrot.slane %v10298, 4
        %v10301 = vor.u32 %v10300, %v10296
        %v10302 = vrot.slane %v10301, 4
        %v10304 = vshll.u32 %v10042, 16
        %v10306 = vrot.slane %v10304, 5
        %v10307 = vsel %vm604, %v10302, %v10306
        %v10308 = vshrl.u32 %v10042, 16
        %v10310 = vrot.slane %v10308, 4
        %v10311 = vor.u32 %v10310, %v10306
        %v10312 = vrot.slane %v10311, 4
        %v10314 = vshll.u32 %v10043, 16
        %v10316 = vrot.slane %v10314, 5
        %v10317 = vsel %vm604, %v10312, %v10316
        %v10319 = vshrl.u32 %v10044, 16
        %v10321 = vrot.slane %v10319, 4
        %v10322 = vshll.u32 %v10044, 16
        %v10324 = vrot.slane %v10322, 5
        %v10325 = vor.u32 %v10321, %v10324
        %v10326 = vrot.slane %v10325, 4
        %v10328 = vshll.u32 %v10045, 16
        %v10330 = vrot.slane %v10328, 5
        %v10331 = vsel %vm604, %v10326, %v10330
        %v10332 = vshrl.u32 %v10045, 16
        %v10334 = vrot.slane %v10332, 4
        %v10335 = vor.u32 %v10334, %v10330
        %v10336 = vrot.slane %v10335, 4
        %v10338 = vshll.u32 %v10046, 16
        %v10340 = vrot.slane %v10338, 5
        %v10341 = vsel %vm604, %v10336, %v10340
        %v10342 = vshrl.u32 %v10046, 16
        %v10344 = vrot.slane %v10342, 4
        %v10345 = vor.u32 %v10344, %v10340
        %v10346 = vrot.slane %v10345, 4
        %v10348 = vshll.u32 %v10047, 16
        %v10350 = vrot.slane %v10348, 5
        %v10351 = vsel %vm604, %v10346, %v10350
        %v10352 = vshrl.u32 %v10047, 16
        %v10354 = vrot.slane %v10352, 4
        %v10355 = vor.u32 %v10354, %v10350
        %v10356 = vrot.slane %v10355, 4
        %v10358 = vshll.u32 %v10048, 16
        %v10360 = vrot.slane %v10358, 5
        %v10361 = vsel %vm604, %v10356, %v10360
        %v10363 = vshrl.u32 %v10049, 16
        %v10365 = vrot.slane %v10363, 4
        %v10366 = vshll.u32 %v10049, 16
        %v10368 = vrot.slane %v10366, 5
        %v10369 = vor.u32 %v10365, %v10368
        %v10370 = vrot.slane %v10369, 4
        %v10372 = vshll.u32 %v10050, 16
        %v10374 = vrot.slane %v10372, 5
        %v10375 = vsel %vm604, %v10370, %v10374
        %v10376 = vshrl.u32 %v10050, 16
        %v10378 = vrot.slane %v10376, 4
        %v10379 = vor.u32 %v10378, %v10374
        %v10380 = vrot.slane %v10379, 4
        %v10382 = vshll.u32 %v10051, 16
        %v10384 = vrot.slane %v10382, 5
        %v10385 = vsel %vm604, %v10380, %v10384
        %v10386 = vshrl.u32 %v10051, 16
        %v10388 = vrot.slane %v10386, 4
        %v10389 = vor.u32 %v10388, %v10384
        %v10390 = vrot.slane %v10389, 4
        %v10392 = vshll.u32 %v10052, 16
        %v10394 = vrot.slane %v10392, 5
        %v10395 = vsel %vm604, %v10390, %v10394
        %v10396 = vshrl.u32 %v10052, 16
        %v10398 = vrot.slane %v10396, 4
        %v10399 = vor.u32 %v10398, %v10394
        %v10400 = vrot.slane %v10399, 4
        %v10402 = vshll.u32 %v10053, 16
        %v10404 = vrot.slane %v10402, 5
        %v10405 = vsel %vm604, %v10400, %v10404
        %v10406 = vld [vmem:[#allocation14 + $0x1c] sm:$0xf]
        %v10407 = vunpack.c.l.b16 %v10067
        %v10408 = vunpack.c.l.b16 %v10077
        %v10409 = vunpack.c.l.b16 %v10087
        %v10410 = vunpack.c.l.b16 %v10097
        %v10411 = vunpack.c.l.b16 %v10111
        %v10412 = vunpack.c.l.b16 %v10121
        %v10413 = vunpack.c.l.b16 %v10131
        %v10414 = vunpack.c.l.b16 %v10141
        %v10415 = vunpack.c.l.b16 %v10155
        %v10416 = vunpack.c.l.b16 %v10165
        %v10417 = vunpack.c.l.b16 %v10175
        %v10418 = vunpack.c.l.b16 %v10185
        %v10419 = vunpack.c.l.b16 %v10199
        %v10420 = vunpack.c.l.b16 %v10209
        %v10421 = vunpack.c.l.b16 %v10219
        %v10422 = vunpack.c.l.b16 %v10229
        %v10423 = vunpack.c.l.b16 %v10243
        %v10424 = vunpack.c.l.b16 %v10253
        %v10425 = vunpack.c.l.b16 %v10263
        %v10426 = vunpack.c.l.b16 %v10273
        %v10427 = vunpack.c.l.b16 %v10287
        %v10428 = vunpack.c.l.b16 %v10297
        %v10429 = vunpack.c.l.b16 %v10307
        %v10430 = vunpack.c.l.b16 %v10317
        %v10431 = vunpack.c.l.b16 %v10331
        %v10432 = vunpack.c.l.b16 %v10341
        %v10433 = vunpack.c.l.b16 %v10351
        %v10434 = vunpack.c.l.b16 %v10361
        %v10435 = vunpack.c.l.b16 %v10375
        %v10436 = vunpack.c.l.b16 %v10385
        %v10437 = vunpack.c.l.b16 %v10395
        %v10438 = vunpack.c.l.b16 %v10405
        %v10439 = vpack.c.b16 %v10408, %v10407
        %v10440 = vpack.c.b16 %v10410, %v10409
        %v10441 = vpack.c.b16 %v10412, %v10411
        %v10442 = vpack.c.b16 %v10414, %v10413
        %v10443 = vpack.c.b16 %v10416, %v10415
        %v10444 = vpack.c.b16 %v10418, %v10417
        %v10445 = vpack.c.b16 %v10420, %v10419
        %v10446 = vpack.c.b16 %v10422, %v10421
        %v10447 = vpack.c.b16 %v10424, %v10423
        %v10448 = vpack.c.b16 %v10426, %v10425
        %v10449 = vpack.c.b16 %v10428, %v10427
        %v10450 = vpack.c.b16 %v10430, %v10429
        %v10451 = vpack.c.b16 %v10432, %v10431
        %v10452 = vpack.c.b16 %v10434, %v10433
        %v10453 = vpack.c.b16 %v10436, %v10435
        %v10454 = vpack.c.b16 %v10438, %v10437
        %v10456 = vsel %vm7241, %v10439, 0
        %v10459 = vsel %vm7241, %v10440, 0
        %v10462 = vsel %vm7241, %v10441, 0
        %v10465 = vsel %vm7241, %v10442, 0
        %v10468 = vsel %vm7241, %v10443, 0
        %v10471 = vsel %vm7241, %v10444, 0
        %v10474 = vsel %vm7241, %v10445, 0
        %v10477 = vsel %vm7241, %v10446, 0
        %v10480 = vsel %vm7241, %v10447, 0
        %v10483 = vsel %vm7241, %v10448, 0
        %v10486 = vsel %vm7241, %v10449, 0
        %v10489 = vsel %vm7241, %v10450, 0
        %v10492 = vsel %vm7241, %v10451, 0
        %v10495 = vsel %vm7241, %v10452, 0
        %v10498 = vsel %vm7241, %v10453, 0
        %v10501 = vsel %vm7241, %v10454, 0
        %v10504 = vsel %vm7290, %v10406, 0
        %10506 = vmatprep.subr.bf16.mxu0 0
        %10507 = vmatpush1.bf16.msra.mxu0 %v10504
        %10508 = vmatprep.subr.bf16.mxu0 0
        %10509 = vmatpush1.bf16.msra.mxu0 0
        %10510 = vmatprep.subr.bf16.mxu0 0
        %10511 = vmatpush1.bf16.msra.mxu0 0
        %10512 = vmatprep.subr.bf16.mxu0 0
        %10513 = vmatpush1.bf16.msra.mxu0 0
        %10514 = vmatprep.subr.bf16.mxu0 0
        %10515 = vmatpush1.bf16.msra.mxu0 0
        %10516 = vmatprep.subr.bf16.mxu0 0
        %10517 = vmatpush1.bf16.msra.mxu0 0
        %10518 = vmatprep.subr.bf16.mxu0 0
        %10519 = vmatpush1.bf16.msra.mxu0 0
        %10520 = vmatprep.subr.bf16.mxu0 0
        %10521 = vmatpush1.bf16.msra.mxu0 0
        %10522 = vmatprep.subr.bf16.mxu0 0
        %10523 = vmatpush1.bf16.msra.mxu0 0
        %10524 = vmatprep.subr.bf16.mxu0 0
        %10525 = vmatpush1.bf16.msra.mxu0 0
        %10526 = vmatprep.subr.bf16.mxu0 0
        %10527 = vmatpush1.bf16.msra.mxu0 0
        %10528 = vmatprep.subr.bf16.mxu0 0
        %10529 = vmatpush1.bf16.msra.mxu0 0
        %10530 = vmatprep.subr.bf16.mxu0 0
        %10531 = vmatpush1.bf16.msra.mxu0 0
        %10532 = vmatprep.subr.bf16.mxu0 0
        %10533 = vmatpush1.bf16.msra.mxu0 0
        %10534 = vmatprep.subr.bf16.mxu0 0
        %10535 = vmatpush1.bf16.msra.mxu0 0
        %10536 = vmatprep.subr.bf16.mxu0 0
        %10537 = vmatpush1.bf16.msra.mxu0 0
        %10538 = vmatprep.mubr.bf16.mxu0 0
        %10539 = vmatmul.mubr.bf16.gmra.mrb[0].mxu0 %v10456
        %v10540 = vpop.f32.mrb[0].mxu0
        %v10541 = vadd.f32 0.0, %v10540
        %v10542 = vpop.f32.mrb[0].mxu0
        %v10543 = vpop.f32.mrb[0].mxu0
        %v10544 = vadd.f32 0.0, %v10543
        %v10545 = vpop.f32.mrb[0].mxu0
        %10546 = vmatprep.mubr.bf16.mxu0 0
        %10547 = vmatmul.mubr.bf16.gmra.mrb[0].mxu0 %v10459
        %v10548 = vpop.f32.mrb[0].mxu0
        %v10549 = vadd.f32 0.0, %v10548
        %v10550 = vpop.f32.mrb[0].mxu0
        %v10551 = vpop.f32.mrb[0].mxu0
        %v10552 = vadd.f32 0.0, %v10551
        %v10553 = vpop.f32.mrb[0].mxu0
        %10554 = vmatprep.mubr.bf16.mxu0 0
        %10555 = vmatmul.mubr.bf16.gmra.mrb[0].mxu0 %v10462
        %v10556 = vpop.f32.mrb[0].mxu0
        %v10557 = vadd.f32 0.0, %v10556
        %v10558 = vpop.f32.mrb[0].mxu0
        %v10559 = vpop.f32.mrb[0].mxu0
        %v10560 = vadd.f32 0.0, %v10559
        %v10561 = vpop.f32.mrb[0].mxu0
        %10562 = vmatprep.mubr.bf16.mxu0 0
        %10563 = vmatmul.mubr.bf16.gmra.mrb[0].mxu0 %v10465
        %v10564 = vpop.f32.mrb[0].mxu0
        %v10565 = vadd.f32 0.0, %v10564
        %v10566 = vpop.f32.mrb[0].mxu0
        %v10567 = vpop.f32.mrb[0].mxu0
        %v10568 = vadd.f32 0.0, %v10567
        %v10569 = vpop.f32.mrb[0].mxu0
        %10570 = vmatprep.mubr.bf16.mxu0 0
        %10571 = vmatmul.mubr.bf16.gmra.mrb[0].mxu0 %v10468
        %v10572 = vpop.f32.mrb[0].mxu0
        %v10573 = vadd.f32 0.0, %v10572
        %v10574 = vpop.f32.mrb[0].mxu0
        %v10575 = vpop.f32.mrb[0].mxu0
        %v10576 = vadd.f32 0.0, %v10575
        %v10577 = vpop.f32.mrb[0].mxu0
        %10578 = vmatprep.mubr.bf16.mxu0 0
        %10579 = vmatmul.mubr.bf16.gmra.mrb[0].mxu0 %v10471
        %v10580 = vpop.f32.mrb[0].mxu0
        %v10581 = vadd.f32 0.0, %v10580
        %v10582 = vpop.f32.mrb[0].mxu0
        %v10583 = vpop.f32.mrb[0].mxu0
        %v10584 = vadd.f32 0.0, %v10583
        %v10585 = vpop.f32.mrb[0].mxu0
        %10586 = vmatprep.mubr.bf16.mxu0 0
        %10587 = vmatmul.mubr.bf16.gmra.mrb[0].mxu0 %v10474
        %v10588 = vpop.f32.mrb[0].mxu0
        %v10589 = vadd.f32 0.0, %v10588
        %v10590 = vpop.f32.mrb[0].mxu0
        %v10591 = vpop.f32.mrb[0].mxu0
        %v10592 = vadd.f32 0.0, %v10591
        %v10593 = vpop.f32.mrb[0].mxu0
        %10594 = vmatprep.mubr.bf16.mxu0 0
        %10595 = vmatmul.mubr.bf16.gmra.mrb[0].mxu0 %v10477
        %v10596 = vpop.f32.mrb[0].mxu0
        %v10597 = vadd.f32 0.0, %v10596
        %v10598 = vpop.f32.mrb[0].mxu0
        %v10599 = vpop.f32.mrb[0].mxu0
        %v10600 = vadd.f32 0.0, %v10599
        %v10601 = vpop.f32.mrb[0].mxu0
        %10602 = vmatprep.mubr.bf16.mxu0 0
        %10603 = vmatmul.mubr.bf16.gmra.mrb[0].mxu0 %v10480
        %v10604 = vpop.f32.mrb[0].mxu0
        %v10605 = vadd.f32 0.0, %v10604
        %v10606 = vpop.f32.mrb[0].mxu0
        %v10607 = vpop.f32.mrb[0].mxu0
        %v10608 = vadd.f32 0.0, %v10607
        %v10609 = vpop.f32.mrb[0].mxu0
        %10610 = vmatprep.mubr.bf16.mxu0 0
        %10611 = vmatmul.mubr.bf16.gmra.mrb[0].mxu0 %v10483
        %v10612 = vpop.f32.mrb[0].mxu0
        %v10613 = vadd.f32 0.0, %v10612
        %v10614 = vpop.f32.mrb[0].mxu0
        %v10615 = vpop.f32.mrb[0].mxu0
        %v10616 = vadd.f32 0.0, %v10615
        %v10617 = vpop.f32.mrb[0].mxu0
        %10618 = vmatprep.mubr.bf16.mxu0 0
        %10619 = vmatmul.mubr.bf16.gmra.mrb[0].mxu0 %v10486
        %v10620 = vpop.f32.mrb[0].mxu0
        %v10621 = vadd.f32 0.0, %v10620
        %v10622 = vpop.f32.mrb[0].mxu0
        %v10623 = vpop.f32.mrb[0].mxu0
        %v10624 = vadd.f32 0.0, %v10623
        %v10625 = vpop.f32.mrb[0].mxu0
        %10626 = vmatprep.mubr.bf16.mxu0 0
        %10627 = vmatmul.mubr.bf16.gmra.mrb[0].mxu0 %v10489
        %v10628 = vpop.f32.mrb[0].mxu0
        %v10629 = vadd.f32 0.0, %v10628
        %v10630 = vpop.f32.mrb[0].mxu0
        %v10631 = vpop.f32.mrb[0].mxu0
        %v10632 = vadd.f32 0.0, %v10631
        %v10633 = vpop.f32.mrb[0].mxu0
        %10634 = vmatprep.mubr.bf16.mxu0 0
        %10635 = vmatmul.mubr.bf16.gmra.mrb[0].mxu0 %v10492
        %v10636 = vpop.f32.mrb[0].mxu0
        %v10637 = vadd.f32 0.0, %v10636
        %v10638 = vpop.f32.mrb[0].mxu0
        %v10639 = vpop.f32.mrb[0].mxu0
        %v10640 = vadd.f32 0.0, %v10639
        %v10641 = vpop.f32.mrb[0].mxu0
        %10642 = vmatprep.mubr.bf16.mxu0 0
        %10643 = vmatmul.mubr.bf16.gmra.mrb[0].mxu0 %v10495
        %v10644 = vpop.f32.mrb[0].mxu0
        %v10645 = vadd.f32 0.0, %v10644
        %v10646 = vpop.f32.mrb[0].mxu0
        %v10647 = vpop.f32.mrb[0].mxu0
        %v10648 = vadd.f32 0.0, %v10647
        %v10649 = vpop.f32.mrb[0].mxu0
        %10650 = vmatprep.mubr.bf16.mxu0 0
        %10651 = vmatmul.mubr.bf16.gmra.mrb[0].mxu0 %v10498
        %v10652 = vpop.f32.mrb[0].mxu0
        %v10653 = vadd.f32 0.0, %v10652
        %v10654 = vpop.f32.mrb[0].mxu0
        %v10655 = vpop.f32.mrb[0].mxu0
        %v10656 = vadd.f32 0.0, %v10655
        %v10657 = vpop.f32.mrb[0].mxu0
        %10658 = vmatprep.mubr.bf16.mxu0 0
        %10659 = vmatmul.mubr.bf16.gmra.mrb[0].mxu0 %v10501
        %v10660 = vpop.f32.mrb[0].mxu0
        %v10661 = vadd.f32 0.0, %v10660
        %v10662 = vpop.f32.mrb[0].mxu0
        %v10663 = vpop.f32.mrb[0].mxu0
        %v10664 = vadd.f32 0.0, %v10663
        %v10665 = vpop.f32.mrb[0].mxu0
        %10666 = vdwg.mxu0
        %v10667 = vadd.f32 %v9982, %v10541
        %v10668 = vadd.f32 %v9983, %v10544
        %v10669 = vadd.f32 %v9984, %v10549
        %v10670 = vadd.f32 %v9985, %v10552
        %v10671 = vadd.f32 %v9986, %v10557
        %v10672 = vadd.f32 %v9987, %v10560
        %v10673 = vadd.f32 %v9988, %v10565
        %v10674 = vadd.f32 %v9989, %v10568
        %v10675 = vadd.f32 %v9990, %v10573
        %v10676 = vadd.f32 %v9991, %v10576
        %v10677 = vadd.f32 %v9992, %v10581
        %v10678 = vadd.f32 %v9993, %v10584
        %v10679 = vadd.f32 %v9994, %v10589
        %v10680 = vadd.f32 %v9995, %v10592
        %v10681 = vadd.f32 %v9996, %v10597
        %v10682 = vadd.f32 %v9997, %v10600
        %v10683 = vadd.f32 %v9998, %v10605
        %v10684 = vadd.f32 %v9999, %v10608
        %v10685 = vadd.f32 %v10000, %v10613
        %v10686 = vadd.f32 %v10001, %v10616
        %v10687 = vadd.f32 %v10002, %v10621
        %v10688 = vadd.f32 %v10003, %v10624
        %v10689 = vadd.f32 %v10004, %v10629
        %v10690 = vadd.f32 %v10005, %v10632
        %v10691 = vadd.f32 %v10006, %v10637
        %v10692 = vadd.f32 %v10007, %v10640
        %v10693 = vadd.f32 %v10008, %v10645
        %v10694 = vadd.f32 %v10009, %v10648
        %v10695 = vadd.f32 %v10010, %v10653
        %v10696 = vadd.f32 %v10011, %v10656
        %v10697 = vadd.f32 %v10012, %v10661
        %v10698 = vadd.f32 %v10013, %v10664
        %v10699 = vld [vmem:[%s9656] sm:$0xe]
        %v10700 = vld [vmem:[%s9656 + $0x14] sm:$0xe]
        %v10701 = vld [vmem:[%s9656 + $0x28] sm:$0xe]
        %v10702 = vld [vmem:[%s9656 + $0x3c] sm:$0xe]
        %v10703 = vld [vmem:[%s9656 + $0x50] sm:$0xe]
        %v10704 = vld [vmem:[%s9656 + $0x64] sm:$0xe]
        %v10705 = vld [vmem:[%s9656 + $0x78] sm:$0xe]
        %v10706 = vld [vmem:[%s9656 + $0x8c] sm:$0xe]
        %v10747 = vrot.slane %v10699, 5
        %v10748 = vrot.slane %v10747, 4
        %v10749 = vrot.slane %v10015, 5
        %v10750 = vsel %vm1756, %v10748, %v10749
        %v10751 = vrot.slane %v10749, 4
        %v10752 = vrot.slane %v10016, 5
        %v10753 = vsel %vm1756, %v10751, %v10752
        %v10754 = vrot.slane %v10752, 4
        %v10755 = vrot.slane %v10017, 5
        %v10756 = vsel %vm1756, %v10754, %v10755
        %v10757 = vrot.slane %v10755, 4
        %v10758 = vrot.slane %v10018, 5
        %v10759 = vsel %vm1756, %v10757, %v10758
        %v10760 = vrot.slane %v10700, 5
        %v10761 = vrot.slane %v10760, 4
        %v10762 = vrot.slane %v10020, 5
        %v10763 = vsel %vm1756, %v10761, %v10762
        %v10764 = vrot.slane %v10762, 4
        %v10765 = vrot.slane %v10021, 5
        %v10766 = vsel %vm1756, %v10764, %v10765
        %v10767 = vrot.slane %v10765, 4
        %v10768 = vrot.slane %v10022, 5
        %v10769 = vsel %vm1756, %v10767, %v10768
        %v10770 = vrot.slane %v10768, 4
        %v10771 = vrot.slane %v10023, 5
        %v10772 = vsel %vm1756, %v10770, %v10771
        %v10773 = vrot.slane %v10701, 5
        %v10774 = vrot.slane %v10773, 4
        %v10775 = vrot.slane %v10025, 5
        %v10776 = vsel %vm1756, %v10774, %v10775
        %v10777 = vrot.slane %v10775, 4
        %v10778 = vrot.slane %v10026, 5
        %v10779 = vsel %vm1756, %v10777, %v10778
        %v10780 = vrot.slane %v10778, 4
        %v10781 = vrot.slane %v10027, 5
        %v10782 = vsel %vm1756, %v10780, %v10781
        %v10783 = vrot.slane %v10781, 4
        %v10784 = vrot.slane %v10028, 5
        %v10785 = vsel %vm1756, %v10783, %v10784
        %v10786 = vrot.slane %v10702, 5
        %v10787 = vrot.slane %v10786, 4
        %v10788 = vrot.slane %v10030, 5
        %v10789 = vsel %vm1756, %v10787, %v10788
        %v10790 = vrot.slane %v10788, 4
        %v10791 = vrot.slane %v10031, 5
        %v10792 = vsel %vm1756, %v10790, %v10791
        %v10793 = vrot.slane %v10791, 4
        %v10794 = vrot.slane %v10032, 5
        %v10795 = vsel %vm1756, %v10793, %v10794
        %v10796 = vrot.slane %v10794, 4
        %v10797 = vrot.slane %v10033, 5
        %v10798 = vsel %vm1756, %v10796, %v10797
        %v10799 = vrot.slane %v10703, 5
        %v10800 = vrot.slane %v10799, 4
        %v10801 = vrot.slane %v10035, 5
        %v10802 = vsel %vm1756, %v10800, %v10801
        %v10803 = vrot.slane %v10801, 4
        %v10804 = vrot.slane %v10036, 5
        %v10805 = vsel %vm1756, %v10803, %v10804
        %v10806 = vrot.slane %v10804, 4
        %v10807 = vrot.slane %v10037, 5
        %v10808 = vsel %vm1756, %v10806, %v10807
        %v10809 = vrot.slane %v10807, 4
        %v10810 = vrot.slane %v10038, 5
        %v10811 = vsel %vm1756, %v10809, %v10810
        %v10812 = vrot.slane %v10704, 5
        %v10813 = vrot.slane %v10812, 4
        %v10814 = vrot.slane %v10040, 5
        %v10815 = vsel %vm1756, %v10813, %v10814
        %v10816 = vrot.slane %v10814, 4
        %v10817 = vrot.slane %v10041, 5
        %v10818 = vsel %vm1756, %v10816, %v10817
        %v10819 = vrot.slane %v10817, 4
        %v10820 = vrot.slane %v10042, 5
        %v10821 = vsel %vm1756, %v10819, %v10820
        %v10822 = vrot.slane %v10820, 4
        %v10823 = vrot.slane %v10043, 5
        %v10824 = vsel %vm1756, %v10822, %v10823
        %v10825 = vrot.slane %v10705, 5
        %v10826 = vrot.slane %v10825, 4
        %v10827 = vrot.slane %v10045, 5
        %v10828 = vsel %vm1756, %v10826, %v10827
        %v10829 = vrot.slane %v10827, 4
        %v10830 = vrot.slane %v10046, 5
        %v10831 = vsel %vm1756, %v10829, %v10830
        %v10832 = vrot.slane %v10830, 4
        %v10833 = vrot.slane %v10047, 5
        %v10834 = vsel %vm1756, %v10832, %v10833
        %v10835 = vrot.slane %v10833, 4
        %v10836 = vrot.slane %v10048, 5
        %v10837 = vsel %vm1756, %v10835, %v10836
        %v10838 = vrot.slane %v10706, 5
        %v10839 = vrot.slane %v10838, 4
        %v10840 = vrot.slane %v10050, 5
        %v10841 = vsel %vm1756, %v10839, %v10840
        %v10842 = vrot.slane %v10840, 4
        %v10843 = vrot.slane %v10051, 5
        %v10844 = vsel %vm1756, %v10842, %v10843
        %v10845 = vrot.slane %v10843, 4
        %v10846 = vrot.slane %v10052, 5
        %v10847 = vsel %vm1756, %v10845, %v10846
        %v10848 = vrot.slane %v10846, 4
        %v10849 = vrot.slane %v10053, 5
        %v10850 = vsel %vm1756, %v10848, %v10849
        %v10851 = vld [vmem:[#allocation14 + $0x20] sm:$0xf]
        %v10852 = vunpack.c.l.b16 %v10750
        %v10853 = vunpack.c.l.b16 %v10753
        %v10854 = vunpack.c.l.b16 %v10756
        %v10855 = vunpack.c.l.b16 %v10759
        %v10856 = vunpack.c.l.b16 %v10763
        %v10857 = vunpack.c.l.b16 %v10766
        %v10858 = vunpack.c.l.b16 %v10769
        %v10859 = vunpack.c.l.b16 %v10772
        %v10860 = vunpack.c.l.b16 %v10776
        %v10861 = vunpack.c.l.b16 %v10779
        %v10862 = vunpack.c.l.b16 %v10782
        %v10863 = vunpack.c.l.b16 %v10785
        %v10864 = vunpack.c.l.b16 %v10789
        %v10865 = vunpack.c.l.b16 %v10792
        %v10866 = vunpack.c.l.b16 %v10795
        %v10867 = vunpack.c.l.b16 %v10798
        %v10868 = vunpack.c.l.b16 %v10802
        %v10869 = vunpack.c.l.b16 %v10805
        %v10870 = vunpack.c.l.b16 %v10808
        %v10871 = vunpack.c.l.b16 %v10811
        %v10872 = vunpack.c.l.b16 %v10815
        %v10873 = vunpack.c.l.b16 %v10818
        %v10874 = vunpack.c.l.b16 %v10821
        %v10875 = vunpack.c.l.b16 %v10824
        %v10876 = vunpack.c.l.b16 %v10828
        %v10877 = vunpack.c.l.b16 %v10831
        %v10878 = vunpack.c.l.b16 %v10834
        %v10879 = vunpack.c.l.b16 %v10837
        %v10880 = vunpack.c.l.b16 %v10841
        %v10881 = vunpack.c.l.b16 %v10844
        %v10882 = vunpack.c.l.b16 %v10847
        %v10883 = vunpack.c.l.b16 %v10850
        %v10884 = vpack.c.b16 %v10853, %v10852
        %v10885 = vpack.c.b16 %v10855, %v10854
        %v10886 = vpack.c.b16 %v10857, %v10856
        %v10887 = vpack.c.b16 %v10859, %v10858
        %v10888 = vpack.c.b16 %v10861, %v10860
        %v10889 = vpack.c.b16 %v10863, %v10862
        %v10890 = vpack.c.b16 %v10865, %v10864
        %v10891 = vpack.c.b16 %v10867, %v10866
        %v10892 = vpack.c.b16 %v10869, %v10868
        %v10893 = vpack.c.b16 %v10871, %v10870
        %v10894 = vpack.c.b16 %v10873, %v10872
        %v10895 = vpack.c.b16 %v10875, %v10874
        %v10896 = vpack.c.b16 %v10877, %v10876
        %v10897 = vpack.c.b16 %v10879, %v10878
        %v10898 = vpack.c.b16 %v10881, %v10880
        %v10899 = vpack.c.b16 %v10883, %v10882
        %v10901 = vsel %vm7241, %v10884, 0
        %v10904 = vsel %vm7241, %v10885, 0
        %v10907 = vsel %vm7241, %v10886, 0
        %v10910 = vsel %vm7241, %v10887, 0
        %v10913 = vsel %vm7241, %v10888, 0
        %v10916 = vsel %vm7241, %v10889, 0
        %v10919 = vsel %vm7241, %v10890, 0
        %v10922 = vsel %vm7241, %v10891, 0
        %v10925 = vsel %vm7241, %v10892, 0
        %v10928 = vsel %vm7241, %v10893, 0
        %v10931 = vsel %vm7241, %v10894, 0
        %v10934 = vsel %vm7241, %v10895, 0
        %v10937 = vsel %vm7241, %v10896, 0
        %v10940 = vsel %vm7241, %v10897, 0
        %v10943 = vsel %vm7241, %v10898, 0
        %v10946 = vsel %vm7241, %v10899, 0
        %v10949 = vsel %vm7290, %v10851, 0
        %10951 = vmatprep.subr.bf16.mxu0 0
        %10952 = vmatpush1.bf16.msra.mxu0 %v10949
        %10953 = vmatprep.subr.bf16.mxu0 0
        %10954 = vmatpush1.bf16.msra.mxu0 0
        %10955 = vmatprep.subr.bf16.mxu0 0
        %10956 = vmatpush1.bf16.msra.mxu0 0
        %10957 = vmatprep.subr.bf16.mxu0 0
        %10958 = vmatpush1.bf16.msra.mxu0 0
        %10959 = vmatprep.subr.bf16.mxu0 0
        %10960 = vmatpush1.bf16.msra.mxu0 0
        %10961 = vmatprep.subr.bf16.mxu0 0
        %10962 = vmatpush1.bf16.msra.mxu0 0
        %10963 = vmatprep.subr.bf16.mxu0 0
        %10964 = vmatpush1.bf16.msra.mxu0 0
        %10965 = vmatprep.subr.bf16.mxu0 0
        %10966 = vmatpush1.bf16.msra.mxu0 0
        %10967 = vmatprep.subr.bf16.mxu0 0
        %10968 = vmatpush1.bf16.msra.mxu0 0
        %10969 = vmatprep.subr.bf16.mxu0 0
        %10970 = vmatpush1.bf16.msra.mxu0 0
        %10971 = vmatprep.subr.bf16.mxu0 0
        %10972 = vmatpush1.bf16.msra.mxu0 0
        %10973 = vmatprep.subr.bf16.mxu0 0
        %10974 = vmatpush1.bf16.msra.mxu0 0
        %10975 = vmatprep.subr.bf16.mxu0 0
        %10976 = vmatpush1.bf16.msra.mxu0 0
        %10977 = vmatprep.subr.bf16.mxu0 0
        %10978 = vmatpush1.bf16.msra.mxu0 0
        %10979 = vmatprep.subr.bf16.mxu0 0
        %10980 = vmatpush1.bf16.msra.mxu0 0
        %10981 = vmatprep.subr.bf16.mxu0 0
        %10982 = vmatpush1.bf16.msra.mxu0 0
        %10983 = vmatprep.mubr.bf16.mxu0 0
        %10984 = vmatmul.mubr.bf16.gmra.mrb[0].mxu0 %v10901
        %v10985 = vpop.f32.mrb[0].mxu0
        %v10986 = vadd.f32 0.0, %v10985
        %v10987 = vpop.f32.mrb[0].mxu0
        %v10988 = vpop.f32.mrb[0].mxu0
        %v10989 = vadd.f32 0.0, %v10988
        %v10990 = vpop.f32.mrb[0].mxu0
        %10991 = vmatprep.mubr.bf16.mxu0 0
        %10992 = vmatmul.mubr.bf16.gmra.mrb[0].mxu0 %v10904
        %v10993 = vpop.f32.mrb[0].mxu0
        %v10994 = vadd.f32 0.0, %v10993
        %v10995 = vpop.f32.mrb[0].mxu0
        %v10996 = vpop.f32.mrb[0].mxu0
        %v10997 = vadd.f32 0.0, %v10996
        %v10998 = vpop.f32.mrb[0].mxu0
        %10999 = vmatprep.mubr.bf16.mxu0 0
        %11000 = vmatmul.mubr.bf16.gmra.mrb[0].mxu0 %v10907
        %v11001 = vpop.f32.mrb[0].mxu0
        %v11002 = vadd.f32 0.0, %v11001
        %v11003 = vpop.f32.mrb[0].mxu0
        %v11004 = vpop.f32.mrb[0].mxu0
        %v11005 = vadd.f32 0.0, %v11004
        %v11006 = vpop.f32.mrb[0].mxu0
        %11007 = vmatprep.mubr.bf16.mxu0 0
        %11008 = vmatmul.mubr.bf16.gmra.mrb[0].mxu0 %v10910
        %v11009 = vpop.f32.mrb[0].mxu0
        %v11010 = vadd.f32 0.0, %v11009
        %v11011 = vpop.f32.mrb[0].mxu0
        %v11012 = vpop.f32.mrb[0].mxu0
        %v11013 = vadd.f32 0.0, %v11012
        %v11014 = vpop.f32.mrb[0].mxu0
        %11015 = vmatprep.mubr.bf16.mxu0 0
        %11016 = vmatmul.mubr.bf16.gmra.mrb[0].mxu0 %v10913
        %v11017 = vpop.f32.mrb[0].mxu0
        %v11018 = vadd.f32 0.0, %v11017
        %v11019 = vpop.f32.mrb[0].mxu0
        %v11020 = vpop.f32.mrb[0].mxu0
        %v11021 = vadd.f32 0.0, %v11020
        %v11022 = vpop.f32.mrb[0].mxu0
        %11023 = vmatprep.mubr.bf16.mxu0 0
        %11024 = vmatmul.mubr.bf16.gmra.mrb[0].mxu0 %v10916
        %v11025 = vpop.f32.mrb[0].mxu0
        %v11026 = vadd.f32 0.0, %v11025
        %v11027 = vpop.f32.mrb[0].mxu0
        %v11028 = vpop.f32.mrb[0].mxu0
        %v11029 = vadd.f32 0.0, %v11028
        %v11030 = vpop.f32.mrb[0].mxu0
        %11031 = vmatprep.mubr.bf16.mxu0 0
        %11032 = vmatmul.mubr.bf16.gmra.mrb[0].mxu0 %v10919
        %v11033 = vpop.f32.mrb[0].mxu0
        %v11034 = vadd.f32 0.0, %v11033
        %v11035 = vpop.f32.mrb[0].mxu0
        %v11036 = vpop.f32.mrb[0].mxu0
        %v11037 = vadd.f32 0.0, %v11036
        %v11038 = vpop.f32.mrb[0].mxu0
        %11039 = vmatprep.mubr.bf16.mxu0 0
        %11040 = vmatmul.mubr.bf16.gmra.mrb[0].mxu0 %v10922
        %v11041 = vpop.f32.mrb[0].mxu0
        %v11042 = vadd.f32 0.0, %v11041
        %v11043 = vpop.f32.mrb[0].mxu0
        %v11044 = vpop.f32.mrb[0].mxu0
        %v11045 = vadd.f32 0.0, %v11044
        %v11046 = vpop.f32.mrb[0].mxu0
        %11047 = vmatprep.mubr.bf16.mxu0 0
        %11048 = vmatmul.mubr.bf16.gmra.mrb[0].mxu0 %v10925
        %v11049 = vpop.f32.mrb[0].mxu0
        %v11050 = vadd.f32 0.0, %v11049
        %v11051 = vpop.f32.mrb[0].mxu0
        %v11052 = vpop.f32.mrb[0].mxu0
        %v11053 = vadd.f32 0.0, %v11052
        %v11054 = vpop.f32.mrb[0].mxu0
        %11055 = vmatprep.mubr.bf16.mxu0 0
        %11056 = vmatmul.mubr.bf16.gmra.mrb[0].mxu0 %v10928
        %v11057 = vpop.f32.mrb[0].mxu0
        %v11058 = vadd.f32 0.0, %v11057
        %v11059 = vpop.f32.mrb[0].mxu0
        %v11060 = vpop.f32.mrb[0].mxu0
        %v11061 = vadd.f32 0.0, %v11060
        %v11062 = vpop.f32.mrb[0].mxu0
        %11063 = vmatprep.mubr.bf16.mxu0 0
        %11064 = vmatmul.mubr.bf16.gmra.mrb[0].mxu0 %v10931
        %v11065 = vpop.f32.mrb[0].mxu0
        %v11066 = vadd.f32 0.0, %v11065
        %v11067 = vpop.f32.mrb[0].mxu0
        %v11068 = vpop.f32.mrb[0].mxu0
        %v11069 = vadd.f32 0.0, %v11068
        %v11070 = vpop.f32.mrb[0].mxu0
        %11071 = vmatprep.mubr.bf16.mxu0 0
        %11072 = vmatmul.mubr.bf16.gmra.mrb[0].mxu0 %v10934
        %v11073 = vpop.f32.mrb[0].mxu0
        %v11074 = vadd.f32 0.0, %v11073
        %v11075 = vpop.f32.mrb[0].mxu0
        %v11076 = vpop.f32.mrb[0].mxu0
        %v11077 = vadd.f32 0.0, %v11076
        %v11078 = vpop.f32.mrb[0].mxu0
        %11079 = vmatprep.mubr.bf16.mxu0 0
        %11080 = vmatmul.mubr.bf16.gmra.mrb[0].mxu0 %v10937
        %v11081 = vpop.f32.mrb[0].mxu0
        %v11082 = vadd.f32 0.0, %v11081
        %v11083 = vpop.f32.mrb[0].mxu0
        %v11084 = vpop.f32.mrb[0].mxu0
        %v11085 = vadd.f32 0.0, %v11084
        %v11086 = vpop.f32.mrb[0].mxu0
        %11087 = vmatprep.mubr.bf16.mxu0 0
        %11088 = vmatmul.mubr.bf16.gmra.mrb[0].mxu0 %v10940
        %v11089 = vpop.f32.mrb[0].mxu0
        %v11090 = vadd.f32 0.0, %v11089
        %v11091 = vpop.f32.mrb[0].mxu0
        %v11092 = vpop.f32.mrb[0].mxu0
        %v11093 = vadd.f32 0.0, %v11092
        %v11094 = vpop.f32.mrb[0].mxu0
        %11095 = vmatprep.mubr.bf16.mxu0 0
        %11096 = vmatmul.mubr.bf16.gmra.mrb[0].mxu0 %v10943
        %v11097 = vpop.f32.mrb[0].mxu0
        %v11098 = vadd.f32 0.0, %v11097
        %v11099 = vpop.f32.mrb[0].mxu0
        %v11100 = vpop.f32.mrb[0].mxu0
        %v11101 = vadd.f32 0.0, %v11100
        %v11102 = vpop.f32.mrb[0].mxu0
        %11103 = vmatprep.mubr.bf16.mxu0 0
        %11104 = vmatmul.mubr.bf16.gmra.mrb[0].mxu0 %v10946
        %v11105 = vpop.f32.mrb[0].mxu0
        %v11106 = vadd.f32 0.0, %v11105
        %v11107 = vpop.f32.mrb[0].mxu0
        %v11108 = vpop.f32.mrb[0].mxu0
        %v11109 = vadd.f32 0.0, %v11108
        %v11110 = vpop.f32.mrb[0].mxu0
        %11111 = vdwg.mxu0
        %v11112 = vadd.f32 %v10667, %v10986
        %v11113 = vadd.f32 %v10668, %v10989
        %v11114 = vadd.f32 %v10669, %v10994
        %v11115 = vadd.f32 %v10670, %v10997
        %v11116 = vadd.f32 %v10671, %v11002
        %v11117 = vadd.f32 %v10672, %v11005
        %v11118 = vadd.f32 %v10673, %v11010
        %v11119 = vadd.f32 %v10674, %v11013
        %v11120 = vadd.f32 %v10675, %v11018
        %v11121 = vadd.f32 %v10676, %v11021
        %v11122 = vadd.f32 %v10677, %v11026
        %v11123 = vadd.f32 %v10678, %v11029
        %v11124 = vadd.f32 %v10679, %v11034
        %v11125 = vadd.f32 %v10680, %v11037
        %v11126 = vadd.f32 %v10681, %v11042
        %v11127 = vadd.f32 %v10682, %v11045
        %v11128 = vadd.f32 %v10683, %v11050
        %v11129 = vadd.f32 %v10684, %v11053
        %v11130 = vadd.f32 %v10685, %v11058
        %v11131 = vadd.f32 %v10686, %v11061
        %v11132 = vadd.f32 %v10687, %v11066
        %v11133 = vadd.f32 %v10688, %v11069
        %v11134 = vadd.f32 %v10689, %v11074
        %v11135 = vadd.f32 %v10690, %v11077
        %v11136 = vadd.f32 %v10691, %v11082
        %v11137 = vadd.f32 %v10692, %v11085
        %v11138 = vadd.f32 %v10693, %v11090
        %v11139 = vadd.f32 %v10694, %v11093
        %v11140 = vadd.f32 %v10695, %v11098
        %v11141 = vadd.f32 %v10696, %v11101
        %v11142 = vadd.f32 %v10697, %v11106
        %v11143 = vadd.f32 %v10698, %v11109
        %v11145 = vlaneseq
        %v11146 = vshrl.u32 %v11145, 7
        %v11147 = vsub.s32 0, %v11146
        %v11148 = vrot.slane %v550, %v11147
        %v11150 = vadd.f32 %v11112, %v11148
        %v11151 = vadd.f32 %v11113, %v11148
        %v11152 = vadd.f32 %v11114, %v11148
        %v11153 = vadd.f32 %v11115, %v11148
        %v11154 = vadd.f32 %v11116, %v11148
        %v11155 = vadd.f32 %v11117, %v11148
        %v11156 = vadd.f32 %v11118, %v11148
        %v11157 = vadd.f32 %v11119, %v11148
        %v11158 = vadd.f32 %v11120, %v11148
        %v11159 = vadd.f32 %v11121, %v11148
        %v11160 = vadd.f32 %v11122, %v11148
        %v11161 = vadd.f32 %v11123, %v11148
        %v11162 = vadd.f32 %v11124, %v11148
        %v11163 = vadd.f32 %v11125, %v11148
        %v11164 = vadd.f32 %v11126, %v11148
        %v11165 = vadd.f32 %v11127, %v11148
        %v11166 = vadd.f32 %v11128, %v11148
        %v11167 = vadd.f32 %v11129, %v11148
        %v11168 = vadd.f32 %v11130, %v11148
        %v11169 = vadd.f32 %v11131, %v11148
        %v11170 = vadd.f32 %v11132, %v11148
        %v11171 = vadd.f32 %v11133, %v11148
        %v11172 = vadd.f32 %v11134, %v11148
        %v11173 = vadd.f32 %v11135, %v11148
        %v11174 = vadd.f32 %v11136, %v11148
        %v11175 = vadd.f32 %v11137, %v11148
        %v11176 = vadd.f32 %v11138, %v11148
        %v11177 = vadd.f32 %v11139, %v11148
        %v11178 = vadd.f32 %v11140, %v11148
        %v11179 = vadd.f32 %v11141, %v11148
        %v11180 = vadd.f32 %v11142, %v11148
        %v11181 = vadd.f32 %v11143, %v11148
        %v11182 = vld [vmem:[%s470] sm:$0xf]
        %v11183 = vld [vmem:[%s470 + $0x4] sm:$0xf]
        %v11184 = vld [vmem:[%s470 + $0x8] sm:$0xf]
        %v11185 = vld [vmem:[%s470 + $0xc] sm:$0xf]
        %v11186 = vld [vmem:[%s470 + $0x10] sm:$0xf]
        %v11187 = vld [vmem:[%s470 + $0x14] sm:$0xf]
        %v11188 = vld [vmem:[%s470 + $0x18] sm:$0xf]
        %v11189 = vld [vmem:[%s470 + $0x1c] sm:$0xf]
        %v11190 = vld [vmem:[%s470 + $0x20] sm:$0xf]
        %v11191 = vld [vmem:[%s470 + $0x24] sm:$0xf]
        %v11192 = vld [vmem:[%s470 + $0x28] sm:$0xf]
        %v11193 = vld [vmem:[%s470 + $0x2c] sm:$0xf]
        %v11194 = vld [vmem:[%s470 + $0x30] sm:$0xf]
        %v11195 = vld [vmem:[%s470 + $0x34] sm:$0xf]
        %v11196 = vld [vmem:[%s470 + $0x38] sm:$0xf]
        %v11197 = vld [vmem:[%s470 + $0x3c] sm:$0xf]
        %v11198 = vld [vmem:[%s470 + $0x40] sm:$0xf]
        %v11199 = vld [vmem:[%s470 + $0x44] sm:$0xf]
        %v11200 = vld [vmem:[%s470 + $0x48] sm:$0xf]
        %v11201 = vld [vmem:[%s470 + $0x4c] sm:$0xf]
        %v11202 = vld [vmem:[%s470 + $0x50] sm:$0xf]
        %v11203 = vld [vmem:[%s470 + $0x54] sm:$0xf]
        %v11204 = vld [vmem:[%s470 + $0x58] sm:$0xf]
        %v11205 = vld [vmem:[%s470 + $0x5c] sm:$0xf]
        %v11206 = vld [vmem:[%s470 + $0x60] sm:$0xf]
        %v11207 = vld [vmem:[%s470 + $0x64] sm:$0xf]
        %v11208 = vld [vmem:[%s470 + $0x68] sm:$0xf]
        %v11209 = vld [vmem:[%s470 + $0x6c] sm:$0xf]
        %v11210 = vld [vmem:[%s470 + $0x70] sm:$0xf]
        %v11211 = vld [vmem:[%s470 + $0x74] sm:$0xf]
        %v11212 = vld [vmem:[%s470 + $0x78] sm:$0xf]
        %v11213 = vld [vmem:[%s470 + $0x7c] sm:$0xf]
        %v11214 = vld [vmem:[#allocation17] sm:$0x3]
        %v11215 = vld [vmem:[#allocation18] sm:$0x1]
        %v11217 = vlaneseq
        %v11218 = vshrl.u32 %v11217, 7
        %v11219 = vsub.s32 0, %v11218
        %v11220 = vrot.slane %v11215, %v11219
        %v11254 = vunpack.c.l.b16 %v11182
        %v11255 = vunpack.c.l.b16 %v11183
        %v11256 = vunpack.c.l.b16 %v11184
        %v11257 = vunpack.c.l.b16 %v11185
        %v11258 = vunpack.c.l.b16 %v11186
        %v11259 = vunpack.c.l.b16 %v11187
        %v11260 = vunpack.c.l.b16 %v11188
        %v11261 = vunpack.c.l.b16 %v11189
        %v11262 = vunpack.c.l.b16 %v11190
        %v11263 = vunpack.c.l.b16 %v11191
        %v11264 = vunpack.c.l.b16 %v11192
        %v11265 = vunpack.c.l.b16 %v11193
        %v11266 = vunpack.c.l.b16 %v11194
        %v11267 = vunpack.c.l.b16 %v11195
        %v11268 = vunpack.c.l.b16 %v11196
        %v11269 = vunpack.c.l.b16 %v11197
        %v11270 = vunpack.c.l.b16 %v11198
        %v11271 = vunpack.c.l.b16 %v11199
        %v11272 = vunpack.c.l.b16 %v11200
        %v11273 = vunpack.c.l.b16 %v11201
        %v11274 = vunpack.c.l.b16 %v11202
        %v11275 = vunpack.c.l.b16 %v11203
        %v11276 = vunpack.c.l.b16 %v11204
        %v11277 = vunpack.c.l.b16 %v11205
        %v11278 = vunpack.c.l.b16 %v11206
        %v11279 = vunpack.c.l.b16 %v11207
        %v11280 = vunpack.c.l.b16 %v11208
        %v11281 = vunpack.c.l.b16 %v11209
        %v11282 = vunpack.c.l.b16 %v11210
        %v11283 = vunpack.c.l.b16 %v11211
        %v11284 = vunpack.c.l.b16 %v11212
        %v11285 = vunpack.c.l.b16 %v11213
        %v11286 = vpack.c.b16 %v11255, %v11254
        %v11287 = vpack.c.b16 %v11257, %v11256
        %v11288 = vpack.c.b16 %v11259, %v11258
        %v11289 = vpack.c.b16 %v11261, %v11260
        %v11290 = vpack.c.b16 %v11263, %v11262
        %v11291 = vpack.c.b16 %v11265, %v11264
        %v11292 = vpack.c.b16 %v11267, %v11266
        %v11293 = vpack.c.b16 %v11269, %v11268
        %v11294 = vpack.c.b16 %v11271, %v11270
        %v11295 = vpack.c.b16 %v11273, %v11272
        %v11296 = vpack.c.b16 %v11275, %v11274
        %v11297 = vpack.c.b16 %v11277, %v11276
        %v11298 = vpack.c.b16 %v11279, %v11278
        %v11299 = vpack.c.b16 %v11281, %v11280
        %v11300 = vpack.c.b16 %v11283, %v11282
        %v11301 = vpack.c.b16 %v11285, %v11284
        %v11303 = vsel %vm1110, %v11286, 0
        %v11306 = vsel %vm1110, %v11287, 0
        %v11309 = vsel %vm1110, %v11288, 0
        %v11312 = vsel %vm1110, %v11289, 0
        %v11315 = vsel %vm1110, %v11290, 0
        %v11318 = vsel %vm1110, %v11291, 0
        %v11321 = vsel %vm1110, %v11292, 0
        %v11324 = vsel %vm1110, %v11293, 0
        %v11327 = vsel %vm1110, %v11294, 0
        %v11330 = vsel %vm1110, %v11295, 0
        %v11333 = vsel %vm1110, %v11296, 0
        %v11336 = vsel %vm1110, %v11297, 0
        %v11339 = vsel %vm1110, %v11298, 0
        %v11342 = vsel %vm1110, %v11299, 0
        %v11345 = vsel %vm1110, %v11300, 0
        %v11348 = vsel %vm1110, %v11301, 0
        %v11351 = vsel %vm1171, %v11214, 0
        %11353 = vmatprep.subr.bf16.mxu0 0
        %11354 = vmatpush1.bf16.msra.mxu0 %v11351
        %11355 = vmatprep.subr.bf16.mxu0 0
        %11356 = vmatpush1.bf16.msra.mxu0 0
        %11357 = vmatprep.subr.bf16.mxu0 0
        %11358 = vmatpush1.bf16.msra.mxu0 0
        %11359 = vmatprep.subr.bf16.mxu0 0
        %11360 = vmatpush1.bf16.msra.mxu0 0
        %11361 = vmatprep.subr.bf16.mxu0 0
        %11362 = vmatpush1.bf16.msra.mxu0 0
        %11363 = vmatprep.subr.bf16.mxu0 0
        %11364 = vmatpush1.bf16.msra.mxu0 0
        %11365 = vmatprep.subr.bf16.mxu0 0
        %11366 = vmatpush1.bf16.msra.mxu0 0
        %11367 = vmatprep.subr.bf16.mxu0 0
        %11368 = vmatpush1.bf16.msra.mxu0 0
        %11369 = vmatprep.subr.bf16.mxu0 0
        %11370 = vmatpush1.bf16.msra.mxu0 0
        %11371 = vmatprep.subr.bf16.mxu0 0
        %11372 = vmatpush1.bf16.msra.mxu0 0
        %11373 = vmatprep.subr.bf16.mxu0 0
        %11374 = vmatpush1.bf16.msra.mxu0 0
        %11375 = vmatprep.subr.bf16.mxu0 0
        %11376 = vmatpush1.bf16.msra.mxu0 0
        %11377 = vmatprep.subr.bf16.mxu0 0
        %11378 = vmatpush1.bf16.msra.mxu0 0
        %11379 = vmatprep.subr.bf16.mxu0 0
        %11380 = vmatpush1.bf16.msra.mxu0 0
        %11381 = vmatprep.subr.bf16.mxu0 0
        %11382 = vmatpush1.bf16.msra.mxu0 0
        %11383 = vmatprep.subr.bf16.mxu0 0
        %11384 = vmatpush1.bf16.msra.mxu0 0
        %11385 = vmatprep.mubr.bf16.mxu0 0
        %11386 = vmatmul.mubr.bf16.gmra.mrb[0].mxu0 %v11303
        %v11387 = vpop.f32.mrb[0].mxu0
        %v11388 = vadd.f32 %v11220, %v11387
        %v11389 = vpop.f32.mrb[0].mxu0
        %v11390 = vpop.f32.mrb[0].mxu0
        %v11391 = vadd.f32 %v11220, %v11390
        %v11392 = vpop.f32.mrb[0].mxu0
        %11393 = vmatprep.mubr.bf16.mxu0 0
        %11394 = vmatmul.mubr.bf16.gmra.mrb[0].mxu0 %v11306
        %v11395 = vpop.f32.mrb[0].mxu0
        %v11396 = vadd.f32 %v11220, %v11395
        %v11397 = vpop.f32.mrb[0].mxu0
        %v11398 = vpop.f32.mrb[0].mxu0
        %v11399 = vadd.f32 %v11220, %v11398
        %v11400 = vpop.f32.mrb[0].mxu0
        %11401 = vmatprep.mubr.bf16.mxu0 0
        %11402 = vmatmul.mubr.bf16.gmra.mrb[0].mxu0 %v11309
        %v11403 = vpop.f32.mrb[0].mxu0
        %v11404 = vadd.f32 %v11220, %v11403
        %v11405 = vpop.f32.mrb[0].mxu0
        %v11406 = vpop.f32.mrb[0].mxu0
        %v11407 = vadd.f32 %v11220, %v11406
        %v11408 = vpop.f32.mrb[0].mxu0
        %11409 = vmatprep.mubr.bf16.mxu0 0
        %11410 = vmatmul.mubr.bf16.gmra.mrb[0].mxu0 %v11312
        %v11411 = vpop.f32.mrb[0].mxu0
        %v11412 = vadd.f32 %v11220, %v11411
        %v11413 = vpop.f32.mrb[0].mxu0
        %v11414 = vpop.f32.mrb[0].mxu0
        %v11415 = vadd.f32 %v11220, %v11414
        %v11416 = vpop.f32.mrb[0].mxu0
        %11417 = vmatprep.mubr.bf16.mxu0 0
        %11418 = vmatmul.mubr.bf16.gmra.mrb[0].mxu0 %v11315
        %v11419 = vpop.f32.mrb[0].mxu0
        %v11420 = vadd.f32 %v11220, %v11419
        %v11421 = vpop.f32.mrb[0].mxu0
        %v11422 = vpop.f32.mrb[0].mxu0
        %v11423 = vadd.f32 %v11220, %v11422
        %v11424 = vpop.f32.mrb[0].mxu0
        %11425 = vmatprep.mubr.bf16.mxu0 0
        %11426 = vmatmul.mubr.bf16.gmra.mrb[0].mxu0 %v11318
        %v11427 = vpop.f32.mrb[0].mxu0
        %v11428 = vadd.f32 %v11220, %v11427
        %v11429 = vpop.f32.mrb[0].mxu0
        %v11430 = vpop.f32.mrb[0].mxu0
        %v11431 = vadd.f32 %v11220, %v11430
        %v11432 = vpop.f32.mrb[0].mxu0
        %11433 = vmatprep.mubr.bf16.mxu0 0
        %11434 = vmatmul.mubr.bf16.gmra.mrb[0].mxu0 %v11321
        %v11435 = vpop.f32.mrb[0].mxu0
        %v11436 = vadd.f32 %v11220, %v11435
        %v11437 = vpop.f32.mrb[0].mxu0
        %v11438 = vpop.f32.mrb[0].mxu0
        %v11439 = vadd.f32 %v11220, %v11438
        %v11440 = vpop.f32.mrb[0].mxu0
        %11441 = vmatprep.mubr.bf16.mxu0 0
        %11442 = vmatmul.mubr.bf16.gmra.mrb[0].mxu0 %v11324
        %v11443 = vpop.f32.mrb[0].mxu0
        %v11444 = vadd.f32 %v11220, %v11443
        %v11445 = vpop.f32.mrb[0].mxu0
        %v11446 = vpop.f32.mrb[0].mxu0
        %v11447 = vadd.f32 %v11220, %v11446
        %v11448 = vpop.f32.mrb[0].mxu0
        %11449 = vmatprep.mubr.bf16.mxu0 0
        %11450 = vmatmul.mubr.bf16.gmra.mrb[0].mxu0 %v11327
        %v11451 = vpop.f32.mrb[0].mxu0
        %v11452 = vadd.f32 %v11220, %v11451
        %v11453 = vpop.f32.mrb[0].mxu0
        %v11454 = vpop.f32.mrb[0].mxu0
        %v11455 = vadd.f32 %v11220, %v11454
        %v11456 = vpop.f32.mrb[0].mxu0
        %11457 = vmatprep.mubr.bf16.mxu0 0
        %11458 = vmatmul.mubr.bf16.gmra.mrb[0].mxu0 %v11330
        %v11459 = vpop.f32.mrb[0].mxu0
        %v11460 = vadd.f32 %v11220, %v11459
        %v11461 = vpop.f32.mrb[0].mxu0
        %v11462 = vpop.f32.mrb[0].mxu0
        %v11463 = vadd.f32 %v11220, %v11462
        %v11464 = vpop.f32.mrb[0].mxu0
        %11465 = vmatprep.mubr.bf16.mxu0 0
        %11466 = vmatmul.mubr.bf16.gmra.mrb[0].mxu0 %v11333
        %v11467 = vpop.f32.mrb[0].mxu0
        %v11468 = vadd.f32 %v11220, %v11467
        %v11469 = vpop.f32.mrb[0].mxu0
        %v11470 = vpop.f32.mrb[0].mxu0
        %v11471 = vadd.f32 %v11220, %v11470
        %v11472 = vpop.f32.mrb[0].mxu0
        %11473 = vmatprep.mubr.bf16.mxu0 0
        %11474 = vmatmul.mubr.bf16.gmra.mrb[0].mxu0 %v11336
        %v11475 = vpop.f32.mrb[0].mxu0
        %v11476 = vadd.f32 %v11220, %v11475
        %v11477 = vpop.f32.mrb[0].mxu0
        %v11478 = vpop.f32.mrb[0].mxu0
        %v11479 = vadd.f32 %v11220, %v11478
        %v11480 = vpop.f32.mrb[0].mxu0
        %11481 = vmatprep.mubr.bf16.mxu0 0
        %11482 = vmatmul.mubr.bf16.gmra.mrb[0].mxu0 %v11339
        %v11483 = vpop.f32.mrb[0].mxu0
        %v11484 = vadd.f32 %v11220, %v11483
        %v11485 = vpop.f32.mrb[0].mxu0
        %v11486 = vpop.f32.mrb[0].mxu0
        %v11487 = vadd.f32 %v11220, %v11486
        %v11488 = vpop.f32.mrb[0].mxu0
        %11489 = vmatprep.mubr.bf16.mxu0 0
        %11490 = vmatmul.mubr.bf16.gmra.mrb[0].mxu0 %v11342
        %v11491 = vpop.f32.mrb[0].mxu0
        %v11492 = vadd.f32 %v11220, %v11491
        %v11493 = vpop.f32.mrb[0].mxu0
        %v11494 = vpop.f32.mrb[0].mxu0
        %v11495 = vadd.f32 %v11220, %v11494
        %v11496 = vpop.f32.mrb[0].mxu0
        %11497 = vmatprep.mubr.bf16.mxu0 0
        %11498 = vmatmul.mubr.bf16.gmra.mrb[0].mxu0 %v11345
        %v11499 = vpop.f32.mrb[0].mxu0
        %v11500 = vadd.f32 %v11220, %v11499
        %v11501 = vpop.f32.mrb[0].mxu0
        %v11502 = vpop.f32.mrb[0].mxu0
        %v11503 = vadd.f32 %v11220, %v11502
        %v11504 = vpop.f32.mrb[0].mxu0
        %11505 = vmatprep.mubr.bf16.mxu0 0
        %11506 = vmatmul.mubr.bf16.gmra.mrb[0].mxu0 %v11348
        %v11507 = vpop.f32.mrb[0].mxu0
        %v11508 = vadd.f32 %v11220, %v11507
        %v11509 = vpop.f32.mrb[0].mxu0
        %v11510 = vpop.f32.mrb[0].mxu0
        %v11511 = vadd.f32 %v11220, %v11510
        %v11512 = vpop.f32.mrb[0].mxu0
        %11513 = vdwg.mxu0
        %v11514 = vadd.f32 %v11150, %v11388
        %v11515 = vadd.f32 %v11151, %v11391
        %v11516 = vadd.f32 %v11152, %v11396
        %v11517 = vadd.f32 %v11153, %v11399
        %v11518 = vadd.f32 %v11154, %v11404
        %v11519 = vadd.f32 %v11155, %v11407
        %v11520 = vadd.f32 %v11156, %v11412
        %v11521 = vadd.f32 %v11157, %v11415
        %v11522 = vadd.f32 %v11158, %v11420
        %v11523 = vadd.f32 %v11159, %v11423
        %v11524 = vadd.f32 %v11160, %v11428
        %v11525 = vadd.f32 %v11161, %v11431
        %v11526 = vadd.f32 %v11162, %v11436
        %v11527 = vadd.f32 %v11163, %v11439
        %v11528 = vadd.f32 %v11164, %v11444
        %v11529 = vadd.f32 %v11165, %v11447
        %v11530 = vadd.f32 %v11166, %v11452
        %v11531 = vadd.f32 %v11167, %v11455
        %v11532 = vadd.f32 %v11168, %v11460
        %v11533 = vadd.f32 %v11169, %v11463
        %v11534 = vadd.f32 %v11170, %v11468
        %v11535 = vadd.f32 %v11171, %v11471
        %v11536 = vadd.f32 %v11172, %v11476
        %v11537 = vadd.f32 %v11173, %v11479
        %v11538 = vadd.f32 %v11174, %v11484
        %v11539 = vadd.f32 %v11175, %v11487
        %v11540 = vadd.f32 %v11176, %v11492
        %v11541 = vadd.f32 %v11177, %v11495
        %v11542 = vadd.f32 %v11178, %v11500
        %v11543 = vadd.f32 %v11179, %v11503
        %v11544 = vadd.f32 %v11180, %v11508
        %v11545 = vadd.f32 %v11181, %v11511
        %11546 = vst.msk [vmem:[%s543] sm:$0xff] %vm7241, %v11514
        %11547 = vst.msk [vmem:[%s543 + $0x8] sm:$0xff] %vm7241, %v11515
        %11548 = vst.msk [vmem:[%s543 + $0x10] sm:$0xff] %vm7241, %v11516
        %11549 = vst.msk [vmem:[%s543 + $0x18] sm:$0xff] %vm7241, %v11517
        %11550 = vst.msk [vmem:[%s543 + $0x20] sm:$0xff] %vm7241, %v11518
        %11551 = vst.msk [vmem:[%s543 + $0x28] sm:$0xff] %vm7241, %v11519
        %11552 = vst.msk [vmem:[%s543 + $0x30] sm:$0xff] %vm7241, %v11520
        %11553 = vst.msk [vmem:[%s543 + $0x38] sm:$0xff] %vm7241, %v11521
        %11554 = vst.msk [vmem:[%s543 + $0x40] sm:$0xff] %vm7241, %v11522
        %11555 = vst.msk [vmem:[%s543 + $0x48] sm:$0xff] %vm7241, %v11523
        %11556 = vst.msk [vmem:[%s543 + $0x50] sm:$0xff] %vm7241, %v11524
        %11557 = vst.msk [vmem:[%s543 + $0x58] sm:$0xff] %vm7241, %v11525
        %11558 = vst.msk [vmem:[%s543 + $0x60] sm:$0xff] %vm7241, %v11526
        %11559 = vst.msk [vmem:[%s543 + $0x68] sm:$0xff] %vm7241, %v11527
        %11560 = vst.msk [vmem:[%s543 + $0x70] sm:$0xff] %vm7241, %v11528
        %11561 = vst.msk [vmem:[%s543 + $0x78] sm:$0xff] %vm7241, %v11529
        %11562 = vst.msk [vmem:[%s543 + $0x80] sm:$0xff] %vm7241, %v11530
        %11563 = vst.msk [vmem:[%s543 + $0x88] sm:$0xff] %vm7241, %v11531
        %11564 = vst.msk [vmem:[%s543 + $0x90] sm:$0xff] %vm7241, %v11532
        %11565 = vst.msk [vmem:[%s543 + $0x98] sm:$0xff] %vm7241, %v11533
        %11566 = vst.msk [vmem:[%s543 + $0xa0] sm:$0xff] %vm7241, %v11534
        %11567 = vst.msk [vmem:[%s543 + $0xa8] sm:$0xff] %vm7241, %v11535
        %11568 = vst.msk [vmem:[%s543 + $0xb0] sm:$0xff] %vm7241, %v11536
        %11569 = vst.msk [vmem:[%s543 + $0xb8] sm:$0xff] %vm7241, %v11537
        %11570 = vst.msk [vmem:[%s543 + $0xc0] sm:$0xff] %vm7241, %v11538
        %11571 = vst.msk [vmem:[%s543 + $0xc8] sm:$0xff] %vm7241, %v11539
        %11572 = vst.msk [vmem:[%s543 + $0xd0] sm:$0xff] %vm7241, %v11540
        %11573 = vst.msk [vmem:[%s543 + $0xd8] sm:$0xff] %vm7241, %v11541
        %11574 = vst.msk [vmem:[%s543 + $0xe0] sm:$0xff] %vm7241, %v11542
        %11575 = vst.msk [vmem:[%s543 + $0xe8] sm:$0xff] %vm7241, %v11543
        %11576 = vst.msk [vmem:[%s543 + $0xf0] sm:$0xff] %vm7241, %v11544
        %11577 = vst.msk [vmem:[%s543 + $0xf8] sm:$0xff] %vm7241, %v11545
        %s11578 = sand.u32 %s280, 1
        %s11579 = scalar_lea.sflag [#allocation5], %s11578
        %s11580 = sand.u32 %s280, 1
        %s11581 = smul.addr %s11580, 256
        %s11582 = scalar_lea.vmem [#allocation20], %s11581
        // Predicated region
        $region109: #{tpu_custom_call.1} parent=59 // pred_check
          %p11583 = pneg %p290
        $region110: #{tpu_custom_call.1} parent=59 // pred_check_branch
          %11585 = sbr.rel (%p11583) target = $region112
        $region111: #{tpu_custom_call.1} parent=59 // pred_region
          %s11586 = smul.u32 32, %s39
          %s11588 = ssub.s32 4096, 4096
          %11589 = vsyncadd %s11579, %s11588
          %s11590 = smul.addr %s38, 128
          %s11591 = sadd.s32 %s11586, %s11590
          %s11592 = smul.addr %s11591, 128
          %s11593 = scalar_lea.hbm %s10, %s11592
          %s11594 = sshll.u32 %s11582, 4
          %s11595 = int_to_ptr.vmem [resolvable:$true] %s11594
          %11600 = dma.vmem_to_hbm [thread:$0]  %s11595, 4096, %s11593, %s11579, 128, 128, 8
        $region112: #{tpu_custom_call.1} parent=59 // pred_fallthru
          _
      $region60: #{tpu_custom_call.1} parent=5 // pred_fallthru
        _
      %p11601 = scmp.le.s32.totalorder 2, %s29
      // Predicated region
      $region113: #{tpu_custom_call.1} parent=5 // pred_check
        %p11602 = pneg %p11601
      $region114: #{tpu_custom_call.1} parent=5 // pred_check_branch
        %11604 = sbr.rel (%p11602) target = $region116
      $region115: #{tpu_custom_call.1} parent=5 // pred_region
        %s11605 = ssub.s32 %s29, 2
        // Predicated region
        $region117: #{tpu_custom_call.1} parent=115 // pred_check
          %p11606 = pneg %p296
        $region118: #{tpu_custom_call.1} parent=115 // pred_check_branch
          %11608 = sbr.rel (%p11606) target = $region120
        $region119: #{tpu_custom_call.1} parent=115 // pred_region
          %s11609 = sand.u32 %s281, 1
          %s11610 = scalar_lea.sflag [#allocation5], %s11609
          %s11611 = sand.u32 %s281, 1
          %s11612 = smul.addr %s11611, 256
          %s11613 = scalar_lea.vmem [#allocation20], %s11612
          %11614 = dma.done %s11610, 4096
        $region120: #{tpu_custom_call.1} parent=115 // pred_fallthru
          _
      $region116: #{tpu_custom_call.1} parent=5 // pred_fallthru
        _
    $region6: #{tpu_custom_call.1} parent=1 // loop_footer
      %s33 = sadd.s32 1, %s29
    $region7: #{tpu_custom_call.1} parent=1 // loop_footer_branch
      %28 = sbr.rel target = $region3
    $region8: #{tpu_custom_call.1} parent=1 // loop_exit
      _
    %11615 = vsyncpa [#allocation4], 1
    %s11616 = scalar_lea.sflag [#allocation4], 1
    %11617 = vsyncpa %s11616, 1
    %11618 = vsyncpa [#allocation7], 1
    %s11619 = scalar_lea.sflag [#allocation7], 1
    %11620 = vsyncpa %s11619, 1
    %11621 = vsyncpa [#allocation10], 1
    %11622 = vsyncpa [#allocation13], 1
    %11623 = vsyncpa [#allocation16], 1
    %11624 = vsyncpa [#allocation19], 1
    %11625 = vsyncpa [#allocation5], 1
    %s11626 = scalar_lea.sflag [#allocation5], 1
    %11627 = vsyncpa %s11626, 1

</llo_original>
